<compile_context>
chip_gen: v5e
topology: v5e:2x2
jax: 0.10.0
libtpu: 0.0.40
codegen_flags: <defaults>
</compile_context>

<pallas_src>
import functools

import jax
import jax.numpy as jnp
from jax import lax
from jax.experimental import pallas as pl
from jax.experimental.pallas import tpu as pltpu

LRELU_SLOPE = 0.1
HALO_BLK = 128   # lane-aligned halo width; must cover the TOTAL receptive radius of ALL fused stages


def _res_block_kernel(xl_ref, xc_ref, xr_ref, w_ref, b_ref, o_ref, *,
                      stage_dilations, kernel, t_tile):
    """One (batch, time-tile) grid step computing the FULL ResBlock on a halo'd window.

    xl_ref : (1, F, HALO_BLK)  128 cols left of the tile (block index clamped at t == 0)
    xc_ref : (1, F, t_tile)    the tile itself
    xr_ref : (1, F, HALO_BLK)  128 cols right of the tile (clamped at the last tile)
    w_ref  : (NL, K, F, F)     per-layer per-tap weights, W[l, k, o, i] = conv_w_l[o, i, k]
    b_ref  : (NL, F, 1)        per-layer biases (float32)
    o_ref  : (1, F, t_tile)
    """
    F = xc_ref.shape[1]
    K = kernel
    center = (K - 1) // 2
    HB, TT = HALO_BLK, t_tile
    W0 = TT + 2 * HB
    t = pl.program_id(1)
    mxu_dtype = w_ref.dtype

    # Halo'd window; running activation / residual chain kept in f32, only MXU operands downcast.
    h = jnp.concatenate([xl_ref[0], xc_ref[0], xr_ref[0]], axis=1).astype(jnp.float32)

    # Global zero-padding mask: a clamped halo slab is entirely out-of-sequence exactly when the
    # tile touches that sequence edge -> 0/1 slabs from two scalar compares (no iota needed).
    ones_hb = jnp.ones((1, HB), jnp.float32)
    zeros_hb = jnp.zeros((1, HB), jnp.float32)
    left_m = jnp.where(t > 0, ones_hb, zeros_hb)
    right_m = jnp.where(t < pl.num_programs(1) - 1, ones_hb, zeros_hb)
    mask0 = jnp.concatenate([left_m, jnp.ones((1, TT), jnp.float32), right_m], axis=1)  # (1, W0)

    L = 0            # left offset of the current (shrunken) frame inside the original window
    W = W0           # current frame width
    li = 0           # flat layer index into w_ref / b_ref
    for dils in stage_dilations:                                  # ResDilatedConv stages
        res = h                                                   # stage residual (f32)
        r_stage = 0
        for d in dils:                                            # LeakyReLU -> dilated conv
            r = center * d
            a = jnp.where(h >= 0.0, h, LRELU_SLOPE * h)           # LeakyReLU(0.1), f32
            a = a * mask0[:, L:L + W]                             # re-impose global zero padding
            a = a.astype(mxu_dtype)                               # MXU feed dtype (bf16 on v6e/v7x)
            Wn = W - 2 * r                                        # VALID conv output width
            # K accumulated small matmuls; each tap is a static slice of `a` (no scratch / concat).
            acc = jnp.dot(w_ref[li, 0], a[:, 0:Wn],
                          preferred_element_type=jnp.float32)
            for k in range(1, K):
                acc = acc + jnp.dot(w_ref[li, k], a[:, k * d:k * d + Wn],
                                    preferred_element_type=jnp.float32)
            h = acc + b_ref[li]                                   # (F, Wn) + (F, 1), f32
            li += 1
            L += r
            W = Wn
            r_stage += r
        h = res[:, r_stage:r_stage + W] + h                       # ONE residual add per stage

    c0 = HB - L                                                   # center tile inside final frame
    o_ref[...] = h[:, c0:c0 + TT][None].astype(o_ref.dtype)


def res_block(series, w_taps, biases, *, stage_dilations, kernel, t_tile=1024):
    """Fused ResBlock.forward :: (B, F, T) -> (B, F, T) in a single pallas_call.

    w_taps : (NL, K, F, F) weight_norm-folded conv weights (dtype = MXU operand dtype).
    biases : (NL, F, 1) float32.
    """
    B, F, T = series.shape
    K = kernel
    HB = HALO_BLK
    NL = sum(len(d) for d in stage_dilations)
    assert K % 2 == 1, "odd kernel required for symmetric 'same' padding"
    assert w_taps.shape == (NL, K, F, F) and biases.shape == (NL, F, 1)

    # Receptive radius of ALL fused stages must fit in the halo (review correctness concern).
    receptive = ((K - 1) // 2) * sum(sum(d) for d in stage_dilations)
    assert receptive <= HB, "halo block too small for the fused kernel/dilation config"

    t_tile = min(t_tile, T)
    assert T % t_tile == 0 and t_tile % HB == 0 and t_tile >= HB
    nt = T // t_tile
    cpt = t_tile // HB            # center-tile width in halo blocks
    n_hb = T // HB                # number of halo blocks along T

    kfn = functools.partial(_res_block_kernel,
                            stage_dilations=tuple(tuple(d) for d in stage_dilations),
                            kernel=K, t_tile=t_tile)

    return pl.pallas_call(
        kfn,
        out_shape=jax.ShapeDtypeStruct((B, F, T), series.dtype),
        grid=(B, nt),
        in_specs=[
            # left halo block (clamped at the first tile; zeroed via the slab mask in-kernel)
            pl.BlockSpec((1, F, HB), lambda b, t: (b, 0, jnp.maximum(t * cpt - 1, 0))),
            # center tile
            pl.BlockSpec((1, F, t_tile), lambda b, t: (b, 0, t)),
            # right halo block (clamped at the last tile; zeroed via the slab mask in-kernel)
            pl.BlockSpec((1, F, HB), lambda b, t: (b, 0, jnp.minimum((t + 1) * cpt, n_hb - 1))),
            # per-layer per-tap weights / biases (loaded whole, reused every grid step)
            pl.BlockSpec((NL, K, F, F), lambda b, t: (0, 0, 0, 0)),
            pl.BlockSpec((NL, F, 1), lambda b, t: (0, 0, 0)),
        ],
        out_specs=pl.BlockSpec((1, F, t_tile), lambda b, t: (b, 0, t)),
        compiler_params=pltpu.CompilerParams(
            dimension_semantics=("parallel", "parallel")),
    )(series, series, series, w_taps, biases)


def init_res_block_params(key, feat, kernel, stage_dilations, *, mxu_dtype=jnp.float32):
    """Deterministic weight_norm-style params folded into effective conv weights, per-tap layout."""
    ws_eff, bs = [], []
    for dils in stage_dilations:
        for _ in dils:
            key, kv, kg, kb = jax.random.split(key, 4)
            v = jax.random.normal(kv, (feat, feat, kernel), jnp.float32) * 0.05   # (out, in, K)
            g = 1.0 + 0.1 * jax.random.normal(kg, (feat,), jnp.float32)
            norm = jnp.sqrt(jnp.sum(v * v, axis=(1, 2), keepdims=True) + 1e-12)
            ws_eff.append(g[:, None, None] * v / norm)                            # weight_norm folded
            bs.append(0.01 * jax.random.normal(kb, (feat,), jnp.float32))
    # per-tap layout: w_taps[l, k, o, i] = w_eff_l[o, i, k]
    w_taps = jnp.stack([jnp.transpose(w, (2, 0, 1)) for w in ws_eff]).astype(mxu_dtype)
    biases = jnp.stack(bs)[:, :, None]                                            # (NL, F, 1) f32
    return key, ws_eff, bs, w_taps, biases


def _res_block_ref(x, ws_eff, bs, *, stage_dilations):
    """Pure-JAX reference of ResBlock.forward (f32, HIGHEST precision)."""
    y = x
    li = 0
    for dils in stage_dilations:
        h = y
        for d in dils:
            h = jnp.where(h >= 0, h, LRELU_SLOPE * h)
            h = lax.conv_general_dilated(
                h, ws_eff[li], window_strides=(1,), padding="SAME",
                rhs_dilation=(d,), dimension_numbers=("NCH", "OIH", "NCH"),
                precision=lax.Precision.HIGHEST,
            ) + bs[li][None, :, None]
            li += 1
        y = y + h
    return y


if __name__ == "__main__":
    B, FEAT, T = 2, 16, 4096
    KERNEL = 3
    STAGE_DILATIONS = ((1, 3, 5), (1, 3, 5))   # ResBlock with two ResDilatedConv stages
    T_TILE = 1024                              # grid (2, 4): 8 parallel steps, halo overhead ~12%

    key = jax.random.PRNGKey(0)
    key, kx = jax.random.split(key)
    x = jax.random.normal(kx, (B, FEAT, T), jnp.float32)       # (B, Feat, T) like PyTorch

    key, ws_eff, bs, w_taps_f32, biases = init_res_block_params(
        key, FEAT, KERNEL, STAGE_DILATIONS, mxu_dtype=jnp.float32)

    # f32 path: checked tightly against the HIGHEST-precision reference.
    y = res_block(x, w_taps_f32, biases, stage_dilations=STAGE_DILATIONS,
                  kernel=KERNEL, t_tile=T_TILE)
    y = jax.block_until_ready(y)

    y_ref = _res_block_ref(x, ws_eff, bs, stage_dilations=STAGE_DILATIONS)
    assert y.shape == x.shape
    err = jnp.max(jnp.abs(y - y_ref))
    assert jnp.allclose(y, y_ref, atol=2e-3, rtol=2e-3), f"f32 max abs diff {err}"

    # bf16 MXU-feed path (v6e/v7x recommendation): bf16 inputs + weights, f32 accumulators and
    # residual chain inside the kernel; checked loosely against the f32 reference.
    y_bf16 = res_block(x.astype(jnp.bfloat16), w_taps_f32.astype(jnp.bfloat16), biases,
                       stage_dilations=STAGE_DILATIONS, kernel=KERNEL, t_tile=T_TILE)
    y_bf16 = jax.block_until_ready(y_bf16)
    err_bf = jnp.max(jnp.abs(y_bf16.astype(jnp.float32) - y_ref))
    assert jnp.allclose(y_bf16.astype(jnp.float32), y_ref, atol=1e-1, rtol=1e-1), \
        f"bf16 max abs diff {err_bf}"

    print("KERNEL_OK")
</pallas_src>

<mosaic_0001>
module attributes {stable_mosaic.version = 11 : i64} {
  func.func @_res_block_kernel(%arg0: i32, %arg1: i32, %arg2: memref<1x16x128xf32, #tpu.memory_space<vmem>>, %arg3: memref<1x16x1024xf32, #tpu.memory_space<vmem>>, %arg4: memref<1x16x128xf32, #tpu.memory_space<vmem>>, %arg5: memref<6x3x16x16xf32, #tpu.memory_space<vmem>>, %arg6: memref<6x16x1xf32, #tpu.memory_space<vmem>>, %arg7: memref<1x16x1024xf32, #tpu.memory_space<vmem>>) attributes {dimension_semantics = [#tpu.dimension_semantics<parallel>, #tpu.dimension_semantics<parallel>], iteration_bounds = array<i64: 2, 4>, scalar_prefetch = 0 : i64, scratch_operands = 0 : i64, tpu.core_type = #tpu.core_type<tc>, window_params = [{transform_indices = @transform_0, window_bounds = array<i64: 1, 16, 128>}, {transform_indices = @transform_1, window_bounds = array<i64: 1, 16, 1024>}, {transform_indices = @transform_2, window_bounds = array<i64: 1, 16, 128>}, {pipeline_mode = #tpu.pipeline_mode<synchronous>, transform_indices = @transform_3, window_bounds = array<i64: 6, 3, 16, 16>}, {pipeline_mode = #tpu.pipeline_mode<synchronous>, transform_indices = @transform_4, window_bounds = array<i64: 6, 16, 1>}, {transform_indices = @transform_5, window_bounds = array<i64: 1, 16, 1024>}]} {
    %c0 = arith.constant 0 : index
    %c0_0 = arith.constant 0 : index
    %c0_1 = arith.constant 0 : index
    %0 = vector.load %arg2[%c0, %c0_0, %c0_1] : memref<1x16x128xf32, #tpu.memory_space<vmem>>, vector<1x16x128xf32>
    %1 = vector.shape_cast %0 : vector<1x16x128xf32> to vector<16x128xf32>
    %c0_2 = arith.constant 0 : index
    %c0_3 = arith.constant 0 : index
    %c0_4 = arith.constant 0 : index
    %2 = vector.load %arg3[%c0_2, %c0_3, %c0_4] : memref<1x16x1024xf32, #tpu.memory_space<vmem>>, vector<1x16x1024xf32>
    %3 = vector.shape_cast %2 : vector<1x16x1024xf32> to vector<16x1024xf32>
    %c0_5 = arith.constant 0 : index
    %c0_6 = arith.constant 0 : index
    %c0_7 = arith.constant 0 : index
    %4 = vector.load %arg4[%c0_5, %c0_6, %c0_7] : memref<1x16x128xf32, #tpu.memory_space<vmem>>, vector<1x16x128xf32>
    %5 = vector.shape_cast %4 : vector<1x16x128xf32> to vector<16x128xf32>
    %6 = tpu.concatenate %1, %3, %5 in 1 : vector<16x128xf32>, vector<16x1024xf32>, vector<16x128xf32> -> vector<16x1280xf32>
    %cst = arith.constant 1.000000e+00 : f32
    %7 = vector.broadcast %cst : f32 to vector<1x128xf32>
    %cst_8 = arith.constant 0.000000e+00 : f32
    %8 = vector.broadcast %cst_8 : f32 to vector<1x128xf32>
    %c0_i32 = arith.constant 0 : i32
    %9 = arith.cmpi sgt, %arg1, %c0_i32 : i32
    %10 = arith.select %9, %7, %8 : vector<1x128xf32>
    %c3_i32 = arith.constant 3 : i32
    %11 = arith.cmpi slt, %arg1, %c3_i32 : i32
    %12 = arith.select %11, %7, %8 : vector<1x128xf32>
    %cst_9 = arith.constant 1.000000e+00 : f32
    %13 = vector.broadcast %cst_9 : f32 to vector<1x1024xf32>
    %14 = tpu.concatenate %10, %13, %12 in 1 : vector<1x128xf32>, vector<1x1024xf32>, vector<1x128xf32> -> vector<1x1280xf32>
    %cst_10 = arith.constant 0.000000e+00 : f32
    %15 = vector.broadcast %cst_10 : f32 to vector<16x1280xf32>
    %16 = arith.cmpf oge, %6, %15 : vector<16x1280xf32>
    %cst_11 = arith.constant 1.000000e-01 : f32
    %17 = vector.broadcast %cst_11 : f32 to vector<16x1280xf32>
    %18 = arith.mulf %17, %6 : vector<16x1280xf32>
    %19 = arith.select %16, %6, %18 : vector<16x1280xi1>, vector<16x1280xf32>
    %20 = vector.broadcast %14 : vector<1x1280xf32> to vector<16x1280xf32>
    %21 = arith.mulf %19, %20 : vector<16x1280xf32>
    %c0_12 = arith.constant 0 : index
    %c0_13 = arith.constant 0 : index
    %c0_14 = arith.constant 0 : index
    %c0_15 = arith.constant 0 : index
    %22 = vector.load %arg5[%c0_12, %c0_13, %c0_14, %c0_15] : memref<6x3x16x16xf32, #tpu.memory_space<vmem>>, vector<1x1x16x16xf32>
    %23 = vector.shape_cast %22 : vector<1x1x16x16xf32> to vector<16x16xf32>
    %24 = vector.extract_strided_slice %21 {offsets = [0, 0], sizes = [16, 1278], strides = [1, 1]} : vector<16x1280xf32> to vector<16x1278xf32>
    %cst_16 = arith.constant dense<0.000000e+00> : vector<16x1278xf32>
    %25 = tpu.matmul %23, %24, %cst_16 {dimension_numbers = #tpu.dot_dimension_numbers<[1], [0], [0], [1], [0, 0, 1, 1], [], []>} : vector<16x16xf32>, vector<16x1278xf32>, vector<16x1278xf32> -> vector<16x1278xf32>
    %c0_17 = arith.constant 0 : index
    %c1 = arith.constant 1 : index
    %c0_18 = arith.constant 0 : index
    %c0_19 = arith.constant 0 : index
    %26 = vector.load %arg5[%c0_17, %c1, %c0_18, %c0_19] : memref<6x3x16x16xf32, #tpu.memory_space<vmem>>, vector<1x1x16x16xf32>
    %27 = vector.shape_cast %26 : vector<1x1x16x16xf32> to vector<16x16xf32>
    %28 = vector.extract_strided_slice %21 {offsets = [0, 1], sizes = [16, 1278], strides = [1, 1]} : vector<16x1280xf32> to vector<16x1278xf32>
    %cst_20 = arith.constant dense<0.000000e+00> : vector<16x1278xf32>
    %29 = tpu.matmul %27, %28, %cst_20 {dimension_numbers = #tpu.dot_dimension_numbers<[1], [0], [0], [1], [0, 0, 1, 1], [], []>} : vector<16x16xf32>, vector<16x1278xf32>, vector<16x1278xf32> -> vector<16x1278xf32>
    %30 = arith.addf %25, %29 : vector<16x1278xf32>
    %c0_21 = arith.constant 0 : index
    %c2 = arith.constant 2 : index
    %c0_22 = arith.constant 0 : index
    %c0_23 = arith.constant 0 : index
    %31 = vector.load %arg5[%c0_21, %c2, %c0_22, %c0_23] : memref<6x3x16x16xf32, #tpu.memory_space<vmem>>, vector<1x1x16x16xf32>
    %32 = vector.shape_cast %31 : vector<1x1x16x16xf32> to vector<16x16xf32>
    %33 = vector.extract_strided_slice %21 {offsets = [0, 2], sizes = [16, 1278], strides = [1, 1]} : vector<16x1280xf32> to vector<16x1278xf32>
    %cst_24 = arith.constant dense<0.000000e+00> : vector<16x1278xf32>
    %34 = tpu.matmul %32, %33, %cst_24 {dimension_numbers = #tpu.dot_dimension_numbers<[1], [0], [0], [1], [0, 0, 1, 1], [], []>} : vector<16x16xf32>, vector<16x1278xf32>, vector<16x1278xf32> -> vector<16x1278xf32>
    %35 = arith.addf %30, %34 : vector<16x1278xf32>
    %c0_25 = arith.constant 0 : index
    %c0_26 = arith.constant 0 : index
    %c0_27 = arith.constant 0 : index
    %36 = vector.load %arg6[%c0_25, %c0_26, %c0_27] : memref<6x16x1xf32, #tpu.memory_space<vmem>>, vector<1x16x1xf32>
    %37 = vector.shape_cast %36 : vector<1x16x1xf32> to vector<16x1xf32>
    %38 = vector.broadcast %37 : vector<16x1xf32> to vector<16x1278xf32>
    %39 = arith.addf %35, %38 : vector<16x1278xf32>
    %cst_28 = arith.constant 0.000000e+00 : f32
    %40 = vector.broadcast %cst_28 : f32 to vector<16x1278xf32>
    %41 = arith.cmpf oge, %39, %40 : vector<16x1278xf32>
    %cst_29 = arith.constant 1.000000e-01 : f32
    %42 = vector.broadcast %cst_29 : f32 to vector<16x1278xf32>
    %43 = arith.mulf %42, %39 : vector<16x1278xf32>
    %44 = arith.select %41, %39, %43 : vector<16x1278xi1>, vector<16x1278xf32>
    %45 = vector.extract_strided_slice %14 {offsets = [0, 1], sizes = [1, 1278], strides = [1, 1]} : vector<1x1280xf32> to vector<1x1278xf32>
    %46 = vector.broadcast %45 : vector<1x1278xf32> to vector<16x1278xf32>
    %47 = arith.mulf %44, %46 : vector<16x1278xf32>
    %c1_30 = arith.constant 1 : index
    %c0_31 = arith.constant 0 : index
    %c0_32 = arith.constant 0 : index
    %c0_33 = arith.constant 0 : index
    %48 = vector.load %arg5[%c1_30, %c0_31, %c0_32, %c0_33] : memref<6x3x16x16xf32, #tpu.memory_space<vmem>>, vector<1x1x16x16xf32>
    %49 = vector.shape_cast %48 : vector<1x1x16x16xf32> to vector<16x16xf32>
    %50 = vector.extract_strided_slice %47 {offsets = [0, 0], sizes = [16, 1272], strides = [1, 1]} : vector<16x1278xf32> to vector<16x1272xf32>
    %cst_34 = arith.constant dense<0.000000e+00> : vector<16x1272xf32>
    %51 = tpu.matmul %49, %50, %cst_34 {dimension_numbers = #tpu.dot_dimension_numbers<[1], [0], [0], [1], [0, 0, 1, 1], [], []>} : vector<16x16xf32>, vector<16x1272xf32>, vector<16x1272xf32> -> vector<16x1272xf32>
    %c1_35 = arith.constant 1 : index
    %c1_36 = arith.constant 1 : index
    %c0_37 = arith.constant 0 : index
    %c0_38 = arith.constant 0 : index
    %52 = vector.load %arg5[%c1_35, %c1_36, %c0_37, %c0_38] : memref<6x3x16x16xf32, #tpu.memory_space<vmem>>, vector<1x1x16x16xf32>
    %53 = vector.shape_cast %52 : vector<1x1x16x16xf32> to vector<16x16xf32>
    %54 = vector.extract_strided_slice %47 {offsets = [0, 3], sizes = [16, 1272], strides = [1, 1]} : vector<16x1278xf32> to vector<16x1272xf32>
    %cst_39 = arith.constant dense<0.000000e+00> : vector<16x1272xf32>
    %55 = tpu.matmul %53, %54, %cst_39 {dimension_numbers = #tpu.dot_dimension_numbers<[1], [0], [0], [1], [0, 0, 1, 1], [], []>} : vector<16x16xf32>, vector<16x1272xf32>, vector<16x1272xf32> -> vector<16x1272xf32>
    %56 = arith.addf %51, %55 : vector<16x1272xf32>
    %c1_40 = arith.constant 1 : index
    %c2_41 = arith.constant 2 : index
    %c0_42 = arith.constant 0 : index
    %c0_43 = arith.constant 0 : index
    %57 = vector.load %arg5[%c1_40, %c2_41, %c0_42, %c0_43] : memref<6x3x16x16xf32, #tpu.memory_space<vmem>>, vector<1x1x16x16xf32>
    %58 = vector.shape_cast %57 : vector<1x1x16x16xf32> to vector<16x16xf32>
    %59 = vector.extract_strided_slice %47 {offsets = [0, 6], sizes = [16, 1272], strides = [1, 1]} : vector<16x1278xf32> to vector<16x1272xf32>
    %cst_44 = arith.constant dense<0.000000e+00> : vector<16x1272xf32>
    %60 = tpu.matmul %58, %59, %cst_44 {dimension_numbers = #tpu.dot_dimension_numbers<[1], [0], [0], [1], [0, 0, 1, 1], [], []>} : vector<16x16xf32>, vector<16x1272xf32>, vector<16x1272xf32> -> vector<16x1272xf32>
    %61 = arith.addf %56, %60 : vector<16x1272xf32>
    %c1_45 = arith.constant 1 : index
    %c0_46 = arith.constant 0 : index
    %c0_47 = arith.constant 0 : index
    %62 = vector.load %arg6[%c1_45, %c0_46, %c0_47] : memref<6x16x1xf32, #tpu.memory_space<vmem>>, vector<1x16x1xf32>
    %63 = vector.shape_cast %62 : vector<1x16x1xf32> to vector<16x1xf32>
    %64 = vector.broadcast %63 : vector<16x1xf32> to vector<16x1272xf32>
    %65 = arith.addf %61, %64 : vector<16x1272xf32>
    %cst_48 = arith.constant 0.000000e+00 : f32
    %66 = vector.broadcast %cst_48 : f32 to vector<16x1272xf32>
    %67 = arith.cmpf oge, %65, %66 : vector<16x1272xf32>
    %cst_49 = arith.constant 1.000000e-01 : f32
    %68 = vector.broadcast %cst_49 : f32 to vector<16x1272xf32>
    %69 = arith.mulf %68, %65 : vector<16x1272xf32>
    %70 = arith.select %67, %65, %69 : vector<16x1272xi1>, vector<16x1272xf32>
    %71 = vector.extract_strided_slice %14 {offsets = [0, 4], sizes = [1, 1272], strides = [1, 1]} : vector<1x1280xf32> to vector<1x1272xf32>
    %72 = vector.broadcast %71 : vector<1x1272xf32> to vector<16x1272xf32>
    %73 = arith.mulf %70, %72 : vector<16x1272xf32>
    %c2_50 = arith.constant 2 : index
    %c0_51 = arith.constant 0 : index
    %c0_52 = arith.constant 0 : index
    %c0_53 = arith.constant 0 : index
    %74 = vector.load %arg5[%c2_50, %c0_51, %c0_52, %c0_53] : memref<6x3x16x16xf32, #tpu.memory_space<vmem>>, vector<1x1x16x16xf32>
    %75 = vector.shape_cast %74 : vector<1x1x16x16xf32> to vector<16x16xf32>
    %76 = vector.extract_strided_slice %73 {offsets = [0, 0], sizes = [16, 1262], strides = [1, 1]} : vector<16x1272xf32> to vector<16x1262xf32>
    %cst_54 = arith.constant dense<0.000000e+00> : vector<16x1262xf32>
    %77 = tpu.matmul %75, %76, %cst_54 {dimension_numbers = #tpu.dot_dimension_numbers<[1], [0], [0], [1], [0, 0, 1, 1], [], []>} : vector<16x16xf32>, vector<16x1262xf32>, vector<16x1262xf32> -> vector<16x1262xf32>
    %c2_55 = arith.constant 2 : index
    %c1_56 = arith.constant 1 : index
    %c0_57 = arith.constant 0 : index
    %c0_58 = arith.constant 0 : index
    %78 = vector.load %arg5[%c2_55, %c1_56, %c0_57, %c0_58] : memref<6x3x16x16xf32, #tpu.memory_space<vmem>>, vector<1x1x16x16xf32>
    %79 = vector.shape_cast %78 : vector<1x1x16x16xf32> to vector<16x16xf32>
    %80 = vector.extract_strided_slice %73 {offsets = [0, 5], sizes = [16, 1262], strides = [1, 1]} : vector<16x1272xf32> to vector<16x1262xf32>
    %cst_59 = arith.constant dense<0.000000e+00> : vector<16x1262xf32>
    %81 = tpu.matmul %79, %80, %cst_59 {dimension_numbers = #tpu.dot_dimension_numbers<[1], [0], [0], [1], [0, 0, 1, 1], [], []>} : vector<16x16xf32>, vector<16x1262xf32>, vector<16x1262xf32> -> vector<16x1262xf32>
    %82 = arith.addf %77, %81 : vector<16x1262xf32>
    %c2_60 = arith.constant 2 : index
    %c2_61 = arith.constant 2 : index
    %c0_62 = arith.constant 0 : index
    %c0_63 = arith.constant 0 : index
    %83 = vector.load %arg5[%c2_60, %c2_61, %c0_62, %c0_63] : memref<6x3x16x16xf32, #tpu.memory_space<vmem>>, vector<1x1x16x16xf32>
    %84 = vector.shape_cast %83 : vector<1x1x16x16xf32> to vector<16x16xf32>
    %85 = vector.extract_strided_slice %73 {offsets = [0, 10], sizes = [16, 1262], strides = [1, 1]} : vector<16x1272xf32> to vector<16x1262xf32>
    %cst_64 = arith.constant dense<0.000000e+00> : vector<16x1262xf32>
    %86 = tpu.matmul %84, %85, %cst_64 {dimension_numbers = #tpu.dot_dimension_numbers<[1], [0], [0], [1], [0, 0, 1, 1], [], []>} : vector<16x16xf32>, vector<16x1262xf32>, vector<16x1262xf32> -> vector<16x1262xf32>
    %87 = arith.addf %82, %86 : vector<16x1262xf32>
    %c2_65 = arith.constant 2 : index
    %c0_66 = arith.constant 0 : index
    %c0_67 = arith.constant 0 : index
    %88 = vector.load %arg6[%c2_65, %c0_66, %c0_67] : memref<6x16x1xf32, #tpu.memory_space<vmem>>, vector<1x16x1xf32>
    %89 = vector.shape_cast %88 : vector<1x16x1xf32> to vector<16x1xf32>
    %90 = vector.broadcast %89 : vector<16x1xf32> to vector<16x1262xf32>
    %91 = arith.addf %87, %90 : vector<16x1262xf32>
    %92 = vector.extract_strided_slice %6 {offsets = [0, 9], sizes = [16, 1262], strides = [1, 1]} : vector<16x1280xf32> to vector<16x1262xf32>
    %93 = arith.addf %92, %91 : vector<16x1262xf32>
    %cst_68 = arith.constant 0.000000e+00 : f32
    %94 = vector.broadcast %cst_68 : f32 to vector<16x1262xf32>
    %95 = arith.cmpf oge, %93, %94 : vector<16x1262xf32>
    %cst_69 = arith.constant 1.000000e-01 : f32
    %96 = vector.broadcast %cst_69 : f32 to vector<16x1262xf32>
    %97 = arith.mulf %96, %93 : vector<16x1262xf32>
    %98 = arith.select %95, %93, %97 : vector<16x1262xi1>, vector<16x1262xf32>
    %99 = vector.extract_strided_slice %14 {offsets = [0, 9], sizes = [1, 1262], strides = [1, 1]} : vector<1x1280xf32> to vector<1x1262xf32>
    %100 = vector.broadcast %99 : vector<1x1262xf32> to vector<16x1262xf32>
    %101 = arith.mulf %98, %100 : vector<16x1262xf32>
    %c3 = arith.constant 3 : index
    %c0_70 = arith.constant 0 : index
    %c0_71 = arith.constant 0 : index
    %c0_72 = arith.constant 0 : index
    %102 = vector.load %arg5[%c3, %c0_70, %c0_71, %c0_72] : memref<6x3x16x16xf32, #tpu.memory_space<vmem>>, vector<1x1x16x16xf32>
    %103 = vector.shape_cast %102 : vector<1x1x16x16xf32> to vector<16x16xf32>
    %104 = vector.extract_strided_slice %101 {offsets = [0, 0], sizes = [16, 1260], strides = [1, 1]} : vector<16x1262xf32> to vector<16x1260xf32>
    %cst_73 = arith.constant dense<0.000000e+00> : vector<16x1260xf32>
    %105 = tpu.matmul %103, %104, %cst_73 {dimension_numbers = #tpu.dot_dimension_numbers<[1], [0], [0], [1], [0, 0, 1, 1], [], []>} : vector<16x16xf32>, vector<16x1260xf32>, vector<16x1260xf32> -> vector<16x1260xf32>
    %c3_74 = arith.constant 3 : index
    %c1_75 = arith.constant 1 : index
    %c0_76 = arith.constant 0 : index
    %c0_77 = arith.constant 0 : index
    %106 = vector.load %arg5[%c3_74, %c1_75, %c0_76, %c0_77] : memref<6x3x16x16xf32, #tpu.memory_space<vmem>>, vector<1x1x16x16xf32>
    %107 = vector.shape_cast %106 : vector<1x1x16x16xf32> to vector<16x16xf32>
    %108 = vector.extract_strided_slice %101 {offsets = [0, 1], sizes = [16, 1260], strides = [1, 1]} : vector<16x1262xf32> to vector<16x1260xf32>
    %cst_78 = arith.constant dense<0.000000e+00> : vector<16x1260xf32>
    %109 = tpu.matmul %107, %108, %cst_78 {dimension_numbers = #tpu.dot_dimension_numbers<[1], [0], [0], [1], [0, 0, 1, 1], [], []>} : vector<16x16xf32>, vector<16x1260xf32>, vector<16x1260xf32> -> vector<16x1260xf32>
    %110 = arith.addf %105, %109 : vector<16x1260xf32>
    %c3_79 = arith.constant 3 : index
    %c2_80 = arith.constant 2 : index
    %c0_81 = arith.constant 0 : index
    %c0_82 = arith.constant 0 : index
    %111 = vector.load %arg5[%c3_79, %c2_80, %c0_81, %c0_82] : memref<6x3x16x16xf32, #tpu.memory_space<vmem>>, vector<1x1x16x16xf32>
    %112 = vector.shape_cast %111 : vector<1x1x16x16xf32> to vector<16x16xf32>
    %113 = vector.extract_strided_slice %101 {offsets = [0, 2], sizes = [16, 1260], strides = [1, 1]} : vector<16x1262xf32> to vector<16x1260xf32>
    %cst_83 = arith.constant dense<0.000000e+00> : vector<16x1260xf32>
    %114 = tpu.matmul %112, %113, %cst_83 {dimension_numbers = #tpu.dot_dimension_numbers<[1], [0], [0], [1], [0, 0, 1, 1], [], []>} : vector<16x16xf32>, vector<16x1260xf32>, vector<16x1260xf32> -> vector<16x1260xf32>
    %115 = arith.addf %110, %114 : vector<16x1260xf32>
    %c3_84 = arith.constant 3 : index
    %c0_85 = arith.constant 0 : index
    %c0_86 = arith.constant 0 : index
    %116 = vector.load %arg6[%c3_84, %c0_85, %c0_86] : memref<6x16x1xf32, #tpu.memory_space<vmem>>, vector<1x16x1xf32>
    %117 = vector.shape_cast %116 : vector<1x16x1xf32> to vector<16x1xf32>
    %118 = vector.broadcast %117 : vector<16x1xf32> to vector<16x1260xf32>
    %119 = arith.addf %115, %118 : vector<16x1260xf32>
    %cst_87 = arith.constant 0.000000e+00 : f32
    %120 = vector.broadcast %cst_87 : f32 to vector<16x1260xf32>
    %121 = arith.cmpf oge, %119, %120 : vector<16x1260xf32>
    %cst_88 = arith.constant 1.000000e-01 : f32
    %122 = vector.broadcast %cst_88 : f32 to vector<16x1260xf32>
    %123 = arith.mulf %122, %119 : vector<16x1260xf32>
    %124 = arith.select %121, %119, %123 : vector<16x1260xi1>, vector<16x1260xf32>
    %125 = vector.extract_strided_slice %14 {offsets = [0, 10], sizes = [1, 1260], strides = [1, 1]} : vector<1x1280xf32> to vector<1x1260xf32>
    %126 = vector.broadcast %125 : vector<1x1260xf32> to vector<16x1260xf32>
    %127 = arith.mulf %124, %126 : vector<16x1260xf32>
    %c4 = arith.constant 4 : index
    %c0_89 = arith.constant 0 : index
    %c0_90 = arith.constant 0 : index
    %c0_91 = arith.constant 0 : index
    %128 = vector.load %arg5[%c4, %c0_89, %c0_90, %c0_91] : memref<6x3x16x16xf32, #tpu.memory_space<vmem>>, vector<1x1x16x16xf32>
    %129 = vector.shape_cast %128 : vector<1x1x16x16xf32> to vector<16x16xf32>
    %130 = vector.extract_strided_slice %127 {offsets = [0, 0], sizes = [16, 1254], strides = [1, 1]} : vector<16x1260xf32> to vector<16x1254xf32>
    %cst_92 = arith.constant dense<0.000000e+00> : vector<16x1254xf32>
    %131 = tpu.matmul %129, %130, %cst_92 {dimension_numbers = #tpu.dot_dimension_numbers<[1], [0], [0], [1], [0, 0, 1, 1], [], []>} : vector<16x16xf32>, vector<16x1254xf32>, vector<16x1254xf32> -> vector<16x1254xf32>
    %c4_93 = arith.constant 4 : index
    %c1_94 = arith.constant 1 : index
    %c0_95 = arith.constant 0 : index
    %c0_96 = arith.constant 0 : index
    %132 = vector.load %arg5[%c4_93, %c1_94, %c0_95, %c0_96] : memref<6x3x16x16xf32, #tpu.memory_space<vmem>>, vector<1x1x16x16xf32>
    %133 = vector.shape_cast %132 : vector<1x1x16x16xf32> to vector<16x16xf32>
    %134 = vector.extract_strided_slice %127 {offsets = [0, 3], sizes = [16, 1254], strides = [1, 1]} : vector<16x1260xf32> to vector<16x1254xf32>
    %cst_97 = arith.constant dense<0.000000e+00> : vector<16x1254xf32>
    %135 = tpu.matmul %133, %134, %cst_97 {dimension_numbers = #tpu.dot_dimension_numbers<[1], [0], [0], [1], [0, 0, 1, 1], [], []>} : vector<16x16xf32>, vector<16x1254xf32>, vector<16x1254xf32> -> vector<16x1254xf32>
    %136 = arith.addf %131, %135 : vector<16x1254xf32>
    %c4_98 = arith.constant 4 : index
    %c2_99 = arith.constant 2 : index
    %c0_100 = arith.constant 0 : index
    %c0_101 = arith.constant 0 : index
    %137 = vector.load %arg5[%c4_98, %c2_99, %c0_100, %c0_101] : memref<6x3x16x16xf32, #tpu.memory_space<vmem>>, vector<1x1x16x16xf32>
    %138 = vector.shape_cast %137 : vector<1x1x16x16xf32> to vector<16x16xf32>
    %139 = vector.extract_strided_slice %127 {offsets = [0, 6], sizes = [16, 1254], strides = [1, 1]} : vector<16x1260xf32> to vector<16x1254xf32>
    %cst_102 = arith.constant dense<0.000000e+00> : vector<16x1254xf32>
    %140 = tpu.matmul %138, %139, %cst_102 {dimension_numbers = #tpu.dot_dimension_numbers<[1], [0], [0], [1], [0, 0, 1, 1], [], []>} : vector<16x16xf32>, vector<16x1254xf32>, vector<16x1254xf32> -> vector<16x1254xf32>
    %141 = arith.addf %136, %140 : vector<16x1254xf32>
    %c4_103 = arith.constant 4 : index
    %c0_104 = arith.constant 0 : index
    %c0_105 = arith.constant 0 : index
    %142 = vector.load %arg6[%c4_103, %c0_104, %c0_105] : memref<6x16x1xf32, #tpu.memory_space<vmem>>, vector<1x16x1xf32>
    %143 = vector.shape_cast %142 : vector<1x16x1xf32> to vector<16x1xf32>
    %144 = vector.broadcast %143 : vector<16x1xf32> to vector<16x1254xf32>
    %145 = arith.addf %141, %144 : vector<16x1254xf32>
    %cst_106 = arith.constant 0.000000e+00 : f32
    %146 = vector.broadcast %cst_106 : f32 to vector<16x1254xf32>
    %147 = arith.cmpf oge, %145, %146 : vector<16x1254xf32>
    %cst_107 = arith.constant 1.000000e-01 : f32
    %148 = vector.broadcast %cst_107 : f32 to vector<16x1254xf32>
    %149 = arith.mulf %148, %145 : vector<16x1254xf32>
    %150 = arith.select %147, %145, %149 : vector<16x1254xi1>, vector<16x1254xf32>
    %151 = vector.extract_strided_slice %14 {offsets = [0, 13], sizes = [1, 1254], strides = [1, 1]} : vector<1x1280xf32> to vector<1x1254xf32>
    %152 = vector.broadcast %151 : vector<1x1254xf32> to vector<16x1254xf32>
    %153 = arith.mulf %150, %152 : vector<16x1254xf32>
    %c5 = arith.constant 5 : index
    %c0_108 = arith.constant 0 : index
    %c0_109 = arith.constant 0 : index
    %c0_110 = arith.constant 0 : index
    %154 = vector.load %arg5[%c5, %c0_108, %c0_109, %c0_110] : memref<6x3x16x16xf32, #tpu.memory_space<vmem>>, vector<1x1x16x16xf32>
    %155 = vector.shape_cast %154 : vector<1x1x16x16xf32> to vector<16x16xf32>
    %156 = vector.extract_strided_slice %153 {offsets = [0, 0], sizes = [16, 1244], strides = [1, 1]} : vector<16x1254xf32> to vector<16x1244xf32>
    %cst_111 = arith.constant dense<0.000000e+00> : vector<16x1244xf32>
    %157 = tpu.matmul %155, %156, %cst_111 {dimension_numbers = #tpu.dot_dimension_numbers<[1], [0], [0], [1], [0, 0, 1, 1], [], []>} : vector<16x16xf32>, vector<16x1244xf32>, vector<16x1244xf32> -> vector<16x1244xf32>
    %c5_112 = arith.constant 5 : index
    %c1_113 = arith.constant 1 : index
    %c0_114 = arith.constant 0 : index
    %c0_115 = arith.constant 0 : index
    %158 = vector.load %arg5[%c5_112, %c1_113, %c0_114, %c0_115] : memref<6x3x16x16xf32, #tpu.memory_space<vmem>>, vector<1x1x16x16xf32>
    %159 = vector.shape_cast %158 : vector<1x1x16x16xf32> to vector<16x16xf32>
    %160 = vector.extract_strided_slice %153 {offsets = [0, 5], sizes = [16, 1244], strides = [1, 1]} : vector<16x1254xf32> to vector<16x1244xf32>
    %cst_116 = arith.constant dense<0.000000e+00> : vector<16x1244xf32>
    %161 = tpu.matmul %159, %160, %cst_116 {dimension_numbers = #tpu.dot_dimension_numbers<[1], [0], [0], [1], [0, 0, 1, 1], [], []>} : vector<16x16xf32>, vector<16x1244xf32>, vector<16x1244xf32> -> vector<16x1244xf32>
    %162 = arith.addf %157, %161 : vector<16x1244xf32>
    %c5_117 = arith.constant 5 : index
    %c2_118 = arith.constant 2 : index
    %c0_119 = arith.constant 0 : index
    %c0_120 = arith.constant 0 : index
    %163 = vector.load %arg5[%c5_117, %c2_118, %c0_119, %c0_120] : memref<6x3x16x16xf32, #tpu.memory_space<vmem>>, vector<1x1x16x16xf32>
    %164 = vector.shape_cast %163 : vector<1x1x16x16xf32> to vector<16x16xf32>
    %165 = vector.extract_strided_slice %153 {offsets = [0, 10], sizes = [16, 1244], strides = [1, 1]} : vector<16x1254xf32> to vector<16x1244xf32>
    %cst_121 = arith.constant dense<0.000000e+00> : vector<16x1244xf32>
    %166 = tpu.matmul %164, %165, %cst_121 {dimension_numbers = #tpu.dot_dimension_numbers<[1], [0], [0], [1], [0, 0, 1, 1], [], []>} : vector<16x16xf32>, vector<16x1244xf32>, vector<16x1244xf32> -> vector<16x1244xf32>
    %167 = arith.addf %162, %166 : vector<16x1244xf32>
    %c5_122 = arith.constant 5 : index
    %c0_123 = arith.constant 0 : index
    %c0_124 = arith.constant 0 : index
    %168 = vector.load %arg6[%c5_122, %c0_123, %c0_124] : memref<6x16x1xf32, #tpu.memory_space<vmem>>, vector<1x16x1xf32>
    %169 = vector.shape_cast %168 : vector<1x16x1xf32> to vector<16x1xf32>
    %170 = vector.broadcast %169 : vector<16x1xf32> to vector<16x1244xf32>
    %171 = arith.addf %167, %170 : vector<16x1244xf32>
    %172 = vector.extract_strided_slice %93 {offsets = [0, 9], sizes = [16, 1244], strides = [1, 1]} : vector<16x1262xf32> to vector<16x1244xf32>
    %173 = arith.addf %172, %171 : vector<16x1244xf32>
    %174 = vector.extract_strided_slice %173 {offsets = [0, 110], sizes = [16, 1024], strides = [1, 1]} : vector<16x1244xf32> to vector<16x1024xf32>
    %175 = vector.shape_cast %174 : vector<16x1024xf32> to vector<1x16x1024xf32>
    %c0_125 = arith.constant 0 : index
    %c0_126 = arith.constant 0 : index
    %c0_127 = arith.constant 0 : index
    %176 = vector.load %arg7[%c0_125, %c0_126, %c0_127] : memref<1x16x1024xf32, #tpu.memory_space<vmem>>, vector<1x16x1024xf32>
    tpu.vector_store %arg7[%c0_125, %c0_126, %c0_127], %175 {strides = array<i32>} : memref<1x16x1024xf32, #tpu.memory_space<vmem>>, vector<1x16x1024xf32>,
    return
  }
  func.func @transform_0(%arg0: i32, %arg1: i32) -> (i32, i32, i32) {
    %c8_i32 = arith.constant 8 : i32
    %0 = arith.muli %arg1, %c8_i32 : i32
    %c1_i32 = arith.constant 1 : i32
    %1 = arith.subi %0, %c1_i32 : i32
    %c0_i32 = arith.constant 0 : i32
    %2 = arith.maxsi %1, %c0_i32 : i32
    %c0_i32_0 = arith.constant 0 : i32
    %c0_i32_1 = arith.constant 0 : i32
    return %arg0, %c0_i32_0, %2 : i32, i32, i32
  }
  func.func @transform_1(%arg0: i32, %arg1: i32) -> (i32, i32, i32) {
    %c0_i32 = arith.constant 0 : i32
    %c0_i32_0 = arith.constant 0 : i32
    return %arg0, %c0_i32, %arg1 : i32, i32, i32
  }
  func.func @transform_2(%arg0: i32, %arg1: i32) -> (i32, i32, i32) {
    %c1_i32 = arith.constant 1 : i32
    %0 = arith.addi %arg1, %c1_i32 : i32
    %c8_i32 = arith.constant 8 : i32
    %1 = arith.muli %0, %c8_i32 : i32
    %c31_i32 = arith.constant 31 : i32
    %2 = arith.minsi %1, %c31_i32 : i32
    %c0_i32 = arith.constant 0 : i32
    %c0_i32_0 = arith.constant 0 : i32
    return %arg0, %c0_i32, %2 : i32, i32, i32
  }
  func.func @transform_3(%arg0: i32, %arg1: i32) -> (i32, i32, i32, i32) {
    %c0_i32 = arith.constant 0 : i32
    %c0_i32_0 = arith.constant 0 : i32
    %c0_i32_1 = arith.constant 0 : i32
    %c0_i32_2 = arith.constant 0 : i32
    %c0_i32_3 = arith.constant 0 : i32
    return %c0_i32, %c0_i32_0, %c0_i32_1, %c0_i32_2 : i32, i32, i32, i32
  }
  func.func @transform_4(%arg0: i32, %arg1: i32) -> (i32, i32, i32) {
    %c0_i32 = arith.constant 0 : i32
    %c0_i32_0 = arith.constant 0 : i32
    %c0_i32_1 = arith.constant 0 : i32
    %c0_i32_2 = arith.constant 0 : i32
    return %c0_i32, %c0_i32_0, %c0_i32_1 : i32, i32, i32
  }
  func.func @transform_5(%arg0: i32, %arg1: i32) -> (i32, i32, i32) {
    %c0_i32 = arith.constant 0 : i32
    %c0_i32_0 = arith.constant 0 : i32
    return %arg0, %c0_i32, %arg1 : i32, i32, i32
  }
}

</mosaic_0001>

<llo_original>
// kernel: tpu_custom_call.1
$region0: #{tpu_custom_call.1}
  #allocation0 [shape = 'u32[]', space=smem, size = 0x4, offset = 0x4, fixed_abs, tag = 'smem constant byte address 0x4 - core index']
  #allocation1 [shape = 'u32[72,128]{1,0:T(1,128)}', space=vmem, size = 0x9000, scoped, tag = 'internal scratch']
  %s0 = inlined_call_operand.hbm [shape: f32[2,16,4096], index: 0, kind: input, shape index: {}]
  %s1 = inlined_call_operand.hbm [shape: f32[2,16,4096], index: 1, kind: input, shape index: {}]
  %s2 = inlined_call_operand.hbm [shape: f32[2,16,4096], index: 2, kind: input, shape index: {}]
  %s3 = inlined_call_operand.hbm [shape: f32[6,3,16,16], index: 3, kind: input, shape index: {}]
  %s4 = inlined_call_operand.vmem [shape: f32[6,16,1], index: 4, kind: input, shape index: {}]
  %s5 = inlined_call_operand.hbm [shape: f32[2,16,4096], index: 5, kind: output, shape index: {}]
  %s6 = sld [smem:[#allocation0]]
  $region69: #{tpu_custom_call.1} parent=0
    _
  %s8 = ssub.s32 1, %s6
  %s9 = scalar_select 0, %s8, %s6
  $region1: #{tpu_custom_call.1} parent=0
    #allocation2 [shape = 'u8[16384]{0}', space=vmem, size = 0x4000, scoped, tag = 'input window, operand 0']
    #allocation3 [shape = 's32[2]{0}', space=sflag, size = 0x8, scoped, tag = 'scoped memory for tpu_custom_call.1']
    #allocation4 [shape = 's32[2]{0}', space=sflag, size = 0x8, scoped, tag = 'scoped memory for tpu_custom_call.1']
    #allocation5 [shape = 'u8[131072]{0}', space=vmem, size = 0x20000, scoped, tag = 'input window, operand 1']
    #allocation6 [shape = 's32[2]{0}', space=sflag, size = 0x8, scoped, tag = 'scoped memory for tpu_custom_call.1']
    #allocation7 [shape = 'u8[16384]{0}', space=vmem, size = 0x4000, scoped, tag = 'input window, operand 2']
    #allocation8 [shape = 'u8[147456]{0}', space=vmem, size = 0x24000, scoped, tag = 'input window, operand 3, single buffered']
    #allocation9 [shape = 's32[1]{0}', space=sflag, size = 0x4, scoped, tag = 'scoped memory for tpu_custom_call.1']
    #allocation10 [shape = 'u8[131072]{0}', space=vmem, size = 0x20000, scoped, tag = 'output window, operand 0']
    %10 = vsyncpa [#allocation3], 0
    %s11 = scalar_lea.sflag [#allocation3], 1
    %12 = vsyncpa %s11, 0
    %13 = vsyncpa [#allocation6], 0
    %s14 = scalar_lea.sflag [#allocation6], 1
    %15 = vsyncpa %s14, 0
    %16 = vsyncpa [#allocation9], 0
    %17 = vsyncpa [#allocation4], 0
    %s18 = scalar_lea.sflag [#allocation4], 1
    %19 = vsyncpa %s18, 0
    loop: start=0, step=1, limit=10
    $region2: #{tpu_custom_call.1} parent=1 // loop_pre_header
      _
    $region3: #{tpu_custom_call.1} parent=1 // loop_header
      %s21 = sphi 0, %s25
      %p22 = scmp.ge.s32.totalorder %s21, 10
      %s28 = sphi 0, %s40
      %s29 = sphi 0, %s36
      %s30 = sphi 0, %s28
      %s31 = sphi 0, %s29
      %s32 = sphi 0, %s30
      %s33 = sphi 0, %s31
      %s53 = sphi 0, %s55
      %s56 = sphi 0, %s53
      %s57 = sphi 0, %s56
      %s73 = sphi 0, %s57
      %s81 = sphi 0, %s83
      %s84 = sphi 0, %s81
      %s85 = sphi 0, %s84
      %s101 = sphi 0, %s85
      %s117 = sphi 0, %s119
      %s120 = sphi 0, %s117
      %s121 = sphi 0, %s120
      %s137 = sphi 0, %s121
      %s141 = sphi 0, %s141
      %s143 = sphi 0, %s141
      %s144 = sphi 0, %s143
      %s158 = sphi 0, %s144
      %s162 = sphi 0, %s162
      %s164 = sphi 0, %s162
      %s165 = sphi 0, %s164
      %s179 = sphi 0, %s165
      %s187 = sphi 0, %s189
      %s190 = sphi 0, %s187
      %s191 = sphi 0, %s190
      %s207 = sphi 0, %s191
    $region4: #{tpu_custom_call.1} parent=1 // loop_header_branch
      %24 = sbr.rel (%p22) target = $region8
    $region5: #{tpu_custom_call.1} parent=1 // loop_body
      %s26 = ssub.s32 %s21, 1
      %s27 = ssub.s32 %s21, 2
      %s34 = sadd.s32 1, %s29
      %p35 = scmp.ge.s32.totalorder %s34, 4
      %s36 = scalar_select %p35, 0, %s34
      %s37 = sadd.s32 1, %s28
      %s38 = scalar_select %p35, %s37, %s28
      %p39 = scmp.ge.s32.totalorder %s38, 2
      %s40 = scalar_select %p39, 0, %s38
      %s41 = smul.u32 %s29, 8
      %s42 = ssub.s32 %s41, 1
      %p43 = scmp.gt.s32.totalorder %s42, 0
      %s44 = scalar_select %p43, %s42, 0
      %s45 = smul.u32 %s36, 8
      %s46 = ssub.s32 %s45, 1
      %p47 = scmp.gt.s32.totalorder %s46, 0
      %s48 = scalar_select %p47, %s46, 0
      %s49 = ssub.s32 %s28, %s40
      %s50 = ssub.s32 %s44, %s48
      %s51 = sor.u32 %s49, %s50
      %p52 = scmp.eq.s32.totalorder %s51, 0
      %s54 = sadd.s32 %s53, 1
      %s55 = scalar_select %p52, %s53, %s54
      %p58 = pneg %p52
      %p59 = scmp.eq.s32.totalorder %s21, 7
      %p60 = por %p58, %p59
      %p61 = scmp.ne.s32.totalorder %s53, %s56
      %p62 = scmp.eq.s32.totalorder %s21, 0
      %p63 = por %p61, %p62
      %p64 = scmp.ne.s32.totalorder %s53, %s56
      %p65 = scmp.eq.s32.totalorder %s26, 7
      %p66 = por %p64, %p65
      %p67 = scmp.ne.s32.totalorder %s56, %s57
      %p68 = scmp.eq.s32.totalorder %s26, 0
      %p69 = por %p67, %p68
      %p70 = scmp.ne.s32.totalorder %s56, %s57
      %p71 = scmp.eq.s32.totalorder %s27, 7
      %p72 = por %p70, %p71
      %p74 = scmp.ne.s32.totalorder %s57, %s73
      %p75 = scmp.eq.s32.totalorder %s27, 0
      %p76 = por %p74, %p75
      %s77 = ssub.s32 %s28, %s40
      %s78 = ssub.s32 %s29, %s36
      %s79 = sor.u32 %s77, %s78
      %p80 = scmp.eq.s32.totalorder %s79, 0
      %s82 = sadd.s32 %s81, 1
      %s83 = scalar_select %p80, %s81, %s82
      %p86 = pneg %p80
      %p87 = scmp.eq.s32.totalorder %s21, 7
      %p88 = por %p86, %p87
      %p89 = scmp.ne.s32.totalorder %s81, %s84
      %p90 = scmp.eq.s32.totalorder %s21, 0
      %p91 = por %p89, %p90
      %p92 = scmp.ne.s32.totalorder %s81, %s84
      %p93 = scmp.eq.s32.totalorder %s26, 7
      %p94 = por %p92, %p93
      %p95 = scmp.ne.s32.totalorder %s84, %s85
      %p96 = scmp.eq.s32.totalorder %s26, 0
      %p97 = por %p95, %p96
      %p98 = scmp.ne.s32.totalorder %s84, %s85
      %p99 = scmp.eq.s32.totalorder %s27, 7
      %p100 = por %p98, %p99
      %p102 = scmp.ne.s32.totalorder %s85, %s101
      %p103 = scmp.eq.s32.totalorder %s27, 0
      %p104 = por %p102, %p103
      %s105 = sadd.s32 %s29, 1
      %s106 = smul.u32 %s105, 8
      %p107 = scmp.lt.s32.totalorder %s106, 31
      %s108 = scalar_select %p107, %s106, 31
      %s109 = sadd.s32 %s36, 1
      %s110 = smul.u32 %s109, 8
      %p111 = scmp.lt.s32.totalorder %s110, 31
      %s112 = scalar_select %p111, %s110, 31
      %s113 = ssub.s32 %s28, %s40
      %s114 = ssub.s32 %s108, %s112
      %s115 = sor.u32 %s113, %s114
      %p116 = scmp.eq.s32.totalorder %s115, 0
      %s118 = sadd.s32 %s117, 1
      %s119 = scalar_select %p116, %s117, %s118
      %p122 = pneg %p116
      %p123 = scmp.eq.s32.totalorder %s21, 7
      %p124 = por %p122, %p123
      %p125 = scmp.ne.s32.totalorder %s117, %s120
      %p126 = scmp.eq.s32.totalorder %s21, 0
      %p127 = por %p125, %p126
      %p128 = scmp.ne.s32.totalorder %s117, %s120
      %p129 = scmp.eq.s32.totalorder %s26, 7
      %p130 = por %p128, %p129
      %p131 = scmp.ne.s32.totalorder %s120, %s121
      %p132 = scmp.eq.s32.totalorder %s26, 0
      %p133 = por %p131, %p132
      %p134 = scmp.ne.s32.totalorder %s120, %s121
      %p135 = scmp.eq.s32.totalorder %s27, 7
      %p136 = por %p134, %p135
      %p138 = scmp.ne.s32.totalorder %s121, %s137
      %p139 = scmp.eq.s32.totalorder %s27, 0
      %p140 = por %p138, %p139
      %s142 = sadd.s32 %s141, 1
      %p145 = scmp.eq.s32.totalorder %s21, 7
      %p146 = scmp.ne.s32.totalorder %s141, %s143
      %p147 = scmp.eq.s32.totalorder %s21, 0
      %p148 = por %p146, %p147
      %p149 = scmp.ne.s32.totalorder %s141, %s143
      %p150 = scmp.eq.s32.totalorder %s26, 7
      %p151 = por %p149, %p150
      %p152 = scmp.ne.s32.totalorder %s143, %s144
      %p153 = scmp.eq.s32.totalorder %s26, 0
      %p154 = por %p152, %p153
      %p155 = scmp.ne.s32.totalorder %s143, %s144
      %p156 = scmp.eq.s32.totalorder %s27, 7
      %p157 = por %p155, %p156
      %p159 = scmp.ne.s32.totalorder %s144, %s158
      %p160 = scmp.eq.s32.totalorder %s27, 0
      %p161 = por %p159, %p160
      %s163 = sadd.s32 %s162, 1
      %p166 = scmp.eq.s32.totalorder %s21, 7
      %p167 = scmp.ne.s32.totalorder %s162, %s164
      %p168 = scmp.eq.s32.totalorder %s21, 0
      %p169 = por %p167, %p168
      %p170 = scmp.ne.s32.totalorder %s162, %s164
      %p171 = scmp.eq.s32.totalorder %s26, 7
      %p172 = por %p170, %p171
      %p173 = scmp.ne.s32.totalorder %s164, %s165
      %p174 = scmp.eq.s32.totalorder %s26, 0
      %p175 = por %p173, %p174
      %p176 = scmp.ne.s32.totalorder %s164, %s165
      %p177 = scmp.eq.s32.totalorder %s27, 7
      %p178 = por %p176, %p177
      %p180 = scmp.ne.s32.totalorder %s165, %s179
      %p181 = scmp.eq.s32.totalorder %s27, 0
      %p182 = por %p180, %p181
      %s183 = ssub.s32 %s28, %s40
      %s184 = ssub.s32 %s29, %s36
      %s185 = sor.u32 %s183, %s184
      %p186 = scmp.eq.s32.totalorder %s185, 0
      %s188 = sadd.s32 %s187, 1
      %s189 = scalar_select %p186, %s187, %s188
      %p192 = pneg %p186
      %p193 = scmp.eq.s32.totalorder %s21, 7
      %p194 = por %p192, %p193
      %p195 = scmp.ne.s32.totalorder %s187, %s190
      %p196 = scmp.eq.s32.totalorder %s21, 0
      %p197 = por %p195, %p196
      %p198 = scmp.ne.s32.totalorder %s187, %s190
      %p199 = scmp.eq.s32.totalorder %s26, 7
      %p200 = por %p198, %p199
      %p201 = scmp.ne.s32.totalorder %s190, %s191
      %p202 = scmp.eq.s32.totalorder %s26, 0
      %p203 = por %p201, %p202
      %p204 = scmp.ne.s32.totalorder %s190, %s191
      %p205 = scmp.eq.s32.totalorder %s27, 7
      %p206 = por %p204, %p205
      %p208 = scmp.ne.s32.totalorder %s191, %s207
      %p209 = scmp.eq.s32.totalorder %s27, 0
      %p210 = por %p208, %p209
      %p211 = scmp.le.s32.totalorder 1, %s21
      %p212 = scmp.lt.s32.totalorder %s21, 9
      %p213 = pnand %p211, %p212
      %p214 = pneg %p213
      // Predicated region
      $region9: #{tpu_custom_call.1} parent=5 // pred_check
        _
      $region10: #{tpu_custom_call.1} parent=5 // pred_check_branch
        %216 = sbr.rel (%p213) target = $region12
      $region11: #{tpu_custom_call.1} parent=5 // pred_region
        %s217 = ssub.s32 %s21, 1
        // Predicated region
        $region13: #{tpu_custom_call.1} parent=11 // pred_check
          %p218 = pneg %p154
        $region14: #{tpu_custom_call.1} parent=11 // pred_check_branch
          %220 = sbr.rel (%p218) target = $region16
        $region15: #{tpu_custom_call.1} parent=11 // pred_region
          %222 = vsyncadd [#allocation9], 0
          %s223 = sshll.u32 %s3, 4
          %s224 = int_to_ptr.hbm [resolvable:$true] %s223
          %s225 = sshll.u32 [#allocation8], 4
          %s226 = int_to_ptr.vmem [resolvable:$true] %s225
          %231 = dma.hbm_to_vmem [thread:$0]  %s224, 4608, %s226, [#allocation9], 128, 128, 8
        $region16: #{tpu_custom_call.1} parent=11 // pred_fallthru
          _
        // Predicated region
        $region17: #{tpu_custom_call.1} parent=11 // pred_check
          %p232 = pneg %p175
        $region18: #{tpu_custom_call.1} parent=11 // pred_check_branch
          %234 = sbr.rel (%p232) target = $region20
        $region19: #{tpu_custom_call.1} parent=11 // pred_region
          _
        $region20: #{tpu_custom_call.1} parent=11 // pred_fallthru
          _
      $region12: #{tpu_custom_call.1} parent=5 // pred_fallthru
        _
      %p235 = scmp.lt.s32.totalorder %s21, 8
      // Predicated region
      $region21: #{tpu_custom_call.1} parent=5 // pred_check
        %p236 = pneg %p235
      $region22: #{tpu_custom_call.1} parent=5 // pred_check_branch
        %238 = sbr.rel (%p236) target = $region24
      $region23: #{tpu_custom_call.1} parent=5 // pred_region
        // Predicated region
        $region25: #{tpu_custom_call.1} parent=23 // pred_check
          %p239 = pneg %p63
        $region26: #{tpu_custom_call.1} parent=23 // pred_check_branch
          %241 = sbr.rel (%p239) target = $region28
        $region27: #{tpu_custom_call.1} parent=23 // pred_region
          %s242 = sand.u32 %s53, 1
          %s243 = scalar_lea.sflag [#allocation3], %s242
          %s244 = sand.u32 %s53, 1
          %s245 = smul.addr %s244, 16
          %s246 = scalar_lea.vmem [#allocation2], %s245
          %s247 = smul.u32 %s29, 8
          %s248 = ssub.s32 %s247, 1
          %p249 = scmp.gt.s32.totalorder %s248, 0
          %s250 = scalar_select %p249, %s248, 0
          %252 = vsyncadd %s243, 0
          %s253 = smul.addr %s28, 64
          %s254 = sadd.s32 %s250, %s253
          %s255 = smul.addr %s254, 8
          %s256 = scalar_lea.hbm %s0, %s255
          %s257 = sshll.u32 %s256, 4
          %s258 = int_to_ptr.hbm [resolvable:$true] %s257
          %s259 = sshll.u32 %s246, 4
          %s260 = int_to_ptr.vmem [resolvable:$true] %s259
          %265 = dma.hbm_to_vmem [thread:$0]  %s258, 256, %s260, %s243, 4096, 128, 8
        $region28: #{tpu_custom_call.1} parent=23 // pred_fallthru
          _
        // Predicated region
        $region29: #{tpu_custom_call.1} parent=23 // pred_check
          %p266 = pneg %p91
        $region30: #{tpu_custom_call.1} parent=23 // pred_check_branch
          %268 = sbr.rel (%p266) target = $region32
        $region31: #{tpu_custom_call.1} parent=23 // pred_region
          %s269 = sand.u32 %s21, 1
          %s270 = scalar_lea.sflag [#allocation6], %s269
          %s271 = sand.u32 %s81, 1
          %s272 = smul.addr %s271, 128
          %s273 = scalar_lea.vmem [#allocation5], %s272
          %s274 = smul.u32 8, %s29
          %276 = vsyncadd %s270, 0
          %s277 = smul.addr %s28, 64
          %s278 = sadd.s32 %s274, %s277
          %s279 = smul.addr %s278, 8
          %s280 = scalar_lea.hbm %s1, %s279
          %s281 = sshll.u32 %s280, 4
          %s282 = int_to_ptr.hbm [resolvable:$true] %s281
          %s283 = sshll.u32 %s273, 4
          %s284 = int_to_ptr.vmem [resolvable:$true] %s283
          %289 = dma.hbm_to_vmem [thread:$0]  %s282, 2048, %s284, %s270, 4096, 1024, 64
        $region32: #{tpu_custom_call.1} parent=23 // pred_fallthru
          _
        // Predicated region
        $region33: #{tpu_custom_call.1} parent=23 // pred_check
          %p290 = pneg %p127
        $region34: #{tpu_custom_call.1} parent=23 // pred_check_branch
          %292 = sbr.rel (%p290) target = $region36
        $region35: #{tpu_custom_call.1} parent=23 // pred_region
          %s293 = sand.u32 %s21, 1
          %s294 = scalar_lea.sflag [#allocation6], %s293
          %s295 = sand.u32 %s117, 1
          %s296 = smul.addr %s295, 16
          %s297 = scalar_lea.vmem [#allocation7], %s296
          %s298 = sadd.s32 %s29, 1
          %s299 = smul.u32 %s298, 8
          %p300 = scmp.lt.s32.totalorder %s299, 31
          %s301 = scalar_select %p300, %s299, 31
          %303 = vsyncadd %s294, 0
          %s304 = smul.addr %s28, 64
          %s305 = sadd.s32 %s301, %s304
          %s306 = smul.addr %s305, 8
          %s307 = scalar_lea.hbm %s2, %s306
          %s308 = sshll.u32 %s307, 4
          %s309 = int_to_ptr.hbm [resolvable:$true] %s308
          %s310 = sshll.u32 %s297, 4
          %s311 = int_to_ptr.vmem [resolvable:$true] %s310
          %316 = dma.hbm_to_vmem [thread:$0]  %s309, 256, %s311, %s294, 4096, 128, 8
        $region36: #{tpu_custom_call.1} parent=23 // pred_fallthru
          _
      $region24: #{tpu_custom_call.1} parent=5 // pred_fallthru
        _
      %p317 = scmp.le.s32.totalorder 1, %s21
      %p318 = scmp.lt.s32.totalorder %s21, 9
      %p319 = pnand %p317, %p318
      %p320 = pneg %p319
      // Predicated region
      $region37: #{tpu_custom_call.1} parent=5 // pred_check
        _
      $region38: #{tpu_custom_call.1} parent=5 // pred_check_branch
        %322 = sbr.rel (%p319) target = $region40
      $region39: #{tpu_custom_call.1} parent=5 // pred_region
        %s323 = ssub.s32 %s21, 1
        %s324 = sand.u32 %s56, 1
        %s325 = scalar_lea.sflag [#allocation3], %s324
        %s326 = sand.u32 %s56, 1
        %s327 = smul.addr %s326, 16
        %s328 = scalar_lea.vmem [#allocation2], %s327
        // Predicated region
        $region41: #{tpu_custom_call.1} parent=39 // pred_check
          %p329 = pneg %p69
        $region42: #{tpu_custom_call.1} parent=39 // pred_check_branch
          %331 = sbr.rel (%p329) target = $region44
        $region43: #{tpu_custom_call.1} parent=39 // pred_region
          %333 = dma.done %s325, 256
        $region44: #{tpu_custom_call.1} parent=39 // pred_fallthru
          _
        %s334 = sand.u32 %s26, 1
        %s335 = scalar_lea.sflag [#allocation6], %s334
        %s336 = sand.u32 %s84, 1
        %s337 = smul.addr %s336, 128
        %s338 = scalar_lea.vmem [#allocation5], %s337
        // Predicated region
        $region45: #{tpu_custom_call.1} parent=39 // pred_check
          %p339 = pneg %p97
        $region46: #{tpu_custom_call.1} parent=39 // pred_check_branch
          %341 = sbr.rel (%p339) target = $region48
        $region47: #{tpu_custom_call.1} parent=39 // pred_region
          %343 = dma.done %s335, 2048
        $region48: #{tpu_custom_call.1} parent=39 // pred_fallthru
          _
        %s344 = sand.u32 %s26, 1
        %s345 = scalar_lea.sflag [#allocation6], %s344
        %s346 = sand.u32 %s120, 1
        %s347 = smul.addr %s346, 16
        %s348 = scalar_lea.vmem [#allocation7], %s347
        // Predicated region
        $region49: #{tpu_custom_call.1} parent=39 // pred_check
          %p349 = pneg %p133
        $region50: #{tpu_custom_call.1} parent=39 // pred_check_branch
          %351 = sbr.rel (%p349) target = $region52
        $region51: #{tpu_custom_call.1} parent=39 // pred_region
          %353 = dma.done %s345, 256
        $region52: #{tpu_custom_call.1} parent=39 // pred_fallthru
          _
        // Predicated region
        $region53: #{tpu_custom_call.1} parent=39 // pred_check
          %p354 = pneg %p154
        $region54: #{tpu_custom_call.1} parent=39 // pred_check_branch
          %356 = sbr.rel (%p354) target = $region56
        $region55: #{tpu_custom_call.1} parent=39 // pred_region
          %358 = dma.done [#allocation9], 4608
        $region56: #{tpu_custom_call.1} parent=39 // pred_fallthru
          _
        %s359 = sand.u32 %s56, 1
        %s360 = scalar_lea.sflag [#allocation3], %s359
        %s361 = sand.u32 %s56, 1
        %s362 = smul.addr %s361, 16
        %s363 = scalar_lea.vmem [#allocation2], %s362
        %p364 = pneg %p69
        %p365 = pneg %p66
        %s366 = sand.u32 %s26, 1
        %s367 = scalar_lea.sflag [#allocation6], %s366
        %s368 = sand.u32 %s84, 1
        %s369 = smul.addr %s368, 128
        %s370 = scalar_lea.vmem [#allocation5], %s369
        %p371 = pneg %p97
        %p372 = pneg %p94
        %s373 = sand.u32 %s26, 1
        %s374 = scalar_lea.sflag [#allocation6], %s373
        %s375 = sand.u32 %s120, 1
        %s376 = smul.addr %s375, 16
        %s377 = scalar_lea.vmem [#allocation7], %s376
        %p378 = pneg %p133
        %p379 = pneg %p130
        %p380 = pneg %p154
        %p381 = pneg %p151
        %p382 = pneg %p175
        %p383 = pneg %p172
        %p384 = pneg %p203
        %p385 = pneg %p200
        %s386 = sand.u32 %s190, 1
        %s387 = scalar_lea.sflag [#allocation4], %s386
        %s388 = sand.u32 %s190, 1
        %s389 = smul.addr %s388, 128
        %s390 = scalar_lea.vmem [#allocation10], %s389
        %s391 = smul.u32 %s31, 8
        %s392 = ssub.s32 %s391, 1
        %p393 = scmp.gt.s32.totalorder %s392, 0
        %s394 = scalar_select %p393, %s392, 0
        %s395 = smul.u32 8, %s31
        %s396 = sadd.s32 %s31, 1
        %s397 = smul.u32 %s396, 8
        %p398 = scmp.lt.s32.totalorder %s397, 31
        %s399 = scalar_select %p398, %s397, 31
        %s400 = smul.u32 8, %s31
        %v401 = vld [vmem:[%s328] sm:$0xff]
        %v402 = vld [vmem:[%s328 + $0x8] sm:$0xff]
        %v403 = vld [vmem:[%s338] sm:$0xff]
        %v404 = vld [vmem:[%s338 + $0x8] sm:$0xff]
        %v405 = vld [vmem:[%s338 + $0x10] sm:$0xff]
        %v406 = vld [vmem:[%s338 + $0x18] sm:$0xff]
        %v407 = vld [vmem:[%s338 + $0x20] sm:$0xff]
        %v408 = vld [vmem:[%s338 + $0x28] sm:$0xff]
        %v409 = vld [vmem:[%s338 + $0x30] sm:$0xff]
        %v410 = vld [vmem:[%s338 + $0x38] sm:$0xff]
        %v411 = vld [vmem:[%s338 + $0x40] sm:$0xff]
        %v412 = vld [vmem:[%s338 + $0x48] sm:$0xff]
        %v413 = vld [vmem:[%s338 + $0x50] sm:$0xff]
        %v414 = vld [vmem:[%s338 + $0x58] sm:$0xff]
        %v415 = vld [vmem:[%s338 + $0x60] sm:$0xff]
        %v416 = vld [vmem:[%s338 + $0x68] sm:$0xff]
        %v417 = vld [vmem:[%s338 + $0x70] sm:$0xff]
        %v418 = vld [vmem:[%s338 + $0x78] sm:$0xff]
        %v419 = vld [vmem:[%s348] sm:$0xff]
        %v420 = vld [vmem:[%s348 + $0x8] sm:$0xff]
        %p421 = scmp.gt.s32.totalorder %s31, 0
        %s422 = scalar_select %p421, 1, 0
        %v423 = vstv %s422
        %vm424 = vcmp.eq.s32.totalorder %v423, 1
        %v425 = vsel %vm424, 1.0, 0.0
        %p426 = scmp.lt.s32.totalorder %s31, 3
        %s427 = scalar_select %p426, 1, 0
        %v428 = vstv %s427
        %vm429 = vcmp.eq.s32.totalorder %v428, 1
        %v430 = vsel %vm429, 1.0, 0.0
        %vm431 = vcmp.ge.f32.partialorder %v401, 0.0
        %vm432 = vcmp.ge.f32.partialorder %v403, 0.0
        %vm433 = vcmp.ge.f32.partialorder %v404, 0.0
        %vm434 = vcmp.ge.f32.partialorder %v405, 0.0
        %vm435 = vcmp.ge.f32.partialorder %v406, 0.0
        %vm436 = vcmp.ge.f32.partialorder %v407, 0.0
        %vm437 = vcmp.ge.f32.partialorder %v408, 0.0
        %vm438 = vcmp.ge.f32.partialorder %v409, 0.0
        %vm439 = vcmp.ge.f32.partialorder %v410, 0.0
        %vm440 = vcmp.ge.f32.partialorder %v419, 0.0
        %vm441 = vcmp.ge.f32.partialorder %v402, 0.0
        %vm442 = vcmp.ge.f32.partialorder %v411, 0.0
        %vm443 = vcmp.ge.f32.partialorder %v412, 0.0
        %vm444 = vcmp.ge.f32.partialorder %v413, 0.0
        %vm445 = vcmp.ge.f32.partialorder %v414, 0.0
        %vm446 = vcmp.ge.f32.partialorder %v415, 0.0
        %vm447 = vcmp.ge.f32.partialorder %v416, 0.0
        %vm448 = vcmp.ge.f32.partialorder %v417, 0.0
        %vm449 = vcmp.ge.f32.partialorder %v418, 0.0
        %vm450 = vcmp.ge.f32.partialorder %v420, 0.0
        %v451 = vmul.f32 %v401, 0.1
        %v452 = vmul.f32 %v403, 0.1
        %v453 = vmul.f32 %v404, 0.1
        %v454 = vmul.f32 %v405, 0.1
        %v455 = vmul.f32 %v406, 0.1
        %v456 = vmul.f32 %v407, 0.1
        %v457 = vmul.f32 %v408, 0.1
        %v458 = vmul.f32 %v409, 0.1
        %v459 = vmul.f32 %v410, 0.1
        %v460 = vmul.f32 %v419, 0.1
        %v461 = vmul.f32 %v402, 0.1
        %v462 = vmul.f32 %v411, 0.1
        %v463 = vmul.f32 %v412, 0.1
        %v464 = vmul.f32 %v413, 0.1
        %v465 = vmul.f32 %v414, 0.1
        %v466 = vmul.f32 %v415, 0.1
        %v467 = vmul.f32 %v416, 0.1
        %v468 = vmul.f32 %v417, 0.1
        %v469 = vmul.f32 %v418, 0.1
        %v470 = vmul.f32 %v420, 0.1
        %v471 = vsel %vm431, %v401, %v451
        %v472 = vsel %vm432, %v403, %v452
        %v473 = vsel %vm433, %v404, %v453
        %v474 = vsel %vm434, %v405, %v454
        %v475 = vsel %vm435, %v406, %v455
        %v476 = vsel %vm436, %v407, %v456
        %v477 = vsel %vm437, %v408, %v457
        %v478 = vsel %vm438, %v409, %v458
        %v479 = vsel %vm439, %v410, %v459
        %v480 = vsel %vm440, %v419, %v460
        %v481 = vsel %vm441, %v402, %v461
        %v482 = vsel %vm442, %v411, %v462
        %v483 = vsel %vm443, %v412, %v463
        %v484 = vsel %vm444, %v413, %v464
        %v485 = vsel %vm445, %v414, %v465
        %v486 = vsel %vm446, %v415, %v466
        %v487 = vsel %vm447, %v416, %v467
        %v488 = vsel %vm448, %v417, %v468
        %v489 = vsel %vm449, %v418, %v469
        %v490 = vsel %vm450, %v420, %v470
        %v491 = vperm.slane %v425, 0
        %v492 = vperm.slane 1.0, 0
        %v493 = vperm.slane %v430, 0
        %v494 = vmul.f32 %v471, %v491
        %v495 = vmul.f32 %v472, %v492
        %v496 = vmul.f32 %v473, %v492
        %v497 = vmul.f32 %v474, %v492
        %v498 = vmul.f32 %v475, %v492
        %v499 = vmul.f32 %v476, %v492
        %v500 = vmul.f32 %v477, %v492
        %v501 = vmul.f32 %v478, %v492
        %v502 = vmul.f32 %v479, %v492
        %v503 = vmul.f32 %v480, %v493
        %v504 = vmul.f32 %v481, %v491
        %v505 = vmul.f32 %v482, %v492
        %v506 = vmul.f32 %v483, %v492
        %v507 = vmul.f32 %v484, %v492
        %v508 = vmul.f32 %v485, %v492
        %v509 = vmul.f32 %v486, %v492
        %v510 = vmul.f32 %v487, %v492
        %v511 = vmul.f32 %v488, %v492
        %v512 = vmul.f32 %v489, %v492
        %v513 = vmul.f32 %v490, %v493
        %v514 = vld [vmem:[#allocation8] sm:$0xff]
        %v515 = vld [vmem:[#allocation8 + $0x8] sm:$0xff]
        %s516 = scalar_lea.vmem [#allocation8], 16
        %v517 = vld [vmem:[%s516] sm:$0xff]
        %v518 = vld [vmem:[%s516 + $0x8] sm:$0xff]
        %539 = vrot.lane.b32.xlu0 %v494, 127
        %v540 = vpop.permute.xlu0 %539
        %541 = vrot.lane.b32.xlu0 %v495, 127
        %v542 = vpop.permute.xlu0 %541
        %543 = vrot.lane.b32.xlu0 %v496, 127
        %v544 = vpop.permute.xlu0 %543
        %545 = vrot.lane.b32.xlu0 %v497, 127
        %v546 = vpop.permute.xlu0 %545
        %547 = vrot.lane.b32.xlu0 %v498, 127
        %v548 = vpop.permute.xlu0 %547
        %549 = vrot.lane.b32.xlu0 %v499, 127
        %v550 = vpop.permute.xlu0 %549
        %551 = vrot.lane.b32.xlu0 %v500, 127
        %v552 = vpop.permute.xlu0 %551
        %553 = vrot.lane.b32.xlu0 %v501, 127
        %v554 = vpop.permute.xlu0 %553
        %555 = vrot.lane.b32.xlu0 %v502, 127
        %v556 = vpop.permute.xlu0 %555
        %557 = vrot.lane.b32.xlu0 %v503, 127
        %v558 = vpop.permute.xlu0 %557
        %559 = vrot.lane.b32.xlu0 %v504, 127
        %v560 = vpop.permute.xlu0 %559
        %561 = vrot.lane.b32.xlu0 %v505, 127
        %v562 = vpop.permute.xlu0 %561
        %563 = vrot.lane.b32.xlu0 %v506, 127
        %v564 = vpop.permute.xlu0 %563
        %565 = vrot.lane.b32.xlu0 %v507, 127
        %v566 = vpop.permute.xlu0 %565
        %567 = vrot.lane.b32.xlu0 %v508, 127
        %v568 = vpop.permute.xlu0 %567
        %569 = vrot.lane.b32.xlu0 %v509, 127
        %v570 = vpop.permute.xlu0 %569
        %571 = vrot.lane.b32.xlu0 %v510, 127
        %v572 = vpop.permute.xlu0 %571
        %573 = vrot.lane.b32.xlu0 %v511, 127
        %v574 = vpop.permute.xlu0 %573
        %575 = vrot.lane.b32.xlu0 %v512, 127
        %v576 = vpop.permute.xlu0 %575
        %577 = vrot.lane.b32.xlu0 %v513, 127
        %v578 = vpop.permute.xlu0 %577
        %vm579 = vcmask 1039360
        %v580 = vsel %vm579, %v540, %v542
        %v581 = vsel %vm579, %v542, %v544
        %v582 = vsel %vm579, %v544, %v546
        %v583 = vsel %vm579, %v546, %v548
        %v584 = vsel %vm579, %v548, %v550
        %v585 = vsel %vm579, %v550, %v552
        %v586 = vsel %vm579, %v552, %v554
        %v587 = vsel %vm579, %v554, %v556
        %v588 = vsel %vm579, %v556, %v558
        %v589 = vsel %vm579, %v560, %v562
        %v590 = vsel %vm579, %v562, %v564
        %v591 = vsel %vm579, %v564, %v566
        %v592 = vsel %vm579, %v566, %v568
        %v593 = vsel %vm579, %v568, %v570
        %v594 = vsel %vm579, %v570, %v572
        %v595 = vsel %vm579, %v572, %v574
        %v596 = vsel %vm579, %v574, %v576
        %v597 = vsel %vm579, %v576, %v578
        %vm618 = vcmask 130048
        %v620 = vsel %vm618, %v517, 0
        %v623 = vsel %vm618, %v518, 0
        %625 = vmatpush.msra.mxu0 0.0
        %626 = vmatpush.msra.mxu0 0.0
        %627 = vmatpush.msra.mxu0 0.0
        %628 = vmatpush.msra.mxu0 0.0
        %629 = vmatpush.msra.mxu0 0.0
        %630 = vmatpush.msra.mxu0 0.0
        %631 = vmatpush.msra.mxu0 0.0
        %632 = vmatpush.msra.mxu0 0.0
        %633 = vmatpush.msra.mxu0 0.0
        %634 = vmatpush.msra.mxu0 0.0
        %635 = vmatpush.msra.mxu0 0.0
        %636 = vmatpush.msra.mxu0 0.0
        %637 = vmatpush.msra.mxu0 0.0
        %638 = vmatpush.msra.mxu0 0.0
        %639 = vmatpush.msra.mxu0 %v589
        %640 = vmatpush.msra.mxu0 %v580
        %641 = vmatmul.f32.gmra.mxu0 %v620
        %v642 = vpop.f32.mrf.mxu0
        %v643 = vadd.f32 0.0, %v642
        %644 = vmatmul.f32.gmra.mxu0 %v623
        %v645 = vpop.f32.mrf.mxu0
        %v646 = vadd.f32 0.0, %v645
        %647 = vdwg.mxu0
        %648 = vmatpush.msra.mxu0 0.0
        %649 = vmatpush.msra.mxu0 0.0
        %650 = vmatpush.msra.mxu0 0.0
        %651 = vmatpush.msra.mxu0 0.0
        %652 = vmatpush.msra.mxu0 0.0
        %653 = vmatpush.msra.mxu0 0.0
        %654 = vmatpush.msra.mxu0 0.0
        %655 = vmatpush.msra.mxu0 0.0
        %656 = vmatpush.msra.mxu0 0.0
        %657 = vmatpush.msra.mxu0 0.0
        %658 = vmatpush.msra.mxu0 0.0
        %659 = vmatpush.msra.mxu0 0.0
        %660 = vmatpush.msra.mxu0 0.0
        %661 = vmatpush.msra.mxu0 0.0
        %662 = vmatpush.msra.mxu0 %v590
        %663 = vmatpush.msra.mxu0 %v581
        %664 = vmatmul.f32.gmra.mxu0 %v620
        %v665 = vpop.f32.mrf.mxu0
        %v666 = vadd.f32 0.0, %v665
        %667 = vmatmul.f32.gmra.mxu0 %v623
        %v668 = vpop.f32.mrf.mxu0
        %v669 = vadd.f32 0.0, %v668
        %670 = vdwg.mxu0
        %671 = vmatpush.msra.mxu0 0.0
        %672 = vmatpush.msra.mxu0 0.0
        %673 = vmatpush.msra.mxu0 0.0
        %674 = vmatpush.msra.mxu0 0.0
        %675 = vmatpush.msra.mxu0 0.0
        %676 = vmatpush.msra.mxu0 0.0
        %677 = vmatpush.msra.mxu0 0.0
        %678 = vmatpush.msra.mxu0 0.0
        %679 = vmatpush.msra.mxu0 0.0
        %680 = vmatpush.msra.mxu0 0.0
        %681 = vmatpush.msra.mxu0 0.0
        %682 = vmatpush.msra.mxu0 0.0
        %683 = vmatpush.msra.mxu0 0.0
        %684 = vmatpush.msra.mxu0 0.0
        %685 = vmatpush.msra.mxu0 %v591
        %686 = vmatpush.msra.mxu0 %v582
        %687 = vmatmul.f32.gmra.mxu0 %v620
        %v688 = vpop.f32.mrf.mxu0
        %v689 = vadd.f32 0.0, %v688
        %690 = vmatmul.f32.gmra.mxu0 %v623
        %v691 = vpop.f32.mrf.mxu0
        %v692 = vadd.f32 0.0, %v691
        %693 = vdwg.mxu0
        %694 = vmatpush.msra.mxu0 0.0
        %695 = vmatpush.msra.mxu0 0.0
        %696 = vmatpush.msra.mxu0 0.0
        %697 = vmatpush.msra.mxu0 0.0
        %698 = vmatpush.msra.mxu0 0.0
        %699 = vmatpush.msra.mxu0 0.0
        %700 = vmatpush.msra.mxu0 0.0
        %701 = vmatpush.msra.mxu0 0.0
        %702 = vmatpush.msra.mxu0 0.0
        %703 = vmatpush.msra.mxu0 0.0
        %704 = vmatpush.msra.mxu0 0.0
        %705 = vmatpush.msra.mxu0 0.0
        %706 = vmatpush.msra.mxu0 0.0
        %707 = vmatpush.msra.mxu0 0.0
        %708 = vmatpush.msra.mxu0 %v592
        %709 = vmatpush.msra.mxu0 %v583
        %710 = vmatmul.f32.gmra.mxu0 %v620
        %v711 = vpop.f32.mrf.mxu0
        %v712 = vadd.f32 0.0, %v711
        %713 = vmatmul.f32.gmra.mxu0 %v623
        %v714 = vpop.f32.mrf.mxu0
        %v715 = vadd.f32 0.0, %v714
        %716 = vdwg.mxu0
        %717 = vmatpush.msra.mxu0 0.0
        %718 = vmatpush.msra.mxu0 0.0
        %719 = vmatpush.msra.mxu0 0.0
        %720 = vmatpush.msra.mxu0 0.0
        %721 = vmatpush.msra.mxu0 0.0
        %722 = vmatpush.msra.mxu0 0.0
        %723 = vmatpush.msra.mxu0 0.0
        %724 = vmatpush.msra.mxu0 0.0
        %725 = vmatpush.msra.mxu0 0.0
        %726 = vmatpush.msra.mxu0 0.0
        %727 = vmatpush.msra.mxu0 0.0
        %728 = vmatpush.msra.mxu0 0.0
        %729 = vmatpush.msra.mxu0 0.0
        %730 = vmatpush.msra.mxu0 0.0
        %731 = vmatpush.msra.mxu0 %v593
        %732 = vmatpush.msra.mxu0 %v584
        %733 = vmatmul.f32.gmra.mxu0 %v620
        %v734 = vpop.f32.mrf.mxu0
        %v735 = vadd.f32 0.0, %v734
        %736 = vmatmul.f32.gmra.mxu0 %v623
        %v737 = vpop.f32.mrf.mxu0
        %v738 = vadd.f32 0.0, %v737
        %739 = vdwg.mxu0
        %740 = vmatpush.msra.mxu0 0.0
        %741 = vmatpush.msra.mxu0 0.0
        %742 = vmatpush.msra.mxu0 0.0
        %743 = vmatpush.msra.mxu0 0.0
        %744 = vmatpush.msra.mxu0 0.0
        %745 = vmatpush.msra.mxu0 0.0
        %746 = vmatpush.msra.mxu0 0.0
        %747 = vmatpush.msra.mxu0 0.0
        %748 = vmatpush.msra.mxu0 0.0
        %749 = vmatpush.msra.mxu0 0.0
        %750 = vmatpush.msra.mxu0 0.0
        %751 = vmatpush.msra.mxu0 0.0
        %752 = vmatpush.msra.mxu0 0.0
        %753 = vmatpush.msra.mxu0 0.0
        %754 = vmatpush.msra.mxu0 %v594
        %755 = vmatpush.msra.mxu0 %v585
        %756 = vmatmul.f32.gmra.mxu0 %v620
        %v757 = vpop.f32.mrf.mxu0
        %v758 = vadd.f32 0.0, %v757
        %759 = vmatmul.f32.gmra.mxu0 %v623
        %v760 = vpop.f32.mrf.mxu0
        %v761 = vadd.f32 0.0, %v760
        %762 = vdwg.mxu0
        %763 = vmatpush.msra.mxu0 0.0
        %764 = vmatpush.msra.mxu0 0.0
        %765 = vmatpush.msra.mxu0 0.0
        %766 = vmatpush.msra.mxu0 0.0
        %767 = vmatpush.msra.mxu0 0.0
        %768 = vmatpush.msra.mxu0 0.0
        %769 = vmatpush.msra.mxu0 0.0
        %770 = vmatpush.msra.mxu0 0.0
        %771 = vmatpush.msra.mxu0 0.0
        %772 = vmatpush.msra.mxu0 0.0
        %773 = vmatpush.msra.mxu0 0.0
        %774 = vmatpush.msra.mxu0 0.0
        %775 = vmatpush.msra.mxu0 0.0
        %776 = vmatpush.msra.mxu0 0.0
        %777 = vmatpush.msra.mxu0 %v595
        %778 = vmatpush.msra.mxu0 %v586
        %779 = vmatmul.f32.gmra.mxu0 %v620
        %v780 = vpop.f32.mrf.mxu0
        %v781 = vadd.f32 0.0, %v780
        %782 = vmatmul.f32.gmra.mxu0 %v623
        %v783 = vpop.f32.mrf.mxu0
        %v784 = vadd.f32 0.0, %v783
        %785 = vdwg.mxu0
        %786 = vmatpush.msra.mxu0 0.0
        %787 = vmatpush.msra.mxu0 0.0
        %788 = vmatpush.msra.mxu0 0.0
        %789 = vmatpush.msra.mxu0 0.0
        %790 = vmatpush.msra.mxu0 0.0
        %791 = vmatpush.msra.mxu0 0.0
        %792 = vmatpush.msra.mxu0 0.0
        %793 = vmatpush.msra.mxu0 0.0
        %794 = vmatpush.msra.mxu0 0.0
        %795 = vmatpush.msra.mxu0 0.0
        %796 = vmatpush.msra.mxu0 0.0
        %797 = vmatpush.msra.mxu0 0.0
        %798 = vmatpush.msra.mxu0 0.0
        %799 = vmatpush.msra.mxu0 0.0
        %800 = vmatpush.msra.mxu0 %v596
        %801 = vmatpush.msra.mxu0 %v587
        %802 = vmatmul.f32.gmra.mxu0 %v620
        %v803 = vpop.f32.mrf.mxu0
        %v804 = vadd.f32 0.0, %v803
        %805 = vmatmul.f32.gmra.mxu0 %v623
        %v806 = vpop.f32.mrf.mxu0
        %v807 = vadd.f32 0.0, %v806
        %808 = vdwg.mxu0
        %809 = vmatpush.msra.mxu0 0.0
        %810 = vmatpush.msra.mxu0 0.0
        %811 = vmatpush.msra.mxu0 0.0
        %812 = vmatpush.msra.mxu0 0.0
        %813 = vmatpush.msra.mxu0 0.0
        %814 = vmatpush.msra.mxu0 0.0
        %815 = vmatpush.msra.mxu0 0.0
        %816 = vmatpush.msra.mxu0 0.0
        %817 = vmatpush.msra.mxu0 0.0
        %818 = vmatpush.msra.mxu0 0.0
        %819 = vmatpush.msra.mxu0 0.0
        %820 = vmatpush.msra.mxu0 0.0
        %821 = vmatpush.msra.mxu0 0.0
        %822 = vmatpush.msra.mxu0 0.0
        %823 = vmatpush.msra.mxu0 %v597
        %824 = vmatpush.msra.mxu0 %v588
        %825 = vmatmul.f32.gmra.mxu0 %v620
        %v826 = vpop.f32.mrf.mxu0
        %v827 = vadd.f32 0.0, %v826
        %828 = vmatmul.f32.gmra.mxu0 %v623
        %v829 = vpop.f32.mrf.mxu0
        %v830 = vadd.f32 0.0, %v829
        %831 = vdwg.mxu0
        %832 = vmatpush.msra.mxu0 0.0
        %833 = vmatpush.msra.mxu0 0.0
        %834 = vmatpush.msra.mxu0 0.0
        %835 = vmatpush.msra.mxu0 0.0
        %836 = vmatpush.msra.mxu0 0.0
        %837 = vmatpush.msra.mxu0 0.0
        %838 = vmatpush.msra.mxu0 0.0
        %839 = vmatpush.msra.mxu0 0.0
        %840 = vmatpush.msra.mxu0 0.0
        %841 = vmatpush.msra.mxu0 0.0
        %842 = vmatpush.msra.mxu0 0.0
        %843 = vmatpush.msra.mxu0 0.0
        %844 = vmatpush.msra.mxu0 0.0
        %845 = vmatpush.msra.mxu0 0.0
        %846 = vmatpush.msra.mxu0 %v578
        %847 = vmatpush.msra.mxu0 %v558
        %848 = vmatmul.f32.gmra.mxu0 %v620
        %v849 = vpop.f32.mrf.mxu0
        %v850 = vadd.f32 0.0, %v849
        %851 = vmatmul.f32.gmra.mxu0 %v623
        %v852 = vpop.f32.mrf.mxu0
        %v853 = vadd.f32 0.0, %v852
        %854 = vdwg.mxu0
        %v856 = vsel %vm618, %v514, 0
        %v859 = vsel %vm618, %v515, 0
        %861 = vmatpush.msra.mxu0 0.0
        %862 = vmatpush.msra.mxu0 0.0
        %863 = vmatpush.msra.mxu0 0.0
        %864 = vmatpush.msra.mxu0 0.0
        %865 = vmatpush.msra.mxu0 0.0
        %866 = vmatpush.msra.mxu0 0.0
        %867 = vmatpush.msra.mxu0 0.0
        %868 = vmatpush.msra.mxu0 0.0
        %869 = vmatpush.msra.mxu0 0.0
        %870 = vmatpush.msra.mxu0 0.0
        %871 = vmatpush.msra.mxu0 0.0
        %872 = vmatpush.msra.mxu0 0.0
        %873 = vmatpush.msra.mxu0 0.0
        %874 = vmatpush.msra.mxu0 0.0
        %875 = vmatpush.msra.mxu0 %v504
        %876 = vmatpush.msra.mxu0 %v494
        %877 = vmatmul.f32.gmra.mxu0 %v856
        %v878 = vpop.f32.mrf.mxu0
        %v879 = vadd.f32 %v643, %v878
        %880 = vmatmul.f32.gmra.mxu0 %v859
        %v881 = vpop.f32.mrf.mxu0
        %v882 = vadd.f32 %v646, %v881
        %883 = vdwg.mxu0
        %884 = vmatpush.msra.mxu0 0.0
        %885 = vmatpush.msra.mxu0 0.0
        %886 = vmatpush.msra.mxu0 0.0
        %887 = vmatpush.msra.mxu0 0.0
        %888 = vmatpush.msra.mxu0 0.0
        %889 = vmatpush.msra.mxu0 0.0
        %890 = vmatpush.msra.mxu0 0.0
        %891 = vmatpush.msra.mxu0 0.0
        %892 = vmatpush.msra.mxu0 0.0
        %893 = vmatpush.msra.mxu0 0.0
        %894 = vmatpush.msra.mxu0 0.0
        %895 = vmatpush.msra.mxu0 0.0
        %896 = vmatpush.msra.mxu0 0.0
        %897 = vmatpush.msra.mxu0 0.0
        %898 = vmatpush.msra.mxu0 %v505
        %899 = vmatpush.msra.mxu0 %v495
        %900 = vmatmul.f32.gmra.mxu0 %v856
        %v901 = vpop.f32.mrf.mxu0
        %v902 = vadd.f32 %v666, %v901
        %903 = vmatmul.f32.gmra.mxu0 %v859
        %v904 = vpop.f32.mrf.mxu0
        %v905 = vadd.f32 %v669, %v904
        %906 = vdwg.mxu0
        %907 = vmatpush.msra.mxu0 0.0
        %908 = vmatpush.msra.mxu0 0.0
        %909 = vmatpush.msra.mxu0 0.0
        %910 = vmatpush.msra.mxu0 0.0
        %911 = vmatpush.msra.mxu0 0.0
        %912 = vmatpush.msra.mxu0 0.0
        %913 = vmatpush.msra.mxu0 0.0
        %914 = vmatpush.msra.mxu0 0.0
        %915 = vmatpush.msra.mxu0 0.0
        %916 = vmatpush.msra.mxu0 0.0
        %917 = vmatpush.msra.mxu0 0.0
        %918 = vmatpush.msra.mxu0 0.0
        %919 = vmatpush.msra.mxu0 0.0
        %920 = vmatpush.msra.mxu0 0.0
        %921 = vmatpush.msra.mxu0 %v506
        %922 = vmatpush.msra.mxu0 %v496
        %923 = vmatmul.f32.gmra.mxu0 %v856
        %v924 = vpop.f32.mrf.mxu0
        %v925 = vadd.f32 %v689, %v924
        %926 = vmatmul.f32.gmra.mxu0 %v859
        %v927 = vpop.f32.mrf.mxu0
        %v928 = vadd.f32 %v692, %v927
        %929 = vdwg.mxu0
        %930 = vmatpush.msra.mxu0 0.0
        %931 = vmatpush.msra.mxu0 0.0
        %932 = vmatpush.msra.mxu0 0.0
        %933 = vmatpush.msra.mxu0 0.0
        %934 = vmatpush.msra.mxu0 0.0
        %935 = vmatpush.msra.mxu0 0.0
        %936 = vmatpush.msra.mxu0 0.0
        %937 = vmatpush.msra.mxu0 0.0
        %938 = vmatpush.msra.mxu0 0.0
        %939 = vmatpush.msra.mxu0 0.0
        %940 = vmatpush.msra.mxu0 0.0
        %941 = vmatpush.msra.mxu0 0.0
        %942 = vmatpush.msra.mxu0 0.0
        %943 = vmatpush.msra.mxu0 0.0
        %944 = vmatpush.msra.mxu0 %v507
        %945 = vmatpush.msra.mxu0 %v497
        %946 = vmatmul.f32.gmra.mxu0 %v856
        %v947 = vpop.f32.mrf.mxu0
        %v948 = vadd.f32 %v712, %v947
        %949 = vmatmul.f32.gmra.mxu0 %v859
        %v950 = vpop.f32.mrf.mxu0
        %v951 = vadd.f32 %v715, %v950
        %952 = vdwg.mxu0
        %953 = vmatpush.msra.mxu0 0.0
        %954 = vmatpush.msra.mxu0 0.0
        %955 = vmatpush.msra.mxu0 0.0
        %956 = vmatpush.msra.mxu0 0.0
        %957 = vmatpush.msra.mxu0 0.0
        %958 = vmatpush.msra.mxu0 0.0
        %959 = vmatpush.msra.mxu0 0.0
        %960 = vmatpush.msra.mxu0 0.0
        %961 = vmatpush.msra.mxu0 0.0
        %962 = vmatpush.msra.mxu0 0.0
        %963 = vmatpush.msra.mxu0 0.0
        %964 = vmatpush.msra.mxu0 0.0
        %965 = vmatpush.msra.mxu0 0.0
        %966 = vmatpush.msra.mxu0 0.0
        %967 = vmatpush.msra.mxu0 %v508
        %968 = vmatpush.msra.mxu0 %v498
        %969 = vmatmul.f32.gmra.mxu0 %v856
        %v970 = vpop.f32.mrf.mxu0
        %v971 = vadd.f32 %v735, %v970
        %972 = vmatmul.f32.gmra.mxu0 %v859
        %v973 = vpop.f32.mrf.mxu0
        %v974 = vadd.f32 %v738, %v973
        %975 = vdwg.mxu0
        %976 = vmatpush.msra.mxu0 0.0
        %977 = vmatpush.msra.mxu0 0.0
        %978 = vmatpush.msra.mxu0 0.0
        %979 = vmatpush.msra.mxu0 0.0
        %980 = vmatpush.msra.mxu0 0.0
        %981 = vmatpush.msra.mxu0 0.0
        %982 = vmatpush.msra.mxu0 0.0
        %983 = vmatpush.msra.mxu0 0.0
        %984 = vmatpush.msra.mxu0 0.0
        %985 = vmatpush.msra.mxu0 0.0
        %986 = vmatpush.msra.mxu0 0.0
        %987 = vmatpush.msra.mxu0 0.0
        %988 = vmatpush.msra.mxu0 0.0
        %989 = vmatpush.msra.mxu0 0.0
        %990 = vmatpush.msra.mxu0 %v509
        %991 = vmatpush.msra.mxu0 %v499
        %992 = vmatmul.f32.gmra.mxu0 %v856
        %v993 = vpop.f32.mrf.mxu0
        %v994 = vadd.f32 %v758, %v993
        %995 = vmatmul.f32.gmra.mxu0 %v859
        %v996 = vpop.f32.mrf.mxu0
        %v997 = vadd.f32 %v761, %v996
        %998 = vdwg.mxu0
        %999 = vmatpush.msra.mxu0 0.0
        %1000 = vmatpush.msra.mxu0 0.0
        %1001 = vmatpush.msra.mxu0 0.0
        %1002 = vmatpush.msra.mxu0 0.0
        %1003 = vmatpush.msra.mxu0 0.0
        %1004 = vmatpush.msra.mxu0 0.0
        %1005 = vmatpush.msra.mxu0 0.0
        %1006 = vmatpush.msra.mxu0 0.0
        %1007 = vmatpush.msra.mxu0 0.0
        %1008 = vmatpush.msra.mxu0 0.0
        %1009 = vmatpush.msra.mxu0 0.0
        %1010 = vmatpush.msra.mxu0 0.0
        %1011 = vmatpush.msra.mxu0 0.0
        %1012 = vmatpush.msra.mxu0 0.0
        %1013 = vmatpush.msra.mxu0 %v510
        %1014 = vmatpush.msra.mxu0 %v500
        %1015 = vmatmul.f32.gmra.mxu0 %v856
        %v1016 = vpop.f32.mrf.mxu0
        %v1017 = vadd.f32 %v781, %v1016
        %1018 = vmatmul.f32.gmra.mxu0 %v859
        %v1019 = vpop.f32.mrf.mxu0
        %v1020 = vadd.f32 %v784, %v1019
        %1021 = vdwg.mxu0
        %1022 = vmatpush.msra.mxu0 0.0
        %1023 = vmatpush.msra.mxu0 0.0
        %1024 = vmatpush.msra.mxu0 0.0
        %1025 = vmatpush.msra.mxu0 0.0
        %1026 = vmatpush.msra.mxu0 0.0
        %1027 = vmatpush.msra.mxu0 0.0
        %1028 = vmatpush.msra.mxu0 0.0
        %1029 = vmatpush.msra.mxu0 0.0
        %1030 = vmatpush.msra.mxu0 0.0
        %1031 = vmatpush.msra.mxu0 0.0
        %1032 = vmatpush.msra.mxu0 0.0
        %1033 = vmatpush.msra.mxu0 0.0
        %1034 = vmatpush.msra.mxu0 0.0
        %1035 = vmatpush.msra.mxu0 0.0
        %1036 = vmatpush.msra.mxu0 %v511
        %1037 = vmatpush.msra.mxu0 %v501
        %1038 = vmatmul.f32.gmra.mxu0 %v856
        %v1039 = vpop.f32.mrf.mxu0
        %v1040 = vadd.f32 %v804, %v1039
        %1041 = vmatmul.f32.gmra.mxu0 %v859
        %v1042 = vpop.f32.mrf.mxu0
        %v1043 = vadd.f32 %v807, %v1042
        %1044 = vdwg.mxu0
        %1045 = vmatpush.msra.mxu0 0.0
        %1046 = vmatpush.msra.mxu0 0.0
        %1047 = vmatpush.msra.mxu0 0.0
        %1048 = vmatpush.msra.mxu0 0.0
        %1049 = vmatpush.msra.mxu0 0.0
        %1050 = vmatpush.msra.mxu0 0.0
        %1051 = vmatpush.msra.mxu0 0.0
        %1052 = vmatpush.msra.mxu0 0.0
        %1053 = vmatpush.msra.mxu0 0.0
        %1054 = vmatpush.msra.mxu0 0.0
        %1055 = vmatpush.msra.mxu0 0.0
        %1056 = vmatpush.msra.mxu0 0.0
        %1057 = vmatpush.msra.mxu0 0.0
        %1058 = vmatpush.msra.mxu0 0.0
        %1059 = vmatpush.msra.mxu0 %v512
        %1060 = vmatpush.msra.mxu0 %v502
        %1061 = vmatmul.f32.gmra.mxu0 %v856
        %v1062 = vpop.f32.mrf.mxu0
        %v1063 = vadd.f32 %v827, %v1062
        %1064 = vmatmul.f32.gmra.mxu0 %v859
        %v1065 = vpop.f32.mrf.mxu0
        %v1066 = vadd.f32 %v830, %v1065
        %1067 = vdwg.mxu0
        %1068 = vmatpush.msra.mxu0 0.0
        %1069 = vmatpush.msra.mxu0 0.0
        %1070 = vmatpush.msra.mxu0 0.0
        %1071 = vmatpush.msra.mxu0 0.0
        %1072 = vmatpush.msra.mxu0 0.0
        %1073 = vmatpush.msra.mxu0 0.0
        %1074 = vmatpush.msra.mxu0 0.0
        %1075 = vmatpush.msra.mxu0 0.0
        %1076 = vmatpush.msra.mxu0 0.0
        %1077 = vmatpush.msra.mxu0 0.0
        %1078 = vmatpush.msra.mxu0 0.0
        %1079 = vmatpush.msra.mxu0 0.0
        %1080 = vmatpush.msra.mxu0 0.0
        %1081 = vmatpush.msra.mxu0 0.0
        %1082 = vmatpush.msra.mxu0 %v513
        %1083 = vmatpush.msra.mxu0 %v503
        %1084 = vmatmul.f32.gmra.mxu0 %v856
        %v1085 = vpop.f32.mrf.mxu0
        %v1086 = vadd.f32 %v850, %v1085
        %1087 = vmatmul.f32.gmra.mxu0 %v859
        %v1088 = vpop.f32.mrf.mxu0
        %v1089 = vadd.f32 %v853, %v1088
        %1090 = vdwg.mxu0
        %s1091 = scalar_lea.vmem [#allocation8], 32
        %v1092 = vld [vmem:[%s1091] sm:$0xff]
        %v1093 = vld [vmem:[%s1091 + $0x8] sm:$0xff]
        %1094 = vrot.lane.b32.xlu0 %v494, 126
        %v1095 = vpop.permute.xlu0 %1094
        %1096 = vrot.lane.b32.xlu0 %v495, 126
        %v1097 = vpop.permute.xlu0 %1096
        %1098 = vrot.lane.b32.xlu0 %v496, 126
        %v1099 = vpop.permute.xlu0 %1098
        %1100 = vrot.lane.b32.xlu0 %v497, 126
        %v1101 = vpop.permute.xlu0 %1100
        %1102 = vrot.lane.b32.xlu0 %v498, 126
        %v1103 = vpop.permute.xlu0 %1102
        %1104 = vrot.lane.b32.xlu0 %v499, 126
        %v1105 = vpop.permute.xlu0 %1104
        %1106 = vrot.lane.b32.xlu0 %v500, 126
        %v1107 = vpop.permute.xlu0 %1106
        %1108 = vrot.lane.b32.xlu0 %v501, 126
        %v1109 = vpop.permute.xlu0 %1108
        %1110 = vrot.lane.b32.xlu0 %v502, 126
        %v1111 = vpop.permute.xlu0 %1110
        %1112 = vrot.lane.b32.xlu0 %v503, 126
        %v1113 = vpop.permute.xlu0 %1112
        %1114 = vrot.lane.b32.xlu0 %v504, 126
        %v1115 = vpop.permute.xlu0 %1114
        %1116 = vrot.lane.b32.xlu0 %v505, 126
        %v1117 = vpop.permute.xlu0 %1116
        %1118 = vrot.lane.b32.xlu0 %v506, 126
        %v1119 = vpop.permute.xlu0 %1118
        %1120 = vrot.lane.b32.xlu0 %v507, 126
        %v1121 = vpop.permute.xlu0 %1120
        %1122 = vrot.lane.b32.xlu0 %v508, 126
        %v1123 = vpop.permute.xlu0 %1122
        %1124 = vrot.lane.b32.xlu0 %v509, 126
        %v1125 = vpop.permute.xlu0 %1124
        %1126 = vrot.lane.b32.xlu0 %v510, 126
        %v1127 = vpop.permute.xlu0 %1126
        %1128 = vrot.lane.b32.xlu0 %v511, 126
        %v1129 = vpop.permute.xlu0 %1128
        %1130 = vrot.lane.b32.xlu0 %v512, 126
        %v1131 = vpop.permute.xlu0 %1130
        %1132 = vrot.lane.b32.xlu0 %v513, 126
        %v1133 = vpop.permute.xlu0 %1132
        %vm1134 = vcmask 1031168
        %v1135 = vsel %vm1134, %v1095, %v1097
        %v1136 = vsel %vm1134, %v1097, %v1099
        %v1137 = vsel %vm1134, %v1099, %v1101
        %v1138 = vsel %vm1134, %v1101, %v1103
        %v1139 = vsel %vm1134, %v1103, %v1105
        %v1140 = vsel %vm1134, %v1105, %v1107
        %v1141 = vsel %vm1134, %v1107, %v1109
        %v1142 = vsel %vm1134, %v1109, %v1111
        %v1143 = vsel %vm1134, %v1111, %v1113
        %v1144 = vsel %vm1134, %v1115, %v1117
        %v1145 = vsel %vm1134, %v1117, %v1119
        %v1146 = vsel %vm1134, %v1119, %v1121
        %v1147 = vsel %vm1134, %v1121, %v1123
        %v1148 = vsel %vm1134, %v1123, %v1125
        %v1149 = vsel %vm1134, %v1125, %v1127
        %v1150 = vsel %vm1134, %v1127, %v1129
        %v1151 = vsel %vm1134, %v1129, %v1131
        %v1152 = vsel %vm1134, %v1131, %v1133
        %v1174 = vsel %vm618, %v1092, 0
        %v1177 = vsel %vm618, %v1093, 0
        %1179 = vmatpush.msra.mxu0 0.0
        %1180 = vmatpush.msra.mxu0 0.0
        %1181 = vmatpush.msra.mxu0 0.0
        %1182 = vmatpush.msra.mxu0 0.0
        %1183 = vmatpush.msra.mxu0 0.0
        %1184 = vmatpush.msra.mxu0 0.0
        %1185 = vmatpush.msra.mxu0 0.0
        %1186 = vmatpush.msra.mxu0 0.0
        %1187 = vmatpush.msra.mxu0 0.0
        %1188 = vmatpush.msra.mxu0 0.0
        %1189 = vmatpush.msra.mxu0 0.0
        %1190 = vmatpush.msra.mxu0 0.0
        %1191 = vmatpush.msra.mxu0 0.0
        %1192 = vmatpush.msra.mxu0 0.0
        %1193 = vmatpush.msra.mxu0 %v1144
        %1194 = vmatpush.msra.mxu0 %v1135
        %1195 = vmatmul.f32.gmra.mxu0 %v1174
        %v1196 = vpop.f32.mrf.mxu0
        %v1197 = vadd.f32 0.0, %v1196
        %1198 = vmatmul.f32.gmra.mxu0 %v1177
        %v1199 = vpop.f32.mrf.mxu0
        %v1200 = vadd.f32 0.0, %v1199
        %1201 = vdwg.mxu0
        %1202 = vmatpush.msra.mxu0 0.0
        %1203 = vmatpush.msra.mxu0 0.0
        %1204 = vmatpush.msra.mxu0 0.0
        %1205 = vmatpush.msra.mxu0 0.0
        %1206 = vmatpush.msra.mxu0 0.0
        %1207 = vmatpush.msra.mxu0 0.0
        %1208 = vmatpush.msra.mxu0 0.0
        %1209 = vmatpush.msra.mxu0 0.0
        %1210 = vmatpush.msra.mxu0 0.0
        %1211 = vmatpush.msra.mxu0 0.0
        %1212 = vmatpush.msra.mxu0 0.0
        %1213 = vmatpush.msra.mxu0 0.0
        %1214 = vmatpush.msra.mxu0 0.0
        %1215 = vmatpush.msra.mxu0 0.0
        %1216 = vmatpush.msra.mxu0 %v1145
        %1217 = vmatpush.msra.mxu0 %v1136
        %1218 = vmatmul.f32.gmra.mxu0 %v1174
        %v1219 = vpop.f32.mrf.mxu0
        %v1220 = vadd.f32 0.0, %v1219
        %1221 = vmatmul.f32.gmra.mxu0 %v1177
        %v1222 = vpop.f32.mrf.mxu0
        %v1223 = vadd.f32 0.0, %v1222
        %1224 = vdwg.mxu0
        %1225 = vmatpush.msra.mxu0 0.0
        %1226 = vmatpush.msra.mxu0 0.0
        %1227 = vmatpush.msra.mxu0 0.0
        %1228 = vmatpush.msra.mxu0 0.0
        %1229 = vmatpush.msra.mxu0 0.0
        %1230 = vmatpush.msra.mxu0 0.0
        %1231 = vmatpush.msra.mxu0 0.0
        %1232 = vmatpush.msra.mxu0 0.0
        %1233 = vmatpush.msra.mxu0 0.0
        %1234 = vmatpush.msra.mxu0 0.0
        %1235 = vmatpush.msra.mxu0 0.0
        %1236 = vmatpush.msra.mxu0 0.0
        %1237 = vmatpush.msra.mxu0 0.0
        %1238 = vmatpush.msra.mxu0 0.0
        %1239 = vmatpush.msra.mxu0 %v1146
        %1240 = vmatpush.msra.mxu0 %v1137
        %1241 = vmatmul.f32.gmra.mxu0 %v1174
        %v1242 = vpop.f32.mrf.mxu0
        %v1243 = vadd.f32 0.0, %v1242
        %1244 = vmatmul.f32.gmra.mxu0 %v1177
        %v1245 = vpop.f32.mrf.mxu0
        %v1246 = vadd.f32 0.0, %v1245
        %1247 = vdwg.mxu0
        %1248 = vmatpush.msra.mxu0 0.0
        %1249 = vmatpush.msra.mxu0 0.0
        %1250 = vmatpush.msra.mxu0 0.0
        %1251 = vmatpush.msra.mxu0 0.0
        %1252 = vmatpush.msra.mxu0 0.0
        %1253 = vmatpush.msra.mxu0 0.0
        %1254 = vmatpush.msra.mxu0 0.0
        %1255 = vmatpush.msra.mxu0 0.0
        %1256 = vmatpush.msra.mxu0 0.0
        %1257 = vmatpush.msra.mxu0 0.0
        %1258 = vmatpush.msra.mxu0 0.0
        %1259 = vmatpush.msra.mxu0 0.0
        %1260 = vmatpush.msra.mxu0 0.0
        %1261 = vmatpush.msra.mxu0 0.0
        %1262 = vmatpush.msra.mxu0 %v1147
        %1263 = vmatpush.msra.mxu0 %v1138
        %1264 = vmatmul.f32.gmra.mxu0 %v1174
        %v1265 = vpop.f32.mrf.mxu0
        %v1266 = vadd.f32 0.0, %v1265
        %1267 = vmatmul.f32.gmra.mxu0 %v1177
        %v1268 = vpop.f32.mrf.mxu0
        %v1269 = vadd.f32 0.0, %v1268
        %1270 = vdwg.mxu0
        %1271 = vmatpush.msra.mxu0 0.0
        %1272 = vmatpush.msra.mxu0 0.0
        %1273 = vmatpush.msra.mxu0 0.0
        %1274 = vmatpush.msra.mxu0 0.0
        %1275 = vmatpush.msra.mxu0 0.0
        %1276 = vmatpush.msra.mxu0 0.0
        %1277 = vmatpush.msra.mxu0 0.0
        %1278 = vmatpush.msra.mxu0 0.0
        %1279 = vmatpush.msra.mxu0 0.0
        %1280 = vmatpush.msra.mxu0 0.0
        %1281 = vmatpush.msra.mxu0 0.0
        %1282 = vmatpush.msra.mxu0 0.0
        %1283 = vmatpush.msra.mxu0 0.0
        %1284 = vmatpush.msra.mxu0 0.0
        %1285 = vmatpush.msra.mxu0 %v1148
        %1286 = vmatpush.msra.mxu0 %v1139
        %1287 = vmatmul.f32.gmra.mxu0 %v1174
        %v1288 = vpop.f32.mrf.mxu0
        %v1289 = vadd.f32 0.0, %v1288
        %1290 = vmatmul.f32.gmra.mxu0 %v1177
        %v1291 = vpop.f32.mrf.mxu0
        %v1292 = vadd.f32 0.0, %v1291
        %1293 = vdwg.mxu0
        %1294 = vmatpush.msra.mxu0 0.0
        %1295 = vmatpush.msra.mxu0 0.0
        %1296 = vmatpush.msra.mxu0 0.0
        %1297 = vmatpush.msra.mxu0 0.0
        %1298 = vmatpush.msra.mxu0 0.0
        %1299 = vmatpush.msra.mxu0 0.0
        %1300 = vmatpush.msra.mxu0 0.0
        %1301 = vmatpush.msra.mxu0 0.0
        %1302 = vmatpush.msra.mxu0 0.0
        %1303 = vmatpush.msra.mxu0 0.0
        %1304 = vmatpush.msra.mxu0 0.0
        %1305 = vmatpush.msra.mxu0 0.0
        %1306 = vmatpush.msra.mxu0 0.0
        %1307 = vmatpush.msra.mxu0 0.0
        %1308 = vmatpush.msra.mxu0 %v1149
        %1309 = vmatpush.msra.mxu0 %v1140
        %1310 = vmatmul.f32.gmra.mxu0 %v1174
        %v1311 = vpop.f32.mrf.mxu0
        %v1312 = vadd.f32 0.0, %v1311
        %1313 = vmatmul.f32.gmra.mxu0 %v1177
        %v1314 = vpop.f32.mrf.mxu0
        %v1315 = vadd.f32 0.0, %v1314
        %1316 = vdwg.mxu0
        %1317 = vmatpush.msra.mxu0 0.0
        %1318 = vmatpush.msra.mxu0 0.0
        %1319 = vmatpush.msra.mxu0 0.0
        %1320 = vmatpush.msra.mxu0 0.0
        %1321 = vmatpush.msra.mxu0 0.0
        %1322 = vmatpush.msra.mxu0 0.0
        %1323 = vmatpush.msra.mxu0 0.0
        %1324 = vmatpush.msra.mxu0 0.0
        %1325 = vmatpush.msra.mxu0 0.0
        %1326 = vmatpush.msra.mxu0 0.0
        %1327 = vmatpush.msra.mxu0 0.0
        %1328 = vmatpush.msra.mxu0 0.0
        %1329 = vmatpush.msra.mxu0 0.0
        %1330 = vmatpush.msra.mxu0 0.0
        %1331 = vmatpush.msra.mxu0 %v1150
        %1332 = vmatpush.msra.mxu0 %v1141
        %1333 = vmatmul.f32.gmra.mxu0 %v1174
        %v1334 = vpop.f32.mrf.mxu0
        %v1335 = vadd.f32 0.0, %v1334
        %1336 = vmatmul.f32.gmra.mxu0 %v1177
        %v1337 = vpop.f32.mrf.mxu0
        %v1338 = vadd.f32 0.0, %v1337
        %1339 = vdwg.mxu0
        %1340 = vmatpush.msra.mxu0 0.0
        %1341 = vmatpush.msra.mxu0 0.0
        %1342 = vmatpush.msra.mxu0 0.0
        %1343 = vmatpush.msra.mxu0 0.0
        %1344 = vmatpush.msra.mxu0 0.0
        %1345 = vmatpush.msra.mxu0 0.0
        %1346 = vmatpush.msra.mxu0 0.0
        %1347 = vmatpush.msra.mxu0 0.0
        %1348 = vmatpush.msra.mxu0 0.0
        %1349 = vmatpush.msra.mxu0 0.0
        %1350 = vmatpush.msra.mxu0 0.0
        %1351 = vmatpush.msra.mxu0 0.0
        %1352 = vmatpush.msra.mxu0 0.0
        %1353 = vmatpush.msra.mxu0 0.0
        %1354 = vmatpush.msra.mxu0 %v1151
        %1355 = vmatpush.msra.mxu0 %v1142
        %1356 = vmatmul.f32.gmra.mxu0 %v1174
        %v1357 = vpop.f32.mrf.mxu0
        %v1358 = vadd.f32 0.0, %v1357
        %1359 = vmatmul.f32.gmra.mxu0 %v1177
        %v1360 = vpop.f32.mrf.mxu0
        %v1361 = vadd.f32 0.0, %v1360
        %1362 = vdwg.mxu0
        %1363 = vmatpush.msra.mxu0 0.0
        %1364 = vmatpush.msra.mxu0 0.0
        %1365 = vmatpush.msra.mxu0 0.0
        %1366 = vmatpush.msra.mxu0 0.0
        %1367 = vmatpush.msra.mxu0 0.0
        %1368 = vmatpush.msra.mxu0 0.0
        %1369 = vmatpush.msra.mxu0 0.0
        %1370 = vmatpush.msra.mxu0 0.0
        %1371 = vmatpush.msra.mxu0 0.0
        %1372 = vmatpush.msra.mxu0 0.0
        %1373 = vmatpush.msra.mxu0 0.0
        %1374 = vmatpush.msra.mxu0 0.0
        %1375 = vmatpush.msra.mxu0 0.0
        %1376 = vmatpush.msra.mxu0 0.0
        %1377 = vmatpush.msra.mxu0 %v1152
        %1378 = vmatpush.msra.mxu0 %v1143
        %1379 = vmatmul.f32.gmra.mxu0 %v1174
        %v1380 = vpop.f32.mrf.mxu0
        %v1381 = vadd.f32 0.0, %v1380
        %1382 = vmatmul.f32.gmra.mxu0 %v1177
        %v1383 = vpop.f32.mrf.mxu0
        %v1384 = vadd.f32 0.0, %v1383
        %1385 = vdwg.mxu0
        %1386 = vmatpush.msra.mxu0 0.0
        %1387 = vmatpush.msra.mxu0 0.0
        %1388 = vmatpush.msra.mxu0 0.0
        %1389 = vmatpush.msra.mxu0 0.0
        %1390 = vmatpush.msra.mxu0 0.0
        %1391 = vmatpush.msra.mxu0 0.0
        %1392 = vmatpush.msra.mxu0 0.0
        %1393 = vmatpush.msra.mxu0 0.0
        %1394 = vmatpush.msra.mxu0 0.0
        %1395 = vmatpush.msra.mxu0 0.0
        %1396 = vmatpush.msra.mxu0 0.0
        %1397 = vmatpush.msra.mxu0 0.0
        %1398 = vmatpush.msra.mxu0 0.0
        %1399 = vmatpush.msra.mxu0 0.0
        %1400 = vmatpush.msra.mxu0 %v1133
        %1401 = vmatpush.msra.mxu0 %v1113
        %1402 = vmatmul.f32.gmra.mxu0 %v1174
        %v1403 = vpop.f32.mrf.mxu0
        %v1404 = vadd.f32 0.0, %v1403
        %1405 = vmatmul.f32.gmra.mxu0 %v1177
        %v1406 = vpop.f32.mrf.mxu0
        %v1407 = vadd.f32 0.0, %v1406
        %1408 = vdwg.mxu0
        %v1409 = vadd.f32 %v879, %v1197
        %v1410 = vadd.f32 %v902, %v1220
        %v1411 = vadd.f32 %v925, %v1243
        %v1412 = vadd.f32 %v948, %v1266
        %v1413 = vadd.f32 %v971, %v1289
        %v1414 = vadd.f32 %v994, %v1312
        %v1415 = vadd.f32 %v1017, %v1335
        %v1416 = vadd.f32 %v1040, %v1358
        %v1417 = vadd.f32 %v1063, %v1381
        %v1418 = vadd.f32 %v1086, %v1404
        %v1419 = vadd.f32 %v882, %v1200
        %v1420 = vadd.f32 %v905, %v1223
        %v1421 = vadd.f32 %v928, %v1246
        %v1422 = vadd.f32 %v951, %v1269
        %v1423 = vadd.f32 %v974, %v1292
        %v1424 = vadd.f32 %v997, %v1315
        %v1425 = vadd.f32 %v1020, %v1338
        %v1426 = vadd.f32 %v1043, %v1361
        %v1427 = vadd.f32 %v1066, %v1384
        %v1428 = vadd.f32 %v1089, %v1407
        %v1429 = vld [vmem:[%s4] sm:$0xff]
        %v1430 = vld [vmem:[%s4 + $0x8] sm:$0xff]
        %1432 = vset.pattern.permute.xlu0 0
        %1433 = vperm.xlu0 %1432, %v1429
        %v1434 = vpop.permute.xlu0 %1433
        %1437 = vset.pattern.permute.xlu0 0
        %1438 = vperm.xlu0 %1437, %v1430
        %v1439 = vpop.permute.xlu0 %1438
        %v1441 = vadd.f32 %v1409, %v1434
        %v1442 = vadd.f32 %v1410, %v1434
        %v1443 = vadd.f32 %v1411, %v1434
        %v1444 = vadd.f32 %v1412, %v1434
        %v1445 = vadd.f32 %v1413, %v1434
        %v1446 = vadd.f32 %v1414, %v1434
        %v1447 = vadd.f32 %v1415, %v1434
        %v1448 = vadd.f32 %v1416, %v1434
        %v1449 = vadd.f32 %v1417, %v1434
        %v1450 = vadd.f32 %v1418, %v1434
        %v1451 = vadd.f32 %v1419, %v1439
        %v1452 = vadd.f32 %v1420, %v1439
        %v1453 = vadd.f32 %v1421, %v1439
        %v1454 = vadd.f32 %v1422, %v1439
        %v1455 = vadd.f32 %v1423, %v1439
        %v1456 = vadd.f32 %v1424, %v1439
        %v1457 = vadd.f32 %v1425, %v1439
        %v1458 = vadd.f32 %v1426, %v1439
        %v1459 = vadd.f32 %v1427, %v1439
        %v1460 = vadd.f32 %v1428, %v1439
        %vm1461 = vcmp.ge.f32.partialorder %v1441, 0.0
        %vm1462 = vcmp.ge.f32.partialorder %v1442, 0.0
        %vm1463 = vcmp.ge.f32.partialorder %v1443, 0.0
        %vm1464 = vcmp.ge.f32.partialorder %v1444, 0.0
        %vm1465 = vcmp.ge.f32.partialorder %v1445, 0.0
        %vm1466 = vcmp.ge.f32.partialorder %v1446, 0.0
        %vm1467 = vcmp.ge.f32.partialorder %v1447, 0.0
        %vm1468 = vcmp.ge.f32.partialorder %v1448, 0.0
        %vm1469 = vcmp.ge.f32.partialorder %v1449, 0.0
        %vm1470 = vcmp.ge.f32.partialorder %v1450, 0.0
        %vm1471 = vcmp.ge.f32.partialorder %v1451, 0.0
        %vm1472 = vcmp.ge.f32.partialorder %v1452, 0.0
        %vm1473 = vcmp.ge.f32.partialorder %v1453, 0.0
        %vm1474 = vcmp.ge.f32.partialorder %v1454, 0.0
        %vm1475 = vcmp.ge.f32.partialorder %v1455, 0.0
        %vm1476 = vcmp.ge.f32.partialorder %v1456, 0.0
        %vm1477 = vcmp.ge.f32.partialorder %v1457, 0.0
        %vm1478 = vcmp.ge.f32.partialorder %v1458, 0.0
        %vm1479 = vcmp.ge.f32.partialorder %v1459, 0.0
        %vm1480 = vcmp.ge.f32.partialorder %v1460, 0.0
        %v1481 = vmul.f32 %v1441, 0.1
        %v1482 = vmul.f32 %v1442, 0.1
        %v1483 = vmul.f32 %v1443, 0.1
        %v1484 = vmul.f32 %v1444, 0.1
        %v1485 = vmul.f32 %v1445, 0.1
        %v1486 = vmul.f32 %v1446, 0.1
        %v1487 = vmul.f32 %v1447, 0.1
        %v1488 = vmul.f32 %v1448, 0.1
        %v1489 = vmul.f32 %v1449, 0.1
        %v1490 = vmul.f32 %v1450, 0.1
        %v1491 = vmul.f32 %v1451, 0.1
        %v1492 = vmul.f32 %v1452, 0.1
        %v1493 = vmul.f32 %v1453, 0.1
        %v1494 = vmul.f32 %v1454, 0.1
        %v1495 = vmul.f32 %v1455, 0.1
        %v1496 = vmul.f32 %v1456, 0.1
        %v1497 = vmul.f32 %v1457, 0.1
        %v1498 = vmul.f32 %v1458, 0.1
        %v1499 = vmul.f32 %v1459, 0.1
        %v1500 = vmul.f32 %v1460, 0.1
        %v1501 = vsel %vm1461, %v1441, %v1481
        %v1502 = vsel %vm1462, %v1442, %v1482
        %v1503 = vsel %vm1463, %v1443, %v1483
        %v1504 = vsel %vm1464, %v1444, %v1484
        %v1505 = vsel %vm1465, %v1445, %v1485
        %v1506 = vsel %vm1466, %v1446, %v1486
        %v1507 = vsel %vm1467, %v1447, %v1487
        %v1508 = vsel %vm1468, %v1448, %v1488
        %v1509 = vsel %vm1469, %v1449, %v1489
        %v1510 = vsel %vm1470, %v1450, %v1490
        %v1511 = vsel %vm1471, %v1451, %v1491
        %v1512 = vsel %vm1472, %v1452, %v1492
        %v1513 = vsel %vm1473, %v1453, %v1493
        %v1514 = vsel %vm1474, %v1454, %v1494
        %v1515 = vsel %vm1475, %v1455, %v1495
        %v1516 = vsel %vm1476, %v1456, %v1496
        %v1517 = vsel %vm1477, %v1457, %v1497
        %v1518 = vsel %vm1478, %v1458, %v1498
        %v1519 = vsel %vm1479, %v1459, %v1499
        %v1520 = vsel %vm1480, %v1460, %v1500
        %1524 = vrot.lane.b32.xlu0 %v491, 127
        %v1525 = vpop.permute.xlu0 %1524
        %1526 = vrot.lane.b32.xlu0 %v492, 127
        %v1527 = vpop.permute.xlu0 %1526
        %1528 = vrot.lane.b32.xlu0 %v493, 127
        %v1529 = vpop.permute.xlu0 %1528
        %v1530 = vsel %vm579, %v1525, %v1527
        %v1531 = vsel %vm579, %v1527, %v1529
        %v1536 = vmul.f32 %v1501, %v1530
        %v1537 = vmul.f32 %v1502, %v1527
        %v1538 = vmul.f32 %v1503, %v1527
        %v1539 = vmul.f32 %v1504, %v1527
        %v1540 = vmul.f32 %v1505, %v1527
        %v1541 = vmul.f32 %v1506, %v1527
        %v1542 = vmul.f32 %v1507, %v1527
        %v1543 = vmul.f32 %v1508, %v1527
        %v1544 = vmul.f32 %v1509, %v1531
        %v1545 = vmul.f32 %v1510, %v1529
        %v1546 = vmul.f32 %v1511, %v1530
        %v1547 = vmul.f32 %v1512, %v1527
        %v1548 = vmul.f32 %v1513, %v1527
        %v1549 = vmul.f32 %v1514, %v1527
        %v1550 = vmul.f32 %v1515, %v1527
        %v1551 = vmul.f32 %v1516, %v1527
        %v1552 = vmul.f32 %v1517, %v1527
        %v1553 = vmul.f32 %v1518, %v1527
        %v1554 = vmul.f32 %v1519, %v1531
        %v1555 = vmul.f32 %v1520, %v1529
        %s1556 = scalar_lea.vmem [#allocation8], 48
        %v1557 = vld [vmem:[%s1556] sm:$0xff]
        %v1558 = vld [vmem:[%s1556 + $0x8] sm:$0xff]
        %s1559 = scalar_lea.vmem [#allocation8], 64
        %v1560 = vld [vmem:[%s1559] sm:$0xff]
        %v1561 = vld [vmem:[%s1559 + $0x8] sm:$0xff]
        %1582 = vrot.lane.b32.xlu0 %v1536, 125
        %v1583 = vpop.permute.xlu0 %1582
        %1584 = vrot.lane.b32.xlu0 %v1537, 125
        %v1585 = vpop.permute.xlu0 %1584
        %1586 = vrot.lane.b32.xlu0 %v1538, 125
        %v1587 = vpop.permute.xlu0 %1586
        %1588 = vrot.lane.b32.xlu0 %v1539, 125
        %v1589 = vpop.permute.xlu0 %1588
        %1590 = vrot.lane.b32.xlu0 %v1540, 125
        %v1591 = vpop.permute.xlu0 %1590
        %1592 = vrot.lane.b32.xlu0 %v1541, 125
        %v1593 = vpop.permute.xlu0 %1592
        %1594 = vrot.lane.b32.xlu0 %v1542, 125
        %v1595 = vpop.permute.xlu0 %1594
        %1596 = vrot.lane.b32.xlu0 %v1543, 125
        %v1597 = vpop.permute.xlu0 %1596
        %1598 = vrot.lane.b32.xlu0 %v1544, 125
        %v1599 = vpop.permute.xlu0 %1598
        %1600 = vrot.lane.b32.xlu0 %v1545, 125
        %v1601 = vpop.permute.xlu0 %1600
        %1602 = vrot.lane.b32.xlu0 %v1546, 125
        %v1603 = vpop.permute.xlu0 %1602
        %1604 = vrot.lane.b32.xlu0 %v1547, 125
        %v1605 = vpop.permute.xlu0 %1604
        %1606 = vrot.lane.b32.xlu0 %v1548, 125
        %v1607 = vpop.permute.xlu0 %1606
        %1608 = vrot.lane.b32.xlu0 %v1549, 125
        %v1609 = vpop.permute.xlu0 %1608
        %1610 = vrot.lane.b32.xlu0 %v1550, 125
        %v1611 = vpop.permute.xlu0 %1610
        %1612 = vrot.lane.b32.xlu0 %v1551, 125
        %v1613 = vpop.permute.xlu0 %1612
        %1614 = vrot.lane.b32.xlu0 %v1552, 125
        %v1615 = vpop.permute.xlu0 %1614
        %1616 = vrot.lane.b32.xlu0 %v1553, 125
        %v1617 = vpop.permute.xlu0 %1616
        %1618 = vrot.lane.b32.xlu0 %v1554, 125
        %v1619 = vpop.permute.xlu0 %1618
        %1620 = vrot.lane.b32.xlu0 %v1555, 125
        %v1621 = vpop.permute.xlu0 %1620
        %vm1622 = vcmask 1022976
        %v1623 = vsel %vm1622, %v1583, %v1585
        %v1624 = vsel %vm1622, %v1585, %v1587
        %v1625 = vsel %vm1622, %v1587, %v1589
        %v1626 = vsel %vm1622, %v1589, %v1591
        %v1627 = vsel %vm1622, %v1591, %v1593
        %v1628 = vsel %vm1622, %v1593, %v1595
        %v1629 = vsel %vm1622, %v1595, %v1597
        %v1630 = vsel %vm1622, %v1597, %v1599
        %v1631 = vsel %vm1622, %v1599, %v1601
        %v1632 = vsel %vm1622, %v1603, %v1605
        %v1633 = vsel %vm1622, %v1605, %v1607
        %v1634 = vsel %vm1622, %v1607, %v1609
        %v1635 = vsel %vm1622, %v1609, %v1611
        %v1636 = vsel %vm1622, %v1611, %v1613
        %v1637 = vsel %vm1622, %v1613, %v1615
        %v1638 = vsel %vm1622, %v1615, %v1617
        %v1639 = vsel %vm1622, %v1617, %v1619
        %v1640 = vsel %vm1622, %v1619, %v1621
        %v1662 = vsel %vm618, %v1560, 0
        %v1665 = vsel %vm618, %v1561, 0
        %1667 = vmatpush.msra.mxu0 0.0
        %1668 = vmatpush.msra.mxu0 0.0
        %1669 = vmatpush.msra.mxu0 0.0
        %1670 = vmatpush.msra.mxu0 0.0
        %1671 = vmatpush.msra.mxu0 0.0
        %1672 = vmatpush.msra.mxu0 0.0
        %1673 = vmatpush.msra.mxu0 0.0
        %1674 = vmatpush.msra.mxu0 0.0
        %1675 = vmatpush.msra.mxu0 0.0
        %1676 = vmatpush.msra.mxu0 0.0
        %1677 = vmatpush.msra.mxu0 0.0
        %1678 = vmatpush.msra.mxu0 0.0
        %1679 = vmatpush.msra.mxu0 0.0
        %1680 = vmatpush.msra.mxu0 0.0
        %1681 = vmatpush.msra.mxu0 %v1632
        %1682 = vmatpush.msra.mxu0 %v1623
        %1683 = vmatmul.f32.gmra.mxu0 %v1662
        %v1684 = vpop.f32.mrf.mxu0
        %v1685 = vadd.f32 0.0, %v1684
        %1686 = vmatmul.f32.gmra.mxu0 %v1665
        %v1687 = vpop.f32.mrf.mxu0
        %v1688 = vadd.f32 0.0, %v1687
        %1689 = vdwg.mxu0
        %1690 = vmatpush.msra.mxu0 0.0
        %1691 = vmatpush.msra.mxu0 0.0
        %1692 = vmatpush.msra.mxu0 0.0
        %1693 = vmatpush.msra.mxu0 0.0
        %1694 = vmatpush.msra.mxu0 0.0
        %1695 = vmatpush.msra.mxu0 0.0
        %1696 = vmatpush.msra.mxu0 0.0
        %1697 = vmatpush.msra.mxu0 0.0
        %1698 = vmatpush.msra.mxu0 0.0
        %1699 = vmatpush.msra.mxu0 0.0
        %1700 = vmatpush.msra.mxu0 0.0
        %1701 = vmatpush.msra.mxu0 0.0
        %1702 = vmatpush.msra.mxu0 0.0
        %1703 = vmatpush.msra.mxu0 0.0
        %1704 = vmatpush.msra.mxu0 %v1633
        %1705 = vmatpush.msra.mxu0 %v1624
        %1706 = vmatmul.f32.gmra.mxu0 %v1662
        %v1707 = vpop.f32.mrf.mxu0
        %v1708 = vadd.f32 0.0, %v1707
        %1709 = vmatmul.f32.gmra.mxu0 %v1665
        %v1710 = vpop.f32.mrf.mxu0
        %v1711 = vadd.f32 0.0, %v1710
        %1712 = vdwg.mxu0
        %1713 = vmatpush.msra.mxu0 0.0
        %1714 = vmatpush.msra.mxu0 0.0
        %1715 = vmatpush.msra.mxu0 0.0
        %1716 = vmatpush.msra.mxu0 0.0
        %1717 = vmatpush.msra.mxu0 0.0
        %1718 = vmatpush.msra.mxu0 0.0
        %1719 = vmatpush.msra.mxu0 0.0
        %1720 = vmatpush.msra.mxu0 0.0
        %1721 = vmatpush.msra.mxu0 0.0
        %1722 = vmatpush.msra.mxu0 0.0
        %1723 = vmatpush.msra.mxu0 0.0
        %1724 = vmatpush.msra.mxu0 0.0
        %1725 = vmatpush.msra.mxu0 0.0
        %1726 = vmatpush.msra.mxu0 0.0
        %1727 = vmatpush.msra.mxu0 %v1634
        %1728 = vmatpush.msra.mxu0 %v1625
        %1729 = vmatmul.f32.gmra.mxu0 %v1662
        %v1730 = vpop.f32.mrf.mxu0
        %v1731 = vadd.f32 0.0, %v1730
        %1732 = vmatmul.f32.gmra.mxu0 %v1665
        %v1733 = vpop.f32.mrf.mxu0
        %v1734 = vadd.f32 0.0, %v1733
        %1735 = vdwg.mxu0
        %1736 = vmatpush.msra.mxu0 0.0
        %1737 = vmatpush.msra.mxu0 0.0
        %1738 = vmatpush.msra.mxu0 0.0
        %1739 = vmatpush.msra.mxu0 0.0
        %1740 = vmatpush.msra.mxu0 0.0
        %1741 = vmatpush.msra.mxu0 0.0
        %1742 = vmatpush.msra.mxu0 0.0
        %1743 = vmatpush.msra.mxu0 0.0
        %1744 = vmatpush.msra.mxu0 0.0
        %1745 = vmatpush.msra.mxu0 0.0
        %1746 = vmatpush.msra.mxu0 0.0
        %1747 = vmatpush.msra.mxu0 0.0
        %1748 = vmatpush.msra.mxu0 0.0
        %1749 = vmatpush.msra.mxu0 0.0
        %1750 = vmatpush.msra.mxu0 %v1635
        %1751 = vmatpush.msra.mxu0 %v1626
        %1752 = vmatmul.f32.gmra.mxu0 %v1662
        %v1753 = vpop.f32.mrf.mxu0
        %v1754 = vadd.f32 0.0, %v1753
        %1755 = vmatmul.f32.gmra.mxu0 %v1665
        %v1756 = vpop.f32.mrf.mxu0
        %v1757 = vadd.f32 0.0, %v1756
        %1758 = vdwg.mxu0
        %1759 = vmatpush.msra.mxu0 0.0
        %1760 = vmatpush.msra.mxu0 0.0
        %1761 = vmatpush.msra.mxu0 0.0
        %1762 = vmatpush.msra.mxu0 0.0
        %1763 = vmatpush.msra.mxu0 0.0
        %1764 = vmatpush.msra.mxu0 0.0
        %1765 = vmatpush.msra.mxu0 0.0
        %1766 = vmatpush.msra.mxu0 0.0
        %1767 = vmatpush.msra.mxu0 0.0
        %1768 = vmatpush.msra.mxu0 0.0
        %1769 = vmatpush.msra.mxu0 0.0
        %1770 = vmatpush.msra.mxu0 0.0
        %1771 = vmatpush.msra.mxu0 0.0
        %1772 = vmatpush.msra.mxu0 0.0
        %1773 = vmatpush.msra.mxu0 %v1636
        %1774 = vmatpush.msra.mxu0 %v1627
        %1775 = vmatmul.f32.gmra.mxu0 %v1662
        %v1776 = vpop.f32.mrf.mxu0
        %v1777 = vadd.f32 0.0, %v1776
        %1778 = vmatmul.f32.gmra.mxu0 %v1665
        %v1779 = vpop.f32.mrf.mxu0
        %v1780 = vadd.f32 0.0, %v1779
        %1781 = vdwg.mxu0
        %1782 = vmatpush.msra.mxu0 0.0
        %1783 = vmatpush.msra.mxu0 0.0
        %1784 = vmatpush.msra.mxu0 0.0
        %1785 = vmatpush.msra.mxu0 0.0
        %1786 = vmatpush.msra.mxu0 0.0
        %1787 = vmatpush.msra.mxu0 0.0
        %1788 = vmatpush.msra.mxu0 0.0
        %1789 = vmatpush.msra.mxu0 0.0
        %1790 = vmatpush.msra.mxu0 0.0
        %1791 = vmatpush.msra.mxu0 0.0
        %1792 = vmatpush.msra.mxu0 0.0
        %1793 = vmatpush.msra.mxu0 0.0
        %1794 = vmatpush.msra.mxu0 0.0
        %1795 = vmatpush.msra.mxu0 0.0
        %1796 = vmatpush.msra.mxu0 %v1637
        %1797 = vmatpush.msra.mxu0 %v1628
        %1798 = vmatmul.f32.gmra.mxu0 %v1662
        %v1799 = vpop.f32.mrf.mxu0
        %v1800 = vadd.f32 0.0, %v1799
        %1801 = vmatmul.f32.gmra.mxu0 %v1665
        %v1802 = vpop.f32.mrf.mxu0
        %v1803 = vadd.f32 0.0, %v1802
        %1804 = vdwg.mxu0
        %1805 = vmatpush.msra.mxu0 0.0
        %1806 = vmatpush.msra.mxu0 0.0
        %1807 = vmatpush.msra.mxu0 0.0
        %1808 = vmatpush.msra.mxu0 0.0
        %1809 = vmatpush.msra.mxu0 0.0
        %1810 = vmatpush.msra.mxu0 0.0
        %1811 = vmatpush.msra.mxu0 0.0
        %1812 = vmatpush.msra.mxu0 0.0
        %1813 = vmatpush.msra.mxu0 0.0
        %1814 = vmatpush.msra.mxu0 0.0
        %1815 = vmatpush.msra.mxu0 0.0
        %1816 = vmatpush.msra.mxu0 0.0
        %1817 = vmatpush.msra.mxu0 0.0
        %1818 = vmatpush.msra.mxu0 0.0
        %1819 = vmatpush.msra.mxu0 %v1638
        %1820 = vmatpush.msra.mxu0 %v1629
        %1821 = vmatmul.f32.gmra.mxu0 %v1662
        %v1822 = vpop.f32.mrf.mxu0
        %v1823 = vadd.f32 0.0, %v1822
        %1824 = vmatmul.f32.gmra.mxu0 %v1665
        %v1825 = vpop.f32.mrf.mxu0
        %v1826 = vadd.f32 0.0, %v1825
        %1827 = vdwg.mxu0
        %1828 = vmatpush.msra.mxu0 0.0
        %1829 = vmatpush.msra.mxu0 0.0
        %1830 = vmatpush.msra.mxu0 0.0
        %1831 = vmatpush.msra.mxu0 0.0
        %1832 = vmatpush.msra.mxu0 0.0
        %1833 = vmatpush.msra.mxu0 0.0
        %1834 = vmatpush.msra.mxu0 0.0
        %1835 = vmatpush.msra.mxu0 0.0
        %1836 = vmatpush.msra.mxu0 0.0
        %1837 = vmatpush.msra.mxu0 0.0
        %1838 = vmatpush.msra.mxu0 0.0
        %1839 = vmatpush.msra.mxu0 0.0
        %1840 = vmatpush.msra.mxu0 0.0
        %1841 = vmatpush.msra.mxu0 0.0
        %1842 = vmatpush.msra.mxu0 %v1639
        %1843 = vmatpush.msra.mxu0 %v1630
        %1844 = vmatmul.f32.gmra.mxu0 %v1662
        %v1845 = vpop.f32.mrf.mxu0
        %v1846 = vadd.f32 0.0, %v1845
        %1847 = vmatmul.f32.gmra.mxu0 %v1665
        %v1848 = vpop.f32.mrf.mxu0
        %v1849 = vadd.f32 0.0, %v1848
        %1850 = vdwg.mxu0
        %1851 = vmatpush.msra.mxu0 0.0
        %1852 = vmatpush.msra.mxu0 0.0
        %1853 = vmatpush.msra.mxu0 0.0
        %1854 = vmatpush.msra.mxu0 0.0
        %1855 = vmatpush.msra.mxu0 0.0
        %1856 = vmatpush.msra.mxu0 0.0
        %1857 = vmatpush.msra.mxu0 0.0
        %1858 = vmatpush.msra.mxu0 0.0
        %1859 = vmatpush.msra.mxu0 0.0
        %1860 = vmatpush.msra.mxu0 0.0
        %1861 = vmatpush.msra.mxu0 0.0
        %1862 = vmatpush.msra.mxu0 0.0
        %1863 = vmatpush.msra.mxu0 0.0
        %1864 = vmatpush.msra.mxu0 0.0
        %1865 = vmatpush.msra.mxu0 %v1640
        %1866 = vmatpush.msra.mxu0 %v1631
        %1867 = vmatmul.f32.gmra.mxu0 %v1662
        %v1868 = vpop.f32.mrf.mxu0
        %v1869 = vadd.f32 0.0, %v1868
        %1870 = vmatmul.f32.gmra.mxu0 %v1665
        %v1871 = vpop.f32.mrf.mxu0
        %v1872 = vadd.f32 0.0, %v1871
        %1873 = vdwg.mxu0
        %1874 = vmatpush.msra.mxu0 0.0
        %1875 = vmatpush.msra.mxu0 0.0
        %1876 = vmatpush.msra.mxu0 0.0
        %1877 = vmatpush.msra.mxu0 0.0
        %1878 = vmatpush.msra.mxu0 0.0
        %1879 = vmatpush.msra.mxu0 0.0
        %1880 = vmatpush.msra.mxu0 0.0
        %1881 = vmatpush.msra.mxu0 0.0
        %1882 = vmatpush.msra.mxu0 0.0
        %1883 = vmatpush.msra.mxu0 0.0
        %1884 = vmatpush.msra.mxu0 0.0
        %1885 = vmatpush.msra.mxu0 0.0
        %1886 = vmatpush.msra.mxu0 0.0
        %1887 = vmatpush.msra.mxu0 0.0
        %1888 = vmatpush.msra.mxu0 %v1621
        %1889 = vmatpush.msra.mxu0 %v1601
        %1890 = vmatmul.f32.gmra.mxu0 %v1662
        %v1891 = vpop.f32.mrf.mxu0
        %v1892 = vadd.f32 0.0, %v1891
        %1893 = vmatmul.f32.gmra.mxu0 %v1665
        %v1894 = vpop.f32.mrf.mxu0
        %v1895 = vadd.f32 0.0, %v1894
        %1896 = vdwg.mxu0
        %v1898 = vsel %vm618, %v1557, 0
        %v1901 = vsel %vm618, %v1558, 0
        %1903 = vmatpush.msra.mxu0 0.0
        %1904 = vmatpush.msra.mxu0 0.0
        %1905 = vmatpush.msra.mxu0 0.0
        %1906 = vmatpush.msra.mxu0 0.0
        %1907 = vmatpush.msra.mxu0 0.0
        %1908 = vmatpush.msra.mxu0 0.0
        %1909 = vmatpush.msra.mxu0 0.0
        %1910 = vmatpush.msra.mxu0 0.0
        %1911 = vmatpush.msra.mxu0 0.0
        %1912 = vmatpush.msra.mxu0 0.0
        %1913 = vmatpush.msra.mxu0 0.0
        %1914 = vmatpush.msra.mxu0 0.0
        %1915 = vmatpush.msra.mxu0 0.0
        %1916 = vmatpush.msra.mxu0 0.0
        %1917 = vmatpush.msra.mxu0 %v1546
        %1918 = vmatpush.msra.mxu0 %v1536
        %1919 = vmatmul.f32.gmra.mxu0 %v1898
        %v1920 = vpop.f32.mrf.mxu0
        %v1921 = vadd.f32 %v1685, %v1920
        %1922 = vmatmul.f32.gmra.mxu0 %v1901
        %v1923 = vpop.f32.mrf.mxu0
        %v1924 = vadd.f32 %v1688, %v1923
        %1925 = vdwg.mxu0
        %1926 = vmatpush.msra.mxu0 0.0
        %1927 = vmatpush.msra.mxu0 0.0
        %1928 = vmatpush.msra.mxu0 0.0
        %1929 = vmatpush.msra.mxu0 0.0
        %1930 = vmatpush.msra.mxu0 0.0
        %1931 = vmatpush.msra.mxu0 0.0
        %1932 = vmatpush.msra.mxu0 0.0
        %1933 = vmatpush.msra.mxu0 0.0
        %1934 = vmatpush.msra.mxu0 0.0
        %1935 = vmatpush.msra.mxu0 0.0
        %1936 = vmatpush.msra.mxu0 0.0
        %1937 = vmatpush.msra.mxu0 0.0
        %1938 = vmatpush.msra.mxu0 0.0
        %1939 = vmatpush.msra.mxu0 0.0
        %1940 = vmatpush.msra.mxu0 %v1547
        %1941 = vmatpush.msra.mxu0 %v1537
        %1942 = vmatmul.f32.gmra.mxu0 %v1898
        %v1943 = vpop.f32.mrf.mxu0
        %v1944 = vadd.f32 %v1708, %v1943
        %1945 = vmatmul.f32.gmra.mxu0 %v1901
        %v1946 = vpop.f32.mrf.mxu0
        %v1947 = vadd.f32 %v1711, %v1946
        %1948 = vdwg.mxu0
        %1949 = vmatpush.msra.mxu0 0.0
        %1950 = vmatpush.msra.mxu0 0.0
        %1951 = vmatpush.msra.mxu0 0.0
        %1952 = vmatpush.msra.mxu0 0.0
        %1953 = vmatpush.msra.mxu0 0.0
        %1954 = vmatpush.msra.mxu0 0.0
        %1955 = vmatpush.msra.mxu0 0.0
        %1956 = vmatpush.msra.mxu0 0.0
        %1957 = vmatpush.msra.mxu0 0.0
        %1958 = vmatpush.msra.mxu0 0.0
        %1959 = vmatpush.msra.mxu0 0.0
        %1960 = vmatpush.msra.mxu0 0.0
        %1961 = vmatpush.msra.mxu0 0.0
        %1962 = vmatpush.msra.mxu0 0.0
        %1963 = vmatpush.msra.mxu0 %v1548
        %1964 = vmatpush.msra.mxu0 %v1538
        %1965 = vmatmul.f32.gmra.mxu0 %v1898
        %v1966 = vpop.f32.mrf.mxu0
        %v1967 = vadd.f32 %v1731, %v1966
        %1968 = vmatmul.f32.gmra.mxu0 %v1901
        %v1969 = vpop.f32.mrf.mxu0
        %v1970 = vadd.f32 %v1734, %v1969
        %1971 = vdwg.mxu0
        %1972 = vmatpush.msra.mxu0 0.0
        %1973 = vmatpush.msra.mxu0 0.0
        %1974 = vmatpush.msra.mxu0 0.0
        %1975 = vmatpush.msra.mxu0 0.0
        %1976 = vmatpush.msra.mxu0 0.0
        %1977 = vmatpush.msra.mxu0 0.0
        %1978 = vmatpush.msra.mxu0 0.0
        %1979 = vmatpush.msra.mxu0 0.0
        %1980 = vmatpush.msra.mxu0 0.0
        %1981 = vmatpush.msra.mxu0 0.0
        %1982 = vmatpush.msra.mxu0 0.0
        %1983 = vmatpush.msra.mxu0 0.0
        %1984 = vmatpush.msra.mxu0 0.0
        %1985 = vmatpush.msra.mxu0 0.0
        %1986 = vmatpush.msra.mxu0 %v1549
        %1987 = vmatpush.msra.mxu0 %v1539
        %1988 = vmatmul.f32.gmra.mxu0 %v1898
        %v1989 = vpop.f32.mrf.mxu0
        %v1990 = vadd.f32 %v1754, %v1989
        %1991 = vmatmul.f32.gmra.mxu0 %v1901
        %v1992 = vpop.f32.mrf.mxu0
        %v1993 = vadd.f32 %v1757, %v1992
        %1994 = vdwg.mxu0
        %1995 = vmatpush.msra.mxu0 0.0
        %1996 = vmatpush.msra.mxu0 0.0
        %1997 = vmatpush.msra.mxu0 0.0
        %1998 = vmatpush.msra.mxu0 0.0
        %1999 = vmatpush.msra.mxu0 0.0
        %2000 = vmatpush.msra.mxu0 0.0
        %2001 = vmatpush.msra.mxu0 0.0
        %2002 = vmatpush.msra.mxu0 0.0
        %2003 = vmatpush.msra.mxu0 0.0
        %2004 = vmatpush.msra.mxu0 0.0
        %2005 = vmatpush.msra.mxu0 0.0
        %2006 = vmatpush.msra.mxu0 0.0
        %2007 = vmatpush.msra.mxu0 0.0
        %2008 = vmatpush.msra.mxu0 0.0
        %2009 = vmatpush.msra.mxu0 %v1550
        %2010 = vmatpush.msra.mxu0 %v1540
        %2011 = vmatmul.f32.gmra.mxu0 %v1898
        %v2012 = vpop.f32.mrf.mxu0
        %v2013 = vadd.f32 %v1777, %v2012
        %2014 = vmatmul.f32.gmra.mxu0 %v1901
        %v2015 = vpop.f32.mrf.mxu0
        %v2016 = vadd.f32 %v1780, %v2015
        %2017 = vdwg.mxu0
        %2018 = vmatpush.msra.mxu0 0.0
        %2019 = vmatpush.msra.mxu0 0.0
        %2020 = vmatpush.msra.mxu0 0.0
        %2021 = vmatpush.msra.mxu0 0.0
        %2022 = vmatpush.msra.mxu0 0.0
        %2023 = vmatpush.msra.mxu0 0.0
        %2024 = vmatpush.msra.mxu0 0.0
        %2025 = vmatpush.msra.mxu0 0.0
        %2026 = vmatpush.msra.mxu0 0.0
        %2027 = vmatpush.msra.mxu0 0.0
        %2028 = vmatpush.msra.mxu0 0.0
        %2029 = vmatpush.msra.mxu0 0.0
        %2030 = vmatpush.msra.mxu0 0.0
        %2031 = vmatpush.msra.mxu0 0.0
        %2032 = vmatpush.msra.mxu0 %v1551
        %2033 = vmatpush.msra.mxu0 %v1541
        %2034 = vmatmul.f32.gmra.mxu0 %v1898
        %v2035 = vpop.f32.mrf.mxu0
        %v2036 = vadd.f32 %v1800, %v2035
        %2037 = vmatmul.f32.gmra.mxu0 %v1901
        %v2038 = vpop.f32.mrf.mxu0
        %v2039 = vadd.f32 %v1803, %v2038
        %2040 = vdwg.mxu0
        %2041 = vmatpush.msra.mxu0 0.0
        %2042 = vmatpush.msra.mxu0 0.0
        %2043 = vmatpush.msra.mxu0 0.0
        %2044 = vmatpush.msra.mxu0 0.0
        %2045 = vmatpush.msra.mxu0 0.0
        %2046 = vmatpush.msra.mxu0 0.0
        %2047 = vmatpush.msra.mxu0 0.0
        %2048 = vmatpush.msra.mxu0 0.0
        %2049 = vmatpush.msra.mxu0 0.0
        %2050 = vmatpush.msra.mxu0 0.0
        %2051 = vmatpush.msra.mxu0 0.0
        %2052 = vmatpush.msra.mxu0 0.0
        %2053 = vmatpush.msra.mxu0 0.0
        %2054 = vmatpush.msra.mxu0 0.0
        %2055 = vmatpush.msra.mxu0 %v1552
        %2056 = vmatpush.msra.mxu0 %v1542
        %2057 = vmatmul.f32.gmra.mxu0 %v1898
        %v2058 = vpop.f32.mrf.mxu0
        %v2059 = vadd.f32 %v1823, %v2058
        %2060 = vmatmul.f32.gmra.mxu0 %v1901
        %v2061 = vpop.f32.mrf.mxu0
        %v2062 = vadd.f32 %v1826, %v2061
        %2063 = vdwg.mxu0
        %2064 = vmatpush.msra.mxu0 0.0
        %2065 = vmatpush.msra.mxu0 0.0
        %2066 = vmatpush.msra.mxu0 0.0
        %2067 = vmatpush.msra.mxu0 0.0
        %2068 = vmatpush.msra.mxu0 0.0
        %2069 = vmatpush.msra.mxu0 0.0
        %2070 = vmatpush.msra.mxu0 0.0
        %2071 = vmatpush.msra.mxu0 0.0
        %2072 = vmatpush.msra.mxu0 0.0
        %2073 = vmatpush.msra.mxu0 0.0
        %2074 = vmatpush.msra.mxu0 0.0
        %2075 = vmatpush.msra.mxu0 0.0
        %2076 = vmatpush.msra.mxu0 0.0
        %2077 = vmatpush.msra.mxu0 0.0
        %2078 = vmatpush.msra.mxu0 %v1553
        %2079 = vmatpush.msra.mxu0 %v1543
        %2080 = vmatmul.f32.gmra.mxu0 %v1898
        %v2081 = vpop.f32.mrf.mxu0
        %v2082 = vadd.f32 %v1846, %v2081
        %2083 = vmatmul.f32.gmra.mxu0 %v1901
        %v2084 = vpop.f32.mrf.mxu0
        %v2085 = vadd.f32 %v1849, %v2084
        %2086 = vdwg.mxu0
        %2087 = vmatpush.msra.mxu0 0.0
        %2088 = vmatpush.msra.mxu0 0.0
        %2089 = vmatpush.msra.mxu0 0.0
        %2090 = vmatpush.msra.mxu0 0.0
        %2091 = vmatpush.msra.mxu0 0.0
        %2092 = vmatpush.msra.mxu0 0.0
        %2093 = vmatpush.msra.mxu0 0.0
        %2094 = vmatpush.msra.mxu0 0.0
        %2095 = vmatpush.msra.mxu0 0.0
        %2096 = vmatpush.msra.mxu0 0.0
        %2097 = vmatpush.msra.mxu0 0.0
        %2098 = vmatpush.msra.mxu0 0.0
        %2099 = vmatpush.msra.mxu0 0.0
        %2100 = vmatpush.msra.mxu0 0.0
        %2101 = vmatpush.msra.mxu0 %v1554
        %2102 = vmatpush.msra.mxu0 %v1544
        %2103 = vmatmul.f32.gmra.mxu0 %v1898
        %v2104 = vpop.f32.mrf.mxu0
        %v2105 = vadd.f32 %v1869, %v2104
        %2106 = vmatmul.f32.gmra.mxu0 %v1901
        %v2107 = vpop.f32.mrf.mxu0
        %v2108 = vadd.f32 %v1872, %v2107
        %2109 = vdwg.mxu0
        %2110 = vmatpush.msra.mxu0 0.0
        %2111 = vmatpush.msra.mxu0 0.0
        %2112 = vmatpush.msra.mxu0 0.0
        %2113 = vmatpush.msra.mxu0 0.0
        %2114 = vmatpush.msra.mxu0 0.0
        %2115 = vmatpush.msra.mxu0 0.0
        %2116 = vmatpush.msra.mxu0 0.0
        %2117 = vmatpush.msra.mxu0 0.0
        %2118 = vmatpush.msra.mxu0 0.0
        %2119 = vmatpush.msra.mxu0 0.0
        %2120 = vmatpush.msra.mxu0 0.0
        %2121 = vmatpush.msra.mxu0 0.0
        %2122 = vmatpush.msra.mxu0 0.0
        %2123 = vmatpush.msra.mxu0 0.0
        %2124 = vmatpush.msra.mxu0 %v1555
        %2125 = vmatpush.msra.mxu0 %v1545
        %2126 = vmatmul.f32.gmra.mxu0 %v1898
        %v2127 = vpop.f32.mrf.mxu0
        %v2128 = vadd.f32 %v1892, %v2127
        %2129 = vmatmul.f32.gmra.mxu0 %v1901
        %v2130 = vpop.f32.mrf.mxu0
        %v2131 = vadd.f32 %v1895, %v2130
        %2132 = vdwg.mxu0
        %s2133 = scalar_lea.vmem [#allocation8], 80
        %v2134 = vld [vmem:[%s2133] sm:$0xff]
        %v2135 = vld [vmem:[%s2133 + $0x8] sm:$0xff]
        %2136 = vrot.lane.b32.xlu0 %v1536, 122
        %v2137 = vpop.permute.xlu0 %2136
        %2138 = vrot.lane.b32.xlu0 %v1537, 122
        %v2139 = vpop.permute.xlu0 %2138
        %2140 = vrot.lane.b32.xlu0 %v1538, 122
        %v2141 = vpop.permute.xlu0 %2140
        %2142 = vrot.lane.b32.xlu0 %v1539, 122
        %v2143 = vpop.permute.xlu0 %2142
        %2144 = vrot.lane.b32.xlu0 %v1540, 122
        %v2145 = vpop.permute.xlu0 %2144
        %2146 = vrot.lane.b32.xlu0 %v1541, 122
        %v2147 = vpop.permute.xlu0 %2146
        %2148 = vrot.lane.b32.xlu0 %v1542, 122
        %v2149 = vpop.permute.xlu0 %2148
        %2150 = vrot.lane.b32.xlu0 %v1543, 122
        %v2151 = vpop.permute.xlu0 %2150
        %2152 = vrot.lane.b32.xlu0 %v1544, 122
        %v2153 = vpop.permute.xlu0 %2152
        %2154 = vrot.lane.b32.xlu0 %v1545, 122
        %v2155 = vpop.permute.xlu0 %2154
        %2156 = vrot.lane.b32.xlu0 %v1546, 122
        %v2157 = vpop.permute.xlu0 %2156
        %2158 = vrot.lane.b32.xlu0 %v1547, 122
        %v2159 = vpop.permute.xlu0 %2158
        %2160 = vrot.lane.b32.xlu0 %v1548, 122
        %v2161 = vpop.permute.xlu0 %2160
        %2162 = vrot.lane.b32.xlu0 %v1549, 122
        %v2163 = vpop.permute.xlu0 %2162
        %2164 = vrot.lane.b32.xlu0 %v1550, 122
        %v2165 = vpop.permute.xlu0 %2164
        %2166 = vrot.lane.b32.xlu0 %v1551, 122
        %v2167 = vpop.permute.xlu0 %2166
        %2168 = vrot.lane.b32.xlu0 %v1552, 122
        %v2169 = vpop.permute.xlu0 %2168
        %2170 = vrot.lane.b32.xlu0 %v1553, 122
        %v2171 = vpop.permute.xlu0 %2170
        %2172 = vrot.lane.b32.xlu0 %v1554, 122
        %v2173 = vpop.permute.xlu0 %2172
        %2174 = vrot.lane.b32.xlu0 %v1555, 122
        %v2175 = vpop.permute.xlu0 %2174
        %vm2176 = vcmask 998400
        %v2177 = vsel %vm2176, %v2137, %v2139
        %v2178 = vsel %vm2176, %v2139, %v2141
        %v2179 = vsel %vm2176, %v2141, %v2143
        %v2180 = vsel %vm2176, %v2143, %v2145
        %v2181 = vsel %vm2176, %v2145, %v2147
        %v2182 = vsel %vm2176, %v2147, %v2149
        %v2183 = vsel %vm2176, %v2149, %v2151
        %v2184 = vsel %vm2176, %v2151, %v2153
        %v2185 = vsel %vm2176, %v2153, %v2155
        %v2186 = vsel %vm2176, %v2157, %v2159
        %v2187 = vsel %vm2176, %v2159, %v2161
        %v2188 = vsel %vm2176, %v2161, %v2163
        %v2189 = vsel %vm2176, %v2163, %v2165
        %v2190 = vsel %vm2176, %v2165, %v2167
        %v2191 = vsel %vm2176, %v2167, %v2169
        %v2192 = vsel %vm2176, %v2169, %v2171
        %v2193 = vsel %vm2176, %v2171, %v2173
        %v2194 = vsel %vm2176, %v2173, %v2175
        %v2216 = vsel %vm618, %v2134, 0
        %v2219 = vsel %vm618, %v2135, 0
        %2221 = vmatpush.msra.mxu0 0.0
        %2222 = vmatpush.msra.mxu0 0.0
        %2223 = vmatpush.msra.mxu0 0.0
        %2224 = vmatpush.msra.mxu0 0.0
        %2225 = vmatpush.msra.mxu0 0.0
        %2226 = vmatpush.msra.mxu0 0.0
        %2227 = vmatpush.msra.mxu0 0.0
        %2228 = vmatpush.msra.mxu0 0.0
        %2229 = vmatpush.msra.mxu0 0.0
        %2230 = vmatpush.msra.mxu0 0.0
        %2231 = vmatpush.msra.mxu0 0.0
        %2232 = vmatpush.msra.mxu0 0.0
        %2233 = vmatpush.msra.mxu0 0.0
        %2234 = vmatpush.msra.mxu0 0.0
        %2235 = vmatpush.msra.mxu0 %v2186
        %2236 = vmatpush.msra.mxu0 %v2177
        %2237 = vmatmul.f32.gmra.mxu0 %v2216
        %v2238 = vpop.f32.mrf.mxu0
        %v2239 = vadd.f32 0.0, %v2238
        %2240 = vmatmul.f32.gmra.mxu0 %v2219
        %v2241 = vpop.f32.mrf.mxu0
        %v2242 = vadd.f32 0.0, %v2241
        %2243 = vdwg.mxu0
        %2244 = vmatpush.msra.mxu0 0.0
        %2245 = vmatpush.msra.mxu0 0.0
        %2246 = vmatpush.msra.mxu0 0.0
        %2247 = vmatpush.msra.mxu0 0.0
        %2248 = vmatpush.msra.mxu0 0.0
        %2249 = vmatpush.msra.mxu0 0.0
        %2250 = vmatpush.msra.mxu0 0.0
        %2251 = vmatpush.msra.mxu0 0.0
        %2252 = vmatpush.msra.mxu0 0.0
        %2253 = vmatpush.msra.mxu0 0.0
        %2254 = vmatpush.msra.mxu0 0.0
        %2255 = vmatpush.msra.mxu0 0.0
        %2256 = vmatpush.msra.mxu0 0.0
        %2257 = vmatpush.msra.mxu0 0.0
        %2258 = vmatpush.msra.mxu0 %v2187
        %2259 = vmatpush.msra.mxu0 %v2178
        %2260 = vmatmul.f32.gmra.mxu0 %v2216
        %v2261 = vpop.f32.mrf.mxu0
        %v2262 = vadd.f32 0.0, %v2261
        %2263 = vmatmul.f32.gmra.mxu0 %v2219
        %v2264 = vpop.f32.mrf.mxu0
        %v2265 = vadd.f32 0.0, %v2264
        %2266 = vdwg.mxu0
        %2267 = vmatpush.msra.mxu0 0.0
        %2268 = vmatpush.msra.mxu0 0.0
        %2269 = vmatpush.msra.mxu0 0.0
        %2270 = vmatpush.msra.mxu0 0.0
        %2271 = vmatpush.msra.mxu0 0.0
        %2272 = vmatpush.msra.mxu0 0.0
        %2273 = vmatpush.msra.mxu0 0.0
        %2274 = vmatpush.msra.mxu0 0.0
        %2275 = vmatpush.msra.mxu0 0.0
        %2276 = vmatpush.msra.mxu0 0.0
        %2277 = vmatpush.msra.mxu0 0.0
        %2278 = vmatpush.msra.mxu0 0.0
        %2279 = vmatpush.msra.mxu0 0.0
        %2280 = vmatpush.msra.mxu0 0.0
        %2281 = vmatpush.msra.mxu0 %v2188
        %2282 = vmatpush.msra.mxu0 %v2179
        %2283 = vmatmul.f32.gmra.mxu0 %v2216
        %v2284 = vpop.f32.mrf.mxu0
        %v2285 = vadd.f32 0.0, %v2284
        %2286 = vmatmul.f32.gmra.mxu0 %v2219
        %v2287 = vpop.f32.mrf.mxu0
        %v2288 = vadd.f32 0.0, %v2287
        %2289 = vdwg.mxu0
        %2290 = vmatpush.msra.mxu0 0.0
        %2291 = vmatpush.msra.mxu0 0.0
        %2292 = vmatpush.msra.mxu0 0.0
        %2293 = vmatpush.msra.mxu0 0.0
        %2294 = vmatpush.msra.mxu0 0.0
        %2295 = vmatpush.msra.mxu0 0.0
        %2296 = vmatpush.msra.mxu0 0.0
        %2297 = vmatpush.msra.mxu0 0.0
        %2298 = vmatpush.msra.mxu0 0.0
        %2299 = vmatpush.msra.mxu0 0.0
        %2300 = vmatpush.msra.mxu0 0.0
        %2301 = vmatpush.msra.mxu0 0.0
        %2302 = vmatpush.msra.mxu0 0.0
        %2303 = vmatpush.msra.mxu0 0.0
        %2304 = vmatpush.msra.mxu0 %v2189
        %2305 = vmatpush.msra.mxu0 %v2180
        %2306 = vmatmul.f32.gmra.mxu0 %v2216
        %v2307 = vpop.f32.mrf.mxu0
        %v2308 = vadd.f32 0.0, %v2307
        %2309 = vmatmul.f32.gmra.mxu0 %v2219
        %v2310 = vpop.f32.mrf.mxu0
        %v2311 = vadd.f32 0.0, %v2310
        %2312 = vdwg.mxu0
        %2313 = vmatpush.msra.mxu0 0.0
        %2314 = vmatpush.msra.mxu0 0.0
        %2315 = vmatpush.msra.mxu0 0.0
        %2316 = vmatpush.msra.mxu0 0.0
        %2317 = vmatpush.msra.mxu0 0.0
        %2318 = vmatpush.msra.mxu0 0.0
        %2319 = vmatpush.msra.mxu0 0.0
        %2320 = vmatpush.msra.mxu0 0.0
        %2321 = vmatpush.msra.mxu0 0.0
        %2322 = vmatpush.msra.mxu0 0.0
        %2323 = vmatpush.msra.mxu0 0.0
        %2324 = vmatpush.msra.mxu0 0.0
        %2325 = vmatpush.msra.mxu0 0.0
        %2326 = vmatpush.msra.mxu0 0.0
        %2327 = vmatpush.msra.mxu0 %v2190
        %2328 = vmatpush.msra.mxu0 %v2181
        %2329 = vmatmul.f32.gmra.mxu0 %v2216
        %v2330 = vpop.f32.mrf.mxu0
        %v2331 = vadd.f32 0.0, %v2330
        %2332 = vmatmul.f32.gmra.mxu0 %v2219
        %v2333 = vpop.f32.mrf.mxu0
        %v2334 = vadd.f32 0.0, %v2333
        %2335 = vdwg.mxu0
        %2336 = vmatpush.msra.mxu0 0.0
        %2337 = vmatpush.msra.mxu0 0.0
        %2338 = vmatpush.msra.mxu0 0.0
        %2339 = vmatpush.msra.mxu0 0.0
        %2340 = vmatpush.msra.mxu0 0.0
        %2341 = vmatpush.msra.mxu0 0.0
        %2342 = vmatpush.msra.mxu0 0.0
        %2343 = vmatpush.msra.mxu0 0.0
        %2344 = vmatpush.msra.mxu0 0.0
        %2345 = vmatpush.msra.mxu0 0.0
        %2346 = vmatpush.msra.mxu0 0.0
        %2347 = vmatpush.msra.mxu0 0.0
        %2348 = vmatpush.msra.mxu0 0.0
        %2349 = vmatpush.msra.mxu0 0.0
        %2350 = vmatpush.msra.mxu0 %v2191
        %2351 = vmatpush.msra.mxu0 %v2182
        %2352 = vmatmul.f32.gmra.mxu0 %v2216
        %v2353 = vpop.f32.mrf.mxu0
        %v2354 = vadd.f32 0.0, %v2353
        %2355 = vmatmul.f32.gmra.mxu0 %v2219
        %v2356 = vpop.f32.mrf.mxu0
        %v2357 = vadd.f32 0.0, %v2356
        %2358 = vdwg.mxu0
        %2359 = vmatpush.msra.mxu0 0.0
        %2360 = vmatpush.msra.mxu0 0.0
        %2361 = vmatpush.msra.mxu0 0.0
        %2362 = vmatpush.msra.mxu0 0.0
        %2363 = vmatpush.msra.mxu0 0.0
        %2364 = vmatpush.msra.mxu0 0.0
        %2365 = vmatpush.msra.mxu0 0.0
        %2366 = vmatpush.msra.mxu0 0.0
        %2367 = vmatpush.msra.mxu0 0.0
        %2368 = vmatpush.msra.mxu0 0.0
        %2369 = vmatpush.msra.mxu0 0.0
        %2370 = vmatpush.msra.mxu0 0.0
        %2371 = vmatpush.msra.mxu0 0.0
        %2372 = vmatpush.msra.mxu0 0.0
        %2373 = vmatpush.msra.mxu0 %v2192
        %2374 = vmatpush.msra.mxu0 %v2183
        %2375 = vmatmul.f32.gmra.mxu0 %v2216
        %v2376 = vpop.f32.mrf.mxu0
        %v2377 = vadd.f32 0.0, %v2376
        %2378 = vmatmul.f32.gmra.mxu0 %v2219
        %v2379 = vpop.f32.mrf.mxu0
        %v2380 = vadd.f32 0.0, %v2379
        %2381 = vdwg.mxu0
        %2382 = vmatpush.msra.mxu0 0.0
        %2383 = vmatpush.msra.mxu0 0.0
        %2384 = vmatpush.msra.mxu0 0.0
        %2385 = vmatpush.msra.mxu0 0.0
        %2386 = vmatpush.msra.mxu0 0.0
        %2387 = vmatpush.msra.mxu0 0.0
        %2388 = vmatpush.msra.mxu0 0.0
        %2389 = vmatpush.msra.mxu0 0.0
        %2390 = vmatpush.msra.mxu0 0.0
        %2391 = vmatpush.msra.mxu0 0.0
        %2392 = vmatpush.msra.mxu0 0.0
        %2393 = vmatpush.msra.mxu0 0.0
        %2394 = vmatpush.msra.mxu0 0.0
        %2395 = vmatpush.msra.mxu0 0.0
        %2396 = vmatpush.msra.mxu0 %v2193
        %2397 = vmatpush.msra.mxu0 %v2184
        %2398 = vmatmul.f32.gmra.mxu0 %v2216
        %v2399 = vpop.f32.mrf.mxu0
        %v2400 = vadd.f32 0.0, %v2399
        %2401 = vmatmul.f32.gmra.mxu0 %v2219
        %v2402 = vpop.f32.mrf.mxu0
        %v2403 = vadd.f32 0.0, %v2402
        %2404 = vdwg.mxu0
        %2405 = vmatpush.msra.mxu0 0.0
        %2406 = vmatpush.msra.mxu0 0.0
        %2407 = vmatpush.msra.mxu0 0.0
        %2408 = vmatpush.msra.mxu0 0.0
        %2409 = vmatpush.msra.mxu0 0.0
        %2410 = vmatpush.msra.mxu0 0.0
        %2411 = vmatpush.msra.mxu0 0.0
        %2412 = vmatpush.msra.mxu0 0.0
        %2413 = vmatpush.msra.mxu0 0.0
        %2414 = vmatpush.msra.mxu0 0.0
        %2415 = vmatpush.msra.mxu0 0.0
        %2416 = vmatpush.msra.mxu0 0.0
        %2417 = vmatpush.msra.mxu0 0.0
        %2418 = vmatpush.msra.mxu0 0.0
        %2419 = vmatpush.msra.mxu0 %v2194
        %2420 = vmatpush.msra.mxu0 %v2185
        %2421 = vmatmul.f32.gmra.mxu0 %v2216
        %v2422 = vpop.f32.mrf.mxu0
        %v2423 = vadd.f32 0.0, %v2422
        %2424 = vmatmul.f32.gmra.mxu0 %v2219
        %v2425 = vpop.f32.mrf.mxu0
        %v2426 = vadd.f32 0.0, %v2425
        %2427 = vdwg.mxu0
        %2428 = vmatpush.msra.mxu0 0.0
        %2429 = vmatpush.msra.mxu0 0.0
        %2430 = vmatpush.msra.mxu0 0.0
        %2431 = vmatpush.msra.mxu0 0.0
        %2432 = vmatpush.msra.mxu0 0.0
        %2433 = vmatpush.msra.mxu0 0.0
        %2434 = vmatpush.msra.mxu0 0.0
        %2435 = vmatpush.msra.mxu0 0.0
        %2436 = vmatpush.msra.mxu0 0.0
        %2437 = vmatpush.msra.mxu0 0.0
        %2438 = vmatpush.msra.mxu0 0.0
        %2439 = vmatpush.msra.mxu0 0.0
        %2440 = vmatpush.msra.mxu0 0.0
        %2441 = vmatpush.msra.mxu0 0.0
        %2442 = vmatpush.msra.mxu0 %v2175
        %2443 = vmatpush.msra.mxu0 %v2155
        %2444 = vmatmul.f32.gmra.mxu0 %v2216
        %v2445 = vpop.f32.mrf.mxu0
        %v2446 = vadd.f32 0.0, %v2445
        %2447 = vmatmul.f32.gmra.mxu0 %v2219
        %v2448 = vpop.f32.mrf.mxu0
        %v2449 = vadd.f32 0.0, %v2448
        %2450 = vdwg.mxu0
        %v2451 = vadd.f32 %v1921, %v2239
        %v2452 = vadd.f32 %v1944, %v2262
        %v2453 = vadd.f32 %v1967, %v2285
        %v2454 = vadd.f32 %v1990, %v2308
        %v2455 = vadd.f32 %v2013, %v2331
        %v2456 = vadd.f32 %v2036, %v2354
        %v2457 = vadd.f32 %v2059, %v2377
        %v2458 = vadd.f32 %v2082, %v2400
        %v2459 = vadd.f32 %v2105, %v2423
        %v2460 = vadd.f32 %v2128, %v2446
        %v2461 = vadd.f32 %v1924, %v2242
        %v2462 = vadd.f32 %v1947, %v2265
        %v2463 = vadd.f32 %v1970, %v2288
        %v2464 = vadd.f32 %v1993, %v2311
        %v2465 = vadd.f32 %v2016, %v2334
        %v2466 = vadd.f32 %v2039, %v2357
        %v2467 = vadd.f32 %v2062, %v2380
        %v2468 = vadd.f32 %v2085, %v2403
        %v2469 = vadd.f32 %v2108, %v2426
        %v2470 = vadd.f32 %v2131, %v2449
        %s2471 = scalar_lea.vmem %s4, 16
        %v2472 = vld [vmem:[%s2471] sm:$0xff]
        %v2473 = vld [vmem:[%s2471 + $0x8] sm:$0xff]
        %2475 = vset.pattern.permute.xlu0 0
        %2476 = vperm.xlu0 %2475, %v2472
        %v2477 = vpop.permute.xlu0 %2476
        %2480 = vset.pattern.permute.xlu0 0
        %2481 = vperm.xlu0 %2480, %v2473
        %v2482 = vpop.permute.xlu0 %2481
        %v2484 = vadd.f32 %v2451, %v2477
        %v2485 = vadd.f32 %v2452, %v2477
        %v2486 = vadd.f32 %v2453, %v2477
        %v2487 = vadd.f32 %v2454, %v2477
        %v2488 = vadd.f32 %v2455, %v2477
        %v2489 = vadd.f32 %v2456, %v2477
        %v2490 = vadd.f32 %v2457, %v2477
        %v2491 = vadd.f32 %v2458, %v2477
        %v2492 = vadd.f32 %v2459, %v2477
        %v2493 = vadd.f32 %v2460, %v2477
        %v2494 = vadd.f32 %v2461, %v2482
        %v2495 = vadd.f32 %v2462, %v2482
        %v2496 = vadd.f32 %v2463, %v2482
        %v2497 = vadd.f32 %v2464, %v2482
        %v2498 = vadd.f32 %v2465, %v2482
        %v2499 = vadd.f32 %v2466, %v2482
        %v2500 = vadd.f32 %v2467, %v2482
        %v2501 = vadd.f32 %v2468, %v2482
        %v2502 = vadd.f32 %v2469, %v2482
        %v2503 = vadd.f32 %v2470, %v2482
        %vm2504 = vcmp.ge.f32.partialorder %v2484, 0.0
        %vm2505 = vcmp.ge.f32.partialorder %v2485, 0.0
        %vm2506 = vcmp.ge.f32.partialorder %v2486, 0.0
        %vm2507 = vcmp.ge.f32.partialorder %v2487, 0.0
        %vm2508 = vcmp.ge.f32.partialorder %v2488, 0.0
        %vm2509 = vcmp.ge.f32.partialorder %v2489, 0.0
        %vm2510 = vcmp.ge.f32.partialorder %v2490, 0.0
        %vm2511 = vcmp.ge.f32.partialorder %v2491, 0.0
        %vm2512 = vcmp.ge.f32.partialorder %v2492, 0.0
        %vm2513 = vcmp.ge.f32.partialorder %v2493, 0.0
        %vm2514 = vcmp.ge.f32.partialorder %v2494, 0.0
        %vm2515 = vcmp.ge.f32.partialorder %v2495, 0.0
        %vm2516 = vcmp.ge.f32.partialorder %v2496, 0.0
        %vm2517 = vcmp.ge.f32.partialorder %v2497, 0.0
        %vm2518 = vcmp.ge.f32.partialorder %v2498, 0.0
        %vm2519 = vcmp.ge.f32.partialorder %v2499, 0.0
        %vm2520 = vcmp.ge.f32.partialorder %v2500, 0.0
        %vm2521 = vcmp.ge.f32.partialorder %v2501, 0.0
        %vm2522 = vcmp.ge.f32.partialorder %v2502, 0.0
        %vm2523 = vcmp.ge.f32.partialorder %v2503, 0.0
        %v2524 = vmul.f32 %v2484, 0.1
        %v2525 = vmul.f32 %v2485, 0.1
        %v2526 = vmul.f32 %v2486, 0.1
        %v2527 = vmul.f32 %v2487, 0.1
        %v2528 = vmul.f32 %v2488, 0.1
        %v2529 = vmul.f32 %v2489, 0.1
        %v2530 = vmul.f32 %v2490, 0.1
        %v2531 = vmul.f32 %v2491, 0.1
        %v2532 = vmul.f32 %v2492, 0.1
        %v2533 = vmul.f32 %v2493, 0.1
        %v2534 = vmul.f32 %v2494, 0.1
        %v2535 = vmul.f32 %v2495, 0.1
        %v2536 = vmul.f32 %v2496, 0.1
        %v2537 = vmul.f32 %v2497, 0.1
        %v2538 = vmul.f32 %v2498, 0.1
        %v2539 = vmul.f32 %v2499, 0.1
        %v2540 = vmul.f32 %v2500, 0.1
        %v2541 = vmul.f32 %v2501, 0.1
        %v2542 = vmul.f32 %v2502, 0.1
        %v2543 = vmul.f32 %v2503, 0.1
        %v2544 = vsel %vm2504, %v2484, %v2524
        %v2545 = vsel %vm2505, %v2485, %v2525
        %v2546 = vsel %vm2506, %v2486, %v2526
        %v2547 = vsel %vm2507, %v2487, %v2527
        %v2548 = vsel %vm2508, %v2488, %v2528
        %v2549 = vsel %vm2509, %v2489, %v2529
        %v2550 = vsel %vm2510, %v2490, %v2530
        %v2551 = vsel %vm2511, %v2491, %v2531
        %v2552 = vsel %vm2512, %v2492, %v2532
        %v2553 = vsel %vm2513, %v2493, %v2533
        %v2554 = vsel %vm2514, %v2494, %v2534
        %v2555 = vsel %vm2515, %v2495, %v2535
        %v2556 = vsel %vm2516, %v2496, %v2536
        %v2557 = vsel %vm2517, %v2497, %v2537
        %v2558 = vsel %vm2518, %v2498, %v2538
        %v2559 = vsel %vm2519, %v2499, %v2539
        %v2560 = vsel %vm2520, %v2500, %v2540
        %v2561 = vsel %vm2521, %v2501, %v2541
        %v2562 = vsel %vm2522, %v2502, %v2542
        %v2563 = vsel %vm2523, %v2503, %v2543
        %2564 = vrot.lane.b32.xlu0 %v491, 124
        %v2565 = vpop.permute.xlu0 %2564
        %2566 = vrot.lane.b32.xlu0 %v492, 124
        %v2567 = vpop.permute.xlu0 %2566
        %2568 = vrot.lane.b32.xlu0 %v493, 124
        %v2569 = vpop.permute.xlu0 %2568
        %vm2570 = vcmask 1014784
        %v2571 = vsel %vm2570, %v2565, %v2567
        %v2572 = vsel %vm2570, %v2567, %v2569
        %v2577 = vmul.f32 %v2544, %v2571
        %v2578 = vmul.f32 %v2545, %v2567
        %v2579 = vmul.f32 %v2546, %v2567
        %v2580 = vmul.f32 %v2547, %v2567
        %v2581 = vmul.f32 %v2548, %v2567
        %v2582 = vmul.f32 %v2549, %v2567
        %v2583 = vmul.f32 %v2550, %v2567
        %v2584 = vmul.f32 %v2551, %v2567
        %v2585 = vmul.f32 %v2552, %v2572
        %v2586 = vmul.f32 %v2553, %v2569
        %v2587 = vmul.f32 %v2554, %v2571
        %v2588 = vmul.f32 %v2555, %v2567
        %v2589 = vmul.f32 %v2556, %v2567
        %v2590 = vmul.f32 %v2557, %v2567
        %v2591 = vmul.f32 %v2558, %v2567
        %v2592 = vmul.f32 %v2559, %v2567
        %v2593 = vmul.f32 %v2560, %v2567
        %v2594 = vmul.f32 %v2561, %v2567
        %v2595 = vmul.f32 %v2562, %v2572
        %v2596 = vmul.f32 %v2563, %v2569
        %s2597 = scalar_lea.vmem [#allocation8], 96
        %v2598 = vld [vmem:[%s2597] sm:$0xff]
        %v2599 = vld [vmem:[%s2597 + $0x8] sm:$0xff]
        %s2600 = scalar_lea.vmem [#allocation8], 112
        %v2601 = vld [vmem:[%s2600] sm:$0xff]
        %v2602 = vld [vmem:[%s2600 + $0x8] sm:$0xff]
        %2623 = vrot.lane.b32.xlu0 %v2577, 123
        %v2624 = vpop.permute.xlu0 %2623
        %2625 = vrot.lane.b32.xlu0 %v2578, 123
        %v2626 = vpop.permute.xlu0 %2625
        %2627 = vrot.lane.b32.xlu0 %v2579, 123
        %v2628 = vpop.permute.xlu0 %2627
        %2629 = vrot.lane.b32.xlu0 %v2580, 123
        %v2630 = vpop.permute.xlu0 %2629
        %2631 = vrot.lane.b32.xlu0 %v2581, 123
        %v2632 = vpop.permute.xlu0 %2631
        %2633 = vrot.lane.b32.xlu0 %v2582, 123
        %v2634 = vpop.permute.xlu0 %2633
        %2635 = vrot.lane.b32.xlu0 %v2583, 123
        %v2636 = vpop.permute.xlu0 %2635
        %2637 = vrot.lane.b32.xlu0 %v2584, 123
        %v2638 = vpop.permute.xlu0 %2637
        %2639 = vrot.lane.b32.xlu0 %v2585, 123
        %v2640 = vpop.permute.xlu0 %2639
        %2641 = vrot.lane.b32.xlu0 %v2586, 123
        %v2642 = vpop.permute.xlu0 %2641
        %2643 = vrot.lane.b32.xlu0 %v2587, 123
        %v2644 = vpop.permute.xlu0 %2643
        %2645 = vrot.lane.b32.xlu0 %v2588, 123
        %v2646 = vpop.permute.xlu0 %2645
        %2647 = vrot.lane.b32.xlu0 %v2589, 123
        %v2648 = vpop.permute.xlu0 %2647
        %2649 = vrot.lane.b32.xlu0 %v2590, 123
        %v2650 = vpop.permute.xlu0 %2649
        %2651 = vrot.lane.b32.xlu0 %v2591, 123
        %v2652 = vpop.permute.xlu0 %2651
        %2653 = vrot.lane.b32.xlu0 %v2592, 123
        %v2654 = vpop.permute.xlu0 %2653
        %2655 = vrot.lane.b32.xlu0 %v2593, 123
        %v2656 = vpop.permute.xlu0 %2655
        %2657 = vrot.lane.b32.xlu0 %v2594, 123
        %v2658 = vpop.permute.xlu0 %2657
        %2659 = vrot.lane.b32.xlu0 %v2595, 123
        %v2660 = vpop.permute.xlu0 %2659
        %2661 = vrot.lane.b32.xlu0 %v2596, 123
        %v2662 = vpop.permute.xlu0 %2661
        %vm2663 = vcmask 1006592
        %v2664 = vsel %vm2663, %v2624, %v2626
        %v2665 = vsel %vm2663, %v2626, %v2628
        %v2666 = vsel %vm2663, %v2628, %v2630
        %v2667 = vsel %vm2663, %v2630, %v2632
        %v2668 = vsel %vm2663, %v2632, %v2634
        %v2669 = vsel %vm2663, %v2634, %v2636
        %v2670 = vsel %vm2663, %v2636, %v2638
        %v2671 = vsel %vm2663, %v2638, %v2640
        %v2672 = vsel %vm2663, %v2640, %v2642
        %v2673 = vsel %vm2663, %v2644, %v2646
        %v2674 = vsel %vm2663, %v2646, %v2648
        %v2675 = vsel %vm2663, %v2648, %v2650
        %v2676 = vsel %vm2663, %v2650, %v2652
        %v2677 = vsel %vm2663, %v2652, %v2654
        %v2678 = vsel %vm2663, %v2654, %v2656
        %v2679 = vsel %vm2663, %v2656, %v2658
        %v2680 = vsel %vm2663, %v2658, %v2660
        %v2681 = vsel %vm2663, %v2660, %v2662
        %v2703 = vsel %vm618, %v2601, 0
        %v2706 = vsel %vm618, %v2602, 0
        %2708 = vmatpush.msra.mxu0 0.0
        %2709 = vmatpush.msra.mxu0 0.0
        %2710 = vmatpush.msra.mxu0 0.0
        %2711 = vmatpush.msra.mxu0 0.0
        %2712 = vmatpush.msra.mxu0 0.0
        %2713 = vmatpush.msra.mxu0 0.0
        %2714 = vmatpush.msra.mxu0 0.0
        %2715 = vmatpush.msra.mxu0 0.0
        %2716 = vmatpush.msra.mxu0 0.0
        %2717 = vmatpush.msra.mxu0 0.0
        %2718 = vmatpush.msra.mxu0 0.0
        %2719 = vmatpush.msra.mxu0 0.0
        %2720 = vmatpush.msra.mxu0 0.0
        %2721 = vmatpush.msra.mxu0 0.0
        %2722 = vmatpush.msra.mxu0 %v2673
        %2723 = vmatpush.msra.mxu0 %v2664
        %2724 = vmatmul.f32.gmra.mxu0 %v2703
        %v2725 = vpop.f32.mrf.mxu0
        %v2726 = vadd.f32 0.0, %v2725
        %2727 = vmatmul.f32.gmra.mxu0 %v2706
        %v2728 = vpop.f32.mrf.mxu0
        %v2729 = vadd.f32 0.0, %v2728
        %2730 = vdwg.mxu0
        %2731 = vmatpush.msra.mxu0 0.0
        %2732 = vmatpush.msra.mxu0 0.0
        %2733 = vmatpush.msra.mxu0 0.0
        %2734 = vmatpush.msra.mxu0 0.0
        %2735 = vmatpush.msra.mxu0 0.0
        %2736 = vmatpush.msra.mxu0 0.0
        %2737 = vmatpush.msra.mxu0 0.0
        %2738 = vmatpush.msra.mxu0 0.0
        %2739 = vmatpush.msra.mxu0 0.0
        %2740 = vmatpush.msra.mxu0 0.0
        %2741 = vmatpush.msra.mxu0 0.0
        %2742 = vmatpush.msra.mxu0 0.0
        %2743 = vmatpush.msra.mxu0 0.0
        %2744 = vmatpush.msra.mxu0 0.0
        %2745 = vmatpush.msra.mxu0 %v2674
        %2746 = vmatpush.msra.mxu0 %v2665
        %2747 = vmatmul.f32.gmra.mxu0 %v2703
        %v2748 = vpop.f32.mrf.mxu0
        %v2749 = vadd.f32 0.0, %v2748
        %2750 = vmatmul.f32.gmra.mxu0 %v2706
        %v2751 = vpop.f32.mrf.mxu0
        %v2752 = vadd.f32 0.0, %v2751
        %2753 = vdwg.mxu0
        %2754 = vmatpush.msra.mxu0 0.0
        %2755 = vmatpush.msra.mxu0 0.0
        %2756 = vmatpush.msra.mxu0 0.0
        %2757 = vmatpush.msra.mxu0 0.0
        %2758 = vmatpush.msra.mxu0 0.0
        %2759 = vmatpush.msra.mxu0 0.0
        %2760 = vmatpush.msra.mxu0 0.0
        %2761 = vmatpush.msra.mxu0 0.0
        %2762 = vmatpush.msra.mxu0 0.0
        %2763 = vmatpush.msra.mxu0 0.0
        %2764 = vmatpush.msra.mxu0 0.0
        %2765 = vmatpush.msra.mxu0 0.0
        %2766 = vmatpush.msra.mxu0 0.0
        %2767 = vmatpush.msra.mxu0 0.0
        %2768 = vmatpush.msra.mxu0 %v2675
        %2769 = vmatpush.msra.mxu0 %v2666
        %2770 = vmatmul.f32.gmra.mxu0 %v2703
        %v2771 = vpop.f32.mrf.mxu0
        %v2772 = vadd.f32 0.0, %v2771
        %2773 = vmatmul.f32.gmra.mxu0 %v2706
        %v2774 = vpop.f32.mrf.mxu0
        %v2775 = vadd.f32 0.0, %v2774
        %2776 = vdwg.mxu0
        %2777 = vmatpush.msra.mxu0 0.0
        %2778 = vmatpush.msra.mxu0 0.0
        %2779 = vmatpush.msra.mxu0 0.0
        %2780 = vmatpush.msra.mxu0 0.0
        %2781 = vmatpush.msra.mxu0 0.0
        %2782 = vmatpush.msra.mxu0 0.0
        %2783 = vmatpush.msra.mxu0 0.0
        %2784 = vmatpush.msra.mxu0 0.0
        %2785 = vmatpush.msra.mxu0 0.0
        %2786 = vmatpush.msra.mxu0 0.0
        %2787 = vmatpush.msra.mxu0 0.0
        %2788 = vmatpush.msra.mxu0 0.0
        %2789 = vmatpush.msra.mxu0 0.0
        %2790 = vmatpush.msra.mxu0 0.0
        %2791 = vmatpush.msra.mxu0 %v2676
        %2792 = vmatpush.msra.mxu0 %v2667
        %2793 = vmatmul.f32.gmra.mxu0 %v2703
        %v2794 = vpop.f32.mrf.mxu0
        %v2795 = vadd.f32 0.0, %v2794
        %2796 = vmatmul.f32.gmra.mxu0 %v2706
        %v2797 = vpop.f32.mrf.mxu0
        %v2798 = vadd.f32 0.0, %v2797
        %2799 = vdwg.mxu0
        %2800 = vmatpush.msra.mxu0 0.0
        %2801 = vmatpush.msra.mxu0 0.0
        %2802 = vmatpush.msra.mxu0 0.0
        %2803 = vmatpush.msra.mxu0 0.0
        %2804 = vmatpush.msra.mxu0 0.0
        %2805 = vmatpush.msra.mxu0 0.0
        %2806 = vmatpush.msra.mxu0 0.0
        %2807 = vmatpush.msra.mxu0 0.0
        %2808 = vmatpush.msra.mxu0 0.0
        %2809 = vmatpush.msra.mxu0 0.0
        %2810 = vmatpush.msra.mxu0 0.0
        %2811 = vmatpush.msra.mxu0 0.0
        %2812 = vmatpush.msra.mxu0 0.0
        %2813 = vmatpush.msra.mxu0 0.0
        %2814 = vmatpush.msra.mxu0 %v2677
        %2815 = vmatpush.msra.mxu0 %v2668
        %2816 = vmatmul.f32.gmra.mxu0 %v2703
        %v2817 = vpop.f32.mrf.mxu0
        %v2818 = vadd.f32 0.0, %v2817
        %2819 = vmatmul.f32.gmra.mxu0 %v2706
        %v2820 = vpop.f32.mrf.mxu0
        %v2821 = vadd.f32 0.0, %v2820
        %2822 = vdwg.mxu0
        %2823 = vmatpush.msra.mxu0 0.0
        %2824 = vmatpush.msra.mxu0 0.0
        %2825 = vmatpush.msra.mxu0 0.0
        %2826 = vmatpush.msra.mxu0 0.0
        %2827 = vmatpush.msra.mxu0 0.0
        %2828 = vmatpush.msra.mxu0 0.0
        %2829 = vmatpush.msra.mxu0 0.0
        %2830 = vmatpush.msra.mxu0 0.0
        %2831 = vmatpush.msra.mxu0 0.0
        %2832 = vmatpush.msra.mxu0 0.0
        %2833 = vmatpush.msra.mxu0 0.0
        %2834 = vmatpush.msra.mxu0 0.0
        %2835 = vmatpush.msra.mxu0 0.0
        %2836 = vmatpush.msra.mxu0 0.0
        %2837 = vmatpush.msra.mxu0 %v2678
        %2838 = vmatpush.msra.mxu0 %v2669
        %2839 = vmatmul.f32.gmra.mxu0 %v2703
        %v2840 = vpop.f32.mrf.mxu0
        %v2841 = vadd.f32 0.0, %v2840
        %2842 = vmatmul.f32.gmra.mxu0 %v2706
        %v2843 = vpop.f32.mrf.mxu0
        %v2844 = vadd.f32 0.0, %v2843
        %2845 = vdwg.mxu0
        %2846 = vmatpush.msra.mxu0 0.0
        %2847 = vmatpush.msra.mxu0 0.0
        %2848 = vmatpush.msra.mxu0 0.0
        %2849 = vmatpush.msra.mxu0 0.0
        %2850 = vmatpush.msra.mxu0 0.0
        %2851 = vmatpush.msra.mxu0 0.0
        %2852 = vmatpush.msra.mxu0 0.0
        %2853 = vmatpush.msra.mxu0 0.0
        %2854 = vmatpush.msra.mxu0 0.0
        %2855 = vmatpush.msra.mxu0 0.0
        %2856 = vmatpush.msra.mxu0 0.0
        %2857 = vmatpush.msra.mxu0 0.0
        %2858 = vmatpush.msra.mxu0 0.0
        %2859 = vmatpush.msra.mxu0 0.0
        %2860 = vmatpush.msra.mxu0 %v2679
        %2861 = vmatpush.msra.mxu0 %v2670
        %2862 = vmatmul.f32.gmra.mxu0 %v2703
        %v2863 = vpop.f32.mrf.mxu0
        %v2864 = vadd.f32 0.0, %v2863
        %2865 = vmatmul.f32.gmra.mxu0 %v2706
        %v2866 = vpop.f32.mrf.mxu0
        %v2867 = vadd.f32 0.0, %v2866
        %2868 = vdwg.mxu0
        %2869 = vmatpush.msra.mxu0 0.0
        %2870 = vmatpush.msra.mxu0 0.0
        %2871 = vmatpush.msra.mxu0 0.0
        %2872 = vmatpush.msra.mxu0 0.0
        %2873 = vmatpush.msra.mxu0 0.0
        %2874 = vmatpush.msra.mxu0 0.0
        %2875 = vmatpush.msra.mxu0 0.0
        %2876 = vmatpush.msra.mxu0 0.0
        %2877 = vmatpush.msra.mxu0 0.0
        %2878 = vmatpush.msra.mxu0 0.0
        %2879 = vmatpush.msra.mxu0 0.0
        %2880 = vmatpush.msra.mxu0 0.0
        %2881 = vmatpush.msra.mxu0 0.0
        %2882 = vmatpush.msra.mxu0 0.0
        %2883 = vmatpush.msra.mxu0 %v2680
        %2884 = vmatpush.msra.mxu0 %v2671
        %2885 = vmatmul.f32.gmra.mxu0 %v2703
        %v2886 = vpop.f32.mrf.mxu0
        %v2887 = vadd.f32 0.0, %v2886
        %2888 = vmatmul.f32.gmra.mxu0 %v2706
        %v2889 = vpop.f32.mrf.mxu0
        %v2890 = vadd.f32 0.0, %v2889
        %2891 = vdwg.mxu0
        %2892 = vmatpush.msra.mxu0 0.0
        %2893 = vmatpush.msra.mxu0 0.0
        %2894 = vmatpush.msra.mxu0 0.0
        %2895 = vmatpush.msra.mxu0 0.0
        %2896 = vmatpush.msra.mxu0 0.0
        %2897 = vmatpush.msra.mxu0 0.0
        %2898 = vmatpush.msra.mxu0 0.0
        %2899 = vmatpush.msra.mxu0 0.0
        %2900 = vmatpush.msra.mxu0 0.0
        %2901 = vmatpush.msra.mxu0 0.0
        %2902 = vmatpush.msra.mxu0 0.0
        %2903 = vmatpush.msra.mxu0 0.0
        %2904 = vmatpush.msra.mxu0 0.0
        %2905 = vmatpush.msra.mxu0 0.0
        %2906 = vmatpush.msra.mxu0 %v2681
        %2907 = vmatpush.msra.mxu0 %v2672
        %2908 = vmatmul.f32.gmra.mxu0 %v2703
        %v2909 = vpop.f32.mrf.mxu0
        %v2910 = vadd.f32 0.0, %v2909
        %2911 = vmatmul.f32.gmra.mxu0 %v2706
        %v2912 = vpop.f32.mrf.mxu0
        %v2913 = vadd.f32 0.0, %v2912
        %2914 = vdwg.mxu0
        %2915 = vmatpush.msra.mxu0 0.0
        %2916 = vmatpush.msra.mxu0 0.0
        %2917 = vmatpush.msra.mxu0 0.0
        %2918 = vmatpush.msra.mxu0 0.0
        %2919 = vmatpush.msra.mxu0 0.0
        %2920 = vmatpush.msra.mxu0 0.0
        %2921 = vmatpush.msra.mxu0 0.0
        %2922 = vmatpush.msra.mxu0 0.0
        %2923 = vmatpush.msra.mxu0 0.0
        %2924 = vmatpush.msra.mxu0 0.0
        %2925 = vmatpush.msra.mxu0 0.0
        %2926 = vmatpush.msra.mxu0 0.0
        %2927 = vmatpush.msra.mxu0 0.0
        %2928 = vmatpush.msra.mxu0 0.0
        %2929 = vmatpush.msra.mxu0 %v2662
        %2930 = vmatpush.msra.mxu0 %v2642
        %2931 = vmatmul.f32.gmra.mxu0 %v2703
        %v2932 = vpop.f32.mrf.mxu0
        %v2933 = vadd.f32 0.0, %v2932
        %2934 = vmatmul.f32.gmra.mxu0 %v2706
        %v2935 = vpop.f32.mrf.mxu0
        %v2936 = vadd.f32 0.0, %v2935
        %2937 = vdwg.mxu0
        %v2939 = vsel %vm618, %v2598, 0
        %v2942 = vsel %vm618, %v2599, 0
        %2944 = vmatpush.msra.mxu0 0.0
        %2945 = vmatpush.msra.mxu0 0.0
        %2946 = vmatpush.msra.mxu0 0.0
        %2947 = vmatpush.msra.mxu0 0.0
        %2948 = vmatpush.msra.mxu0 0.0
        %2949 = vmatpush.msra.mxu0 0.0
        %2950 = vmatpush.msra.mxu0 0.0
        %2951 = vmatpush.msra.mxu0 0.0
        %2952 = vmatpush.msra.mxu0 0.0
        %2953 = vmatpush.msra.mxu0 0.0
        %2954 = vmatpush.msra.mxu0 0.0
        %2955 = vmatpush.msra.mxu0 0.0
        %2956 = vmatpush.msra.mxu0 0.0
        %2957 = vmatpush.msra.mxu0 0.0
        %2958 = vmatpush.msra.mxu0 %v2587
        %2959 = vmatpush.msra.mxu0 %v2577
        %2960 = vmatmul.f32.gmra.mxu0 %v2939
        %v2961 = vpop.f32.mrf.mxu0
        %v2962 = vadd.f32 %v2726, %v2961
        %2963 = vmatmul.f32.gmra.mxu0 %v2942
        %v2964 = vpop.f32.mrf.mxu0
        %v2965 = vadd.f32 %v2729, %v2964
        %2966 = vdwg.mxu0
        %2967 = vmatpush.msra.mxu0 0.0
        %2968 = vmatpush.msra.mxu0 0.0
        %2969 = vmatpush.msra.mxu0 0.0
        %2970 = vmatpush.msra.mxu0 0.0
        %2971 = vmatpush.msra.mxu0 0.0
        %2972 = vmatpush.msra.mxu0 0.0
        %2973 = vmatpush.msra.mxu0 0.0
        %2974 = vmatpush.msra.mxu0 0.0
        %2975 = vmatpush.msra.mxu0 0.0
        %2976 = vmatpush.msra.mxu0 0.0
        %2977 = vmatpush.msra.mxu0 0.0
        %2978 = vmatpush.msra.mxu0 0.0
        %2979 = vmatpush.msra.mxu0 0.0
        %2980 = vmatpush.msra.mxu0 0.0
        %2981 = vmatpush.msra.mxu0 %v2588
        %2982 = vmatpush.msra.mxu0 %v2578
        %2983 = vmatmul.f32.gmra.mxu0 %v2939
        %v2984 = vpop.f32.mrf.mxu0
        %v2985 = vadd.f32 %v2749, %v2984
        %2986 = vmatmul.f32.gmra.mxu0 %v2942
        %v2987 = vpop.f32.mrf.mxu0
        %v2988 = vadd.f32 %v2752, %v2987
        %2989 = vdwg.mxu0
        %2990 = vmatpush.msra.mxu0 0.0
        %2991 = vmatpush.msra.mxu0 0.0
        %2992 = vmatpush.msra.mxu0 0.0
        %2993 = vmatpush.msra.mxu0 0.0
        %2994 = vmatpush.msra.mxu0 0.0
        %2995 = vmatpush.msra.mxu0 0.0
        %2996 = vmatpush.msra.mxu0 0.0
        %2997 = vmatpush.msra.mxu0 0.0
        %2998 = vmatpush.msra.mxu0 0.0
        %2999 = vmatpush.msra.mxu0 0.0
        %3000 = vmatpush.msra.mxu0 0.0
        %3001 = vmatpush.msra.mxu0 0.0
        %3002 = vmatpush.msra.mxu0 0.0
        %3003 = vmatpush.msra.mxu0 0.0
        %3004 = vmatpush.msra.mxu0 %v2589
        %3005 = vmatpush.msra.mxu0 %v2579
        %3006 = vmatmul.f32.gmra.mxu0 %v2939
        %v3007 = vpop.f32.mrf.mxu0
        %v3008 = vadd.f32 %v2772, %v3007
        %3009 = vmatmul.f32.gmra.mxu0 %v2942
        %v3010 = vpop.f32.mrf.mxu0
        %v3011 = vadd.f32 %v2775, %v3010
        %3012 = vdwg.mxu0
        %3013 = vmatpush.msra.mxu0 0.0
        %3014 = vmatpush.msra.mxu0 0.0
        %3015 = vmatpush.msra.mxu0 0.0
        %3016 = vmatpush.msra.mxu0 0.0
        %3017 = vmatpush.msra.mxu0 0.0
        %3018 = vmatpush.msra.mxu0 0.0
        %3019 = vmatpush.msra.mxu0 0.0
        %3020 = vmatpush.msra.mxu0 0.0
        %3021 = vmatpush.msra.mxu0 0.0
        %3022 = vmatpush.msra.mxu0 0.0
        %3023 = vmatpush.msra.mxu0 0.0
        %3024 = vmatpush.msra.mxu0 0.0
        %3025 = vmatpush.msra.mxu0 0.0
        %3026 = vmatpush.msra.mxu0 0.0
        %3027 = vmatpush.msra.mxu0 %v2590
        %3028 = vmatpush.msra.mxu0 %v2580
        %3029 = vmatmul.f32.gmra.mxu0 %v2939
        %v3030 = vpop.f32.mrf.mxu0
        %v3031 = vadd.f32 %v2795, %v3030
        %3032 = vmatmul.f32.gmra.mxu0 %v2942
        %v3033 = vpop.f32.mrf.mxu0
        %v3034 = vadd.f32 %v2798, %v3033
        %3035 = vdwg.mxu0
        %3036 = vmatpush.msra.mxu0 0.0
        %3037 = vmatpush.msra.mxu0 0.0
        %3038 = vmatpush.msra.mxu0 0.0
        %3039 = vmatpush.msra.mxu0 0.0
        %3040 = vmatpush.msra.mxu0 0.0
        %3041 = vmatpush.msra.mxu0 0.0
        %3042 = vmatpush.msra.mxu0 0.0
        %3043 = vmatpush.msra.mxu0 0.0
        %3044 = vmatpush.msra.mxu0 0.0
        %3045 = vmatpush.msra.mxu0 0.0
        %3046 = vmatpush.msra.mxu0 0.0
        %3047 = vmatpush.msra.mxu0 0.0
        %3048 = vmatpush.msra.mxu0 0.0
        %3049 = vmatpush.msra.mxu0 0.0
        %3050 = vmatpush.msra.mxu0 %v2591
        %3051 = vmatpush.msra.mxu0 %v2581
        %3052 = vmatmul.f32.gmra.mxu0 %v2939
        %v3053 = vpop.f32.mrf.mxu0
        %v3054 = vadd.f32 %v2818, %v3053
        %3055 = vmatmul.f32.gmra.mxu0 %v2942
        %v3056 = vpop.f32.mrf.mxu0
        %v3057 = vadd.f32 %v2821, %v3056
        %3058 = vdwg.mxu0
        %3059 = vmatpush.msra.mxu0 0.0
        %3060 = vmatpush.msra.mxu0 0.0
        %3061 = vmatpush.msra.mxu0 0.0
        %3062 = vmatpush.msra.mxu0 0.0
        %3063 = vmatpush.msra.mxu0 0.0
        %3064 = vmatpush.msra.mxu0 0.0
        %3065 = vmatpush.msra.mxu0 0.0
        %3066 = vmatpush.msra.mxu0 0.0
        %3067 = vmatpush.msra.mxu0 0.0
        %3068 = vmatpush.msra.mxu0 0.0
        %3069 = vmatpush.msra.mxu0 0.0
        %3070 = vmatpush.msra.mxu0 0.0
        %3071 = vmatpush.msra.mxu0 0.0
        %3072 = vmatpush.msra.mxu0 0.0
        %3073 = vmatpush.msra.mxu0 %v2592
        %3074 = vmatpush.msra.mxu0 %v2582
        %3075 = vmatmul.f32.gmra.mxu0 %v2939
        %v3076 = vpop.f32.mrf.mxu0
        %v3077 = vadd.f32 %v2841, %v3076
        %3078 = vmatmul.f32.gmra.mxu0 %v2942
        %v3079 = vpop.f32.mrf.mxu0
        %v3080 = vadd.f32 %v2844, %v3079
        %3081 = vdwg.mxu0
        %3082 = vmatpush.msra.mxu0 0.0
        %3083 = vmatpush.msra.mxu0 0.0
        %3084 = vmatpush.msra.mxu0 0.0
        %3085 = vmatpush.msra.mxu0 0.0
        %3086 = vmatpush.msra.mxu0 0.0
        %3087 = vmatpush.msra.mxu0 0.0
        %3088 = vmatpush.msra.mxu0 0.0
        %3089 = vmatpush.msra.mxu0 0.0
        %3090 = vmatpush.msra.mxu0 0.0
        %3091 = vmatpush.msra.mxu0 0.0
        %3092 = vmatpush.msra.mxu0 0.0
        %3093 = vmatpush.msra.mxu0 0.0
        %3094 = vmatpush.msra.mxu0 0.0
        %3095 = vmatpush.msra.mxu0 0.0
        %3096 = vmatpush.msra.mxu0 %v2593
        %3097 = vmatpush.msra.mxu0 %v2583
        %3098 = vmatmul.f32.gmra.mxu0 %v2939
        %v3099 = vpop.f32.mrf.mxu0
        %v3100 = vadd.f32 %v2864, %v3099
        %3101 = vmatmul.f32.gmra.mxu0 %v2942
        %v3102 = vpop.f32.mrf.mxu0
        %v3103 = vadd.f32 %v2867, %v3102
        %3104 = vdwg.mxu0
        %3105 = vmatpush.msra.mxu0 0.0
        %3106 = vmatpush.msra.mxu0 0.0
        %3107 = vmatpush.msra.mxu0 0.0
        %3108 = vmatpush.msra.mxu0 0.0
        %3109 = vmatpush.msra.mxu0 0.0
        %3110 = vmatpush.msra.mxu0 0.0
        %3111 = vmatpush.msra.mxu0 0.0
        %3112 = vmatpush.msra.mxu0 0.0
        %3113 = vmatpush.msra.mxu0 0.0
        %3114 = vmatpush.msra.mxu0 0.0
        %3115 = vmatpush.msra.mxu0 0.0
        %3116 = vmatpush.msra.mxu0 0.0
        %3117 = vmatpush.msra.mxu0 0.0
        %3118 = vmatpush.msra.mxu0 0.0
        %3119 = vmatpush.msra.mxu0 %v2594
        %3120 = vmatpush.msra.mxu0 %v2584
        %3121 = vmatmul.f32.gmra.mxu0 %v2939
        %v3122 = vpop.f32.mrf.mxu0
        %v3123 = vadd.f32 %v2887, %v3122
        %3124 = vmatmul.f32.gmra.mxu0 %v2942
        %v3125 = vpop.f32.mrf.mxu0
        %v3126 = vadd.f32 %v2890, %v3125
        %3127 = vdwg.mxu0
        %3128 = vmatpush.msra.mxu0 0.0
        %3129 = vmatpush.msra.mxu0 0.0
        %3130 = vmatpush.msra.mxu0 0.0
        %3131 = vmatpush.msra.mxu0 0.0
        %3132 = vmatpush.msra.mxu0 0.0
        %3133 = vmatpush.msra.mxu0 0.0
        %3134 = vmatpush.msra.mxu0 0.0
        %3135 = vmatpush.msra.mxu0 0.0
        %3136 = vmatpush.msra.mxu0 0.0
        %3137 = vmatpush.msra.mxu0 0.0
        %3138 = vmatpush.msra.mxu0 0.0
        %3139 = vmatpush.msra.mxu0 0.0
        %3140 = vmatpush.msra.mxu0 0.0
        %3141 = vmatpush.msra.mxu0 0.0
        %3142 = vmatpush.msra.mxu0 %v2595
        %3143 = vmatpush.msra.mxu0 %v2585
        %3144 = vmatmul.f32.gmra.mxu0 %v2939
        %v3145 = vpop.f32.mrf.mxu0
        %v3146 = vadd.f32 %v2910, %v3145
        %3147 = vmatmul.f32.gmra.mxu0 %v2942
        %v3148 = vpop.f32.mrf.mxu0
        %v3149 = vadd.f32 %v2913, %v3148
        %3150 = vdwg.mxu0
        %3151 = vmatpush.msra.mxu0 0.0
        %3152 = vmatpush.msra.mxu0 0.0
        %3153 = vmatpush.msra.mxu0 0.0
        %3154 = vmatpush.msra.mxu0 0.0
        %3155 = vmatpush.msra.mxu0 0.0
        %3156 = vmatpush.msra.mxu0 0.0
        %3157 = vmatpush.msra.mxu0 0.0
        %3158 = vmatpush.msra.mxu0 0.0
        %3159 = vmatpush.msra.mxu0 0.0
        %3160 = vmatpush.msra.mxu0 0.0
        %3161 = vmatpush.msra.mxu0 0.0
        %3162 = vmatpush.msra.mxu0 0.0
        %3163 = vmatpush.msra.mxu0 0.0
        %3164 = vmatpush.msra.mxu0 0.0
        %3165 = vmatpush.msra.mxu0 %v2596
        %3166 = vmatpush.msra.mxu0 %v2586
        %3167 = vmatmul.f32.gmra.mxu0 %v2939
        %v3168 = vpop.f32.mrf.mxu0
        %v3169 = vadd.f32 %v2933, %v3168
        %3170 = vmatmul.f32.gmra.mxu0 %v2942
        %v3171 = vpop.f32.mrf.mxu0
        %v3172 = vadd.f32 %v2936, %v3171
        %3173 = vdwg.mxu0
        %s3174 = scalar_lea.vmem [#allocation8], 128
        %v3175 = vld [vmem:[%s3174] sm:$0xff]
        %v3176 = vld [vmem:[%s3174 + $0x8] sm:$0xff]
        %3177 = vrot.lane.b32.xlu0 %v2577, 118
        %v3178 = vpop.permute.xlu0 %3177
        %3179 = vrot.lane.b32.xlu0 %v2578, 118
        %v3180 = vpop.permute.xlu0 %3179
        %3181 = vrot.lane.b32.xlu0 %v2579, 118
        %v3182 = vpop.permute.xlu0 %3181
        %3183 = vrot.lane.b32.xlu0 %v2580, 118
        %v3184 = vpop.permute.xlu0 %3183
        %3185 = vrot.lane.b32.xlu0 %v2581, 118
        %v3186 = vpop.permute.xlu0 %3185
        %3187 = vrot.lane.b32.xlu0 %v2582, 118
        %v3188 = vpop.permute.xlu0 %3187
        %3189 = vrot.lane.b32.xlu0 %v2583, 118
        %v3190 = vpop.permute.xlu0 %3189
        %3191 = vrot.lane.b32.xlu0 %v2584, 118
        %v3192 = vpop.permute.xlu0 %3191
        %3193 = vrot.lane.b32.xlu0 %v2585, 118
        %v3194 = vpop.permute.xlu0 %3193
        %3195 = vrot.lane.b32.xlu0 %v2586, 118
        %v3196 = vpop.permute.xlu0 %3195
        %3197 = vrot.lane.b32.xlu0 %v2587, 118
        %v3198 = vpop.permute.xlu0 %3197
        %3199 = vrot.lane.b32.xlu0 %v2588, 118
        %v3200 = vpop.permute.xlu0 %3199
        %3201 = vrot.lane.b32.xlu0 %v2589, 118
        %v3202 = vpop.permute.xlu0 %3201
        %3203 = vrot.lane.b32.xlu0 %v2590, 118
        %v3204 = vpop.permute.xlu0 %3203
        %3205 = vrot.lane.b32.xlu0 %v2591, 118
        %v3206 = vpop.permute.xlu0 %3205
        %3207 = vrot.lane.b32.xlu0 %v2592, 118
        %v3208 = vpop.permute.xlu0 %3207
        %3209 = vrot.lane.b32.xlu0 %v2593, 118
        %v3210 = vpop.permute.xlu0 %3209
        %3211 = vrot.lane.b32.xlu0 %v2594, 118
        %v3212 = vpop.permute.xlu0 %3211
        %3213 = vrot.lane.b32.xlu0 %v2595, 118
        %v3214 = vpop.permute.xlu0 %3213
        %3215 = vrot.lane.b32.xlu0 %v2596, 118
        %v3216 = vpop.permute.xlu0 %3215
        %vm3217 = vcmask 965632
        %v3218 = vsel %vm3217, %v3178, %v3180
        %v3219 = vsel %vm3217, %v3180, %v3182
        %v3220 = vsel %vm3217, %v3182, %v3184
        %v3221 = vsel %vm3217, %v3184, %v3186
        %v3222 = vsel %vm3217, %v3186, %v3188
        %v3223 = vsel %vm3217, %v3188, %v3190
        %v3224 = vsel %vm3217, %v3190, %v3192
        %v3225 = vsel %vm3217, %v3192, %v3194
        %v3226 = vsel %vm3217, %v3194, %v3196
        %v3227 = vsel %vm3217, %v3198, %v3200
        %v3228 = vsel %vm3217, %v3200, %v3202
        %v3229 = vsel %vm3217, %v3202, %v3204
        %v3230 = vsel %vm3217, %v3204, %v3206
        %v3231 = vsel %vm3217, %v3206, %v3208
        %v3232 = vsel %vm3217, %v3208, %v3210
        %v3233 = vsel %vm3217, %v3210, %v3212
        %v3234 = vsel %vm3217, %v3212, %v3214
        %v3235 = vsel %vm3217, %v3214, %v3216
        %v3257 = vsel %vm618, %v3175, 0
        %v3260 = vsel %vm618, %v3176, 0
        %3262 = vmatpush.msra.mxu0 0.0
        %3263 = vmatpush.msra.mxu0 0.0
        %3264 = vmatpush.msra.mxu0 0.0
        %3265 = vmatpush.msra.mxu0 0.0
        %3266 = vmatpush.msra.mxu0 0.0
        %3267 = vmatpush.msra.mxu0 0.0
        %3268 = vmatpush.msra.mxu0 0.0
        %3269 = vmatpush.msra.mxu0 0.0
        %3270 = vmatpush.msra.mxu0 0.0
        %3271 = vmatpush.msra.mxu0 0.0
        %3272 = vmatpush.msra.mxu0 0.0
        %3273 = vmatpush.msra.mxu0 0.0
        %3274 = vmatpush.msra.mxu0 0.0
        %3275 = vmatpush.msra.mxu0 0.0
        %3276 = vmatpush.msra.mxu0 %v3227
        %3277 = vmatpush.msra.mxu0 %v3218
        %3278 = vmatmul.f32.gmra.mxu0 %v3257
        %v3279 = vpop.f32.mrf.mxu0
        %v3280 = vadd.f32 0.0, %v3279
        %3281 = vmatmul.f32.gmra.mxu0 %v3260
        %v3282 = vpop.f32.mrf.mxu0
        %v3283 = vadd.f32 0.0, %v3282
        %3284 = vdwg.mxu0
        %3285 = vmatpush.msra.mxu0 0.0
        %3286 = vmatpush.msra.mxu0 0.0
        %3287 = vmatpush.msra.mxu0 0.0
        %3288 = vmatpush.msra.mxu0 0.0
        %3289 = vmatpush.msra.mxu0 0.0
        %3290 = vmatpush.msra.mxu0 0.0
        %3291 = vmatpush.msra.mxu0 0.0
        %3292 = vmatpush.msra.mxu0 0.0
        %3293 = vmatpush.msra.mxu0 0.0
        %3294 = vmatpush.msra.mxu0 0.0
        %3295 = vmatpush.msra.mxu0 0.0
        %3296 = vmatpush.msra.mxu0 0.0
        %3297 = vmatpush.msra.mxu0 0.0
        %3298 = vmatpush.msra.mxu0 0.0
        %3299 = vmatpush.msra.mxu0 %v3228
        %3300 = vmatpush.msra.mxu0 %v3219
        %3301 = vmatmul.f32.gmra.mxu0 %v3257
        %v3302 = vpop.f32.mrf.mxu0
        %v3303 = vadd.f32 0.0, %v3302
        %3304 = vmatmul.f32.gmra.mxu0 %v3260
        %v3305 = vpop.f32.mrf.mxu0
        %v3306 = vadd.f32 0.0, %v3305
        %3307 = vdwg.mxu0
        %3308 = vmatpush.msra.mxu0 0.0
        %3309 = vmatpush.msra.mxu0 0.0
        %3310 = vmatpush.msra.mxu0 0.0
        %3311 = vmatpush.msra.mxu0 0.0
        %3312 = vmatpush.msra.mxu0 0.0
        %3313 = vmatpush.msra.mxu0 0.0
        %3314 = vmatpush.msra.mxu0 0.0
        %3315 = vmatpush.msra.mxu0 0.0
        %3316 = vmatpush.msra.mxu0 0.0
        %3317 = vmatpush.msra.mxu0 0.0
        %3318 = vmatpush.msra.mxu0 0.0
        %3319 = vmatpush.msra.mxu0 0.0
        %3320 = vmatpush.msra.mxu0 0.0
        %3321 = vmatpush.msra.mxu0 0.0
        %3322 = vmatpush.msra.mxu0 %v3229
        %3323 = vmatpush.msra.mxu0 %v3220
        %3324 = vmatmul.f32.gmra.mxu0 %v3257
        %v3325 = vpop.f32.mrf.mxu0
        %v3326 = vadd.f32 0.0, %v3325
        %3327 = vmatmul.f32.gmra.mxu0 %v3260
        %v3328 = vpop.f32.mrf.mxu0
        %v3329 = vadd.f32 0.0, %v3328
        %3330 = vdwg.mxu0
        %3331 = vmatpush.msra.mxu0 0.0
        %3332 = vmatpush.msra.mxu0 0.0
        %3333 = vmatpush.msra.mxu0 0.0
        %3334 = vmatpush.msra.mxu0 0.0
        %3335 = vmatpush.msra.mxu0 0.0
        %3336 = vmatpush.msra.mxu0 0.0
        %3337 = vmatpush.msra.mxu0 0.0
        %3338 = vmatpush.msra.mxu0 0.0
        %3339 = vmatpush.msra.mxu0 0.0
        %3340 = vmatpush.msra.mxu0 0.0
        %3341 = vmatpush.msra.mxu0 0.0
        %3342 = vmatpush.msra.mxu0 0.0
        %3343 = vmatpush.msra.mxu0 0.0
        %3344 = vmatpush.msra.mxu0 0.0
        %3345 = vmatpush.msra.mxu0 %v3230
        %3346 = vmatpush.msra.mxu0 %v3221
        %3347 = vmatmul.f32.gmra.mxu0 %v3257
        %v3348 = vpop.f32.mrf.mxu0
        %v3349 = vadd.f32 0.0, %v3348
        %3350 = vmatmul.f32.gmra.mxu0 %v3260
        %v3351 = vpop.f32.mrf.mxu0
        %v3352 = vadd.f32 0.0, %v3351
        %3353 = vdwg.mxu0
        %3354 = vmatpush.msra.mxu0 0.0
        %3355 = vmatpush.msra.mxu0 0.0
        %3356 = vmatpush.msra.mxu0 0.0
        %3357 = vmatpush.msra.mxu0 0.0
        %3358 = vmatpush.msra.mxu0 0.0
        %3359 = vmatpush.msra.mxu0 0.0
        %3360 = vmatpush.msra.mxu0 0.0
        %3361 = vmatpush.msra.mxu0 0.0
        %3362 = vmatpush.msra.mxu0 0.0
        %3363 = vmatpush.msra.mxu0 0.0
        %3364 = vmatpush.msra.mxu0 0.0
        %3365 = vmatpush.msra.mxu0 0.0
        %3366 = vmatpush.msra.mxu0 0.0
        %3367 = vmatpush.msra.mxu0 0.0
        %3368 = vmatpush.msra.mxu0 %v3231
        %3369 = vmatpush.msra.mxu0 %v3222
        %3370 = vmatmul.f32.gmra.mxu0 %v3257
        %v3371 = vpop.f32.mrf.mxu0
        %v3372 = vadd.f32 0.0, %v3371
        %3373 = vmatmul.f32.gmra.mxu0 %v3260
        %v3374 = vpop.f32.mrf.mxu0
        %v3375 = vadd.f32 0.0, %v3374
        %3376 = vdwg.mxu0
        %3377 = vmatpush.msra.mxu0 0.0
        %3378 = vmatpush.msra.mxu0 0.0
        %3379 = vmatpush.msra.mxu0 0.0
        %3380 = vmatpush.msra.mxu0 0.0
        %3381 = vmatpush.msra.mxu0 0.0
        %3382 = vmatpush.msra.mxu0 0.0
        %3383 = vmatpush.msra.mxu0 0.0
        %3384 = vmatpush.msra.mxu0 0.0
        %3385 = vmatpush.msra.mxu0 0.0
        %3386 = vmatpush.msra.mxu0 0.0
        %3387 = vmatpush.msra.mxu0 0.0
        %3388 = vmatpush.msra.mxu0 0.0
        %3389 = vmatpush.msra.mxu0 0.0
        %3390 = vmatpush.msra.mxu0 0.0
        %3391 = vmatpush.msra.mxu0 %v3232
        %3392 = vmatpush.msra.mxu0 %v3223
        %3393 = vmatmul.f32.gmra.mxu0 %v3257
        %v3394 = vpop.f32.mrf.mxu0
        %v3395 = vadd.f32 0.0, %v3394
        %3396 = vmatmul.f32.gmra.mxu0 %v3260
        %v3397 = vpop.f32.mrf.mxu0
        %v3398 = vadd.f32 0.0, %v3397
        %3399 = vdwg.mxu0
        %3400 = vmatpush.msra.mxu0 0.0
        %3401 = vmatpush.msra.mxu0 0.0
        %3402 = vmatpush.msra.mxu0 0.0
        %3403 = vmatpush.msra.mxu0 0.0
        %3404 = vmatpush.msra.mxu0 0.0
        %3405 = vmatpush.msra.mxu0 0.0
        %3406 = vmatpush.msra.mxu0 0.0
        %3407 = vmatpush.msra.mxu0 0.0
        %3408 = vmatpush.msra.mxu0 0.0
        %3409 = vmatpush.msra.mxu0 0.0
        %3410 = vmatpush.msra.mxu0 0.0
        %3411 = vmatpush.msra.mxu0 0.0
        %3412 = vmatpush.msra.mxu0 0.0
        %3413 = vmatpush.msra.mxu0 0.0
        %3414 = vmatpush.msra.mxu0 %v3233
        %3415 = vmatpush.msra.mxu0 %v3224
        %3416 = vmatmul.f32.gmra.mxu0 %v3257
        %v3417 = vpop.f32.mrf.mxu0
        %v3418 = vadd.f32 0.0, %v3417
        %3419 = vmatmul.f32.gmra.mxu0 %v3260
        %v3420 = vpop.f32.mrf.mxu0
        %v3421 = vadd.f32 0.0, %v3420
        %3422 = vdwg.mxu0
        %3423 = vmatpush.msra.mxu0 0.0
        %3424 = vmatpush.msra.mxu0 0.0
        %3425 = vmatpush.msra.mxu0 0.0
        %3426 = vmatpush.msra.mxu0 0.0
        %3427 = vmatpush.msra.mxu0 0.0
        %3428 = vmatpush.msra.mxu0 0.0
        %3429 = vmatpush.msra.mxu0 0.0
        %3430 = vmatpush.msra.mxu0 0.0
        %3431 = vmatpush.msra.mxu0 0.0
        %3432 = vmatpush.msra.mxu0 0.0
        %3433 = vmatpush.msra.mxu0 0.0
        %3434 = vmatpush.msra.mxu0 0.0
        %3435 = vmatpush.msra.mxu0 0.0
        %3436 = vmatpush.msra.mxu0 0.0
        %3437 = vmatpush.msra.mxu0 %v3234
        %3438 = vmatpush.msra.mxu0 %v3225
        %3439 = vmatmul.f32.gmra.mxu0 %v3257
        %v3440 = vpop.f32.mrf.mxu0
        %v3441 = vadd.f32 0.0, %v3440
        %3442 = vmatmul.f32.gmra.mxu0 %v3260
        %v3443 = vpop.f32.mrf.mxu0
        %v3444 = vadd.f32 0.0, %v3443
        %3445 = vdwg.mxu0
        %3446 = vmatpush.msra.mxu0 0.0
        %3447 = vmatpush.msra.mxu0 0.0
        %3448 = vmatpush.msra.mxu0 0.0
        %3449 = vmatpush.msra.mxu0 0.0
        %3450 = vmatpush.msra.mxu0 0.0
        %3451 = vmatpush.msra.mxu0 0.0
        %3452 = vmatpush.msra.mxu0 0.0
        %3453 = vmatpush.msra.mxu0 0.0
        %3454 = vmatpush.msra.mxu0 0.0
        %3455 = vmatpush.msra.mxu0 0.0
        %3456 = vmatpush.msra.mxu0 0.0
        %3457 = vmatpush.msra.mxu0 0.0
        %3458 = vmatpush.msra.mxu0 0.0
        %3459 = vmatpush.msra.mxu0 0.0
        %3460 = vmatpush.msra.mxu0 %v3235
        %3461 = vmatpush.msra.mxu0 %v3226
        %3462 = vmatmul.f32.gmra.mxu0 %v3257
        %v3463 = vpop.f32.mrf.mxu0
        %v3464 = vadd.f32 0.0, %v3463
        %3465 = vmatmul.f32.gmra.mxu0 %v3260
        %v3466 = vpop.f32.mrf.mxu0
        %v3467 = vadd.f32 0.0, %v3466
        %3468 = vdwg.mxu0
        %3469 = vmatpush.msra.mxu0 0.0
        %3470 = vmatpush.msra.mxu0 0.0
        %3471 = vmatpush.msra.mxu0 0.0
        %3472 = vmatpush.msra.mxu0 0.0
        %3473 = vmatpush.msra.mxu0 0.0
        %3474 = vmatpush.msra.mxu0 0.0
        %3475 = vmatpush.msra.mxu0 0.0
        %3476 = vmatpush.msra.mxu0 0.0
        %3477 = vmatpush.msra.mxu0 0.0
        %3478 = vmatpush.msra.mxu0 0.0
        %3479 = vmatpush.msra.mxu0 0.0
        %3480 = vmatpush.msra.mxu0 0.0
        %3481 = vmatpush.msra.mxu0 0.0
        %3482 = vmatpush.msra.mxu0 0.0
        %3483 = vmatpush.msra.mxu0 %v3216
        %3484 = vmatpush.msra.mxu0 %v3196
        %3485 = vmatmul.f32.gmra.mxu0 %v3257
        %v3486 = vpop.f32.mrf.mxu0
        %v3487 = vadd.f32 0.0, %v3486
        %3488 = vmatmul.f32.gmra.mxu0 %v3260
        %v3489 = vpop.f32.mrf.mxu0
        %v3490 = vadd.f32 0.0, %v3489
        %3491 = vdwg.mxu0
        %v3492 = vadd.f32 %v2962, %v3280
        %v3493 = vadd.f32 %v2985, %v3303
        %v3494 = vadd.f32 %v3008, %v3326
        %v3495 = vadd.f32 %v3031, %v3349
        %v3496 = vadd.f32 %v3054, %v3372
        %v3497 = vadd.f32 %v3077, %v3395
        %v3498 = vadd.f32 %v3100, %v3418
        %v3499 = vadd.f32 %v3123, %v3441
        %v3500 = vadd.f32 %v3146, %v3464
        %v3501 = vadd.f32 %v3169, %v3487
        %v3502 = vadd.f32 %v2965, %v3283
        %v3503 = vadd.f32 %v2988, %v3306
        %v3504 = vadd.f32 %v3011, %v3329
        %v3505 = vadd.f32 %v3034, %v3352
        %v3506 = vadd.f32 %v3057, %v3375
        %v3507 = vadd.f32 %v3080, %v3398
        %v3508 = vadd.f32 %v3103, %v3421
        %v3509 = vadd.f32 %v3126, %v3444
        %v3510 = vadd.f32 %v3149, %v3467
        %v3511 = vadd.f32 %v3172, %v3490
        %s3512 = scalar_lea.vmem %s4, 32
        %v3513 = vld [vmem:[%s3512] sm:$0xff]
        %v3514 = vld [vmem:[%s3512 + $0x8] sm:$0xff]
        %3516 = vset.pattern.permute.xlu0 0
        %3517 = vperm.xlu0 %3516, %v3513
        %v3518 = vpop.permute.xlu0 %3517
        %3521 = vset.pattern.permute.xlu0 0
        %3522 = vperm.xlu0 %3521, %v3514
        %v3523 = vpop.permute.xlu0 %3522
        %v3525 = vadd.f32 %v3492, %v3518
        %v3526 = vadd.f32 %v3493, %v3518
        %v3527 = vadd.f32 %v3494, %v3518
        %v3528 = vadd.f32 %v3495, %v3518
        %v3529 = vadd.f32 %v3496, %v3518
        %v3530 = vadd.f32 %v3497, %v3518
        %v3531 = vadd.f32 %v3498, %v3518
        %v3532 = vadd.f32 %v3499, %v3518
        %v3533 = vadd.f32 %v3500, %v3518
        %v3534 = vadd.f32 %v3501, %v3518
        %v3535 = vadd.f32 %v3502, %v3523
        %v3536 = vadd.f32 %v3503, %v3523
        %v3537 = vadd.f32 %v3504, %v3523
        %v3538 = vadd.f32 %v3505, %v3523
        %v3539 = vadd.f32 %v3506, %v3523
        %v3540 = vadd.f32 %v3507, %v3523
        %v3541 = vadd.f32 %v3508, %v3523
        %v3542 = vadd.f32 %v3509, %v3523
        %v3543 = vadd.f32 %v3510, %v3523
        %v3544 = vadd.f32 %v3511, %v3523
        %3565 = vrot.lane.b32.xlu0 %v3525, 9
        %v3566 = vpop.permute.xlu0 %3565
        %3567 = vrot.lane.b32.xlu0 %v3526, 9
        %v3568 = vpop.permute.xlu0 %3567
        %3569 = vrot.lane.b32.xlu0 %v3527, 9
        %v3570 = vpop.permute.xlu0 %3569
        %3571 = vrot.lane.b32.xlu0 %v3528, 9
        %v3572 = vpop.permute.xlu0 %3571
        %3573 = vrot.lane.b32.xlu0 %v3529, 9
        %v3574 = vpop.permute.xlu0 %3573
        %3575 = vrot.lane.b32.xlu0 %v3530, 9
        %v3576 = vpop.permute.xlu0 %3575
        %3577 = vrot.lane.b32.xlu0 %v3531, 9
        %v3578 = vpop.permute.xlu0 %3577
        %3579 = vrot.lane.b32.xlu0 %v3532, 9
        %v3580 = vpop.permute.xlu0 %3579
        %3581 = vrot.lane.b32.xlu0 %v3533, 9
        %v3582 = vpop.permute.xlu0 %3581
        %3583 = vrot.lane.b32.xlu0 %v3534, 9
        %v3584 = vpop.permute.xlu0 %3583
        %3585 = vrot.lane.b32.xlu0 %v3535, 9
        %v3586 = vpop.permute.xlu0 %3585
        %3587 = vrot.lane.b32.xlu0 %v3536, 9
        %v3588 = vpop.permute.xlu0 %3587
        %3589 = vrot.lane.b32.xlu0 %v3537, 9
        %v3590 = vpop.permute.xlu0 %3589
        %3591 = vrot.lane.b32.xlu0 %v3538, 9
        %v3592 = vpop.permute.xlu0 %3591
        %3593 = vrot.lane.b32.xlu0 %v3539, 9
        %v3594 = vpop.permute.xlu0 %3593
        %3595 = vrot.lane.b32.xlu0 %v3540, 9
        %v3596 = vpop.permute.xlu0 %3595
        %3597 = vrot.lane.b32.xlu0 %v3541, 9
        %v3598 = vpop.permute.xlu0 %3597
        %3599 = vrot.lane.b32.xlu0 %v3542, 9
        %v3600 = vpop.permute.xlu0 %3599
        %3601 = vrot.lane.b32.xlu0 %v3543, 9
        %v3602 = vpop.permute.xlu0 %3601
        %3603 = vrot.lane.b32.xlu0 %v3544, 9
        %v3604 = vpop.permute.xlu0 %3603
        %vm3605 = vcmask 72704
        %v3606 = vsel %vm3605, %v3566, %v3568
        %v3607 = vsel %vm3605, %v3568, %v3570
        %v3608 = vsel %vm3605, %v3570, %v3572
        %v3609 = vsel %vm3605, %v3572, %v3574
        %v3610 = vsel %vm3605, %v3574, %v3576
        %v3611 = vsel %vm3605, %v3576, %v3578
        %v3612 = vsel %vm3605, %v3578, %v3580
        %v3613 = vsel %vm3605, %v3580, %v3582
        %v3614 = vsel %vm3605, %v3582, %v3584
        %v3615 = vsel %vm3605, %v3586, %v3588
        %v3616 = vsel %vm3605, %v3588, %v3590
        %v3617 = vsel %vm3605, %v3590, %v3592
        %v3618 = vsel %vm3605, %v3592, %v3594
        %v3619 = vsel %vm3605, %v3594, %v3596
        %v3620 = vsel %vm3605, %v3596, %v3598
        %v3621 = vsel %vm3605, %v3598, %v3600
        %v3622 = vsel %vm3605, %v3600, %v3602
        %v3623 = vsel %vm3605, %v3602, %v3604
        %v3644 = vadd.f32 %v401, %v3566
        %v3645 = vadd.f32 %v403, %v3606
        %v3646 = vadd.f32 %v404, %v3607
        %v3647 = vadd.f32 %v405, %v3608
        %v3648 = vadd.f32 %v406, %v3609
        %v3649 = vadd.f32 %v407, %v3610
        %v3650 = vadd.f32 %v408, %v3611
        %v3651 = vadd.f32 %v409, %v3612
        %v3652 = vadd.f32 %v410, %v3613
        %v3653 = vadd.f32 %v419, %v3614
        %v3654 = vadd.f32 %v402, %v3586
        %v3655 = vadd.f32 %v411, %v3615
        %v3656 = vadd.f32 %v412, %v3616
        %v3657 = vadd.f32 %v413, %v3617
        %v3658 = vadd.f32 %v414, %v3618
        %v3659 = vadd.f32 %v415, %v3619
        %v3660 = vadd.f32 %v416, %v3620
        %v3661 = vadd.f32 %v417, %v3621
        %v3662 = vadd.f32 %v418, %v3622
        %v3663 = vadd.f32 %v420, %v3623
        %vm3664 = vcmp.ge.f32.partialorder %v3644, 0.0
        %vm3665 = vcmp.ge.f32.partialorder %v3645, 0.0
        %vm3666 = vcmp.ge.f32.partialorder %v3646, 0.0
        %vm3667 = vcmp.ge.f32.partialorder %v3647, 0.0
        %vm3668 = vcmp.ge.f32.partialorder %v3648, 0.0
        %vm3669 = vcmp.ge.f32.partialorder %v3649, 0.0
        %vm3670 = vcmp.ge.f32.partialorder %v3650, 0.0
        %vm3671 = vcmp.ge.f32.partialorder %v3651, 0.0
        %vm3672 = vcmp.ge.f32.partialorder %v3652, 0.0
        %vm3673 = vcmp.ge.f32.partialorder %v3653, 0.0
        %vm3674 = vcmp.ge.f32.partialorder %v3654, 0.0
        %vm3675 = vcmp.ge.f32.partialorder %v3655, 0.0
        %vm3676 = vcmp.ge.f32.partialorder %v3656, 0.0
        %vm3677 = vcmp.ge.f32.partialorder %v3657, 0.0
        %vm3678 = vcmp.ge.f32.partialorder %v3658, 0.0
        %vm3679 = vcmp.ge.f32.partialorder %v3659, 0.0
        %vm3680 = vcmp.ge.f32.partialorder %v3660, 0.0
        %vm3681 = vcmp.ge.f32.partialorder %v3661, 0.0
        %vm3682 = vcmp.ge.f32.partialorder %v3662, 0.0
        %vm3683 = vcmp.ge.f32.partialorder %v3663, 0.0
        %v3684 = vmul.f32 %v3644, 0.1
        %v3685 = vmul.f32 %v3645, 0.1
        %v3686 = vmul.f32 %v3646, 0.1
        %v3687 = vmul.f32 %v3647, 0.1
        %v3688 = vmul.f32 %v3648, 0.1
        %v3689 = vmul.f32 %v3649, 0.1
        %v3690 = vmul.f32 %v3650, 0.1
        %v3691 = vmul.f32 %v3651, 0.1
        %v3692 = vmul.f32 %v3652, 0.1
        %v3693 = vmul.f32 %v3653, 0.1
        %v3694 = vmul.f32 %v3654, 0.1
        %v3695 = vmul.f32 %v3655, 0.1
        %v3696 = vmul.f32 %v3656, 0.1
        %v3697 = vmul.f32 %v3657, 0.1
        %v3698 = vmul.f32 %v3658, 0.1
        %v3699 = vmul.f32 %v3659, 0.1
        %v3700 = vmul.f32 %v3660, 0.1
        %v3701 = vmul.f32 %v3661, 0.1
        %v3702 = vmul.f32 %v3662, 0.1
        %v3703 = vmul.f32 %v3663, 0.1
        %v3704 = vsel %vm3664, %v3644, %v3684
        %v3705 = vsel %vm3665, %v3645, %v3685
        %v3706 = vsel %vm3666, %v3646, %v3686
        %v3707 = vsel %vm3667, %v3647, %v3687
        %v3708 = vsel %vm3668, %v3648, %v3688
        %v3709 = vsel %vm3669, %v3649, %v3689
        %v3710 = vsel %vm3670, %v3650, %v3690
        %v3711 = vsel %vm3671, %v3651, %v3691
        %v3712 = vsel %vm3672, %v3652, %v3692
        %v3713 = vsel %vm3673, %v3653, %v3693
        %v3714 = vsel %vm3674, %v3654, %v3694
        %v3715 = vsel %vm3675, %v3655, %v3695
        %v3716 = vsel %vm3676, %v3656, %v3696
        %v3717 = vsel %vm3677, %v3657, %v3697
        %v3718 = vsel %vm3678, %v3658, %v3698
        %v3719 = vsel %vm3679, %v3659, %v3699
        %v3720 = vsel %vm3680, %v3660, %v3700
        %v3721 = vsel %vm3681, %v3661, %v3701
        %v3722 = vsel %vm3682, %v3662, %v3702
        %v3723 = vsel %vm3683, %v3663, %v3703
        %v3724 = vmul.f32 %v3704, %v491
        %v3725 = vmul.f32 %v3705, %v492
        %v3726 = vmul.f32 %v3706, %v492
        %v3727 = vmul.f32 %v3707, %v492
        %v3728 = vmul.f32 %v3708, %v492
        %v3729 = vmul.f32 %v3709, %v492
        %v3730 = vmul.f32 %v3710, %v492
        %v3731 = vmul.f32 %v3711, %v492
        %v3732 = vmul.f32 %v3712, %v492
        %v3733 = vmul.f32 %v3713, %v493
        %v3734 = vmul.f32 %v3714, %v491
        %v3735 = vmul.f32 %v3715, %v492
        %v3736 = vmul.f32 %v3716, %v492
        %v3737 = vmul.f32 %v3717, %v492
        %v3738 = vmul.f32 %v3718, %v492
        %v3739 = vmul.f32 %v3719, %v492
        %v3740 = vmul.f32 %v3720, %v492
        %v3741 = vmul.f32 %v3721, %v492
        %v3742 = vmul.f32 %v3722, %v492
        %v3743 = vmul.f32 %v3723, %v493
        %s3744 = scalar_lea.vmem [#allocation8], 144
        %v3745 = vld [vmem:[%s3744] sm:$0xff]
        %v3746 = vld [vmem:[%s3744 + $0x8] sm:$0xff]
        %s3747 = scalar_lea.vmem [#allocation8], 160
        %v3748 = vld [vmem:[%s3747] sm:$0xff]
        %v3749 = vld [vmem:[%s3747 + $0x8] sm:$0xff]
        %3770 = vrot.lane.b32.xlu0 %v3724, 118
        %v3771 = vpop.permute.xlu0 %3770
        %3772 = vrot.lane.b32.xlu0 %v3725, 118
        %v3773 = vpop.permute.xlu0 %3772
        %3774 = vrot.lane.b32.xlu0 %v3726, 118
        %v3775 = vpop.permute.xlu0 %3774
        %3776 = vrot.lane.b32.xlu0 %v3727, 118
        %v3777 = vpop.permute.xlu0 %3776
        %3778 = vrot.lane.b32.xlu0 %v3728, 118
        %v3779 = vpop.permute.xlu0 %3778
        %3780 = vrot.lane.b32.xlu0 %v3729, 118
        %v3781 = vpop.permute.xlu0 %3780
        %3782 = vrot.lane.b32.xlu0 %v3730, 118
        %v3783 = vpop.permute.xlu0 %3782
        %3784 = vrot.lane.b32.xlu0 %v3731, 118
        %v3785 = vpop.permute.xlu0 %3784
        %3786 = vrot.lane.b32.xlu0 %v3732, 118
        %v3787 = vpop.permute.xlu0 %3786
        %3788 = vrot.lane.b32.xlu0 %v3733, 118
        %v3789 = vpop.permute.xlu0 %3788
        %3790 = vrot.lane.b32.xlu0 %v3734, 118
        %v3791 = vpop.permute.xlu0 %3790
        %3792 = vrot.lane.b32.xlu0 %v3735, 118
        %v3793 = vpop.permute.xlu0 %3792
        %3794 = vrot.lane.b32.xlu0 %v3736, 118
        %v3795 = vpop.permute.xlu0 %3794
        %3796 = vrot.lane.b32.xlu0 %v3737, 118
        %v3797 = vpop.permute.xlu0 %3796
        %3798 = vrot.lane.b32.xlu0 %v3738, 118
        %v3799 = vpop.permute.xlu0 %3798
        %3800 = vrot.lane.b32.xlu0 %v3739, 118
        %v3801 = vpop.permute.xlu0 %3800
        %3802 = vrot.lane.b32.xlu0 %v3740, 118
        %v3803 = vpop.permute.xlu0 %3802
        %3804 = vrot.lane.b32.xlu0 %v3741, 118
        %v3805 = vpop.permute.xlu0 %3804
        %3806 = vrot.lane.b32.xlu0 %v3742, 118
        %v3807 = vpop.permute.xlu0 %3806
        %3808 = vrot.lane.b32.xlu0 %v3743, 118
        %v3809 = vpop.permute.xlu0 %3808
        %v3810 = vsel %vm3217, %v3771, %v3773
        %v3811 = vsel %vm3217, %v3773, %v3775
        %v3812 = vsel %vm3217, %v3775, %v3777
        %v3813 = vsel %vm3217, %v3777, %v3779
        %v3814 = vsel %vm3217, %v3779, %v3781
        %v3815 = vsel %vm3217, %v3781, %v3783
        %v3816 = vsel %vm3217, %v3783, %v3785
        %v3817 = vsel %vm3217, %v3785, %v3787
        %v3818 = vsel %vm3217, %v3787, %v3789
        %v3819 = vsel %vm3217, %v3791, %v3793
        %v3820 = vsel %vm3217, %v3793, %v3795
        %v3821 = vsel %vm3217, %v3795, %v3797
        %v3822 = vsel %vm3217, %v3797, %v3799
        %v3823 = vsel %vm3217, %v3799, %v3801
        %v3824 = vsel %vm3217, %v3801, %v3803
        %v3825 = vsel %vm3217, %v3803, %v3805
        %v3826 = vsel %vm3217, %v3805, %v3807
        %v3827 = vsel %vm3217, %v3807, %v3809
        %v3849 = vsel %vm618, %v3748, 0
        %v3852 = vsel %vm618, %v3749, 0
        %3854 = vmatpush.msra.mxu0 0.0
        %3855 = vmatpush.msra.mxu0 0.0
        %3856 = vmatpush.msra.mxu0 0.0
        %3857 = vmatpush.msra.mxu0 0.0
        %3858 = vmatpush.msra.mxu0 0.0
        %3859 = vmatpush.msra.mxu0 0.0
        %3860 = vmatpush.msra.mxu0 0.0
        %3861 = vmatpush.msra.mxu0 0.0
        %3862 = vmatpush.msra.mxu0 0.0
        %3863 = vmatpush.msra.mxu0 0.0
        %3864 = vmatpush.msra.mxu0 0.0
        %3865 = vmatpush.msra.mxu0 0.0
        %3866 = vmatpush.msra.mxu0 0.0
        %3867 = vmatpush.msra.mxu0 0.0
        %3868 = vmatpush.msra.mxu0 %v3819
        %3869 = vmatpush.msra.mxu0 %v3810
        %3870 = vmatmul.f32.gmra.mxu0 %v3849
        %v3871 = vpop.f32.mrf.mxu0
        %v3872 = vadd.f32 0.0, %v3871
        %3873 = vmatmul.f32.gmra.mxu0 %v3852
        %v3874 = vpop.f32.mrf.mxu0
        %v3875 = vadd.f32 0.0, %v3874
        %3876 = vdwg.mxu0
        %3877 = vmatpush.msra.mxu0 0.0
        %3878 = vmatpush.msra.mxu0 0.0
        %3879 = vmatpush.msra.mxu0 0.0
        %3880 = vmatpush.msra.mxu0 0.0
        %3881 = vmatpush.msra.mxu0 0.0
        %3882 = vmatpush.msra.mxu0 0.0
        %3883 = vmatpush.msra.mxu0 0.0
        %3884 = vmatpush.msra.mxu0 0.0
        %3885 = vmatpush.msra.mxu0 0.0
        %3886 = vmatpush.msra.mxu0 0.0
        %3887 = vmatpush.msra.mxu0 0.0
        %3888 = vmatpush.msra.mxu0 0.0
        %3889 = vmatpush.msra.mxu0 0.0
        %3890 = vmatpush.msra.mxu0 0.0
        %3891 = vmatpush.msra.mxu0 %v3820
        %3892 = vmatpush.msra.mxu0 %v3811
        %3893 = vmatmul.f32.gmra.mxu0 %v3849
        %v3894 = vpop.f32.mrf.mxu0
        %v3895 = vadd.f32 0.0, %v3894
        %3896 = vmatmul.f32.gmra.mxu0 %v3852
        %v3897 = vpop.f32.mrf.mxu0
        %v3898 = vadd.f32 0.0, %v3897
        %3899 = vdwg.mxu0
        %3900 = vmatpush.msra.mxu0 0.0
        %3901 = vmatpush.msra.mxu0 0.0
        %3902 = vmatpush.msra.mxu0 0.0
        %3903 = vmatpush.msra.mxu0 0.0
        %3904 = vmatpush.msra.mxu0 0.0
        %3905 = vmatpush.msra.mxu0 0.0
        %3906 = vmatpush.msra.mxu0 0.0
        %3907 = vmatpush.msra.mxu0 0.0
        %3908 = vmatpush.msra.mxu0 0.0
        %3909 = vmatpush.msra.mxu0 0.0
        %3910 = vmatpush.msra.mxu0 0.0
        %3911 = vmatpush.msra.mxu0 0.0
        %3912 = vmatpush.msra.mxu0 0.0
        %3913 = vmatpush.msra.mxu0 0.0
        %3914 = vmatpush.msra.mxu0 %v3821
        %3915 = vmatpush.msra.mxu0 %v3812
        %3916 = vmatmul.f32.gmra.mxu0 %v3849
        %v3917 = vpop.f32.mrf.mxu0
        %v3918 = vadd.f32 0.0, %v3917
        %3919 = vmatmul.f32.gmra.mxu0 %v3852
        %v3920 = vpop.f32.mrf.mxu0
        %v3921 = vadd.f32 0.0, %v3920
        %3922 = vdwg.mxu0
        %3923 = vmatpush.msra.mxu0 0.0
        %3924 = vmatpush.msra.mxu0 0.0
        %3925 = vmatpush.msra.mxu0 0.0
        %3926 = vmatpush.msra.mxu0 0.0
        %3927 = vmatpush.msra.mxu0 0.0
        %3928 = vmatpush.msra.mxu0 0.0
        %3929 = vmatpush.msra.mxu0 0.0
        %3930 = vmatpush.msra.mxu0 0.0
        %3931 = vmatpush.msra.mxu0 0.0
        %3932 = vmatpush.msra.mxu0 0.0
        %3933 = vmatpush.msra.mxu0 0.0
        %3934 = vmatpush.msra.mxu0 0.0
        %3935 = vmatpush.msra.mxu0 0.0
        %3936 = vmatpush.msra.mxu0 0.0
        %3937 = vmatpush.msra.mxu0 %v3822
        %3938 = vmatpush.msra.mxu0 %v3813
        %3939 = vmatmul.f32.gmra.mxu0 %v3849
        %v3940 = vpop.f32.mrf.mxu0
        %v3941 = vadd.f32 0.0, %v3940
        %3942 = vmatmul.f32.gmra.mxu0 %v3852
        %v3943 = vpop.f32.mrf.mxu0
        %v3944 = vadd.f32 0.0, %v3943
        %3945 = vdwg.mxu0
        %3946 = vmatpush.msra.mxu0 0.0
        %3947 = vmatpush.msra.mxu0 0.0
        %3948 = vmatpush.msra.mxu0 0.0
        %3949 = vmatpush.msra.mxu0 0.0
        %3950 = vmatpush.msra.mxu0 0.0
        %3951 = vmatpush.msra.mxu0 0.0
        %3952 = vmatpush.msra.mxu0 0.0
        %3953 = vmatpush.msra.mxu0 0.0
        %3954 = vmatpush.msra.mxu0 0.0
        %3955 = vmatpush.msra.mxu0 0.0
        %3956 = vmatpush.msra.mxu0 0.0
        %3957 = vmatpush.msra.mxu0 0.0
        %3958 = vmatpush.msra.mxu0 0.0
        %3959 = vmatpush.msra.mxu0 0.0
        %3960 = vmatpush.msra.mxu0 %v3823
        %3961 = vmatpush.msra.mxu0 %v3814
        %3962 = vmatmul.f32.gmra.mxu0 %v3849
        %v3963 = vpop.f32.mrf.mxu0
        %v3964 = vadd.f32 0.0, %v3963
        %3965 = vmatmul.f32.gmra.mxu0 %v3852
        %v3966 = vpop.f32.mrf.mxu0
        %v3967 = vadd.f32 0.0, %v3966
        %3968 = vdwg.mxu0
        %3969 = vmatpush.msra.mxu0 0.0
        %3970 = vmatpush.msra.mxu0 0.0
        %3971 = vmatpush.msra.mxu0 0.0
        %3972 = vmatpush.msra.mxu0 0.0
        %3973 = vmatpush.msra.mxu0 0.0
        %3974 = vmatpush.msra.mxu0 0.0
        %3975 = vmatpush.msra.mxu0 0.0
        %3976 = vmatpush.msra.mxu0 0.0
        %3977 = vmatpush.msra.mxu0 0.0
        %3978 = vmatpush.msra.mxu0 0.0
        %3979 = vmatpush.msra.mxu0 0.0
        %3980 = vmatpush.msra.mxu0 0.0
        %3981 = vmatpush.msra.mxu0 0.0
        %3982 = vmatpush.msra.mxu0 0.0
        %3983 = vmatpush.msra.mxu0 %v3824
        %3984 = vmatpush.msra.mxu0 %v3815
        %3985 = vmatmul.f32.gmra.mxu0 %v3849
        %v3986 = vpop.f32.mrf.mxu0
        %v3987 = vadd.f32 0.0, %v3986
        %3988 = vmatmul.f32.gmra.mxu0 %v3852
        %v3989 = vpop.f32.mrf.mxu0
        %v3990 = vadd.f32 0.0, %v3989
        %3991 = vdwg.mxu0
        %3992 = vmatpush.msra.mxu0 0.0
        %3993 = vmatpush.msra.mxu0 0.0
        %3994 = vmatpush.msra.mxu0 0.0
        %3995 = vmatpush.msra.mxu0 0.0
        %3996 = vmatpush.msra.mxu0 0.0
        %3997 = vmatpush.msra.mxu0 0.0
        %3998 = vmatpush.msra.mxu0 0.0
        %3999 = vmatpush.msra.mxu0 0.0
        %4000 = vmatpush.msra.mxu0 0.0
        %4001 = vmatpush.msra.mxu0 0.0
        %4002 = vmatpush.msra.mxu0 0.0
        %4003 = vmatpush.msra.mxu0 0.0
        %4004 = vmatpush.msra.mxu0 0.0
        %4005 = vmatpush.msra.mxu0 0.0
        %4006 = vmatpush.msra.mxu0 %v3825
        %4007 = vmatpush.msra.mxu0 %v3816
        %4008 = vmatmul.f32.gmra.mxu0 %v3849
        %v4009 = vpop.f32.mrf.mxu0
        %v4010 = vadd.f32 0.0, %v4009
        %4011 = vmatmul.f32.gmra.mxu0 %v3852
        %v4012 = vpop.f32.mrf.mxu0
        %v4013 = vadd.f32 0.0, %v4012
        %4014 = vdwg.mxu0
        %4015 = vmatpush.msra.mxu0 0.0
        %4016 = vmatpush.msra.mxu0 0.0
        %4017 = vmatpush.msra.mxu0 0.0
        %4018 = vmatpush.msra.mxu0 0.0
        %4019 = vmatpush.msra.mxu0 0.0
        %4020 = vmatpush.msra.mxu0 0.0
        %4021 = vmatpush.msra.mxu0 0.0
        %4022 = vmatpush.msra.mxu0 0.0
        %4023 = vmatpush.msra.mxu0 0.0
        %4024 = vmatpush.msra.mxu0 0.0
        %4025 = vmatpush.msra.mxu0 0.0
        %4026 = vmatpush.msra.mxu0 0.0
        %4027 = vmatpush.msra.mxu0 0.0
        %4028 = vmatpush.msra.mxu0 0.0
        %4029 = vmatpush.msra.mxu0 %v3826
        %4030 = vmatpush.msra.mxu0 %v3817
        %4031 = vmatmul.f32.gmra.mxu0 %v3849
        %v4032 = vpop.f32.mrf.mxu0
        %v4033 = vadd.f32 0.0, %v4032
        %4034 = vmatmul.f32.gmra.mxu0 %v3852
        %v4035 = vpop.f32.mrf.mxu0
        %v4036 = vadd.f32 0.0, %v4035
        %4037 = vdwg.mxu0
        %4038 = vmatpush.msra.mxu0 0.0
        %4039 = vmatpush.msra.mxu0 0.0
        %4040 = vmatpush.msra.mxu0 0.0
        %4041 = vmatpush.msra.mxu0 0.0
        %4042 = vmatpush.msra.mxu0 0.0
        %4043 = vmatpush.msra.mxu0 0.0
        %4044 = vmatpush.msra.mxu0 0.0
        %4045 = vmatpush.msra.mxu0 0.0
        %4046 = vmatpush.msra.mxu0 0.0
        %4047 = vmatpush.msra.mxu0 0.0
        %4048 = vmatpush.msra.mxu0 0.0
        %4049 = vmatpush.msra.mxu0 0.0
        %4050 = vmatpush.msra.mxu0 0.0
        %4051 = vmatpush.msra.mxu0 0.0
        %4052 = vmatpush.msra.mxu0 %v3827
        %4053 = vmatpush.msra.mxu0 %v3818
        %4054 = vmatmul.f32.gmra.mxu0 %v3849
        %v4055 = vpop.f32.mrf.mxu0
        %v4056 = vadd.f32 0.0, %v4055
        %4057 = vmatmul.f32.gmra.mxu0 %v3852
        %v4058 = vpop.f32.mrf.mxu0
        %v4059 = vadd.f32 0.0, %v4058
        %4060 = vdwg.mxu0
        %4061 = vmatpush.msra.mxu0 0.0
        %4062 = vmatpush.msra.mxu0 0.0
        %4063 = vmatpush.msra.mxu0 0.0
        %4064 = vmatpush.msra.mxu0 0.0
        %4065 = vmatpush.msra.mxu0 0.0
        %4066 = vmatpush.msra.mxu0 0.0
        %4067 = vmatpush.msra.mxu0 0.0
        %4068 = vmatpush.msra.mxu0 0.0
        %4069 = vmatpush.msra.mxu0 0.0
        %4070 = vmatpush.msra.mxu0 0.0
        %4071 = vmatpush.msra.mxu0 0.0
        %4072 = vmatpush.msra.mxu0 0.0
        %4073 = vmatpush.msra.mxu0 0.0
        %4074 = vmatpush.msra.mxu0 0.0
        %4075 = vmatpush.msra.mxu0 %v3809
        %4076 = vmatpush.msra.mxu0 %v3789
        %4077 = vmatmul.f32.gmra.mxu0 %v3849
        %v4078 = vpop.f32.mrf.mxu0
        %v4079 = vadd.f32 0.0, %v4078
        %4080 = vmatmul.f32.gmra.mxu0 %v3852
        %v4081 = vpop.f32.mrf.mxu0
        %v4082 = vadd.f32 0.0, %v4081
        %4083 = vdwg.mxu0
        %4084 = vrot.lane.b32.xlu0 %v3724, 119
        %v4085 = vpop.permute.xlu0 %4084
        %4086 = vrot.lane.b32.xlu0 %v3725, 119
        %v4087 = vpop.permute.xlu0 %4086
        %4088 = vrot.lane.b32.xlu0 %v3726, 119
        %v4089 = vpop.permute.xlu0 %4088
        %4090 = vrot.lane.b32.xlu0 %v3727, 119
        %v4091 = vpop.permute.xlu0 %4090
        %4092 = vrot.lane.b32.xlu0 %v3728, 119
        %v4093 = vpop.permute.xlu0 %4092
        %4094 = vrot.lane.b32.xlu0 %v3729, 119
        %v4095 = vpop.permute.xlu0 %4094
        %4096 = vrot.lane.b32.xlu0 %v3730, 119
        %v4097 = vpop.permute.xlu0 %4096
        %4098 = vrot.lane.b32.xlu0 %v3731, 119
        %v4099 = vpop.permute.xlu0 %4098
        %4100 = vrot.lane.b32.xlu0 %v3732, 119
        %v4101 = vpop.permute.xlu0 %4100
        %4102 = vrot.lane.b32.xlu0 %v3733, 119
        %v4103 = vpop.permute.xlu0 %4102
        %4104 = vrot.lane.b32.xlu0 %v3734, 119
        %v4105 = vpop.permute.xlu0 %4104
        %4106 = vrot.lane.b32.xlu0 %v3735, 119
        %v4107 = vpop.permute.xlu0 %4106
        %4108 = vrot.lane.b32.xlu0 %v3736, 119
        %v4109 = vpop.permute.xlu0 %4108
        %4110 = vrot.lane.b32.xlu0 %v3737, 119
        %v4111 = vpop.permute.xlu0 %4110
        %4112 = vrot.lane.b32.xlu0 %v3738, 119
        %v4113 = vpop.permute.xlu0 %4112
        %4114 = vrot.lane.b32.xlu0 %v3739, 119
        %v4115 = vpop.permute.xlu0 %4114
        %4116 = vrot.lane.b32.xlu0 %v3740, 119
        %v4117 = vpop.permute.xlu0 %4116
        %4118 = vrot.lane.b32.xlu0 %v3741, 119
        %v4119 = vpop.permute.xlu0 %4118
        %4120 = vrot.lane.b32.xlu0 %v3742, 119
        %v4121 = vpop.permute.xlu0 %4120
        %4122 = vrot.lane.b32.xlu0 %v3743, 119
        %v4123 = vpop.permute.xlu0 %4122
        %vm4124 = vcmask 973824
        %v4125 = vsel %vm4124, %v4085, %v4087
        %v4126 = vsel %vm4124, %v4087, %v4089
        %v4127 = vsel %vm4124, %v4089, %v4091
        %v4128 = vsel %vm4124, %v4091, %v4093
        %v4129 = vsel %vm4124, %v4093, %v4095
        %v4130 = vsel %vm4124, %v4095, %v4097
        %v4131 = vsel %vm4124, %v4097, %v4099
        %v4132 = vsel %vm4124, %v4099, %v4101
        %v4133 = vsel %vm4124, %v4101, %v4103
        %v4134 = vsel %vm4124, %v4105, %v4107
        %v4135 = vsel %vm4124, %v4107, %v4109
        %v4136 = vsel %vm4124, %v4109, %v4111
        %v4137 = vsel %vm4124, %v4111, %v4113
        %v4138 = vsel %vm4124, %v4113, %v4115
        %v4139 = vsel %vm4124, %v4115, %v4117
        %v4140 = vsel %vm4124, %v4117, %v4119
        %v4141 = vsel %vm4124, %v4119, %v4121
        %v4142 = vsel %vm4124, %v4121, %v4123
        %v4164 = vsel %vm618, %v3745, 0
        %v4167 = vsel %vm618, %v3746, 0
        %4169 = vmatpush.msra.mxu0 0.0
        %4170 = vmatpush.msra.mxu0 0.0
        %4171 = vmatpush.msra.mxu0 0.0
        %4172 = vmatpush.msra.mxu0 0.0
        %4173 = vmatpush.msra.mxu0 0.0
        %4174 = vmatpush.msra.mxu0 0.0
        %4175 = vmatpush.msra.mxu0 0.0
        %4176 = vmatpush.msra.mxu0 0.0
        %4177 = vmatpush.msra.mxu0 0.0
        %4178 = vmatpush.msra.mxu0 0.0
        %4179 = vmatpush.msra.mxu0 0.0
        %4180 = vmatpush.msra.mxu0 0.0
        %4181 = vmatpush.msra.mxu0 0.0
        %4182 = vmatpush.msra.mxu0 0.0
        %4183 = vmatpush.msra.mxu0 %v4134
        %4184 = vmatpush.msra.mxu0 %v4125
        %4185 = vmatmul.f32.gmra.mxu0 %v4164
        %v4186 = vpop.f32.mrf.mxu0
        %v4187 = vadd.f32 %v3872, %v4186
        %4188 = vmatmul.f32.gmra.mxu0 %v4167
        %v4189 = vpop.f32.mrf.mxu0
        %v4190 = vadd.f32 %v3875, %v4189
        %4191 = vdwg.mxu0
        %4192 = vmatpush.msra.mxu0 0.0
        %4193 = vmatpush.msra.mxu0 0.0
        %4194 = vmatpush.msra.mxu0 0.0
        %4195 = vmatpush.msra.mxu0 0.0
        %4196 = vmatpush.msra.mxu0 0.0
        %4197 = vmatpush.msra.mxu0 0.0
        %4198 = vmatpush.msra.mxu0 0.0
        %4199 = vmatpush.msra.mxu0 0.0
        %4200 = vmatpush.msra.mxu0 0.0
        %4201 = vmatpush.msra.mxu0 0.0
        %4202 = vmatpush.msra.mxu0 0.0
        %4203 = vmatpush.msra.mxu0 0.0
        %4204 = vmatpush.msra.mxu0 0.0
        %4205 = vmatpush.msra.mxu0 0.0
        %4206 = vmatpush.msra.mxu0 %v4135
        %4207 = vmatpush.msra.mxu0 %v4126
        %4208 = vmatmul.f32.gmra.mxu0 %v4164
        %v4209 = vpop.f32.mrf.mxu0
        %v4210 = vadd.f32 %v3895, %v4209
        %4211 = vmatmul.f32.gmra.mxu0 %v4167
        %v4212 = vpop.f32.mrf.mxu0
        %v4213 = vadd.f32 %v3898, %v4212
        %4214 = vdwg.mxu0
        %4215 = vmatpush.msra.mxu0 0.0
        %4216 = vmatpush.msra.mxu0 0.0
        %4217 = vmatpush.msra.mxu0 0.0
        %4218 = vmatpush.msra.mxu0 0.0
        %4219 = vmatpush.msra.mxu0 0.0
        %4220 = vmatpush.msra.mxu0 0.0
        %4221 = vmatpush.msra.mxu0 0.0
        %4222 = vmatpush.msra.mxu0 0.0
        %4223 = vmatpush.msra.mxu0 0.0
        %4224 = vmatpush.msra.mxu0 0.0
        %4225 = vmatpush.msra.mxu0 0.0
        %4226 = vmatpush.msra.mxu0 0.0
        %4227 = vmatpush.msra.mxu0 0.0
        %4228 = vmatpush.msra.mxu0 0.0
        %4229 = vmatpush.msra.mxu0 %v4136
        %4230 = vmatpush.msra.mxu0 %v4127
        %4231 = vmatmul.f32.gmra.mxu0 %v4164
        %v4232 = vpop.f32.mrf.mxu0
        %v4233 = vadd.f32 %v3918, %v4232
        %4234 = vmatmul.f32.gmra.mxu0 %v4167
        %v4235 = vpop.f32.mrf.mxu0
        %v4236 = vadd.f32 %v3921, %v4235
        %4237 = vdwg.mxu0
        %4238 = vmatpush.msra.mxu0 0.0
        %4239 = vmatpush.msra.mxu0 0.0
        %4240 = vmatpush.msra.mxu0 0.0
        %4241 = vmatpush.msra.mxu0 0.0
        %4242 = vmatpush.msra.mxu0 0.0
        %4243 = vmatpush.msra.mxu0 0.0
        %4244 = vmatpush.msra.mxu0 0.0
        %4245 = vmatpush.msra.mxu0 0.0
        %4246 = vmatpush.msra.mxu0 0.0
        %4247 = vmatpush.msra.mxu0 0.0
        %4248 = vmatpush.msra.mxu0 0.0
        %4249 = vmatpush.msra.mxu0 0.0
        %4250 = vmatpush.msra.mxu0 0.0
        %4251 = vmatpush.msra.mxu0 0.0
        %4252 = vmatpush.msra.mxu0 %v4137
        %4253 = vmatpush.msra.mxu0 %v4128
        %4254 = vmatmul.f32.gmra.mxu0 %v4164
        %v4255 = vpop.f32.mrf.mxu0
        %v4256 = vadd.f32 %v3941, %v4255
        %4257 = vmatmul.f32.gmra.mxu0 %v4167
        %v4258 = vpop.f32.mrf.mxu0
        %v4259 = vadd.f32 %v3944, %v4258
        %4260 = vdwg.mxu0
        %4261 = vmatpush.msra.mxu0 0.0
        %4262 = vmatpush.msra.mxu0 0.0
        %4263 = vmatpush.msra.mxu0 0.0
        %4264 = vmatpush.msra.mxu0 0.0
        %4265 = vmatpush.msra.mxu0 0.0
        %4266 = vmatpush.msra.mxu0 0.0
        %4267 = vmatpush.msra.mxu0 0.0
        %4268 = vmatpush.msra.mxu0 0.0
        %4269 = vmatpush.msra.mxu0 0.0
        %4270 = vmatpush.msra.mxu0 0.0
        %4271 = vmatpush.msra.mxu0 0.0
        %4272 = vmatpush.msra.mxu0 0.0
        %4273 = vmatpush.msra.mxu0 0.0
        %4274 = vmatpush.msra.mxu0 0.0
        %4275 = vmatpush.msra.mxu0 %v4138
        %4276 = vmatpush.msra.mxu0 %v4129
        %4277 = vmatmul.f32.gmra.mxu0 %v4164
        %v4278 = vpop.f32.mrf.mxu0
        %v4279 = vadd.f32 %v3964, %v4278
        %4280 = vmatmul.f32.gmra.mxu0 %v4167
        %v4281 = vpop.f32.mrf.mxu0
        %v4282 = vadd.f32 %v3967, %v4281
        %4283 = vdwg.mxu0
        %4284 = vmatpush.msra.mxu0 0.0
        %4285 = vmatpush.msra.mxu0 0.0
        %4286 = vmatpush.msra.mxu0 0.0
        %4287 = vmatpush.msra.mxu0 0.0
        %4288 = vmatpush.msra.mxu0 0.0
        %4289 = vmatpush.msra.mxu0 0.0
        %4290 = vmatpush.msra.mxu0 0.0
        %4291 = vmatpush.msra.mxu0 0.0
        %4292 = vmatpush.msra.mxu0 0.0
        %4293 = vmatpush.msra.mxu0 0.0
        %4294 = vmatpush.msra.mxu0 0.0
        %4295 = vmatpush.msra.mxu0 0.0
        %4296 = vmatpush.msra.mxu0 0.0
        %4297 = vmatpush.msra.mxu0 0.0
        %4298 = vmatpush.msra.mxu0 %v4139
        %4299 = vmatpush.msra.mxu0 %v4130
        %4300 = vmatmul.f32.gmra.mxu0 %v4164
        %v4301 = vpop.f32.mrf.mxu0
        %v4302 = vadd.f32 %v3987, %v4301
        %4303 = vmatmul.f32.gmra.mxu0 %v4167
        %v4304 = vpop.f32.mrf.mxu0
        %v4305 = vadd.f32 %v3990, %v4304
        %4306 = vdwg.mxu0
        %4307 = vmatpush.msra.mxu0 0.0
        %4308 = vmatpush.msra.mxu0 0.0
        %4309 = vmatpush.msra.mxu0 0.0
        %4310 = vmatpush.msra.mxu0 0.0
        %4311 = vmatpush.msra.mxu0 0.0
        %4312 = vmatpush.msra.mxu0 0.0
        %4313 = vmatpush.msra.mxu0 0.0
        %4314 = vmatpush.msra.mxu0 0.0
        %4315 = vmatpush.msra.mxu0 0.0
        %4316 = vmatpush.msra.mxu0 0.0
        %4317 = vmatpush.msra.mxu0 0.0
        %4318 = vmatpush.msra.mxu0 0.0
        %4319 = vmatpush.msra.mxu0 0.0
        %4320 = vmatpush.msra.mxu0 0.0
        %4321 = vmatpush.msra.mxu0 %v4140
        %4322 = vmatpush.msra.mxu0 %v4131
        %4323 = vmatmul.f32.gmra.mxu0 %v4164
        %v4324 = vpop.f32.mrf.mxu0
        %v4325 = vadd.f32 %v4010, %v4324
        %4326 = vmatmul.f32.gmra.mxu0 %v4167
        %v4327 = vpop.f32.mrf.mxu0
        %v4328 = vadd.f32 %v4013, %v4327
        %4329 = vdwg.mxu0
        %4330 = vmatpush.msra.mxu0 0.0
        %4331 = vmatpush.msra.mxu0 0.0
        %4332 = vmatpush.msra.mxu0 0.0
        %4333 = vmatpush.msra.mxu0 0.0
        %4334 = vmatpush.msra.mxu0 0.0
        %4335 = vmatpush.msra.mxu0 0.0
        %4336 = vmatpush.msra.mxu0 0.0
        %4337 = vmatpush.msra.mxu0 0.0
        %4338 = vmatpush.msra.mxu0 0.0
        %4339 = vmatpush.msra.mxu0 0.0
        %4340 = vmatpush.msra.mxu0 0.0
        %4341 = vmatpush.msra.mxu0 0.0
        %4342 = vmatpush.msra.mxu0 0.0
        %4343 = vmatpush.msra.mxu0 0.0
        %4344 = vmatpush.msra.mxu0 %v4141
        %4345 = vmatpush.msra.mxu0 %v4132
        %4346 = vmatmul.f32.gmra.mxu0 %v4164
        %v4347 = vpop.f32.mrf.mxu0
        %v4348 = vadd.f32 %v4033, %v4347
        %4349 = vmatmul.f32.gmra.mxu0 %v4167
        %v4350 = vpop.f32.mrf.mxu0
        %v4351 = vadd.f32 %v4036, %v4350
        %4352 = vdwg.mxu0
        %4353 = vmatpush.msra.mxu0 0.0
        %4354 = vmatpush.msra.mxu0 0.0
        %4355 = vmatpush.msra.mxu0 0.0
        %4356 = vmatpush.msra.mxu0 0.0
        %4357 = vmatpush.msra.mxu0 0.0
        %4358 = vmatpush.msra.mxu0 0.0
        %4359 = vmatpush.msra.mxu0 0.0
        %4360 = vmatpush.msra.mxu0 0.0
        %4361 = vmatpush.msra.mxu0 0.0
        %4362 = vmatpush.msra.mxu0 0.0
        %4363 = vmatpush.msra.mxu0 0.0
        %4364 = vmatpush.msra.mxu0 0.0
        %4365 = vmatpush.msra.mxu0 0.0
        %4366 = vmatpush.msra.mxu0 0.0
        %4367 = vmatpush.msra.mxu0 %v4142
        %4368 = vmatpush.msra.mxu0 %v4133
        %4369 = vmatmul.f32.gmra.mxu0 %v4164
        %v4370 = vpop.f32.mrf.mxu0
        %v4371 = vadd.f32 %v4056, %v4370
        %4372 = vmatmul.f32.gmra.mxu0 %v4167
        %v4373 = vpop.f32.mrf.mxu0
        %v4374 = vadd.f32 %v4059, %v4373
        %4375 = vdwg.mxu0
        %4376 = vmatpush.msra.mxu0 0.0
        %4377 = vmatpush.msra.mxu0 0.0
        %4378 = vmatpush.msra.mxu0 0.0
        %4379 = vmatpush.msra.mxu0 0.0
        %4380 = vmatpush.msra.mxu0 0.0
        %4381 = vmatpush.msra.mxu0 0.0
        %4382 = vmatpush.msra.mxu0 0.0
        %4383 = vmatpush.msra.mxu0 0.0
        %4384 = vmatpush.msra.mxu0 0.0
        %4385 = vmatpush.msra.mxu0 0.0
        %4386 = vmatpush.msra.mxu0 0.0
        %4387 = vmatpush.msra.mxu0 0.0
        %4388 = vmatpush.msra.mxu0 0.0
        %4389 = vmatpush.msra.mxu0 0.0
        %4390 = vmatpush.msra.mxu0 %v4123
        %4391 = vmatpush.msra.mxu0 %v4103
        %4392 = vmatmul.f32.gmra.mxu0 %v4164
        %v4393 = vpop.f32.mrf.mxu0
        %v4394 = vadd.f32 %v4079, %v4393
        %4395 = vmatmul.f32.gmra.mxu0 %v4167
        %v4396 = vpop.f32.mrf.mxu0
        %v4397 = vadd.f32 %v4082, %v4396
        %4398 = vdwg.mxu0
        %s4399 = scalar_lea.vmem [#allocation8], 176
        %v4400 = vld [vmem:[%s4399] sm:$0xff]
        %v4401 = vld [vmem:[%s4399 + $0x8] sm:$0xff]
        %4402 = vrot.lane.b32.xlu0 %v3724, 117
        %v4403 = vpop.permute.xlu0 %4402
        %4404 = vrot.lane.b32.xlu0 %v3725, 117
        %v4405 = vpop.permute.xlu0 %4404
        %4406 = vrot.lane.b32.xlu0 %v3726, 117
        %v4407 = vpop.permute.xlu0 %4406
        %4408 = vrot.lane.b32.xlu0 %v3727, 117
        %v4409 = vpop.permute.xlu0 %4408
        %4410 = vrot.lane.b32.xlu0 %v3728, 117
        %v4411 = vpop.permute.xlu0 %4410
        %4412 = vrot.lane.b32.xlu0 %v3729, 117
        %v4413 = vpop.permute.xlu0 %4412
        %4414 = vrot.lane.b32.xlu0 %v3730, 117
        %v4415 = vpop.permute.xlu0 %4414
        %4416 = vrot.lane.b32.xlu0 %v3731, 117
        %v4417 = vpop.permute.xlu0 %4416
        %4418 = vrot.lane.b32.xlu0 %v3732, 117
        %v4419 = vpop.permute.xlu0 %4418
        %4420 = vrot.lane.b32.xlu0 %v3733, 117
        %v4421 = vpop.permute.xlu0 %4420
        %4422 = vrot.lane.b32.xlu0 %v3734, 117
        %v4423 = vpop.permute.xlu0 %4422
        %4424 = vrot.lane.b32.xlu0 %v3735, 117
        %v4425 = vpop.permute.xlu0 %4424
        %4426 = vrot.lane.b32.xlu0 %v3736, 117
        %v4427 = vpop.permute.xlu0 %4426
        %4428 = vrot.lane.b32.xlu0 %v3737, 117
        %v4429 = vpop.permute.xlu0 %4428
        %4430 = vrot.lane.b32.xlu0 %v3738, 117
        %v4431 = vpop.permute.xlu0 %4430
        %4432 = vrot.lane.b32.xlu0 %v3739, 117
        %v4433 = vpop.permute.xlu0 %4432
        %4434 = vrot.lane.b32.xlu0 %v3740, 117
        %v4435 = vpop.permute.xlu0 %4434
        %4436 = vrot.lane.b32.xlu0 %v3741, 117
        %v4437 = vpop.permute.xlu0 %4436
        %4438 = vrot.lane.b32.xlu0 %v3742, 117
        %v4439 = vpop.permute.xlu0 %4438
        %4440 = vrot.lane.b32.xlu0 %v3743, 117
        %v4441 = vpop.permute.xlu0 %4440
        %vm4442 = vcmask 957440
        %v4443 = vsel %vm4442, %v4403, %v4405
        %v4444 = vsel %vm4442, %v4405, %v4407
        %v4445 = vsel %vm4442, %v4407, %v4409
        %v4446 = vsel %vm4442, %v4409, %v4411
        %v4447 = vsel %vm4442, %v4411, %v4413
        %v4448 = vsel %vm4442, %v4413, %v4415
        %v4449 = vsel %vm4442, %v4415, %v4417
        %v4450 = vsel %vm4442, %v4417, %v4419
        %v4451 = vsel %vm4442, %v4419, %v4421
        %v4452 = vsel %vm4442, %v4423, %v4425
        %v4453 = vsel %vm4442, %v4425, %v4427
        %v4454 = vsel %vm4442, %v4427, %v4429
        %v4455 = vsel %vm4442, %v4429, %v4431
        %v4456 = vsel %vm4442, %v4431, %v4433
        %v4457 = vsel %vm4442, %v4433, %v4435
        %v4458 = vsel %vm4442, %v4435, %v4437
        %v4459 = vsel %vm4442, %v4437, %v4439
        %v4460 = vsel %vm4442, %v4439, %v4441
        %v4482 = vsel %vm618, %v4400, 0
        %v4485 = vsel %vm618, %v4401, 0
        %4487 = vmatpush.msra.mxu0 0.0
        %4488 = vmatpush.msra.mxu0 0.0
        %4489 = vmatpush.msra.mxu0 0.0
        %4490 = vmatpush.msra.mxu0 0.0
        %4491 = vmatpush.msra.mxu0 0.0
        %4492 = vmatpush.msra.mxu0 0.0
        %4493 = vmatpush.msra.mxu0 0.0
        %4494 = vmatpush.msra.mxu0 0.0
        %4495 = vmatpush.msra.mxu0 0.0
        %4496 = vmatpush.msra.mxu0 0.0
        %4497 = vmatpush.msra.mxu0 0.0
        %4498 = vmatpush.msra.mxu0 0.0
        %4499 = vmatpush.msra.mxu0 0.0
        %4500 = vmatpush.msra.mxu0 0.0
        %4501 = vmatpush.msra.mxu0 %v4452
        %4502 = vmatpush.msra.mxu0 %v4443
        %4503 = vmatmul.f32.gmra.mxu0 %v4482
        %v4504 = vpop.f32.mrf.mxu0
        %v4505 = vadd.f32 0.0, %v4504
        %4506 = vmatmul.f32.gmra.mxu0 %v4485
        %v4507 = vpop.f32.mrf.mxu0
        %v4508 = vadd.f32 0.0, %v4507
        %4509 = vdwg.mxu0
        %4510 = vmatpush.msra.mxu0 0.0
        %4511 = vmatpush.msra.mxu0 0.0
        %4512 = vmatpush.msra.mxu0 0.0
        %4513 = vmatpush.msra.mxu0 0.0
        %4514 = vmatpush.msra.mxu0 0.0
        %4515 = vmatpush.msra.mxu0 0.0
        %4516 = vmatpush.msra.mxu0 0.0
        %4517 = vmatpush.msra.mxu0 0.0
        %4518 = vmatpush.msra.mxu0 0.0
        %4519 = vmatpush.msra.mxu0 0.0
        %4520 = vmatpush.msra.mxu0 0.0
        %4521 = vmatpush.msra.mxu0 0.0
        %4522 = vmatpush.msra.mxu0 0.0
        %4523 = vmatpush.msra.mxu0 0.0
        %4524 = vmatpush.msra.mxu0 %v4453
        %4525 = vmatpush.msra.mxu0 %v4444
        %4526 = vmatmul.f32.gmra.mxu0 %v4482
        %v4527 = vpop.f32.mrf.mxu0
        %v4528 = vadd.f32 0.0, %v4527
        %4529 = vmatmul.f32.gmra.mxu0 %v4485
        %v4530 = vpop.f32.mrf.mxu0
        %v4531 = vadd.f32 0.0, %v4530
        %4532 = vdwg.mxu0
        %4533 = vmatpush.msra.mxu0 0.0
        %4534 = vmatpush.msra.mxu0 0.0
        %4535 = vmatpush.msra.mxu0 0.0
        %4536 = vmatpush.msra.mxu0 0.0
        %4537 = vmatpush.msra.mxu0 0.0
        %4538 = vmatpush.msra.mxu0 0.0
        %4539 = vmatpush.msra.mxu0 0.0
        %4540 = vmatpush.msra.mxu0 0.0
        %4541 = vmatpush.msra.mxu0 0.0
        %4542 = vmatpush.msra.mxu0 0.0
        %4543 = vmatpush.msra.mxu0 0.0
        %4544 = vmatpush.msra.mxu0 0.0
        %4545 = vmatpush.msra.mxu0 0.0
        %4546 = vmatpush.msra.mxu0 0.0
        %4547 = vmatpush.msra.mxu0 %v4454
        %4548 = vmatpush.msra.mxu0 %v4445
        %4549 = vmatmul.f32.gmra.mxu0 %v4482
        %v4550 = vpop.f32.mrf.mxu0
        %v4551 = vadd.f32 0.0, %v4550
        %4552 = vmatmul.f32.gmra.mxu0 %v4485
        %v4553 = vpop.f32.mrf.mxu0
        %v4554 = vadd.f32 0.0, %v4553
        %4555 = vdwg.mxu0
        %4556 = vmatpush.msra.mxu0 0.0
        %4557 = vmatpush.msra.mxu0 0.0
        %4558 = vmatpush.msra.mxu0 0.0
        %4559 = vmatpush.msra.mxu0 0.0
        %4560 = vmatpush.msra.mxu0 0.0
        %4561 = vmatpush.msra.mxu0 0.0
        %4562 = vmatpush.msra.mxu0 0.0
        %4563 = vmatpush.msra.mxu0 0.0
        %4564 = vmatpush.msra.mxu0 0.0
        %4565 = vmatpush.msra.mxu0 0.0
        %4566 = vmatpush.msra.mxu0 0.0
        %4567 = vmatpush.msra.mxu0 0.0
        %4568 = vmatpush.msra.mxu0 0.0
        %4569 = vmatpush.msra.mxu0 0.0
        %4570 = vmatpush.msra.mxu0 %v4455
        %4571 = vmatpush.msra.mxu0 %v4446
        %4572 = vmatmul.f32.gmra.mxu0 %v4482
        %v4573 = vpop.f32.mrf.mxu0
        %v4574 = vadd.f32 0.0, %v4573
        %4575 = vmatmul.f32.gmra.mxu0 %v4485
        %v4576 = vpop.f32.mrf.mxu0
        %v4577 = vadd.f32 0.0, %v4576
        %4578 = vdwg.mxu0
        %4579 = vmatpush.msra.mxu0 0.0
        %4580 = vmatpush.msra.mxu0 0.0
        %4581 = vmatpush.msra.mxu0 0.0
        %4582 = vmatpush.msra.mxu0 0.0
        %4583 = vmatpush.msra.mxu0 0.0
        %4584 = vmatpush.msra.mxu0 0.0
        %4585 = vmatpush.msra.mxu0 0.0
        %4586 = vmatpush.msra.mxu0 0.0
        %4587 = vmatpush.msra.mxu0 0.0
        %4588 = vmatpush.msra.mxu0 0.0
        %4589 = vmatpush.msra.mxu0 0.0
        %4590 = vmatpush.msra.mxu0 0.0
        %4591 = vmatpush.msra.mxu0 0.0
        %4592 = vmatpush.msra.mxu0 0.0
        %4593 = vmatpush.msra.mxu0 %v4456
        %4594 = vmatpush.msra.mxu0 %v4447
        %4595 = vmatmul.f32.gmra.mxu0 %v4482
        %v4596 = vpop.f32.mrf.mxu0
        %v4597 = vadd.f32 0.0, %v4596
        %4598 = vmatmul.f32.gmra.mxu0 %v4485
        %v4599 = vpop.f32.mrf.mxu0
        %v4600 = vadd.f32 0.0, %v4599
        %4601 = vdwg.mxu0
        %4602 = vmatpush.msra.mxu0 0.0
        %4603 = vmatpush.msra.mxu0 0.0
        %4604 = vmatpush.msra.mxu0 0.0
        %4605 = vmatpush.msra.mxu0 0.0
        %4606 = vmatpush.msra.mxu0 0.0
        %4607 = vmatpush.msra.mxu0 0.0
        %4608 = vmatpush.msra.mxu0 0.0
        %4609 = vmatpush.msra.mxu0 0.0
        %4610 = vmatpush.msra.mxu0 0.0
        %4611 = vmatpush.msra.mxu0 0.0
        %4612 = vmatpush.msra.mxu0 0.0
        %4613 = vmatpush.msra.mxu0 0.0
        %4614 = vmatpush.msra.mxu0 0.0
        %4615 = vmatpush.msra.mxu0 0.0
        %4616 = vmatpush.msra.mxu0 %v4457
        %4617 = vmatpush.msra.mxu0 %v4448
        %4618 = vmatmul.f32.gmra.mxu0 %v4482
        %v4619 = vpop.f32.mrf.mxu0
        %v4620 = vadd.f32 0.0, %v4619
        %4621 = vmatmul.f32.gmra.mxu0 %v4485
        %v4622 = vpop.f32.mrf.mxu0
        %v4623 = vadd.f32 0.0, %v4622
        %4624 = vdwg.mxu0
        %4625 = vmatpush.msra.mxu0 0.0
        %4626 = vmatpush.msra.mxu0 0.0
        %4627 = vmatpush.msra.mxu0 0.0
        %4628 = vmatpush.msra.mxu0 0.0
        %4629 = vmatpush.msra.mxu0 0.0
        %4630 = vmatpush.msra.mxu0 0.0
        %4631 = vmatpush.msra.mxu0 0.0
        %4632 = vmatpush.msra.mxu0 0.0
        %4633 = vmatpush.msra.mxu0 0.0
        %4634 = vmatpush.msra.mxu0 0.0
        %4635 = vmatpush.msra.mxu0 0.0
        %4636 = vmatpush.msra.mxu0 0.0
        %4637 = vmatpush.msra.mxu0 0.0
        %4638 = vmatpush.msra.mxu0 0.0
        %4639 = vmatpush.msra.mxu0 %v4458
        %4640 = vmatpush.msra.mxu0 %v4449
        %4641 = vmatmul.f32.gmra.mxu0 %v4482
        %v4642 = vpop.f32.mrf.mxu0
        %v4643 = vadd.f32 0.0, %v4642
        %4644 = vmatmul.f32.gmra.mxu0 %v4485
        %v4645 = vpop.f32.mrf.mxu0
        %v4646 = vadd.f32 0.0, %v4645
        %4647 = vdwg.mxu0
        %4648 = vmatpush.msra.mxu0 0.0
        %4649 = vmatpush.msra.mxu0 0.0
        %4650 = vmatpush.msra.mxu0 0.0
        %4651 = vmatpush.msra.mxu0 0.0
        %4652 = vmatpush.msra.mxu0 0.0
        %4653 = vmatpush.msra.mxu0 0.0
        %4654 = vmatpush.msra.mxu0 0.0
        %4655 = vmatpush.msra.mxu0 0.0
        %4656 = vmatpush.msra.mxu0 0.0
        %4657 = vmatpush.msra.mxu0 0.0
        %4658 = vmatpush.msra.mxu0 0.0
        %4659 = vmatpush.msra.mxu0 0.0
        %4660 = vmatpush.msra.mxu0 0.0
        %4661 = vmatpush.msra.mxu0 0.0
        %4662 = vmatpush.msra.mxu0 %v4459
        %4663 = vmatpush.msra.mxu0 %v4450
        %4664 = vmatmul.f32.gmra.mxu0 %v4482
        %v4665 = vpop.f32.mrf.mxu0
        %v4666 = vadd.f32 0.0, %v4665
        %4667 = vmatmul.f32.gmra.mxu0 %v4485
        %v4668 = vpop.f32.mrf.mxu0
        %v4669 = vadd.f32 0.0, %v4668
        %4670 = vdwg.mxu0
        %4671 = vmatpush.msra.mxu0 0.0
        %4672 = vmatpush.msra.mxu0 0.0
        %4673 = vmatpush.msra.mxu0 0.0
        %4674 = vmatpush.msra.mxu0 0.0
        %4675 = vmatpush.msra.mxu0 0.0
        %4676 = vmatpush.msra.mxu0 0.0
        %4677 = vmatpush.msra.mxu0 0.0
        %4678 = vmatpush.msra.mxu0 0.0
        %4679 = vmatpush.msra.mxu0 0.0
        %4680 = vmatpush.msra.mxu0 0.0
        %4681 = vmatpush.msra.mxu0 0.0
        %4682 = vmatpush.msra.mxu0 0.0
        %4683 = vmatpush.msra.mxu0 0.0
        %4684 = vmatpush.msra.mxu0 0.0
        %4685 = vmatpush.msra.mxu0 %v4460
        %4686 = vmatpush.msra.mxu0 %v4451
        %4687 = vmatmul.f32.gmra.mxu0 %v4482
        %v4688 = vpop.f32.mrf.mxu0
        %v4689 = vadd.f32 0.0, %v4688
        %4690 = vmatmul.f32.gmra.mxu0 %v4485
        %v4691 = vpop.f32.mrf.mxu0
        %v4692 = vadd.f32 0.0, %v4691
        %4693 = vdwg.mxu0
        %4694 = vmatpush.msra.mxu0 0.0
        %4695 = vmatpush.msra.mxu0 0.0
        %4696 = vmatpush.msra.mxu0 0.0
        %4697 = vmatpush.msra.mxu0 0.0
        %4698 = vmatpush.msra.mxu0 0.0
        %4699 = vmatpush.msra.mxu0 0.0
        %4700 = vmatpush.msra.mxu0 0.0
        %4701 = vmatpush.msra.mxu0 0.0
        %4702 = vmatpush.msra.mxu0 0.0
        %4703 = vmatpush.msra.mxu0 0.0
        %4704 = vmatpush.msra.mxu0 0.0
        %4705 = vmatpush.msra.mxu0 0.0
        %4706 = vmatpush.msra.mxu0 0.0
        %4707 = vmatpush.msra.mxu0 0.0
        %4708 = vmatpush.msra.mxu0 %v4441
        %4709 = vmatpush.msra.mxu0 %v4421
        %4710 = vmatmul.f32.gmra.mxu0 %v4482
        %v4711 = vpop.f32.mrf.mxu0
        %v4712 = vadd.f32 0.0, %v4711
        %4713 = vmatmul.f32.gmra.mxu0 %v4485
        %v4714 = vpop.f32.mrf.mxu0
        %v4715 = vadd.f32 0.0, %v4714
        %4716 = vdwg.mxu0
        %v4717 = vadd.f32 %v4187, %v4505
        %v4718 = vadd.f32 %v4210, %v4528
        %v4719 = vadd.f32 %v4233, %v4551
        %v4720 = vadd.f32 %v4256, %v4574
        %v4721 = vadd.f32 %v4279, %v4597
        %v4722 = vadd.f32 %v4302, %v4620
        %v4723 = vadd.f32 %v4325, %v4643
        %v4724 = vadd.f32 %v4348, %v4666
        %v4725 = vadd.f32 %v4371, %v4689
        %v4726 = vadd.f32 %v4394, %v4712
        %v4727 = vadd.f32 %v4190, %v4508
        %v4728 = vadd.f32 %v4213, %v4531
        %v4729 = vadd.f32 %v4236, %v4554
        %v4730 = vadd.f32 %v4259, %v4577
        %v4731 = vadd.f32 %v4282, %v4600
        %v4732 = vadd.f32 %v4305, %v4623
        %v4733 = vadd.f32 %v4328, %v4646
        %v4734 = vadd.f32 %v4351, %v4669
        %v4735 = vadd.f32 %v4374, %v4692
        %v4736 = vadd.f32 %v4397, %v4715
        %s4737 = scalar_lea.vmem %s4, 48
        %v4738 = vld [vmem:[%s4737] sm:$0xff]
        %v4739 = vld [vmem:[%s4737 + $0x8] sm:$0xff]
        %4741 = vset.pattern.permute.xlu0 0
        %4742 = vperm.xlu0 %4741, %v4738
        %v4743 = vpop.permute.xlu0 %4742
        %4746 = vset.pattern.permute.xlu0 0
        %4747 = vperm.xlu0 %4746, %v4739
        %v4748 = vpop.permute.xlu0 %4747
        %v4750 = vadd.f32 %v4717, %v4743
        %v4751 = vadd.f32 %v4718, %v4743
        %v4752 = vadd.f32 %v4719, %v4743
        %v4753 = vadd.f32 %v4720, %v4743
        %v4754 = vadd.f32 %v4721, %v4743
        %v4755 = vadd.f32 %v4722, %v4743
        %v4756 = vadd.f32 %v4723, %v4743
        %v4757 = vadd.f32 %v4724, %v4743
        %v4758 = vadd.f32 %v4725, %v4743
        %v4759 = vadd.f32 %v4726, %v4743
        %v4760 = vadd.f32 %v4727, %v4748
        %v4761 = vadd.f32 %v4728, %v4748
        %v4762 = vadd.f32 %v4729, %v4748
        %v4763 = vadd.f32 %v4730, %v4748
        %v4764 = vadd.f32 %v4731, %v4748
        %v4765 = vadd.f32 %v4732, %v4748
        %v4766 = vadd.f32 %v4733, %v4748
        %v4767 = vadd.f32 %v4734, %v4748
        %v4768 = vadd.f32 %v4735, %v4748
        %v4769 = vadd.f32 %v4736, %v4748
        %vm4770 = vcmp.ge.f32.partialorder %v4750, 0.0
        %vm4771 = vcmp.ge.f32.partialorder %v4751, 0.0
        %vm4772 = vcmp.ge.f32.partialorder %v4752, 0.0
        %vm4773 = vcmp.ge.f32.partialorder %v4753, 0.0
        %vm4774 = vcmp.ge.f32.partialorder %v4754, 0.0
        %vm4775 = vcmp.ge.f32.partialorder %v4755, 0.0
        %vm4776 = vcmp.ge.f32.partialorder %v4756, 0.0
        %vm4777 = vcmp.ge.f32.partialorder %v4757, 0.0
        %vm4778 = vcmp.ge.f32.partialorder %v4758, 0.0
        %vm4779 = vcmp.ge.f32.partialorder %v4759, 0.0
        %vm4780 = vcmp.ge.f32.partialorder %v4760, 0.0
        %vm4781 = vcmp.ge.f32.partialorder %v4761, 0.0
        %vm4782 = vcmp.ge.f32.partialorder %v4762, 0.0
        %vm4783 = vcmp.ge.f32.partialorder %v4763, 0.0
        %vm4784 = vcmp.ge.f32.partialorder %v4764, 0.0
        %vm4785 = vcmp.ge.f32.partialorder %v4765, 0.0
        %vm4786 = vcmp.ge.f32.partialorder %v4766, 0.0
        %vm4787 = vcmp.ge.f32.partialorder %v4767, 0.0
        %vm4788 = vcmp.ge.f32.partialorder %v4768, 0.0
        %vm4789 = vcmp.ge.f32.partialorder %v4769, 0.0
        %v4790 = vmul.f32 %v4750, 0.1
        %v4791 = vmul.f32 %v4751, 0.1
        %v4792 = vmul.f32 %v4752, 0.1
        %v4793 = vmul.f32 %v4753, 0.1
        %v4794 = vmul.f32 %v4754, 0.1
        %v4795 = vmul.f32 %v4755, 0.1
        %v4796 = vmul.f32 %v4756, 0.1
        %v4797 = vmul.f32 %v4757, 0.1
        %v4798 = vmul.f32 %v4758, 0.1
        %v4799 = vmul.f32 %v4759, 0.1
        %v4800 = vmul.f32 %v4760, 0.1
        %v4801 = vmul.f32 %v4761, 0.1
        %v4802 = vmul.f32 %v4762, 0.1
        %v4803 = vmul.f32 %v4763, 0.1
        %v4804 = vmul.f32 %v4764, 0.1
        %v4805 = vmul.f32 %v4765, 0.1
        %v4806 = vmul.f32 %v4766, 0.1
        %v4807 = vmul.f32 %v4767, 0.1
        %v4808 = vmul.f32 %v4768, 0.1
        %v4809 = vmul.f32 %v4769, 0.1
        %v4810 = vsel %vm4770, %v4750, %v4790
        %v4811 = vsel %vm4771, %v4751, %v4791
        %v4812 = vsel %vm4772, %v4752, %v4792
        %v4813 = vsel %vm4773, %v4753, %v4793
        %v4814 = vsel %vm4774, %v4754, %v4794
        %v4815 = vsel %vm4775, %v4755, %v4795
        %v4816 = vsel %vm4776, %v4756, %v4796
        %v4817 = vsel %vm4777, %v4757, %v4797
        %v4818 = vsel %vm4778, %v4758, %v4798
        %v4819 = vsel %vm4779, %v4759, %v4799
        %v4820 = vsel %vm4780, %v4760, %v4800
        %v4821 = vsel %vm4781, %v4761, %v4801
        %v4822 = vsel %vm4782, %v4762, %v4802
        %v4823 = vsel %vm4783, %v4763, %v4803
        %v4824 = vsel %vm4784, %v4764, %v4804
        %v4825 = vsel %vm4785, %v4765, %v4805
        %v4826 = vsel %vm4786, %v4766, %v4806
        %v4827 = vsel %vm4787, %v4767, %v4807
        %v4828 = vsel %vm4788, %v4768, %v4808
        %v4829 = vsel %vm4789, %v4769, %v4809
        %4830 = vrot.lane.b32.xlu0 %v491, 118
        %v4831 = vpop.permute.xlu0 %4830
        %4832 = vrot.lane.b32.xlu0 %v492, 118
        %v4833 = vpop.permute.xlu0 %4832
        %4834 = vrot.lane.b32.xlu0 %v493, 118
        %v4835 = vpop.permute.xlu0 %4834
        %v4836 = vsel %vm3217, %v4831, %v4833
        %v4837 = vsel %vm3217, %v4833, %v4835
        %v4842 = vmul.f32 %v4810, %v4836
        %v4843 = vmul.f32 %v4811, %v4833
        %v4844 = vmul.f32 %v4812, %v4833
        %v4845 = vmul.f32 %v4813, %v4833
        %v4846 = vmul.f32 %v4814, %v4833
        %v4847 = vmul.f32 %v4815, %v4833
        %v4848 = vmul.f32 %v4816, %v4833
        %v4849 = vmul.f32 %v4817, %v4833
        %v4850 = vmul.f32 %v4818, %v4837
        %v4851 = vmul.f32 %v4819, %v4835
        %v4852 = vmul.f32 %v4820, %v4836
        %v4853 = vmul.f32 %v4821, %v4833
        %v4854 = vmul.f32 %v4822, %v4833
        %v4855 = vmul.f32 %v4823, %v4833
        %v4856 = vmul.f32 %v4824, %v4833
        %v4857 = vmul.f32 %v4825, %v4833
        %v4858 = vmul.f32 %v4826, %v4833
        %v4859 = vmul.f32 %v4827, %v4833
        %v4860 = vmul.f32 %v4828, %v4837
        %v4861 = vmul.f32 %v4829, %v4835
        %s4862 = scalar_lea.vmem [#allocation8], 192
        %v4863 = vld [vmem:[%s4862] sm:$0xff]
        %v4864 = vld [vmem:[%s4862 + $0x8] sm:$0xff]
        %s4865 = scalar_lea.vmem [#allocation8], 208
        %v4866 = vld [vmem:[%s4865] sm:$0xff]
        %v4867 = vld [vmem:[%s4865 + $0x8] sm:$0xff]
        %4888 = vrot.lane.b32.xlu0 %v4842, 125
        %v4889 = vpop.permute.xlu0 %4888
        %4890 = vrot.lane.b32.xlu0 %v4843, 125
        %v4891 = vpop.permute.xlu0 %4890
        %4892 = vrot.lane.b32.xlu0 %v4844, 125
        %v4893 = vpop.permute.xlu0 %4892
        %4894 = vrot.lane.b32.xlu0 %v4845, 125
        %v4895 = vpop.permute.xlu0 %4894
        %4896 = vrot.lane.b32.xlu0 %v4846, 125
        %v4897 = vpop.permute.xlu0 %4896
        %4898 = vrot.lane.b32.xlu0 %v4847, 125
        %v4899 = vpop.permute.xlu0 %4898
        %4900 = vrot.lane.b32.xlu0 %v4848, 125
        %v4901 = vpop.permute.xlu0 %4900
        %4902 = vrot.lane.b32.xlu0 %v4849, 125
        %v4903 = vpop.permute.xlu0 %4902
        %4904 = vrot.lane.b32.xlu0 %v4850, 125
        %v4905 = vpop.permute.xlu0 %4904
        %4906 = vrot.lane.b32.xlu0 %v4851, 125
        %v4907 = vpop.permute.xlu0 %4906
        %4908 = vrot.lane.b32.xlu0 %v4852, 125
        %v4909 = vpop.permute.xlu0 %4908
        %4910 = vrot.lane.b32.xlu0 %v4853, 125
        %v4911 = vpop.permute.xlu0 %4910
        %4912 = vrot.lane.b32.xlu0 %v4854, 125
        %v4913 = vpop.permute.xlu0 %4912
        %4914 = vrot.lane.b32.xlu0 %v4855, 125
        %v4915 = vpop.permute.xlu0 %4914
        %4916 = vrot.lane.b32.xlu0 %v4856, 125
        %v4917 = vpop.permute.xlu0 %4916
        %4918 = vrot.lane.b32.xlu0 %v4857, 125
        %v4919 = vpop.permute.xlu0 %4918
        %4920 = vrot.lane.b32.xlu0 %v4858, 125
        %v4921 = vpop.permute.xlu0 %4920
        %4922 = vrot.lane.b32.xlu0 %v4859, 125
        %v4923 = vpop.permute.xlu0 %4922
        %4924 = vrot.lane.b32.xlu0 %v4860, 125
        %v4925 = vpop.permute.xlu0 %4924
        %4926 = vrot.lane.b32.xlu0 %v4861, 125
        %v4927 = vpop.permute.xlu0 %4926
        %v4928 = vsel %vm1622, %v4889, %v4891
        %v4929 = vsel %vm1622, %v4891, %v4893
        %v4930 = vsel %vm1622, %v4893, %v4895
        %v4931 = vsel %vm1622, %v4895, %v4897
        %v4932 = vsel %vm1622, %v4897, %v4899
        %v4933 = vsel %vm1622, %v4899, %v4901
        %v4934 = vsel %vm1622, %v4901, %v4903
        %v4935 = vsel %vm1622, %v4903, %v4905
        %v4936 = vsel %vm1622, %v4905, %v4907
        %v4937 = vsel %vm1622, %v4909, %v4911
        %v4938 = vsel %vm1622, %v4911, %v4913
        %v4939 = vsel %vm1622, %v4913, %v4915
        %v4940 = vsel %vm1622, %v4915, %v4917
        %v4941 = vsel %vm1622, %v4917, %v4919
        %v4942 = vsel %vm1622, %v4919, %v4921
        %v4943 = vsel %vm1622, %v4921, %v4923
        %v4944 = vsel %vm1622, %v4923, %v4925
        %v4945 = vsel %vm1622, %v4925, %v4927
        %v4967 = vsel %vm618, %v4866, 0
        %v4970 = vsel %vm618, %v4867, 0
        %4972 = vmatpush.msra.mxu0 0.0
        %4973 = vmatpush.msra.mxu0 0.0
        %4974 = vmatpush.msra.mxu0 0.0
        %4975 = vmatpush.msra.mxu0 0.0
        %4976 = vmatpush.msra.mxu0 0.0
        %4977 = vmatpush.msra.mxu0 0.0
        %4978 = vmatpush.msra.mxu0 0.0
        %4979 = vmatpush.msra.mxu0 0.0
        %4980 = vmatpush.msra.mxu0 0.0
        %4981 = vmatpush.msra.mxu0 0.0
        %4982 = vmatpush.msra.mxu0 0.0
        %4983 = vmatpush.msra.mxu0 0.0
        %4984 = vmatpush.msra.mxu0 0.0
        %4985 = vmatpush.msra.mxu0 0.0
        %4986 = vmatpush.msra.mxu0 %v4937
        %4987 = vmatpush.msra.mxu0 %v4928
        %4988 = vmatmul.f32.gmra.mxu0 %v4967
        %v4989 = vpop.f32.mrf.mxu0
        %v4990 = vadd.f32 0.0, %v4989
        %4991 = vmatmul.f32.gmra.mxu0 %v4970
        %v4992 = vpop.f32.mrf.mxu0
        %v4993 = vadd.f32 0.0, %v4992
        %4994 = vdwg.mxu0
        %4995 = vmatpush.msra.mxu0 0.0
        %4996 = vmatpush.msra.mxu0 0.0
        %4997 = vmatpush.msra.mxu0 0.0
        %4998 = vmatpush.msra.mxu0 0.0
        %4999 = vmatpush.msra.mxu0 0.0
        %5000 = vmatpush.msra.mxu0 0.0
        %5001 = vmatpush.msra.mxu0 0.0
        %5002 = vmatpush.msra.mxu0 0.0
        %5003 = vmatpush.msra.mxu0 0.0
        %5004 = vmatpush.msra.mxu0 0.0
        %5005 = vmatpush.msra.mxu0 0.0
        %5006 = vmatpush.msra.mxu0 0.0
        %5007 = vmatpush.msra.mxu0 0.0
        %5008 = vmatpush.msra.mxu0 0.0
        %5009 = vmatpush.msra.mxu0 %v4938
        %5010 = vmatpush.msra.mxu0 %v4929
        %5011 = vmatmul.f32.gmra.mxu0 %v4967
        %v5012 = vpop.f32.mrf.mxu0
        %v5013 = vadd.f32 0.0, %v5012
        %5014 = vmatmul.f32.gmra.mxu0 %v4970
        %v5015 = vpop.f32.mrf.mxu0
        %v5016 = vadd.f32 0.0, %v5015
        %5017 = vdwg.mxu0
        %5018 = vmatpush.msra.mxu0 0.0
        %5019 = vmatpush.msra.mxu0 0.0
        %5020 = vmatpush.msra.mxu0 0.0
        %5021 = vmatpush.msra.mxu0 0.0
        %5022 = vmatpush.msra.mxu0 0.0
        %5023 = vmatpush.msra.mxu0 0.0
        %5024 = vmatpush.msra.mxu0 0.0
        %5025 = vmatpush.msra.mxu0 0.0
        %5026 = vmatpush.msra.mxu0 0.0
        %5027 = vmatpush.msra.mxu0 0.0
        %5028 = vmatpush.msra.mxu0 0.0
        %5029 = vmatpush.msra.mxu0 0.0
        %5030 = vmatpush.msra.mxu0 0.0
        %5031 = vmatpush.msra.mxu0 0.0
        %5032 = vmatpush.msra.mxu0 %v4939
        %5033 = vmatpush.msra.mxu0 %v4930
        %5034 = vmatmul.f32.gmra.mxu0 %v4967
        %v5035 = vpop.f32.mrf.mxu0
        %v5036 = vadd.f32 0.0, %v5035
        %5037 = vmatmul.f32.gmra.mxu0 %v4970
        %v5038 = vpop.f32.mrf.mxu0
        %v5039 = vadd.f32 0.0, %v5038
        %5040 = vdwg.mxu0
        %5041 = vmatpush.msra.mxu0 0.0
        %5042 = vmatpush.msra.mxu0 0.0
        %5043 = vmatpush.msra.mxu0 0.0
        %5044 = vmatpush.msra.mxu0 0.0
        %5045 = vmatpush.msra.mxu0 0.0
        %5046 = vmatpush.msra.mxu0 0.0
        %5047 = vmatpush.msra.mxu0 0.0
        %5048 = vmatpush.msra.mxu0 0.0
        %5049 = vmatpush.msra.mxu0 0.0
        %5050 = vmatpush.msra.mxu0 0.0
        %5051 = vmatpush.msra.mxu0 0.0
        %5052 = vmatpush.msra.mxu0 0.0
        %5053 = vmatpush.msra.mxu0 0.0
        %5054 = vmatpush.msra.mxu0 0.0
        %5055 = vmatpush.msra.mxu0 %v4940
        %5056 = vmatpush.msra.mxu0 %v4931
        %5057 = vmatmul.f32.gmra.mxu0 %v4967
        %v5058 = vpop.f32.mrf.mxu0
        %v5059 = vadd.f32 0.0, %v5058
        %5060 = vmatmul.f32.gmra.mxu0 %v4970
        %v5061 = vpop.f32.mrf.mxu0
        %v5062 = vadd.f32 0.0, %v5061
        %5063 = vdwg.mxu0
        %5064 = vmatpush.msra.mxu0 0.0
        %5065 = vmatpush.msra.mxu0 0.0
        %5066 = vmatpush.msra.mxu0 0.0
        %5067 = vmatpush.msra.mxu0 0.0
        %5068 = vmatpush.msra.mxu0 0.0
        %5069 = vmatpush.msra.mxu0 0.0
        %5070 = vmatpush.msra.mxu0 0.0
        %5071 = vmatpush.msra.mxu0 0.0
        %5072 = vmatpush.msra.mxu0 0.0
        %5073 = vmatpush.msra.mxu0 0.0
        %5074 = vmatpush.msra.mxu0 0.0
        %5075 = vmatpush.msra.mxu0 0.0
        %5076 = vmatpush.msra.mxu0 0.0
        %5077 = vmatpush.msra.mxu0 0.0
        %5078 = vmatpush.msra.mxu0 %v4941
        %5079 = vmatpush.msra.mxu0 %v4932
        %5080 = vmatmul.f32.gmra.mxu0 %v4967
        %v5081 = vpop.f32.mrf.mxu0
        %v5082 = vadd.f32 0.0, %v5081
        %5083 = vmatmul.f32.gmra.mxu0 %v4970
        %v5084 = vpop.f32.mrf.mxu0
        %v5085 = vadd.f32 0.0, %v5084
        %5086 = vdwg.mxu0
        %5087 = vmatpush.msra.mxu0 0.0
        %5088 = vmatpush.msra.mxu0 0.0
        %5089 = vmatpush.msra.mxu0 0.0
        %5090 = vmatpush.msra.mxu0 0.0
        %5091 = vmatpush.msra.mxu0 0.0
        %5092 = vmatpush.msra.mxu0 0.0
        %5093 = vmatpush.msra.mxu0 0.0
        %5094 = vmatpush.msra.mxu0 0.0
        %5095 = vmatpush.msra.mxu0 0.0
        %5096 = vmatpush.msra.mxu0 0.0
        %5097 = vmatpush.msra.mxu0 0.0
        %5098 = vmatpush.msra.mxu0 0.0
        %5099 = vmatpush.msra.mxu0 0.0
        %5100 = vmatpush.msra.mxu0 0.0
        %5101 = vmatpush.msra.mxu0 %v4942
        %5102 = vmatpush.msra.mxu0 %v4933
        %5103 = vmatmul.f32.gmra.mxu0 %v4967
        %v5104 = vpop.f32.mrf.mxu0
        %v5105 = vadd.f32 0.0, %v5104
        %5106 = vmatmul.f32.gmra.mxu0 %v4970
        %v5107 = vpop.f32.mrf.mxu0
        %v5108 = vadd.f32 0.0, %v5107
        %5109 = vdwg.mxu0
        %5110 = vmatpush.msra.mxu0 0.0
        %5111 = vmatpush.msra.mxu0 0.0
        %5112 = vmatpush.msra.mxu0 0.0
        %5113 = vmatpush.msra.mxu0 0.0
        %5114 = vmatpush.msra.mxu0 0.0
        %5115 = vmatpush.msra.mxu0 0.0
        %5116 = vmatpush.msra.mxu0 0.0
        %5117 = vmatpush.msra.mxu0 0.0
        %5118 = vmatpush.msra.mxu0 0.0
        %5119 = vmatpush.msra.mxu0 0.0
        %5120 = vmatpush.msra.mxu0 0.0
        %5121 = vmatpush.msra.mxu0 0.0
        %5122 = vmatpush.msra.mxu0 0.0
        %5123 = vmatpush.msra.mxu0 0.0
        %5124 = vmatpush.msra.mxu0 %v4943
        %5125 = vmatpush.msra.mxu0 %v4934
        %5126 = vmatmul.f32.gmra.mxu0 %v4967
        %v5127 = vpop.f32.mrf.mxu0
        %v5128 = vadd.f32 0.0, %v5127
        %5129 = vmatmul.f32.gmra.mxu0 %v4970
        %v5130 = vpop.f32.mrf.mxu0
        %v5131 = vadd.f32 0.0, %v5130
        %5132 = vdwg.mxu0
        %5133 = vmatpush.msra.mxu0 0.0
        %5134 = vmatpush.msra.mxu0 0.0
        %5135 = vmatpush.msra.mxu0 0.0
        %5136 = vmatpush.msra.mxu0 0.0
        %5137 = vmatpush.msra.mxu0 0.0
        %5138 = vmatpush.msra.mxu0 0.0
        %5139 = vmatpush.msra.mxu0 0.0
        %5140 = vmatpush.msra.mxu0 0.0
        %5141 = vmatpush.msra.mxu0 0.0
        %5142 = vmatpush.msra.mxu0 0.0
        %5143 = vmatpush.msra.mxu0 0.0
        %5144 = vmatpush.msra.mxu0 0.0
        %5145 = vmatpush.msra.mxu0 0.0
        %5146 = vmatpush.msra.mxu0 0.0
        %5147 = vmatpush.msra.mxu0 %v4944
        %5148 = vmatpush.msra.mxu0 %v4935
        %5149 = vmatmul.f32.gmra.mxu0 %v4967
        %v5150 = vpop.f32.mrf.mxu0
        %v5151 = vadd.f32 0.0, %v5150
        %5152 = vmatmul.f32.gmra.mxu0 %v4970
        %v5153 = vpop.f32.mrf.mxu0
        %v5154 = vadd.f32 0.0, %v5153
        %5155 = vdwg.mxu0
        %5156 = vmatpush.msra.mxu0 0.0
        %5157 = vmatpush.msra.mxu0 0.0
        %5158 = vmatpush.msra.mxu0 0.0
        %5159 = vmatpush.msra.mxu0 0.0
        %5160 = vmatpush.msra.mxu0 0.0
        %5161 = vmatpush.msra.mxu0 0.0
        %5162 = vmatpush.msra.mxu0 0.0
        %5163 = vmatpush.msra.mxu0 0.0
        %5164 = vmatpush.msra.mxu0 0.0
        %5165 = vmatpush.msra.mxu0 0.0
        %5166 = vmatpush.msra.mxu0 0.0
        %5167 = vmatpush.msra.mxu0 0.0
        %5168 = vmatpush.msra.mxu0 0.0
        %5169 = vmatpush.msra.mxu0 0.0
        %5170 = vmatpush.msra.mxu0 %v4945
        %5171 = vmatpush.msra.mxu0 %v4936
        %5172 = vmatmul.f32.gmra.mxu0 %v4967
        %v5173 = vpop.f32.mrf.mxu0
        %v5174 = vadd.f32 0.0, %v5173
        %5175 = vmatmul.f32.gmra.mxu0 %v4970
        %v5176 = vpop.f32.mrf.mxu0
        %v5177 = vadd.f32 0.0, %v5176
        %5178 = vdwg.mxu0
        %5179 = vmatpush.msra.mxu0 0.0
        %5180 = vmatpush.msra.mxu0 0.0
        %5181 = vmatpush.msra.mxu0 0.0
        %5182 = vmatpush.msra.mxu0 0.0
        %5183 = vmatpush.msra.mxu0 0.0
        %5184 = vmatpush.msra.mxu0 0.0
        %5185 = vmatpush.msra.mxu0 0.0
        %5186 = vmatpush.msra.mxu0 0.0
        %5187 = vmatpush.msra.mxu0 0.0
        %5188 = vmatpush.msra.mxu0 0.0
        %5189 = vmatpush.msra.mxu0 0.0
        %5190 = vmatpush.msra.mxu0 0.0
        %5191 = vmatpush.msra.mxu0 0.0
        %5192 = vmatpush.msra.mxu0 0.0
        %5193 = vmatpush.msra.mxu0 %v4927
        %5194 = vmatpush.msra.mxu0 %v4907
        %5195 = vmatmul.f32.gmra.mxu0 %v4967
        %v5196 = vpop.f32.mrf.mxu0
        %v5197 = vadd.f32 0.0, %v5196
        %5198 = vmatmul.f32.gmra.mxu0 %v4970
        %v5199 = vpop.f32.mrf.mxu0
        %v5200 = vadd.f32 0.0, %v5199
        %5201 = vdwg.mxu0
        %v5203 = vsel %vm618, %v4863, 0
        %v5206 = vsel %vm618, %v4864, 0
        %5208 = vmatpush.msra.mxu0 0.0
        %5209 = vmatpush.msra.mxu0 0.0
        %5210 = vmatpush.msra.mxu0 0.0
        %5211 = vmatpush.msra.mxu0 0.0
        %5212 = vmatpush.msra.mxu0 0.0
        %5213 = vmatpush.msra.mxu0 0.0
        %5214 = vmatpush.msra.mxu0 0.0
        %5215 = vmatpush.msra.mxu0 0.0
        %5216 = vmatpush.msra.mxu0 0.0
        %5217 = vmatpush.msra.mxu0 0.0
        %5218 = vmatpush.msra.mxu0 0.0
        %5219 = vmatpush.msra.mxu0 0.0
        %5220 = vmatpush.msra.mxu0 0.0
        %5221 = vmatpush.msra.mxu0 0.0
        %5222 = vmatpush.msra.mxu0 %v4852
        %5223 = vmatpush.msra.mxu0 %v4842
        %5224 = vmatmul.f32.gmra.mxu0 %v5203
        %v5225 = vpop.f32.mrf.mxu0
        %v5226 = vadd.f32 %v4990, %v5225
        %5227 = vmatmul.f32.gmra.mxu0 %v5206
        %v5228 = vpop.f32.mrf.mxu0
        %v5229 = vadd.f32 %v4993, %v5228
        %5230 = vdwg.mxu0
        %5231 = vmatpush.msra.mxu0 0.0
        %5232 = vmatpush.msra.mxu0 0.0
        %5233 = vmatpush.msra.mxu0 0.0
        %5234 = vmatpush.msra.mxu0 0.0
        %5235 = vmatpush.msra.mxu0 0.0
        %5236 = vmatpush.msra.mxu0 0.0
        %5237 = vmatpush.msra.mxu0 0.0
        %5238 = vmatpush.msra.mxu0 0.0
        %5239 = vmatpush.msra.mxu0 0.0
        %5240 = vmatpush.msra.mxu0 0.0
        %5241 = vmatpush.msra.mxu0 0.0
        %5242 = vmatpush.msra.mxu0 0.0
        %5243 = vmatpush.msra.mxu0 0.0
        %5244 = vmatpush.msra.mxu0 0.0
        %5245 = vmatpush.msra.mxu0 %v4853
        %5246 = vmatpush.msra.mxu0 %v4843
        %5247 = vmatmul.f32.gmra.mxu0 %v5203
        %v5248 = vpop.f32.mrf.mxu0
        %v5249 = vadd.f32 %v5013, %v5248
        %5250 = vmatmul.f32.gmra.mxu0 %v5206
        %v5251 = vpop.f32.mrf.mxu0
        %v5252 = vadd.f32 %v5016, %v5251
        %5253 = vdwg.mxu0
        %5254 = vmatpush.msra.mxu0 0.0
        %5255 = vmatpush.msra.mxu0 0.0
        %5256 = vmatpush.msra.mxu0 0.0
        %5257 = vmatpush.msra.mxu0 0.0
        %5258 = vmatpush.msra.mxu0 0.0
        %5259 = vmatpush.msra.mxu0 0.0
        %5260 = vmatpush.msra.mxu0 0.0
        %5261 = vmatpush.msra.mxu0 0.0
        %5262 = vmatpush.msra.mxu0 0.0
        %5263 = vmatpush.msra.mxu0 0.0
        %5264 = vmatpush.msra.mxu0 0.0
        %5265 = vmatpush.msra.mxu0 0.0
        %5266 = vmatpush.msra.mxu0 0.0
        %5267 = vmatpush.msra.mxu0 0.0
        %5268 = vmatpush.msra.mxu0 %v4854
        %5269 = vmatpush.msra.mxu0 %v4844
        %5270 = vmatmul.f32.gmra.mxu0 %v5203
        %v5271 = vpop.f32.mrf.mxu0
        %v5272 = vadd.f32 %v5036, %v5271
        %5273 = vmatmul.f32.gmra.mxu0 %v5206
        %v5274 = vpop.f32.mrf.mxu0
        %v5275 = vadd.f32 %v5039, %v5274
        %5276 = vdwg.mxu0
        %5277 = vmatpush.msra.mxu0 0.0
        %5278 = vmatpush.msra.mxu0 0.0
        %5279 = vmatpush.msra.mxu0 0.0
        %5280 = vmatpush.msra.mxu0 0.0
        %5281 = vmatpush.msra.mxu0 0.0
        %5282 = vmatpush.msra.mxu0 0.0
        %5283 = vmatpush.msra.mxu0 0.0
        %5284 = vmatpush.msra.mxu0 0.0
        %5285 = vmatpush.msra.mxu0 0.0
        %5286 = vmatpush.msra.mxu0 0.0
        %5287 = vmatpush.msra.mxu0 0.0
        %5288 = vmatpush.msra.mxu0 0.0
        %5289 = vmatpush.msra.mxu0 0.0
        %5290 = vmatpush.msra.mxu0 0.0
        %5291 = vmatpush.msra.mxu0 %v4855
        %5292 = vmatpush.msra.mxu0 %v4845
        %5293 = vmatmul.f32.gmra.mxu0 %v5203
        %v5294 = vpop.f32.mrf.mxu0
        %v5295 = vadd.f32 %v5059, %v5294
        %5296 = vmatmul.f32.gmra.mxu0 %v5206
        %v5297 = vpop.f32.mrf.mxu0
        %v5298 = vadd.f32 %v5062, %v5297
        %5299 = vdwg.mxu0
        %5300 = vmatpush.msra.mxu0 0.0
        %5301 = vmatpush.msra.mxu0 0.0
        %5302 = vmatpush.msra.mxu0 0.0
        %5303 = vmatpush.msra.mxu0 0.0
        %5304 = vmatpush.msra.mxu0 0.0
        %5305 = vmatpush.msra.mxu0 0.0
        %5306 = vmatpush.msra.mxu0 0.0
        %5307 = vmatpush.msra.mxu0 0.0
        %5308 = vmatpush.msra.mxu0 0.0
        %5309 = vmatpush.msra.mxu0 0.0
        %5310 = vmatpush.msra.mxu0 0.0
        %5311 = vmatpush.msra.mxu0 0.0
        %5312 = vmatpush.msra.mxu0 0.0
        %5313 = vmatpush.msra.mxu0 0.0
        %5314 = vmatpush.msra.mxu0 %v4856
        %5315 = vmatpush.msra.mxu0 %v4846
        %5316 = vmatmul.f32.gmra.mxu0 %v5203
        %v5317 = vpop.f32.mrf.mxu0
        %v5318 = vadd.f32 %v5082, %v5317
        %5319 = vmatmul.f32.gmra.mxu0 %v5206
        %v5320 = vpop.f32.mrf.mxu0
        %v5321 = vadd.f32 %v5085, %v5320
        %5322 = vdwg.mxu0
        %5323 = vmatpush.msra.mxu0 0.0
        %5324 = vmatpush.msra.mxu0 0.0
        %5325 = vmatpush.msra.mxu0 0.0
        %5326 = vmatpush.msra.mxu0 0.0
        %5327 = vmatpush.msra.mxu0 0.0
        %5328 = vmatpush.msra.mxu0 0.0
        %5329 = vmatpush.msra.mxu0 0.0
        %5330 = vmatpush.msra.mxu0 0.0
        %5331 = vmatpush.msra.mxu0 0.0
        %5332 = vmatpush.msra.mxu0 0.0
        %5333 = vmatpush.msra.mxu0 0.0
        %5334 = vmatpush.msra.mxu0 0.0
        %5335 = vmatpush.msra.mxu0 0.0
        %5336 = vmatpush.msra.mxu0 0.0
        %5337 = vmatpush.msra.mxu0 %v4857
        %5338 = vmatpush.msra.mxu0 %v4847
        %5339 = vmatmul.f32.gmra.mxu0 %v5203
        %v5340 = vpop.f32.mrf.mxu0
        %v5341 = vadd.f32 %v5105, %v5340
        %5342 = vmatmul.f32.gmra.mxu0 %v5206
        %v5343 = vpop.f32.mrf.mxu0
        %v5344 = vadd.f32 %v5108, %v5343
        %5345 = vdwg.mxu0
        %5346 = vmatpush.msra.mxu0 0.0
        %5347 = vmatpush.msra.mxu0 0.0
        %5348 = vmatpush.msra.mxu0 0.0
        %5349 = vmatpush.msra.mxu0 0.0
        %5350 = vmatpush.msra.mxu0 0.0
        %5351 = vmatpush.msra.mxu0 0.0
        %5352 = vmatpush.msra.mxu0 0.0
        %5353 = vmatpush.msra.mxu0 0.0
        %5354 = vmatpush.msra.mxu0 0.0
        %5355 = vmatpush.msra.mxu0 0.0
        %5356 = vmatpush.msra.mxu0 0.0
        %5357 = vmatpush.msra.mxu0 0.0
        %5358 = vmatpush.msra.mxu0 0.0
        %5359 = vmatpush.msra.mxu0 0.0
        %5360 = vmatpush.msra.mxu0 %v4858
        %5361 = vmatpush.msra.mxu0 %v4848
        %5362 = vmatmul.f32.gmra.mxu0 %v5203
        %v5363 = vpop.f32.mrf.mxu0
        %v5364 = vadd.f32 %v5128, %v5363
        %5365 = vmatmul.f32.gmra.mxu0 %v5206
        %v5366 = vpop.f32.mrf.mxu0
        %v5367 = vadd.f32 %v5131, %v5366
        %5368 = vdwg.mxu0
        %5369 = vmatpush.msra.mxu0 0.0
        %5370 = vmatpush.msra.mxu0 0.0
        %5371 = vmatpush.msra.mxu0 0.0
        %5372 = vmatpush.msra.mxu0 0.0
        %5373 = vmatpush.msra.mxu0 0.0
        %5374 = vmatpush.msra.mxu0 0.0
        %5375 = vmatpush.msra.mxu0 0.0
        %5376 = vmatpush.msra.mxu0 0.0
        %5377 = vmatpush.msra.mxu0 0.0
        %5378 = vmatpush.msra.mxu0 0.0
        %5379 = vmatpush.msra.mxu0 0.0
        %5380 = vmatpush.msra.mxu0 0.0
        %5381 = vmatpush.msra.mxu0 0.0
        %5382 = vmatpush.msra.mxu0 0.0
        %5383 = vmatpush.msra.mxu0 %v4859
        %5384 = vmatpush.msra.mxu0 %v4849
        %5385 = vmatmul.f32.gmra.mxu0 %v5203
        %v5386 = vpop.f32.mrf.mxu0
        %v5387 = vadd.f32 %v5151, %v5386
        %5388 = vmatmul.f32.gmra.mxu0 %v5206
        %v5389 = vpop.f32.mrf.mxu0
        %v5390 = vadd.f32 %v5154, %v5389
        %5391 = vdwg.mxu0
        %5392 = vmatpush.msra.mxu0 0.0
        %5393 = vmatpush.msra.mxu0 0.0
        %5394 = vmatpush.msra.mxu0 0.0
        %5395 = vmatpush.msra.mxu0 0.0
        %5396 = vmatpush.msra.mxu0 0.0
        %5397 = vmatpush.msra.mxu0 0.0
        %5398 = vmatpush.msra.mxu0 0.0
        %5399 = vmatpush.msra.mxu0 0.0
        %5400 = vmatpush.msra.mxu0 0.0
        %5401 = vmatpush.msra.mxu0 0.0
        %5402 = vmatpush.msra.mxu0 0.0
        %5403 = vmatpush.msra.mxu0 0.0
        %5404 = vmatpush.msra.mxu0 0.0
        %5405 = vmatpush.msra.mxu0 0.0
        %5406 = vmatpush.msra.mxu0 %v4860
        %5407 = vmatpush.msra.mxu0 %v4850
        %5408 = vmatmul.f32.gmra.mxu0 %v5203
        %v5409 = vpop.f32.mrf.mxu0
        %v5410 = vadd.f32 %v5174, %v5409
        %5411 = vmatmul.f32.gmra.mxu0 %v5206
        %v5412 = vpop.f32.mrf.mxu0
        %v5413 = vadd.f32 %v5177, %v5412
        %5414 = vdwg.mxu0
        %5415 = vmatpush.msra.mxu0 0.0
        %5416 = vmatpush.msra.mxu0 0.0
        %5417 = vmatpush.msra.mxu0 0.0
        %5418 = vmatpush.msra.mxu0 0.0
        %5419 = vmatpush.msra.mxu0 0.0
        %5420 = vmatpush.msra.mxu0 0.0
        %5421 = vmatpush.msra.mxu0 0.0
        %5422 = vmatpush.msra.mxu0 0.0
        %5423 = vmatpush.msra.mxu0 0.0
        %5424 = vmatpush.msra.mxu0 0.0
        %5425 = vmatpush.msra.mxu0 0.0
        %5426 = vmatpush.msra.mxu0 0.0
        %5427 = vmatpush.msra.mxu0 0.0
        %5428 = vmatpush.msra.mxu0 0.0
        %5429 = vmatpush.msra.mxu0 %v4861
        %5430 = vmatpush.msra.mxu0 %v4851
        %5431 = vmatmul.f32.gmra.mxu0 %v5203
        %v5432 = vpop.f32.mrf.mxu0
        %v5433 = vadd.f32 %v5197, %v5432
        %5434 = vmatmul.f32.gmra.mxu0 %v5206
        %v5435 = vpop.f32.mrf.mxu0
        %v5436 = vadd.f32 %v5200, %v5435
        %5437 = vdwg.mxu0
        %s5438 = scalar_lea.vmem [#allocation8], 224
        %v5439 = vld [vmem:[%s5438] sm:$0xff]
        %v5440 = vld [vmem:[%s5438 + $0x8] sm:$0xff]
        %5441 = vrot.lane.b32.xlu0 %v4842, 122
        %v5442 = vpop.permute.xlu0 %5441
        %5443 = vrot.lane.b32.xlu0 %v4843, 122
        %v5444 = vpop.permute.xlu0 %5443
        %5445 = vrot.lane.b32.xlu0 %v4844, 122
        %v5446 = vpop.permute.xlu0 %5445
        %5447 = vrot.lane.b32.xlu0 %v4845, 122
        %v5448 = vpop.permute.xlu0 %5447
        %5449 = vrot.lane.b32.xlu0 %v4846, 122
        %v5450 = vpop.permute.xlu0 %5449
        %5451 = vrot.lane.b32.xlu0 %v4847, 122
        %v5452 = vpop.permute.xlu0 %5451
        %5453 = vrot.lane.b32.xlu0 %v4848, 122
        %v5454 = vpop.permute.xlu0 %5453
        %5455 = vrot.lane.b32.xlu0 %v4849, 122
        %v5456 = vpop.permute.xlu0 %5455
        %5457 = vrot.lane.b32.xlu0 %v4850, 122
        %v5458 = vpop.permute.xlu0 %5457
        %5459 = vrot.lane.b32.xlu0 %v4851, 122
        %v5460 = vpop.permute.xlu0 %5459
        %5461 = vrot.lane.b32.xlu0 %v4852, 122
        %v5462 = vpop.permute.xlu0 %5461
        %5463 = vrot.lane.b32.xlu0 %v4853, 122
        %v5464 = vpop.permute.xlu0 %5463
        %5465 = vrot.lane.b32.xlu0 %v4854, 122
        %v5466 = vpop.permute.xlu0 %5465
        %5467 = vrot.lane.b32.xlu0 %v4855, 122
        %v5468 = vpop.permute.xlu0 %5467
        %5469 = vrot.lane.b32.xlu0 %v4856, 122
        %v5470 = vpop.permute.xlu0 %5469
        %5471 = vrot.lane.b32.xlu0 %v4857, 122
        %v5472 = vpop.permute.xlu0 %5471
        %5473 = vrot.lane.b32.xlu0 %v4858, 122
        %v5474 = vpop.permute.xlu0 %5473
        %5475 = vrot.lane.b32.xlu0 %v4859, 122
        %v5476 = vpop.permute.xlu0 %5475
        %5477 = vrot.lane.b32.xlu0 %v4860, 122
        %v5478 = vpop.permute.xlu0 %5477
        %5479 = vrot.lane.b32.xlu0 %v4861, 122
        %v5480 = vpop.permute.xlu0 %5479
        %v5481 = vsel %vm2176, %v5442, %v5444
        %v5482 = vsel %vm2176, %v5444, %v5446
        %v5483 = vsel %vm2176, %v5446, %v5448
        %v5484 = vsel %vm2176, %v5448, %v5450
        %v5485 = vsel %vm2176, %v5450, %v5452
        %v5486 = vsel %vm2176, %v5452, %v5454
        %v5487 = vsel %vm2176, %v5454, %v5456
        %v5488 = vsel %vm2176, %v5456, %v5458
        %v5489 = vsel %vm2176, %v5458, %v5460
        %v5490 = vsel %vm2176, %v5462, %v5464
        %v5491 = vsel %vm2176, %v5464, %v5466
        %v5492 = vsel %vm2176, %v5466, %v5468
        %v5493 = vsel %vm2176, %v5468, %v5470
        %v5494 = vsel %vm2176, %v5470, %v5472
        %v5495 = vsel %vm2176, %v5472, %v5474
        %v5496 = vsel %vm2176, %v5474, %v5476
        %v5497 = vsel %vm2176, %v5476, %v5478
        %v5498 = vsel %vm2176, %v5478, %v5480
        %v5520 = vsel %vm618, %v5439, 0
        %v5523 = vsel %vm618, %v5440, 0
        %5525 = vmatpush.msra.mxu0 0.0
        %5526 = vmatpush.msra.mxu0 0.0
        %5527 = vmatpush.msra.mxu0 0.0
        %5528 = vmatpush.msra.mxu0 0.0
        %5529 = vmatpush.msra.mxu0 0.0
        %5530 = vmatpush.msra.mxu0 0.0
        %5531 = vmatpush.msra.mxu0 0.0
        %5532 = vmatpush.msra.mxu0 0.0
        %5533 = vmatpush.msra.mxu0 0.0
        %5534 = vmatpush.msra.mxu0 0.0
        %5535 = vmatpush.msra.mxu0 0.0
        %5536 = vmatpush.msra.mxu0 0.0
        %5537 = vmatpush.msra.mxu0 0.0
        %5538 = vmatpush.msra.mxu0 0.0
        %5539 = vmatpush.msra.mxu0 %v5490
        %5540 = vmatpush.msra.mxu0 %v5481
        %5541 = vmatmul.f32.gmra.mxu0 %v5520
        %v5542 = vpop.f32.mrf.mxu0
        %v5543 = vadd.f32 0.0, %v5542
        %5544 = vmatmul.f32.gmra.mxu0 %v5523
        %v5545 = vpop.f32.mrf.mxu0
        %v5546 = vadd.f32 0.0, %v5545
        %5547 = vdwg.mxu0
        %5548 = vmatpush.msra.mxu0 0.0
        %5549 = vmatpush.msra.mxu0 0.0
        %5550 = vmatpush.msra.mxu0 0.0
        %5551 = vmatpush.msra.mxu0 0.0
        %5552 = vmatpush.msra.mxu0 0.0
        %5553 = vmatpush.msra.mxu0 0.0
        %5554 = vmatpush.msra.mxu0 0.0
        %5555 = vmatpush.msra.mxu0 0.0
        %5556 = vmatpush.msra.mxu0 0.0
        %5557 = vmatpush.msra.mxu0 0.0
        %5558 = vmatpush.msra.mxu0 0.0
        %5559 = vmatpush.msra.mxu0 0.0
        %5560 = vmatpush.msra.mxu0 0.0
        %5561 = vmatpush.msra.mxu0 0.0
        %5562 = vmatpush.msra.mxu0 %v5491
        %5563 = vmatpush.msra.mxu0 %v5482
        %5564 = vmatmul.f32.gmra.mxu0 %v5520
        %v5565 = vpop.f32.mrf.mxu0
        %v5566 = vadd.f32 0.0, %v5565
        %5567 = vmatmul.f32.gmra.mxu0 %v5523
        %v5568 = vpop.f32.mrf.mxu0
        %v5569 = vadd.f32 0.0, %v5568
        %5570 = vdwg.mxu0
        %5571 = vmatpush.msra.mxu0 0.0
        %5572 = vmatpush.msra.mxu0 0.0
        %5573 = vmatpush.msra.mxu0 0.0
        %5574 = vmatpush.msra.mxu0 0.0
        %5575 = vmatpush.msra.mxu0 0.0
        %5576 = vmatpush.msra.mxu0 0.0
        %5577 = vmatpush.msra.mxu0 0.0
        %5578 = vmatpush.msra.mxu0 0.0
        %5579 = vmatpush.msra.mxu0 0.0
        %5580 = vmatpush.msra.mxu0 0.0
        %5581 = vmatpush.msra.mxu0 0.0
        %5582 = vmatpush.msra.mxu0 0.0
        %5583 = vmatpush.msra.mxu0 0.0
        %5584 = vmatpush.msra.mxu0 0.0
        %5585 = vmatpush.msra.mxu0 %v5492
        %5586 = vmatpush.msra.mxu0 %v5483
        %5587 = vmatmul.f32.gmra.mxu0 %v5520
        %v5588 = vpop.f32.mrf.mxu0
        %v5589 = vadd.f32 0.0, %v5588
        %5590 = vmatmul.f32.gmra.mxu0 %v5523
        %v5591 = vpop.f32.mrf.mxu0
        %v5592 = vadd.f32 0.0, %v5591
        %5593 = vdwg.mxu0
        %5594 = vmatpush.msra.mxu0 0.0
        %5595 = vmatpush.msra.mxu0 0.0
        %5596 = vmatpush.msra.mxu0 0.0
        %5597 = vmatpush.msra.mxu0 0.0
        %5598 = vmatpush.msra.mxu0 0.0
        %5599 = vmatpush.msra.mxu0 0.0
        %5600 = vmatpush.msra.mxu0 0.0
        %5601 = vmatpush.msra.mxu0 0.0
        %5602 = vmatpush.msra.mxu0 0.0
        %5603 = vmatpush.msra.mxu0 0.0
        %5604 = vmatpush.msra.mxu0 0.0
        %5605 = vmatpush.msra.mxu0 0.0
        %5606 = vmatpush.msra.mxu0 0.0
        %5607 = vmatpush.msra.mxu0 0.0
        %5608 = vmatpush.msra.mxu0 %v5493
        %5609 = vmatpush.msra.mxu0 %v5484
        %5610 = vmatmul.f32.gmra.mxu0 %v5520
        %v5611 = vpop.f32.mrf.mxu0
        %v5612 = vadd.f32 0.0, %v5611
        %5613 = vmatmul.f32.gmra.mxu0 %v5523
        %v5614 = vpop.f32.mrf.mxu0
        %v5615 = vadd.f32 0.0, %v5614
        %5616 = vdwg.mxu0
        %5617 = vmatpush.msra.mxu0 0.0
        %5618 = vmatpush.msra.mxu0 0.0
        %5619 = vmatpush.msra.mxu0 0.0
        %5620 = vmatpush.msra.mxu0 0.0
        %5621 = vmatpush.msra.mxu0 0.0
        %5622 = vmatpush.msra.mxu0 0.0
        %5623 = vmatpush.msra.mxu0 0.0
        %5624 = vmatpush.msra.mxu0 0.0
        %5625 = vmatpush.msra.mxu0 0.0
        %5626 = vmatpush.msra.mxu0 0.0
        %5627 = vmatpush.msra.mxu0 0.0
        %5628 = vmatpush.msra.mxu0 0.0
        %5629 = vmatpush.msra.mxu0 0.0
        %5630 = vmatpush.msra.mxu0 0.0
        %5631 = vmatpush.msra.mxu0 %v5494
        %5632 = vmatpush.msra.mxu0 %v5485
        %5633 = vmatmul.f32.gmra.mxu0 %v5520
        %v5634 = vpop.f32.mrf.mxu0
        %v5635 = vadd.f32 0.0, %v5634
        %5636 = vmatmul.f32.gmra.mxu0 %v5523
        %v5637 = vpop.f32.mrf.mxu0
        %v5638 = vadd.f32 0.0, %v5637
        %5639 = vdwg.mxu0
        %5640 = vmatpush.msra.mxu0 0.0
        %5641 = vmatpush.msra.mxu0 0.0
        %5642 = vmatpush.msra.mxu0 0.0
        %5643 = vmatpush.msra.mxu0 0.0
        %5644 = vmatpush.msra.mxu0 0.0
        %5645 = vmatpush.msra.mxu0 0.0
        %5646 = vmatpush.msra.mxu0 0.0
        %5647 = vmatpush.msra.mxu0 0.0
        %5648 = vmatpush.msra.mxu0 0.0
        %5649 = vmatpush.msra.mxu0 0.0
        %5650 = vmatpush.msra.mxu0 0.0
        %5651 = vmatpush.msra.mxu0 0.0
        %5652 = vmatpush.msra.mxu0 0.0
        %5653 = vmatpush.msra.mxu0 0.0
        %5654 = vmatpush.msra.mxu0 %v5495
        %5655 = vmatpush.msra.mxu0 %v5486
        %5656 = vmatmul.f32.gmra.mxu0 %v5520
        %v5657 = vpop.f32.mrf.mxu0
        %v5658 = vadd.f32 0.0, %v5657
        %5659 = vmatmul.f32.gmra.mxu0 %v5523
        %v5660 = vpop.f32.mrf.mxu0
        %v5661 = vadd.f32 0.0, %v5660
        %5662 = vdwg.mxu0
        %5663 = vmatpush.msra.mxu0 0.0
        %5664 = vmatpush.msra.mxu0 0.0
        %5665 = vmatpush.msra.mxu0 0.0
        %5666 = vmatpush.msra.mxu0 0.0
        %5667 = vmatpush.msra.mxu0 0.0
        %5668 = vmatpush.msra.mxu0 0.0
        %5669 = vmatpush.msra.mxu0 0.0
        %5670 = vmatpush.msra.mxu0 0.0
        %5671 = vmatpush.msra.mxu0 0.0
        %5672 = vmatpush.msra.mxu0 0.0
        %5673 = vmatpush.msra.mxu0 0.0
        %5674 = vmatpush.msra.mxu0 0.0
        %5675 = vmatpush.msra.mxu0 0.0
        %5676 = vmatpush.msra.mxu0 0.0
        %5677 = vmatpush.msra.mxu0 %v5496
        %5678 = vmatpush.msra.mxu0 %v5487
        %5679 = vmatmul.f32.gmra.mxu0 %v5520
        %v5680 = vpop.f32.mrf.mxu0
        %v5681 = vadd.f32 0.0, %v5680
        %5682 = vmatmul.f32.gmra.mxu0 %v5523
        %v5683 = vpop.f32.mrf.mxu0
        %v5684 = vadd.f32 0.0, %v5683
        %5685 = vdwg.mxu0
        %5686 = vmatpush.msra.mxu0 0.0
        %5687 = vmatpush.msra.mxu0 0.0
        %5688 = vmatpush.msra.mxu0 0.0
        %5689 = vmatpush.msra.mxu0 0.0
        %5690 = vmatpush.msra.mxu0 0.0
        %5691 = vmatpush.msra.mxu0 0.0
        %5692 = vmatpush.msra.mxu0 0.0
        %5693 = vmatpush.msra.mxu0 0.0
        %5694 = vmatpush.msra.mxu0 0.0
        %5695 = vmatpush.msra.mxu0 0.0
        %5696 = vmatpush.msra.mxu0 0.0
        %5697 = vmatpush.msra.mxu0 0.0
        %5698 = vmatpush.msra.mxu0 0.0
        %5699 = vmatpush.msra.mxu0 0.0
        %5700 = vmatpush.msra.mxu0 %v5497
        %5701 = vmatpush.msra.mxu0 %v5488
        %5702 = vmatmul.f32.gmra.mxu0 %v5520
        %v5703 = vpop.f32.mrf.mxu0
        %v5704 = vadd.f32 0.0, %v5703
        %5705 = vmatmul.f32.gmra.mxu0 %v5523
        %v5706 = vpop.f32.mrf.mxu0
        %v5707 = vadd.f32 0.0, %v5706
        %5708 = vdwg.mxu0
        %5709 = vmatpush.msra.mxu0 0.0
        %5710 = vmatpush.msra.mxu0 0.0
        %5711 = vmatpush.msra.mxu0 0.0
        %5712 = vmatpush.msra.mxu0 0.0
        %5713 = vmatpush.msra.mxu0 0.0
        %5714 = vmatpush.msra.mxu0 0.0
        %5715 = vmatpush.msra.mxu0 0.0
        %5716 = vmatpush.msra.mxu0 0.0
        %5717 = vmatpush.msra.mxu0 0.0
        %5718 = vmatpush.msra.mxu0 0.0
        %5719 = vmatpush.msra.mxu0 0.0
        %5720 = vmatpush.msra.mxu0 0.0
        %5721 = vmatpush.msra.mxu0 0.0
        %5722 = vmatpush.msra.mxu0 0.0
        %5723 = vmatpush.msra.mxu0 %v5498
        %5724 = vmatpush.msra.mxu0 %v5489
        %5725 = vmatmul.f32.gmra.mxu0 %v5520
        %v5726 = vpop.f32.mrf.mxu0
        %v5727 = vadd.f32 0.0, %v5726
        %5728 = vmatmul.f32.gmra.mxu0 %v5523
        %v5729 = vpop.f32.mrf.mxu0
        %v5730 = vadd.f32 0.0, %v5729
        %5731 = vdwg.mxu0
        %5732 = vmatpush.msra.mxu0 0.0
        %5733 = vmatpush.msra.mxu0 0.0
        %5734 = vmatpush.msra.mxu0 0.0
        %5735 = vmatpush.msra.mxu0 0.0
        %5736 = vmatpush.msra.mxu0 0.0
        %5737 = vmatpush.msra.mxu0 0.0
        %5738 = vmatpush.msra.mxu0 0.0
        %5739 = vmatpush.msra.mxu0 0.0
        %5740 = vmatpush.msra.mxu0 0.0
        %5741 = vmatpush.msra.mxu0 0.0
        %5742 = vmatpush.msra.mxu0 0.0
        %5743 = vmatpush.msra.mxu0 0.0
        %5744 = vmatpush.msra.mxu0 0.0
        %5745 = vmatpush.msra.mxu0 0.0
        %5746 = vmatpush.msra.mxu0 %v5480
        %5747 = vmatpush.msra.mxu0 %v5460
        %5748 = vmatmul.f32.gmra.mxu0 %v5520
        %v5749 = vpop.f32.mrf.mxu0
        %v5750 = vadd.f32 0.0, %v5749
        %5751 = vmatmul.f32.gmra.mxu0 %v5523
        %v5752 = vpop.f32.mrf.mxu0
        %v5753 = vadd.f32 0.0, %v5752
        %5754 = vdwg.mxu0
        %v5755 = vadd.f32 %v5226, %v5543
        %v5756 = vadd.f32 %v5249, %v5566
        %v5757 = vadd.f32 %v5272, %v5589
        %v5758 = vadd.f32 %v5295, %v5612
        %v5759 = vadd.f32 %v5318, %v5635
        %v5760 = vadd.f32 %v5341, %v5658
        %v5761 = vadd.f32 %v5364, %v5681
        %v5762 = vadd.f32 %v5387, %v5704
        %v5763 = vadd.f32 %v5410, %v5727
        %v5764 = vadd.f32 %v5433, %v5750
        %v5765 = vadd.f32 %v5229, %v5546
        %v5766 = vadd.f32 %v5252, %v5569
        %v5767 = vadd.f32 %v5275, %v5592
        %v5768 = vadd.f32 %v5298, %v5615
        %v5769 = vadd.f32 %v5321, %v5638
        %v5770 = vadd.f32 %v5344, %v5661
        %v5771 = vadd.f32 %v5367, %v5684
        %v5772 = vadd.f32 %v5390, %v5707
        %v5773 = vadd.f32 %v5413, %v5730
        %v5774 = vadd.f32 %v5436, %v5753
        %s5775 = scalar_lea.vmem %s4, 64
        %v5776 = vld [vmem:[%s5775] sm:$0xff]
        %v5777 = vld [vmem:[%s5775 + $0x8] sm:$0xff]
        %5779 = vset.pattern.permute.xlu0 0
        %5780 = vperm.xlu0 %5779, %v5776
        %v5781 = vpop.permute.xlu0 %5780
        %5784 = vset.pattern.permute.xlu0 0
        %5785 = vperm.xlu0 %5784, %v5777
        %v5786 = vpop.permute.xlu0 %5785
        %v5788 = vadd.f32 %v5755, %v5781
        %v5789 = vadd.f32 %v5756, %v5781
        %v5790 = vadd.f32 %v5757, %v5781
        %v5791 = vadd.f32 %v5758, %v5781
        %v5792 = vadd.f32 %v5759, %v5781
        %v5793 = vadd.f32 %v5760, %v5781
        %v5794 = vadd.f32 %v5761, %v5781
        %v5795 = vadd.f32 %v5762, %v5781
        %v5796 = vadd.f32 %v5763, %v5781
        %v5797 = vadd.f32 %v5764, %v5781
        %v5798 = vadd.f32 %v5765, %v5786
        %v5799 = vadd.f32 %v5766, %v5786
        %v5800 = vadd.f32 %v5767, %v5786
        %v5801 = vadd.f32 %v5768, %v5786
        %v5802 = vadd.f32 %v5769, %v5786
        %v5803 = vadd.f32 %v5770, %v5786
        %v5804 = vadd.f32 %v5771, %v5786
        %v5805 = vadd.f32 %v5772, %v5786
        %v5806 = vadd.f32 %v5773, %v5786
        %v5807 = vadd.f32 %v5774, %v5786
        %vm5808 = vcmp.ge.f32.partialorder %v5788, 0.0
        %vm5809 = vcmp.ge.f32.partialorder %v5789, 0.0
        %vm5810 = vcmp.ge.f32.partialorder %v5790, 0.0
        %vm5811 = vcmp.ge.f32.partialorder %v5791, 0.0
        %vm5812 = vcmp.ge.f32.partialorder %v5792, 0.0
        %vm5813 = vcmp.ge.f32.partialorder %v5793, 0.0
        %vm5814 = vcmp.ge.f32.partialorder %v5794, 0.0
        %vm5815 = vcmp.ge.f32.partialorder %v5795, 0.0
        %vm5816 = vcmp.ge.f32.partialorder %v5796, 0.0
        %vm5817 = vcmp.ge.f32.partialorder %v5797, 0.0
        %vm5818 = vcmp.ge.f32.partialorder %v5798, 0.0
        %vm5819 = vcmp.ge.f32.partialorder %v5799, 0.0
        %vm5820 = vcmp.ge.f32.partialorder %v5800, 0.0
        %vm5821 = vcmp.ge.f32.partialorder %v5801, 0.0
        %vm5822 = vcmp.ge.f32.partialorder %v5802, 0.0
        %vm5823 = vcmp.ge.f32.partialorder %v5803, 0.0
        %vm5824 = vcmp.ge.f32.partialorder %v5804, 0.0
        %vm5825 = vcmp.ge.f32.partialorder %v5805, 0.0
        %vm5826 = vcmp.ge.f32.partialorder %v5806, 0.0
        %vm5827 = vcmp.ge.f32.partialorder %v5807, 0.0
        %v5828 = vmul.f32 %v5788, 0.1
        %v5829 = vmul.f32 %v5789, 0.1
        %v5830 = vmul.f32 %v5790, 0.1
        %v5831 = vmul.f32 %v5791, 0.1
        %v5832 = vmul.f32 %v5792, 0.1
        %v5833 = vmul.f32 %v5793, 0.1
        %v5834 = vmul.f32 %v5794, 0.1
        %v5835 = vmul.f32 %v5795, 0.1
        %v5836 = vmul.f32 %v5796, 0.1
        %v5837 = vmul.f32 %v5797, 0.1
        %v5838 = vmul.f32 %v5798, 0.1
        %v5839 = vmul.f32 %v5799, 0.1
        %v5840 = vmul.f32 %v5800, 0.1
        %v5841 = vmul.f32 %v5801, 0.1
        %v5842 = vmul.f32 %v5802, 0.1
        %v5843 = vmul.f32 %v5803, 0.1
        %v5844 = vmul.f32 %v5804, 0.1
        %v5845 = vmul.f32 %v5805, 0.1
        %v5846 = vmul.f32 %v5806, 0.1
        %v5847 = vmul.f32 %v5807, 0.1
        %v5848 = vsel %vm5808, %v5788, %v5828
        %v5849 = vsel %vm5809, %v5789, %v5829
        %v5850 = vsel %vm5810, %v5790, %v5830
        %v5851 = vsel %vm5811, %v5791, %v5831
        %v5852 = vsel %vm5812, %v5792, %v5832
        %v5853 = vsel %vm5813, %v5793, %v5833
        %v5854 = vsel %vm5814, %v5794, %v5834
        %v5855 = vsel %vm5815, %v5795, %v5835
        %v5856 = vsel %vm5816, %v5796, %v5836
        %v5857 = vsel %vm5817, %v5797, %v5837
        %v5858 = vsel %vm5818, %v5798, %v5838
        %v5859 = vsel %vm5819, %v5799, %v5839
        %v5860 = vsel %vm5820, %v5800, %v5840
        %v5861 = vsel %vm5821, %v5801, %v5841
        %v5862 = vsel %vm5822, %v5802, %v5842
        %v5863 = vsel %vm5823, %v5803, %v5843
        %v5864 = vsel %vm5824, %v5804, %v5844
        %v5865 = vsel %vm5825, %v5805, %v5845
        %v5866 = vsel %vm5826, %v5806, %v5846
        %v5867 = vsel %vm5827, %v5807, %v5847
        %5868 = vrot.lane.b32.xlu0 %v491, 115
        %v5869 = vpop.permute.xlu0 %5868
        %5870 = vrot.lane.b32.xlu0 %v492, 115
        %v5871 = vpop.permute.xlu0 %5870
        %5872 = vrot.lane.b32.xlu0 %v493, 115
        %v5873 = vpop.permute.xlu0 %5872
        %vm5874 = vcmask 941056
        %v5875 = vsel %vm5874, %v5869, %v5871
        %v5876 = vsel %vm5874, %v5871, %v5873
        %v5881 = vmul.f32 %v5848, %v5875
        %v5882 = vmul.f32 %v5849, %v5871
        %v5883 = vmul.f32 %v5850, %v5871
        %v5884 = vmul.f32 %v5851, %v5871
        %v5885 = vmul.f32 %v5852, %v5871
        %v5886 = vmul.f32 %v5853, %v5871
        %v5887 = vmul.f32 %v5854, %v5871
        %v5888 = vmul.f32 %v5855, %v5871
        %v5889 = vmul.f32 %v5856, %v5876
        %v5890 = vmul.f32 %v5857, %v5873
        %v5891 = vmul.f32 %v5858, %v5875
        %v5892 = vmul.f32 %v5859, %v5871
        %v5893 = vmul.f32 %v5860, %v5871
        %v5894 = vmul.f32 %v5861, %v5871
        %v5895 = vmul.f32 %v5862, %v5871
        %v5896 = vmul.f32 %v5863, %v5871
        %v5897 = vmul.f32 %v5864, %v5871
        %v5898 = vmul.f32 %v5865, %v5871
        %v5899 = vmul.f32 %v5866, %v5876
        %v5900 = vmul.f32 %v5867, %v5873
        %s5901 = scalar_lea.vmem [#allocation8], 240
        %v5902 = vld [vmem:[%s5901] sm:$0xff]
        %v5903 = vld [vmem:[%s5901 + $0x8] sm:$0xff]
        %s5904 = scalar_lea.vmem [#allocation8], 256
        %v5905 = vld [vmem:[%s5904] sm:$0xff]
        %v5906 = vld [vmem:[%s5904 + $0x8] sm:$0xff]
        %5927 = vrot.lane.b32.xlu0 %v5881, 123
        %v5928 = vpop.permute.xlu0 %5927
        %5929 = vrot.lane.b32.xlu0 %v5882, 123
        %v5930 = vpop.permute.xlu0 %5929
        %5931 = vrot.lane.b32.xlu0 %v5883, 123
        %v5932 = vpop.permute.xlu0 %5931
        %5933 = vrot.lane.b32.xlu0 %v5884, 123
        %v5934 = vpop.permute.xlu0 %5933
        %5935 = vrot.lane.b32.xlu0 %v5885, 123
        %v5936 = vpop.permute.xlu0 %5935
        %5937 = vrot.lane.b32.xlu0 %v5886, 123
        %v5938 = vpop.permute.xlu0 %5937
        %5939 = vrot.lane.b32.xlu0 %v5887, 123
        %v5940 = vpop.permute.xlu0 %5939
        %5941 = vrot.lane.b32.xlu0 %v5888, 123
        %v5942 = vpop.permute.xlu0 %5941
        %5943 = vrot.lane.b32.xlu0 %v5889, 123
        %v5944 = vpop.permute.xlu0 %5943
        %5945 = vrot.lane.b32.xlu0 %v5890, 123
        %v5946 = vpop.permute.xlu0 %5945
        %5947 = vrot.lane.b32.xlu0 %v5891, 123
        %v5948 = vpop.permute.xlu0 %5947
        %5949 = vrot.lane.b32.xlu0 %v5892, 123
        %v5950 = vpop.permute.xlu0 %5949
        %5951 = vrot.lane.b32.xlu0 %v5893, 123
        %v5952 = vpop.permute.xlu0 %5951
        %5953 = vrot.lane.b32.xlu0 %v5894, 123
        %v5954 = vpop.permute.xlu0 %5953
        %5955 = vrot.lane.b32.xlu0 %v5895, 123
        %v5956 = vpop.permute.xlu0 %5955
        %5957 = vrot.lane.b32.xlu0 %v5896, 123
        %v5958 = vpop.permute.xlu0 %5957
        %5959 = vrot.lane.b32.xlu0 %v5897, 123
        %v5960 = vpop.permute.xlu0 %5959
        %5961 = vrot.lane.b32.xlu0 %v5898, 123
        %v5962 = vpop.permute.xlu0 %5961
        %5963 = vrot.lane.b32.xlu0 %v5899, 123
        %v5964 = vpop.permute.xlu0 %5963
        %5965 = vrot.lane.b32.xlu0 %v5900, 123
        %v5966 = vpop.permute.xlu0 %5965
        %v5967 = vsel %vm2663, %v5928, %v5930
        %v5968 = vsel %vm2663, %v5930, %v5932
        %v5969 = vsel %vm2663, %v5932, %v5934
        %v5970 = vsel %vm2663, %v5934, %v5936
        %v5971 = vsel %vm2663, %v5936, %v5938
        %v5972 = vsel %vm2663, %v5938, %v5940
        %v5973 = vsel %vm2663, %v5940, %v5942
        %v5974 = vsel %vm2663, %v5942, %v5944
        %v5975 = vsel %vm2663, %v5944, %v5946
        %v5976 = vsel %vm2663, %v5948, %v5950
        %v5977 = vsel %vm2663, %v5950, %v5952
        %v5978 = vsel %vm2663, %v5952, %v5954
        %v5979 = vsel %vm2663, %v5954, %v5956
        %v5980 = vsel %vm2663, %v5956, %v5958
        %v5981 = vsel %vm2663, %v5958, %v5960
        %v5982 = vsel %vm2663, %v5960, %v5962
        %v5983 = vsel %vm2663, %v5962, %v5964
        %v5984 = vsel %vm2663, %v5964, %v5966
        %v6004 = vsel %vm618, %v5905, 0
        %v6007 = vsel %vm618, %v5906, 0
        %6009 = vmatpush.msra.mxu0 0.0
        %6010 = vmatpush.msra.mxu0 0.0
        %6011 = vmatpush.msra.mxu0 0.0
        %6012 = vmatpush.msra.mxu0 0.0
        %6013 = vmatpush.msra.mxu0 0.0
        %6014 = vmatpush.msra.mxu0 0.0
        %6015 = vmatpush.msra.mxu0 0.0
        %6016 = vmatpush.msra.mxu0 0.0
        %6017 = vmatpush.msra.mxu0 0.0
        %6018 = vmatpush.msra.mxu0 0.0
        %6019 = vmatpush.msra.mxu0 0.0
        %6020 = vmatpush.msra.mxu0 0.0
        %6021 = vmatpush.msra.mxu0 0.0
        %6022 = vmatpush.msra.mxu0 0.0
        %6023 = vmatpush.msra.mxu0 %v5976
        %6024 = vmatpush.msra.mxu0 %v5967
        %6025 = vmatmul.f32.gmra.mxu0 %v6004
        %v6026 = vpop.f32.mrf.mxu0
        %v6027 = vadd.f32 0.0, %v6026
        %6028 = vmatmul.f32.gmra.mxu0 %v6007
        %v6029 = vpop.f32.mrf.mxu0
        %v6030 = vadd.f32 0.0, %v6029
        %6031 = vdwg.mxu0
        %6032 = vmatpush.msra.mxu0 0.0
        %6033 = vmatpush.msra.mxu0 0.0
        %6034 = vmatpush.msra.mxu0 0.0
        %6035 = vmatpush.msra.mxu0 0.0
        %6036 = vmatpush.msra.mxu0 0.0
        %6037 = vmatpush.msra.mxu0 0.0
        %6038 = vmatpush.msra.mxu0 0.0
        %6039 = vmatpush.msra.mxu0 0.0
        %6040 = vmatpush.msra.mxu0 0.0
        %6041 = vmatpush.msra.mxu0 0.0
        %6042 = vmatpush.msra.mxu0 0.0
        %6043 = vmatpush.msra.mxu0 0.0
        %6044 = vmatpush.msra.mxu0 0.0
        %6045 = vmatpush.msra.mxu0 0.0
        %6046 = vmatpush.msra.mxu0 %v5977
        %6047 = vmatpush.msra.mxu0 %v5968
        %6048 = vmatmul.f32.gmra.mxu0 %v6004
        %v6049 = vpop.f32.mrf.mxu0
        %v6050 = vadd.f32 0.0, %v6049
        %6051 = vmatmul.f32.gmra.mxu0 %v6007
        %v6052 = vpop.f32.mrf.mxu0
        %v6053 = vadd.f32 0.0, %v6052
        %6054 = vdwg.mxu0
        %6055 = vmatpush.msra.mxu0 0.0
        %6056 = vmatpush.msra.mxu0 0.0
        %6057 = vmatpush.msra.mxu0 0.0
        %6058 = vmatpush.msra.mxu0 0.0
        %6059 = vmatpush.msra.mxu0 0.0
        %6060 = vmatpush.msra.mxu0 0.0
        %6061 = vmatpush.msra.mxu0 0.0
        %6062 = vmatpush.msra.mxu0 0.0
        %6063 = vmatpush.msra.mxu0 0.0
        %6064 = vmatpush.msra.mxu0 0.0
        %6065 = vmatpush.msra.mxu0 0.0
        %6066 = vmatpush.msra.mxu0 0.0
        %6067 = vmatpush.msra.mxu0 0.0
        %6068 = vmatpush.msra.mxu0 0.0
        %6069 = vmatpush.msra.mxu0 %v5978
        %6070 = vmatpush.msra.mxu0 %v5969
        %6071 = vmatmul.f32.gmra.mxu0 %v6004
        %v6072 = vpop.f32.mrf.mxu0
        %v6073 = vadd.f32 0.0, %v6072
        %6074 = vmatmul.f32.gmra.mxu0 %v6007
        %v6075 = vpop.f32.mrf.mxu0
        %v6076 = vadd.f32 0.0, %v6075
        %6077 = vdwg.mxu0
        %6078 = vmatpush.msra.mxu0 0.0
        %6079 = vmatpush.msra.mxu0 0.0
        %6080 = vmatpush.msra.mxu0 0.0
        %6081 = vmatpush.msra.mxu0 0.0
        %6082 = vmatpush.msra.mxu0 0.0
        %6083 = vmatpush.msra.mxu0 0.0
        %6084 = vmatpush.msra.mxu0 0.0
        %6085 = vmatpush.msra.mxu0 0.0
        %6086 = vmatpush.msra.mxu0 0.0
        %6087 = vmatpush.msra.mxu0 0.0
        %6088 = vmatpush.msra.mxu0 0.0
        %6089 = vmatpush.msra.mxu0 0.0
        %6090 = vmatpush.msra.mxu0 0.0
        %6091 = vmatpush.msra.mxu0 0.0
        %6092 = vmatpush.msra.mxu0 %v5979
        %6093 = vmatpush.msra.mxu0 %v5970
        %6094 = vmatmul.f32.gmra.mxu0 %v6004
        %v6095 = vpop.f32.mrf.mxu0
        %v6096 = vadd.f32 0.0, %v6095
        %6097 = vmatmul.f32.gmra.mxu0 %v6007
        %v6098 = vpop.f32.mrf.mxu0
        %v6099 = vadd.f32 0.0, %v6098
        %6100 = vdwg.mxu0
        %6101 = vmatpush.msra.mxu0 0.0
        %6102 = vmatpush.msra.mxu0 0.0
        %6103 = vmatpush.msra.mxu0 0.0
        %6104 = vmatpush.msra.mxu0 0.0
        %6105 = vmatpush.msra.mxu0 0.0
        %6106 = vmatpush.msra.mxu0 0.0
        %6107 = vmatpush.msra.mxu0 0.0
        %6108 = vmatpush.msra.mxu0 0.0
        %6109 = vmatpush.msra.mxu0 0.0
        %6110 = vmatpush.msra.mxu0 0.0
        %6111 = vmatpush.msra.mxu0 0.0
        %6112 = vmatpush.msra.mxu0 0.0
        %6113 = vmatpush.msra.mxu0 0.0
        %6114 = vmatpush.msra.mxu0 0.0
        %6115 = vmatpush.msra.mxu0 %v5980
        %6116 = vmatpush.msra.mxu0 %v5971
        %6117 = vmatmul.f32.gmra.mxu0 %v6004
        %v6118 = vpop.f32.mrf.mxu0
        %v6119 = vadd.f32 0.0, %v6118
        %6120 = vmatmul.f32.gmra.mxu0 %v6007
        %v6121 = vpop.f32.mrf.mxu0
        %v6122 = vadd.f32 0.0, %v6121
        %6123 = vdwg.mxu0
        %6124 = vmatpush.msra.mxu0 0.0
        %6125 = vmatpush.msra.mxu0 0.0
        %6126 = vmatpush.msra.mxu0 0.0
        %6127 = vmatpush.msra.mxu0 0.0
        %6128 = vmatpush.msra.mxu0 0.0
        %6129 = vmatpush.msra.mxu0 0.0
        %6130 = vmatpush.msra.mxu0 0.0
        %6131 = vmatpush.msra.mxu0 0.0
        %6132 = vmatpush.msra.mxu0 0.0
        %6133 = vmatpush.msra.mxu0 0.0
        %6134 = vmatpush.msra.mxu0 0.0
        %6135 = vmatpush.msra.mxu0 0.0
        %6136 = vmatpush.msra.mxu0 0.0
        %6137 = vmatpush.msra.mxu0 0.0
        %6138 = vmatpush.msra.mxu0 %v5981
        %6139 = vmatpush.msra.mxu0 %v5972
        %6140 = vmatmul.f32.gmra.mxu0 %v6004
        %v6141 = vpop.f32.mrf.mxu0
        %v6142 = vadd.f32 0.0, %v6141
        %6143 = vmatmul.f32.gmra.mxu0 %v6007
        %v6144 = vpop.f32.mrf.mxu0
        %v6145 = vadd.f32 0.0, %v6144
        %6146 = vdwg.mxu0
        %6147 = vmatpush.msra.mxu0 0.0
        %6148 = vmatpush.msra.mxu0 0.0
        %6149 = vmatpush.msra.mxu0 0.0
        %6150 = vmatpush.msra.mxu0 0.0
        %6151 = vmatpush.msra.mxu0 0.0
        %6152 = vmatpush.msra.mxu0 0.0
        %6153 = vmatpush.msra.mxu0 0.0
        %6154 = vmatpush.msra.mxu0 0.0
        %6155 = vmatpush.msra.mxu0 0.0
        %6156 = vmatpush.msra.mxu0 0.0
        %6157 = vmatpush.msra.mxu0 0.0
        %6158 = vmatpush.msra.mxu0 0.0
        %6159 = vmatpush.msra.mxu0 0.0
        %6160 = vmatpush.msra.mxu0 0.0
        %6161 = vmatpush.msra.mxu0 %v5982
        %6162 = vmatpush.msra.mxu0 %v5973
        %6163 = vmatmul.f32.gmra.mxu0 %v6004
        %v6164 = vpop.f32.mrf.mxu0
        %v6165 = vadd.f32 0.0, %v6164
        %6166 = vmatmul.f32.gmra.mxu0 %v6007
        %v6167 = vpop.f32.mrf.mxu0
        %v6168 = vadd.f32 0.0, %v6167
        %6169 = vdwg.mxu0
        %6170 = vmatpush.msra.mxu0 0.0
        %6171 = vmatpush.msra.mxu0 0.0
        %6172 = vmatpush.msra.mxu0 0.0
        %6173 = vmatpush.msra.mxu0 0.0
        %6174 = vmatpush.msra.mxu0 0.0
        %6175 = vmatpush.msra.mxu0 0.0
        %6176 = vmatpush.msra.mxu0 0.0
        %6177 = vmatpush.msra.mxu0 0.0
        %6178 = vmatpush.msra.mxu0 0.0
        %6179 = vmatpush.msra.mxu0 0.0
        %6180 = vmatpush.msra.mxu0 0.0
        %6181 = vmatpush.msra.mxu0 0.0
        %6182 = vmatpush.msra.mxu0 0.0
        %6183 = vmatpush.msra.mxu0 0.0
        %6184 = vmatpush.msra.mxu0 %v5983
        %6185 = vmatpush.msra.mxu0 %v5974
        %6186 = vmatmul.f32.gmra.mxu0 %v6004
        %v6187 = vpop.f32.mrf.mxu0
        %v6188 = vadd.f32 0.0, %v6187
        %6189 = vmatmul.f32.gmra.mxu0 %v6007
        %v6190 = vpop.f32.mrf.mxu0
        %v6191 = vadd.f32 0.0, %v6190
        %6192 = vdwg.mxu0
        %6193 = vmatpush.msra.mxu0 0.0
        %6194 = vmatpush.msra.mxu0 0.0
        %6195 = vmatpush.msra.mxu0 0.0
        %6196 = vmatpush.msra.mxu0 0.0
        %6197 = vmatpush.msra.mxu0 0.0
        %6198 = vmatpush.msra.mxu0 0.0
        %6199 = vmatpush.msra.mxu0 0.0
        %6200 = vmatpush.msra.mxu0 0.0
        %6201 = vmatpush.msra.mxu0 0.0
        %6202 = vmatpush.msra.mxu0 0.0
        %6203 = vmatpush.msra.mxu0 0.0
        %6204 = vmatpush.msra.mxu0 0.0
        %6205 = vmatpush.msra.mxu0 0.0
        %6206 = vmatpush.msra.mxu0 0.0
        %6207 = vmatpush.msra.mxu0 %v5984
        %6208 = vmatpush.msra.mxu0 %v5975
        %6209 = vmatmul.f32.gmra.mxu0 %v6004
        %v6210 = vpop.f32.mrf.mxu0
        %v6211 = vadd.f32 0.0, %v6210
        %6212 = vmatmul.f32.gmra.mxu0 %v6007
        %v6213 = vpop.f32.mrf.mxu0
        %v6214 = vadd.f32 0.0, %v6213
        %6215 = vdwg.mxu0
        %v6217 = vsel %vm618, %v5902, 0
        %v6220 = vsel %vm618, %v5903, 0
        %6222 = vmatpush.msra.mxu0 0.0
        %6223 = vmatpush.msra.mxu0 0.0
        %6224 = vmatpush.msra.mxu0 0.0
        %6225 = vmatpush.msra.mxu0 0.0
        %6226 = vmatpush.msra.mxu0 0.0
        %6227 = vmatpush.msra.mxu0 0.0
        %6228 = vmatpush.msra.mxu0 0.0
        %6229 = vmatpush.msra.mxu0 0.0
        %6230 = vmatpush.msra.mxu0 0.0
        %6231 = vmatpush.msra.mxu0 0.0
        %6232 = vmatpush.msra.mxu0 0.0
        %6233 = vmatpush.msra.mxu0 0.0
        %6234 = vmatpush.msra.mxu0 0.0
        %6235 = vmatpush.msra.mxu0 0.0
        %6236 = vmatpush.msra.mxu0 %v5891
        %6237 = vmatpush.msra.mxu0 %v5881
        %6238 = vmatmul.f32.gmra.mxu0 %v6217
        %v6239 = vpop.f32.mrf.mxu0
        %v6240 = vadd.f32 %v6027, %v6239
        %6241 = vmatmul.f32.gmra.mxu0 %v6220
        %v6242 = vpop.f32.mrf.mxu0
        %v6243 = vadd.f32 %v6030, %v6242
        %6244 = vdwg.mxu0
        %6245 = vmatpush.msra.mxu0 0.0
        %6246 = vmatpush.msra.mxu0 0.0
        %6247 = vmatpush.msra.mxu0 0.0
        %6248 = vmatpush.msra.mxu0 0.0
        %6249 = vmatpush.msra.mxu0 0.0
        %6250 = vmatpush.msra.mxu0 0.0
        %6251 = vmatpush.msra.mxu0 0.0
        %6252 = vmatpush.msra.mxu0 0.0
        %6253 = vmatpush.msra.mxu0 0.0
        %6254 = vmatpush.msra.mxu0 0.0
        %6255 = vmatpush.msra.mxu0 0.0
        %6256 = vmatpush.msra.mxu0 0.0
        %6257 = vmatpush.msra.mxu0 0.0
        %6258 = vmatpush.msra.mxu0 0.0
        %6259 = vmatpush.msra.mxu0 %v5892
        %6260 = vmatpush.msra.mxu0 %v5882
        %6261 = vmatmul.f32.gmra.mxu0 %v6217
        %v6262 = vpop.f32.mrf.mxu0
        %v6263 = vadd.f32 %v6050, %v6262
        %6264 = vmatmul.f32.gmra.mxu0 %v6220
        %v6265 = vpop.f32.mrf.mxu0
        %v6266 = vadd.f32 %v6053, %v6265
        %6267 = vdwg.mxu0
        %6268 = vmatpush.msra.mxu0 0.0
        %6269 = vmatpush.msra.mxu0 0.0
        %6270 = vmatpush.msra.mxu0 0.0
        %6271 = vmatpush.msra.mxu0 0.0
        %6272 = vmatpush.msra.mxu0 0.0
        %6273 = vmatpush.msra.mxu0 0.0
        %6274 = vmatpush.msra.mxu0 0.0
        %6275 = vmatpush.msra.mxu0 0.0
        %6276 = vmatpush.msra.mxu0 0.0
        %6277 = vmatpush.msra.mxu0 0.0
        %6278 = vmatpush.msra.mxu0 0.0
        %6279 = vmatpush.msra.mxu0 0.0
        %6280 = vmatpush.msra.mxu0 0.0
        %6281 = vmatpush.msra.mxu0 0.0
        %6282 = vmatpush.msra.mxu0 %v5893
        %6283 = vmatpush.msra.mxu0 %v5883
        %6284 = vmatmul.f32.gmra.mxu0 %v6217
        %v6285 = vpop.f32.mrf.mxu0
        %v6286 = vadd.f32 %v6073, %v6285
        %6287 = vmatmul.f32.gmra.mxu0 %v6220
        %v6288 = vpop.f32.mrf.mxu0
        %v6289 = vadd.f32 %v6076, %v6288
        %6290 = vdwg.mxu0
        %6291 = vmatpush.msra.mxu0 0.0
        %6292 = vmatpush.msra.mxu0 0.0
        %6293 = vmatpush.msra.mxu0 0.0
        %6294 = vmatpush.msra.mxu0 0.0
        %6295 = vmatpush.msra.mxu0 0.0
        %6296 = vmatpush.msra.mxu0 0.0
        %6297 = vmatpush.msra.mxu0 0.0
        %6298 = vmatpush.msra.mxu0 0.0
        %6299 = vmatpush.msra.mxu0 0.0
        %6300 = vmatpush.msra.mxu0 0.0
        %6301 = vmatpush.msra.mxu0 0.0
        %6302 = vmatpush.msra.mxu0 0.0
        %6303 = vmatpush.msra.mxu0 0.0
        %6304 = vmatpush.msra.mxu0 0.0
        %6305 = vmatpush.msra.mxu0 %v5894
        %6306 = vmatpush.msra.mxu0 %v5884
        %6307 = vmatmul.f32.gmra.mxu0 %v6217
        %v6308 = vpop.f32.mrf.mxu0
        %v6309 = vadd.f32 %v6096, %v6308
        %6310 = vmatmul.f32.gmra.mxu0 %v6220
        %v6311 = vpop.f32.mrf.mxu0
        %v6312 = vadd.f32 %v6099, %v6311
        %6313 = vdwg.mxu0
        %6314 = vmatpush.msra.mxu0 0.0
        %6315 = vmatpush.msra.mxu0 0.0
        %6316 = vmatpush.msra.mxu0 0.0
        %6317 = vmatpush.msra.mxu0 0.0
        %6318 = vmatpush.msra.mxu0 0.0
        %6319 = vmatpush.msra.mxu0 0.0
        %6320 = vmatpush.msra.mxu0 0.0
        %6321 = vmatpush.msra.mxu0 0.0
        %6322 = vmatpush.msra.mxu0 0.0
        %6323 = vmatpush.msra.mxu0 0.0
        %6324 = vmatpush.msra.mxu0 0.0
        %6325 = vmatpush.msra.mxu0 0.0
        %6326 = vmatpush.msra.mxu0 0.0
        %6327 = vmatpush.msra.mxu0 0.0
        %6328 = vmatpush.msra.mxu0 %v5895
        %6329 = vmatpush.msra.mxu0 %v5885
        %6330 = vmatmul.f32.gmra.mxu0 %v6217
        %v6331 = vpop.f32.mrf.mxu0
        %v6332 = vadd.f32 %v6119, %v6331
        %6333 = vmatmul.f32.gmra.mxu0 %v6220
        %v6334 = vpop.f32.mrf.mxu0
        %v6335 = vadd.f32 %v6122, %v6334
        %6336 = vdwg.mxu0
        %6337 = vmatpush.msra.mxu0 0.0
        %6338 = vmatpush.msra.mxu0 0.0
        %6339 = vmatpush.msra.mxu0 0.0
        %6340 = vmatpush.msra.mxu0 0.0
        %6341 = vmatpush.msra.mxu0 0.0
        %6342 = vmatpush.msra.mxu0 0.0
        %6343 = vmatpush.msra.mxu0 0.0
        %6344 = vmatpush.msra.mxu0 0.0
        %6345 = vmatpush.msra.mxu0 0.0
        %6346 = vmatpush.msra.mxu0 0.0
        %6347 = vmatpush.msra.mxu0 0.0
        %6348 = vmatpush.msra.mxu0 0.0
        %6349 = vmatpush.msra.mxu0 0.0
        %6350 = vmatpush.msra.mxu0 0.0
        %6351 = vmatpush.msra.mxu0 %v5896
        %6352 = vmatpush.msra.mxu0 %v5886
        %6353 = vmatmul.f32.gmra.mxu0 %v6217
        %v6354 = vpop.f32.mrf.mxu0
        %v6355 = vadd.f32 %v6142, %v6354
        %6356 = vmatmul.f32.gmra.mxu0 %v6220
        %v6357 = vpop.f32.mrf.mxu0
        %v6358 = vadd.f32 %v6145, %v6357
        %6359 = vdwg.mxu0
        %6360 = vmatpush.msra.mxu0 0.0
        %6361 = vmatpush.msra.mxu0 0.0
        %6362 = vmatpush.msra.mxu0 0.0
        %6363 = vmatpush.msra.mxu0 0.0
        %6364 = vmatpush.msra.mxu0 0.0
        %6365 = vmatpush.msra.mxu0 0.0
        %6366 = vmatpush.msra.mxu0 0.0
        %6367 = vmatpush.msra.mxu0 0.0
        %6368 = vmatpush.msra.mxu0 0.0
        %6369 = vmatpush.msra.mxu0 0.0
        %6370 = vmatpush.msra.mxu0 0.0
        %6371 = vmatpush.msra.mxu0 0.0
        %6372 = vmatpush.msra.mxu0 0.0
        %6373 = vmatpush.msra.mxu0 0.0
        %6374 = vmatpush.msra.mxu0 %v5897
        %6375 = vmatpush.msra.mxu0 %v5887
        %6376 = vmatmul.f32.gmra.mxu0 %v6217
        %v6377 = vpop.f32.mrf.mxu0
        %v6378 = vadd.f32 %v6165, %v6377
        %6379 = vmatmul.f32.gmra.mxu0 %v6220
        %v6380 = vpop.f32.mrf.mxu0
        %v6381 = vadd.f32 %v6168, %v6380
        %6382 = vdwg.mxu0
        %6383 = vmatpush.msra.mxu0 0.0
        %6384 = vmatpush.msra.mxu0 0.0
        %6385 = vmatpush.msra.mxu0 0.0
        %6386 = vmatpush.msra.mxu0 0.0
        %6387 = vmatpush.msra.mxu0 0.0
        %6388 = vmatpush.msra.mxu0 0.0
        %6389 = vmatpush.msra.mxu0 0.0
        %6390 = vmatpush.msra.mxu0 0.0
        %6391 = vmatpush.msra.mxu0 0.0
        %6392 = vmatpush.msra.mxu0 0.0
        %6393 = vmatpush.msra.mxu0 0.0
        %6394 = vmatpush.msra.mxu0 0.0
        %6395 = vmatpush.msra.mxu0 0.0
        %6396 = vmatpush.msra.mxu0 0.0
        %6397 = vmatpush.msra.mxu0 %v5898
        %6398 = vmatpush.msra.mxu0 %v5888
        %6399 = vmatmul.f32.gmra.mxu0 %v6217
        %v6400 = vpop.f32.mrf.mxu0
        %v6401 = vadd.f32 %v6188, %v6400
        %6402 = vmatmul.f32.gmra.mxu0 %v6220
        %v6403 = vpop.f32.mrf.mxu0
        %v6404 = vadd.f32 %v6191, %v6403
        %6405 = vdwg.mxu0
        %6406 = vmatpush.msra.mxu0 0.0
        %6407 = vmatpush.msra.mxu0 0.0
        %6408 = vmatpush.msra.mxu0 0.0
        %6409 = vmatpush.msra.mxu0 0.0
        %6410 = vmatpush.msra.mxu0 0.0
        %6411 = vmatpush.msra.mxu0 0.0
        %6412 = vmatpush.msra.mxu0 0.0
        %6413 = vmatpush.msra.mxu0 0.0
        %6414 = vmatpush.msra.mxu0 0.0
        %6415 = vmatpush.msra.mxu0 0.0
        %6416 = vmatpush.msra.mxu0 0.0
        %6417 = vmatpush.msra.mxu0 0.0
        %6418 = vmatpush.msra.mxu0 0.0
        %6419 = vmatpush.msra.mxu0 0.0
        %6420 = vmatpush.msra.mxu0 %v5899
        %6421 = vmatpush.msra.mxu0 %v5889
        %6422 = vmatmul.f32.gmra.mxu0 %v6217
        %v6423 = vpop.f32.mrf.mxu0
        %v6424 = vadd.f32 %v6211, %v6423
        %6425 = vmatmul.f32.gmra.mxu0 %v6220
        %v6426 = vpop.f32.mrf.mxu0
        %v6427 = vadd.f32 %v6214, %v6426
        %6428 = vdwg.mxu0
        %s6429 = scalar_lea.vmem [#allocation8], 272
        %v6430 = vld [vmem:[%s6429] sm:$0xff]
        %v6431 = vld [vmem:[%s6429 + $0x8] sm:$0xff]
        %6432 = vrot.lane.b32.xlu0 %v5881, 118
        %v6433 = vpop.permute.xlu0 %6432
        %6434 = vrot.lane.b32.xlu0 %v5882, 118
        %v6435 = vpop.permute.xlu0 %6434
        %6436 = vrot.lane.b32.xlu0 %v5883, 118
        %v6437 = vpop.permute.xlu0 %6436
        %6438 = vrot.lane.b32.xlu0 %v5884, 118
        %v6439 = vpop.permute.xlu0 %6438
        %6440 = vrot.lane.b32.xlu0 %v5885, 118
        %v6441 = vpop.permute.xlu0 %6440
        %6442 = vrot.lane.b32.xlu0 %v5886, 118
        %v6443 = vpop.permute.xlu0 %6442
        %6444 = vrot.lane.b32.xlu0 %v5887, 118
        %v6445 = vpop.permute.xlu0 %6444
        %6446 = vrot.lane.b32.xlu0 %v5888, 118
        %v6447 = vpop.permute.xlu0 %6446
        %6448 = vrot.lane.b32.xlu0 %v5889, 118
        %v6449 = vpop.permute.xlu0 %6448
        %6450 = vrot.lane.b32.xlu0 %v5890, 118
        %v6451 = vpop.permute.xlu0 %6450
        %6452 = vrot.lane.b32.xlu0 %v5891, 118
        %v6453 = vpop.permute.xlu0 %6452
        %6454 = vrot.lane.b32.xlu0 %v5892, 118
        %v6455 = vpop.permute.xlu0 %6454
        %6456 = vrot.lane.b32.xlu0 %v5893, 118
        %v6457 = vpop.permute.xlu0 %6456
        %6458 = vrot.lane.b32.xlu0 %v5894, 118
        %v6459 = vpop.permute.xlu0 %6458
        %6460 = vrot.lane.b32.xlu0 %v5895, 118
        %v6461 = vpop.permute.xlu0 %6460
        %6462 = vrot.lane.b32.xlu0 %v5896, 118
        %v6463 = vpop.permute.xlu0 %6462
        %6464 = vrot.lane.b32.xlu0 %v5897, 118
        %v6465 = vpop.permute.xlu0 %6464
        %6466 = vrot.lane.b32.xlu0 %v5898, 118
        %v6467 = vpop.permute.xlu0 %6466
        %6468 = vrot.lane.b32.xlu0 %v5899, 118
        %v6469 = vpop.permute.xlu0 %6468
        %6470 = vrot.lane.b32.xlu0 %v5900, 118
        %v6471 = vpop.permute.xlu0 %6470
        %v6472 = vsel %vm3217, %v6433, %v6435
        %v6473 = vsel %vm3217, %v6435, %v6437
        %v6474 = vsel %vm3217, %v6437, %v6439
        %v6475 = vsel %vm3217, %v6439, %v6441
        %v6476 = vsel %vm3217, %v6441, %v6443
        %v6477 = vsel %vm3217, %v6443, %v6445
        %v6478 = vsel %vm3217, %v6445, %v6447
        %v6479 = vsel %vm3217, %v6447, %v6449
        %v6480 = vsel %vm3217, %v6449, %v6451
        %v6481 = vsel %vm3217, %v6453, %v6455
        %v6482 = vsel %vm3217, %v6455, %v6457
        %v6483 = vsel %vm3217, %v6457, %v6459
        %v6484 = vsel %vm3217, %v6459, %v6461
        %v6485 = vsel %vm3217, %v6461, %v6463
        %v6486 = vsel %vm3217, %v6463, %v6465
        %v6487 = vsel %vm3217, %v6465, %v6467
        %v6488 = vsel %vm3217, %v6467, %v6469
        %v6489 = vsel %vm3217, %v6469, %v6471
        %v6509 = vsel %vm618, %v6430, 0
        %v6512 = vsel %vm618, %v6431, 0
        %6514 = vmatpush.msra.mxu0 0.0
        %6515 = vmatpush.msra.mxu0 0.0
        %6516 = vmatpush.msra.mxu0 0.0
        %6517 = vmatpush.msra.mxu0 0.0
        %6518 = vmatpush.msra.mxu0 0.0
        %6519 = vmatpush.msra.mxu0 0.0
        %6520 = vmatpush.msra.mxu0 0.0
        %6521 = vmatpush.msra.mxu0 0.0
        %6522 = vmatpush.msra.mxu0 0.0
        %6523 = vmatpush.msra.mxu0 0.0
        %6524 = vmatpush.msra.mxu0 0.0
        %6525 = vmatpush.msra.mxu0 0.0
        %6526 = vmatpush.msra.mxu0 0.0
        %6527 = vmatpush.msra.mxu0 0.0
        %6528 = vmatpush.msra.mxu0 %v6481
        %6529 = vmatpush.msra.mxu0 %v6472
        %6530 = vmatmul.f32.gmra.mxu0 %v6509
        %v6531 = vpop.f32.mrf.mxu0
        %v6532 = vadd.f32 0.0, %v6531
        %6533 = vmatmul.f32.gmra.mxu0 %v6512
        %v6534 = vpop.f32.mrf.mxu0
        %v6535 = vadd.f32 0.0, %v6534
        %6536 = vdwg.mxu0
        %6537 = vmatpush.msra.mxu0 0.0
        %6538 = vmatpush.msra.mxu0 0.0
        %6539 = vmatpush.msra.mxu0 0.0
        %6540 = vmatpush.msra.mxu0 0.0
        %6541 = vmatpush.msra.mxu0 0.0
        %6542 = vmatpush.msra.mxu0 0.0
        %6543 = vmatpush.msra.mxu0 0.0
        %6544 = vmatpush.msra.mxu0 0.0
        %6545 = vmatpush.msra.mxu0 0.0
        %6546 = vmatpush.msra.mxu0 0.0
        %6547 = vmatpush.msra.mxu0 0.0
        %6548 = vmatpush.msra.mxu0 0.0
        %6549 = vmatpush.msra.mxu0 0.0
        %6550 = vmatpush.msra.mxu0 0.0
        %6551 = vmatpush.msra.mxu0 %v6482
        %6552 = vmatpush.msra.mxu0 %v6473
        %6553 = vmatmul.f32.gmra.mxu0 %v6509
        %v6554 = vpop.f32.mrf.mxu0
        %v6555 = vadd.f32 0.0, %v6554
        %6556 = vmatmul.f32.gmra.mxu0 %v6512
        %v6557 = vpop.f32.mrf.mxu0
        %v6558 = vadd.f32 0.0, %v6557
        %6559 = vdwg.mxu0
        %6560 = vmatpush.msra.mxu0 0.0
        %6561 = vmatpush.msra.mxu0 0.0
        %6562 = vmatpush.msra.mxu0 0.0
        %6563 = vmatpush.msra.mxu0 0.0
        %6564 = vmatpush.msra.mxu0 0.0
        %6565 = vmatpush.msra.mxu0 0.0
        %6566 = vmatpush.msra.mxu0 0.0
        %6567 = vmatpush.msra.mxu0 0.0
        %6568 = vmatpush.msra.mxu0 0.0
        %6569 = vmatpush.msra.mxu0 0.0
        %6570 = vmatpush.msra.mxu0 0.0
        %6571 = vmatpush.msra.mxu0 0.0
        %6572 = vmatpush.msra.mxu0 0.0
        %6573 = vmatpush.msra.mxu0 0.0
        %6574 = vmatpush.msra.mxu0 %v6483
        %6575 = vmatpush.msra.mxu0 %v6474
        %6576 = vmatmul.f32.gmra.mxu0 %v6509
        %v6577 = vpop.f32.mrf.mxu0
        %v6578 = vadd.f32 0.0, %v6577
        %6579 = vmatmul.f32.gmra.mxu0 %v6512
        %v6580 = vpop.f32.mrf.mxu0
        %v6581 = vadd.f32 0.0, %v6580
        %6582 = vdwg.mxu0
        %6583 = vmatpush.msra.mxu0 0.0
        %6584 = vmatpush.msra.mxu0 0.0
        %6585 = vmatpush.msra.mxu0 0.0
        %6586 = vmatpush.msra.mxu0 0.0
        %6587 = vmatpush.msra.mxu0 0.0
        %6588 = vmatpush.msra.mxu0 0.0
        %6589 = vmatpush.msra.mxu0 0.0
        %6590 = vmatpush.msra.mxu0 0.0
        %6591 = vmatpush.msra.mxu0 0.0
        %6592 = vmatpush.msra.mxu0 0.0
        %6593 = vmatpush.msra.mxu0 0.0
        %6594 = vmatpush.msra.mxu0 0.0
        %6595 = vmatpush.msra.mxu0 0.0
        %6596 = vmatpush.msra.mxu0 0.0
        %6597 = vmatpush.msra.mxu0 %v6484
        %6598 = vmatpush.msra.mxu0 %v6475
        %6599 = vmatmul.f32.gmra.mxu0 %v6509
        %v6600 = vpop.f32.mrf.mxu0
        %v6601 = vadd.f32 0.0, %v6600
        %6602 = vmatmul.f32.gmra.mxu0 %v6512
        %v6603 = vpop.f32.mrf.mxu0
        %v6604 = vadd.f32 0.0, %v6603
        %6605 = vdwg.mxu0
        %6606 = vmatpush.msra.mxu0 0.0
        %6607 = vmatpush.msra.mxu0 0.0
        %6608 = vmatpush.msra.mxu0 0.0
        %6609 = vmatpush.msra.mxu0 0.0
        %6610 = vmatpush.msra.mxu0 0.0
        %6611 = vmatpush.msra.mxu0 0.0
        %6612 = vmatpush.msra.mxu0 0.0
        %6613 = vmatpush.msra.mxu0 0.0
        %6614 = vmatpush.msra.mxu0 0.0
        %6615 = vmatpush.msra.mxu0 0.0
        %6616 = vmatpush.msra.mxu0 0.0
        %6617 = vmatpush.msra.mxu0 0.0
        %6618 = vmatpush.msra.mxu0 0.0
        %6619 = vmatpush.msra.mxu0 0.0
        %6620 = vmatpush.msra.mxu0 %v6485
        %6621 = vmatpush.msra.mxu0 %v6476
        %6622 = vmatmul.f32.gmra.mxu0 %v6509
        %v6623 = vpop.f32.mrf.mxu0
        %v6624 = vadd.f32 0.0, %v6623
        %6625 = vmatmul.f32.gmra.mxu0 %v6512
        %v6626 = vpop.f32.mrf.mxu0
        %v6627 = vadd.f32 0.0, %v6626
        %6628 = vdwg.mxu0
        %6629 = vmatpush.msra.mxu0 0.0
        %6630 = vmatpush.msra.mxu0 0.0
        %6631 = vmatpush.msra.mxu0 0.0
        %6632 = vmatpush.msra.mxu0 0.0
        %6633 = vmatpush.msra.mxu0 0.0
        %6634 = vmatpush.msra.mxu0 0.0
        %6635 = vmatpush.msra.mxu0 0.0
        %6636 = vmatpush.msra.mxu0 0.0
        %6637 = vmatpush.msra.mxu0 0.0
        %6638 = vmatpush.msra.mxu0 0.0
        %6639 = vmatpush.msra.mxu0 0.0
        %6640 = vmatpush.msra.mxu0 0.0
        %6641 = vmatpush.msra.mxu0 0.0
        %6642 = vmatpush.msra.mxu0 0.0
        %6643 = vmatpush.msra.mxu0 %v6486
        %6644 = vmatpush.msra.mxu0 %v6477
        %6645 = vmatmul.f32.gmra.mxu0 %v6509
        %v6646 = vpop.f32.mrf.mxu0
        %v6647 = vadd.f32 0.0, %v6646
        %6648 = vmatmul.f32.gmra.mxu0 %v6512
        %v6649 = vpop.f32.mrf.mxu0
        %v6650 = vadd.f32 0.0, %v6649
        %6651 = vdwg.mxu0
        %6652 = vmatpush.msra.mxu0 0.0
        %6653 = vmatpush.msra.mxu0 0.0
        %6654 = vmatpush.msra.mxu0 0.0
        %6655 = vmatpush.msra.mxu0 0.0
        %6656 = vmatpush.msra.mxu0 0.0
        %6657 = vmatpush.msra.mxu0 0.0
        %6658 = vmatpush.msra.mxu0 0.0
        %6659 = vmatpush.msra.mxu0 0.0
        %6660 = vmatpush.msra.mxu0 0.0
        %6661 = vmatpush.msra.mxu0 0.0
        %6662 = vmatpush.msra.mxu0 0.0
        %6663 = vmatpush.msra.mxu0 0.0
        %6664 = vmatpush.msra.mxu0 0.0
        %6665 = vmatpush.msra.mxu0 0.0
        %6666 = vmatpush.msra.mxu0 %v6487
        %6667 = vmatpush.msra.mxu0 %v6478
        %6668 = vmatmul.f32.gmra.mxu0 %v6509
        %v6669 = vpop.f32.mrf.mxu0
        %v6670 = vadd.f32 0.0, %v6669
        %6671 = vmatmul.f32.gmra.mxu0 %v6512
        %v6672 = vpop.f32.mrf.mxu0
        %v6673 = vadd.f32 0.0, %v6672
        %6674 = vdwg.mxu0
        %6675 = vmatpush.msra.mxu0 0.0
        %6676 = vmatpush.msra.mxu0 0.0
        %6677 = vmatpush.msra.mxu0 0.0
        %6678 = vmatpush.msra.mxu0 0.0
        %6679 = vmatpush.msra.mxu0 0.0
        %6680 = vmatpush.msra.mxu0 0.0
        %6681 = vmatpush.msra.mxu0 0.0
        %6682 = vmatpush.msra.mxu0 0.0
        %6683 = vmatpush.msra.mxu0 0.0
        %6684 = vmatpush.msra.mxu0 0.0
        %6685 = vmatpush.msra.mxu0 0.0
        %6686 = vmatpush.msra.mxu0 0.0
        %6687 = vmatpush.msra.mxu0 0.0
        %6688 = vmatpush.msra.mxu0 0.0
        %6689 = vmatpush.msra.mxu0 %v6488
        %6690 = vmatpush.msra.mxu0 %v6479
        %6691 = vmatmul.f32.gmra.mxu0 %v6509
        %v6692 = vpop.f32.mrf.mxu0
        %v6693 = vadd.f32 0.0, %v6692
        %6694 = vmatmul.f32.gmra.mxu0 %v6512
        %v6695 = vpop.f32.mrf.mxu0
        %v6696 = vadd.f32 0.0, %v6695
        %6697 = vdwg.mxu0
        %6698 = vmatpush.msra.mxu0 0.0
        %6699 = vmatpush.msra.mxu0 0.0
        %6700 = vmatpush.msra.mxu0 0.0
        %6701 = vmatpush.msra.mxu0 0.0
        %6702 = vmatpush.msra.mxu0 0.0
        %6703 = vmatpush.msra.mxu0 0.0
        %6704 = vmatpush.msra.mxu0 0.0
        %6705 = vmatpush.msra.mxu0 0.0
        %6706 = vmatpush.msra.mxu0 0.0
        %6707 = vmatpush.msra.mxu0 0.0
        %6708 = vmatpush.msra.mxu0 0.0
        %6709 = vmatpush.msra.mxu0 0.0
        %6710 = vmatpush.msra.mxu0 0.0
        %6711 = vmatpush.msra.mxu0 0.0
        %6712 = vmatpush.msra.mxu0 %v6489
        %6713 = vmatpush.msra.mxu0 %v6480
        %6714 = vmatmul.f32.gmra.mxu0 %v6509
        %v6715 = vpop.f32.mrf.mxu0
        %v6716 = vadd.f32 0.0, %v6715
        %6717 = vmatmul.f32.gmra.mxu0 %v6512
        %v6718 = vpop.f32.mrf.mxu0
        %v6719 = vadd.f32 0.0, %v6718
        %6720 = vdwg.mxu0
        %v6721 = vadd.f32 %v6240, %v6532
        %v6722 = vadd.f32 %v6263, %v6555
        %v6723 = vadd.f32 %v6286, %v6578
        %v6724 = vadd.f32 %v6309, %v6601
        %v6725 = vadd.f32 %v6332, %v6624
        %v6726 = vadd.f32 %v6355, %v6647
        %v6727 = vadd.f32 %v6378, %v6670
        %v6728 = vadd.f32 %v6401, %v6693
        %v6729 = vadd.f32 %v6424, %v6716
        %v6730 = vadd.f32 %v6243, %v6535
        %v6731 = vadd.f32 %v6266, %v6558
        %v6732 = vadd.f32 %v6289, %v6581
        %v6733 = vadd.f32 %v6312, %v6604
        %v6734 = vadd.f32 %v6335, %v6627
        %v6735 = vadd.f32 %v6358, %v6650
        %v6736 = vadd.f32 %v6381, %v6673
        %v6737 = vadd.f32 %v6404, %v6696
        %v6738 = vadd.f32 %v6427, %v6719
        %s6739 = scalar_lea.vmem %s4, 80
        %v6740 = vld [vmem:[%s6739] sm:$0xff]
        %v6741 = vld [vmem:[%s6739 + $0x8] sm:$0xff]
        %6743 = vset.pattern.permute.xlu0 0
        %6744 = vperm.xlu0 %6743, %v6740
        %v6745 = vpop.permute.xlu0 %6744
        %6748 = vset.pattern.permute.xlu0 0
        %6749 = vperm.xlu0 %6748, %v6741
        %v6750 = vpop.permute.xlu0 %6749
        %v6752 = vadd.f32 %v6721, %v6745
        %v6753 = vadd.f32 %v6722, %v6745
        %v6754 = vadd.f32 %v6723, %v6745
        %v6755 = vadd.f32 %v6724, %v6745
        %v6756 = vadd.f32 %v6725, %v6745
        %v6757 = vadd.f32 %v6726, %v6745
        %v6758 = vadd.f32 %v6727, %v6745
        %v6759 = vadd.f32 %v6728, %v6745
        %v6760 = vadd.f32 %v6729, %v6745
        %v6761 = vadd.f32 %v6730, %v6750
        %v6762 = vadd.f32 %v6731, %v6750
        %v6763 = vadd.f32 %v6732, %v6750
        %v6764 = vadd.f32 %v6733, %v6750
        %v6765 = vadd.f32 %v6734, %v6750
        %v6766 = vadd.f32 %v6735, %v6750
        %v6767 = vadd.f32 %v6736, %v6750
        %v6768 = vadd.f32 %v6737, %v6750
        %v6769 = vadd.f32 %v6738, %v6750
        %6788 = vrot.lane.b32.xlu0 %v6752, 18
        %v6789 = vpop.permute.xlu0 %6788
        %6790 = vrot.lane.b32.xlu0 %v6753, 18
        %v6791 = vpop.permute.xlu0 %6790
        %6792 = vrot.lane.b32.xlu0 %v6754, 18
        %v6793 = vpop.permute.xlu0 %6792
        %6794 = vrot.lane.b32.xlu0 %v6755, 18
        %v6795 = vpop.permute.xlu0 %6794
        %6796 = vrot.lane.b32.xlu0 %v6756, 18
        %v6797 = vpop.permute.xlu0 %6796
        %6798 = vrot.lane.b32.xlu0 %v6757, 18
        %v6799 = vpop.permute.xlu0 %6798
        %6800 = vrot.lane.b32.xlu0 %v6758, 18
        %v6801 = vpop.permute.xlu0 %6800
        %6802 = vrot.lane.b32.xlu0 %v6759, 18
        %v6803 = vpop.permute.xlu0 %6802
        %6804 = vrot.lane.b32.xlu0 %v6760, 18
        %v6805 = vpop.permute.xlu0 %6804
        %6806 = vrot.lane.b32.xlu0 %v6761, 18
        %v6807 = vpop.permute.xlu0 %6806
        %6808 = vrot.lane.b32.xlu0 %v6762, 18
        %v6809 = vpop.permute.xlu0 %6808
        %6810 = vrot.lane.b32.xlu0 %v6763, 18
        %v6811 = vpop.permute.xlu0 %6810
        %6812 = vrot.lane.b32.xlu0 %v6764, 18
        %v6813 = vpop.permute.xlu0 %6812
        %6814 = vrot.lane.b32.xlu0 %v6765, 18
        %v6815 = vpop.permute.xlu0 %6814
        %6816 = vrot.lane.b32.xlu0 %v6766, 18
        %v6817 = vpop.permute.xlu0 %6816
        %6818 = vrot.lane.b32.xlu0 %v6767, 18
        %v6819 = vpop.permute.xlu0 %6818
        %6820 = vrot.lane.b32.xlu0 %v6768, 18
        %v6821 = vpop.permute.xlu0 %6820
        %6822 = vrot.lane.b32.xlu0 %v6769, 18
        %v6823 = vpop.permute.xlu0 %6822
        %vm6824 = vcmask 146432
        %v6825 = vsel %vm6824, %v6789, %v6791
        %v6826 = vsel %vm6824, %v6791, %v6793
        %v6827 = vsel %vm6824, %v6793, %v6795
        %v6828 = vsel %vm6824, %v6795, %v6797
        %v6829 = vsel %vm6824, %v6797, %v6799
        %v6830 = vsel %vm6824, %v6799, %v6801
        %v6831 = vsel %vm6824, %v6801, %v6803
        %v6832 = vsel %vm6824, %v6803, %v6805
        %v6833 = vsel %vm6824, %v6807, %v6809
        %v6834 = vsel %vm6824, %v6809, %v6811
        %v6835 = vsel %vm6824, %v6811, %v6813
        %v6836 = vsel %vm6824, %v6813, %v6815
        %v6837 = vsel %vm6824, %v6815, %v6817
        %v6838 = vsel %vm6824, %v6817, %v6819
        %v6839 = vsel %vm6824, %v6819, %v6821
        %v6840 = vsel %vm6824, %v6821, %v6823
        %v6857 = vadd.f32 %v3645, %v6825
        %v6858 = vadd.f32 %v3646, %v6826
        %v6859 = vadd.f32 %v3647, %v6827
        %v6860 = vadd.f32 %v3648, %v6828
        %v6861 = vadd.f32 %v3649, %v6829
        %v6862 = vadd.f32 %v3650, %v6830
        %v6863 = vadd.f32 %v3651, %v6831
        %v6864 = vadd.f32 %v3652, %v6832
        %v6865 = vadd.f32 %v3655, %v6833
        %v6866 = vadd.f32 %v3656, %v6834
        %v6867 = vadd.f32 %v3657, %v6835
        %v6868 = vadd.f32 %v3658, %v6836
        %v6869 = vadd.f32 %v3659, %v6837
        %v6870 = vadd.f32 %v3660, %v6838
        %v6871 = vadd.f32 %v3661, %v6839
        %v6872 = vadd.f32 %v3662, %v6840
        %6873 = vst [vmem:[%s390] sm:$0xff] %v6857
        %6874 = vst [vmem:[%s390 + $0x8] sm:$0xff] %v6858
        %6875 = vst [vmem:[%s390 + $0x10] sm:$0xff] %v6859
        %6876 = vst [vmem:[%s390 + $0x18] sm:$0xff] %v6860
        %6877 = vst [vmem:[%s390 + $0x20] sm:$0xff] %v6861
        %6878 = vst [vmem:[%s390 + $0x28] sm:$0xff] %v6862
        %6879 = vst [vmem:[%s390 + $0x30] sm:$0xff] %v6863
        %6880 = vst [vmem:[%s390 + $0x38] sm:$0xff] %v6864
        %6881 = vst [vmem:[%s390 + $0x40] sm:$0xff] %v6865
        %6882 = vst [vmem:[%s390 + $0x48] sm:$0xff] %v6866
        %6883 = vst [vmem:[%s390 + $0x50] sm:$0xff] %v6867
        %6884 = vst [vmem:[%s390 + $0x58] sm:$0xff] %v6868
        %6885 = vst [vmem:[%s390 + $0x60] sm:$0xff] %v6869
        %6886 = vst [vmem:[%s390 + $0x68] sm:$0xff] %v6870
        %6887 = vst [vmem:[%s390 + $0x70] sm:$0xff] %v6871
        %6888 = vst [vmem:[%s390 + $0x78] sm:$0xff] %v6872
        %s6889 = sand.u32 %s190, 1
        %s6890 = scalar_lea.sflag [#allocation4], %s6889
        %s6891 = sand.u32 %s190, 1
        %s6892 = smul.addr %s6891, 128
        %s6893 = scalar_lea.vmem [#allocation10], %s6892
        // Predicated region
        $region57: #{tpu_custom_call.1} parent=39 // pred_check
          %p6894 = pneg %p200
        $region58: #{tpu_custom_call.1} parent=39 // pred_check_branch
          %6896 = sbr.rel (%p6894) target = $region60
        $region59: #{tpu_custom_call.1} parent=39 // pred_region
          %s6897 = smul.u32 8, %s31
          %6899 = vsyncadd %s6890, 0
          %s6900 = smul.addr %s30, 64
          %s6901 = sadd.s32 %s6897, %s6900
          %s6902 = smul.addr %s6901, 8
          %s6903 = scalar_lea.hbm %s5, %s6902
          %s6904 = sshll.u32 %s6893, 4
          %s6905 = int_to_ptr.vmem [resolvable:$true] %s6904
          %s6906 = sshll.u32 %s6903, 4
          %s6907 = int_to_ptr.hbm [resolvable:$true] %s6906
          %6912 = dma.vmem_to_hbm [thread:$0]  %s6905, 2048, %s6907, %s6890, 1024, 4096, 64
        $region60: #{tpu_custom_call.1} parent=39 // pred_fallthru
          _
      $region40: #{tpu_custom_call.1} parent=5 // pred_fallthru
        _
      %p6913 = scmp.le.s32.totalorder 2, %s21
      // Predicated region
      $region61: #{tpu_custom_call.1} parent=5 // pred_check
        %p6914 = pneg %p6913
      $region62: #{tpu_custom_call.1} parent=5 // pred_check_branch
        %6916 = sbr.rel (%p6914) target = $region64
      $region63: #{tpu_custom_call.1} parent=5 // pred_region
        %s6917 = ssub.s32 %s21, 2
        // Predicated region
        $region65: #{tpu_custom_call.1} parent=63 // pred_check
          %p6918 = pneg %p206
        $region66: #{tpu_custom_call.1} parent=63 // pred_check_branch
          %6920 = sbr.rel (%p6918) target = $region68
        $region67: #{tpu_custom_call.1} parent=63 // pred_region
          %s6921 = sand.u32 %s191, 1
          %s6922 = scalar_lea.sflag [#allocation4], %s6921
          %s6923 = sand.u32 %s191, 1
          %s6924 = smul.addr %s6923, 128
          %s6925 = scalar_lea.vmem [#allocation10], %s6924
          %6927 = dma.done %s6922, 2048
        $region68: #{tpu_custom_call.1} parent=63 // pred_fallthru
          _
      $region64: #{tpu_custom_call.1} parent=5 // pred_fallthru
        _
    $region6: #{tpu_custom_call.1} parent=1 // loop_footer
      %s25 = sadd.s32 1, %s21
    $region7: #{tpu_custom_call.1} parent=1 // loop_footer_branch
      %20 = sbr.rel target = $region3
    $region8: #{tpu_custom_call.1} parent=1 // loop_exit
      _
    %6928 = vsyncpa [#allocation3], 1
    %s6929 = scalar_lea.sflag [#allocation3], 1
    %6930 = vsyncpa %s6929, 1
    %6931 = vsyncpa [#allocation6], 1
    %s6932 = scalar_lea.sflag [#allocation6], 1
    %6933 = vsyncpa %s6932, 1
    %6934 = vsyncpa [#allocation9], 1
    %6935 = vsyncpa [#allocation4], 1
    %s6936 = scalar_lea.sflag [#allocation4], 1
    %6937 = vsyncpa %s6936, 1

</llo_original>
